<compile_context>
chip_gen: v6e
topology: v6e:2x2x1
jax: 0.10.0
libtpu: 0.0.40
codegen_flags: <defaults>
</compile_context>

<pallas_src>
import numpy as np
import jax
import jax.numpy as jnp
from jax import lax
from jax.experimental import pallas as pl
from jax.experimental.pallas import tpu as pltpu


def _round_up(n, m):
    return ((n + m - 1) // m) * m


# ---------------------------------------------------------------------------
# Pallas kernels
# ---------------------------------------------------------------------------
def _pool3(act, sel_ref):
    """maxpool1d(kernel=3, stride=3, floor) over the length (lane) dim.

    act:     (C, Lc) activations
    sel_ref: (Lc - 2, Lp) one-hot, sel[l, j] = [l == 3j]

    Window max of 3 lane-shifted slices (VPU) + a single gather matmul.
    """
    lc = act.shape[1]
    m = jnp.maximum(jnp.maximum(act[:, 0:lc - 2], act[:, 1:lc - 1]), act[:, 2:lc])
    return jnp.dot(m, sel_ref[...], preferred_element_type=jnp.float32)


def _conv_stage(h, w_ref, shift_ref, sel_ref):
    """conv1d(k=3, VALID) with BN scale pre-folded into w, + shift + ReLU + pool.

    h:         (Cin, Lin)
    w_ref:     (Cout, 3*Cin)  merged-tap weight, column index m = k*Cin + c
    shift_ref: (Cout, 1)      folded BN shift (conv bias folded in)
    sel_ref:   (Lconv - 2, Lpool)
    """
    lc = h.shape[1] - 2
    # im2col (depth 3): one matmul per stage instead of 3 accumulated ones.
    xcat = jnp.concatenate([h[:, 0:lc], h[:, 1:lc + 1], h[:, 2:lc + 2]], axis=0)
    acc = jnp.dot(w_ref[...], xcat, preferred_element_type=jnp.float32)
    act = jnp.maximum(acc + shift_ref[...], 0.0)
    return _pool3(act, sel_ref)


def conv_stack_kernel(x_ref,
                      w1_ref, t1_ref, sel1_ref,
                      w2_ref, t2_ref, sel2_ref,
                      w3_ref, t3_ref, sel3_ref,
                      o_ref):
    bt = x_ref.shape[0]       # batch tile (static)
    lin = x_ref.shape[1]
    lc1 = lin - 2

    # Static unrolled loop over the batch tile: the grid-step overhead and the
    # (weights + sel) residency are amortized over `bt` samples.  Per-sample
    # compute stays 2-D (channels on sublanes, length on lanes).
    for b in range(bt):
        x = x_ref[pl.ds(b, 1), :]                       # (1, L)
        # stage 1 (Cin == 1): K=3 contraction done on the VPU via broadcast
        # multiplies -- cheaper than a skinny K=3 MXU matmul.
        acc = w1_ref[0] * x[:, 0:lc1]                   # (16,1)*(1,Lc1)->(16,Lc1)
        acc = acc + w1_ref[1] * x[:, 1:lc1 + 1]
        acc = acc + w1_ref[2] * x[:, 2:lc1 + 2]
        h = _pool3(jnp.maximum(acc + t1_ref[...], 0.0), sel1_ref)   # (16, 166)
        h = _conv_stage(h, w2_ref, t2_ref, sel2_ref)                # (32, 54)
        h = _conv_stage(h, w3_ref, t3_ref, sel3_ref)                # (64, 17)
        o_ref[b] = h


def fc_kernel(x_ref, w1_ref, b1_ref, w2_ref, b2_ref, w3_ref, b3_ref, o_ref):
    # Dropout layers are identity in eval mode; the trailing ReLU matches the
    # reference nn.Sequential.
    h = jnp.maximum(
        jnp.dot(x_ref[...], w1_ref[...], preferred_element_type=jnp.float32)
        + b1_ref[...], 0.0)
    h = jnp.maximum(
        jnp.dot(h, w2_ref[...], preferred_element_type=jnp.float32)
        + b2_ref[...], 0.0)
    h = jnp.maximum(
        jnp.dot(h, w3_ref[...], preferred_element_type=jnp.float32)
        + b3_ref[...], 0.0)
    o_ref[...] = h


# ---------------------------------------------------------------------------
# Wrapper
# ---------------------------------------------------------------------------
def onedcnn_forward(x, p, block_b=None):
    B, L = x.shape

    # conv/pool length bookkeeping (k=3 VALID conv, k=3 s=3 floor maxpool)
    lens, cur = [], L
    for _ in range(3):
        lc = cur - 2
        lp = lc // 3
        lens.append((lc, lp))
        cur = lp
    (_, _), (_, _), (_, lp3) = lens

    if block_b is None:
        # Fill at least one sublane group; cap the tile so the unrolled inner
        # loop stays small and per-step VMEM stays far below the 32 MiB default
        # scoped limit (important on v7x's 64 MiB physical VMEM).  Larger
        # batches get multiple "parallel" grid tiles -> both v7x TCs busy.
        block_b = min(32, _round_up(B, 8))
    Bp = _round_up(B, block_b)
    if Bp != B:
        x = jnp.concatenate([x, jnp.zeros((Bp - B, L), x.dtype)], axis=0)
    nb = Bp // block_b

    def const_spec(shape):
        return pl.BlockSpec(shape, lambda i, _r=len(shape): (0,) * _r)

    conv_out = pl.pallas_call(
        conv_stack_kernel,
        out_shape=jax.ShapeDtypeStruct((Bp, 64, lp3), jnp.float32),
        grid=(nb,),
        in_specs=[
            pl.BlockSpec((block_b, L), lambda i: (i, 0)),
            const_spec(p["w1"].shape), const_spec(p["shift1"].shape), const_spec(p["sel1"].shape),
            const_spec(p["w2"].shape), const_spec(p["shift2"].shape), const_spec(p["sel2"].shape),
            const_spec(p["w3"].shape), const_spec(p["shift3"].shape), const_spec(p["sel3"].shape),
        ],
        out_specs=pl.BlockSpec((block_b, 64, lp3), lambda i: (i, 0, 0)),
        compiler_params=pltpu.CompilerParams(dimension_semantics=("parallel",)),
    )(x,
      p["w1"], p["shift1"], p["sel1"],
      p["w2"], p["shift2"], p["sel2"],
      p["w3"], p["shift3"], p["sel3"])

    # Row-major (Bp, 64, 17) -> (Bp, 64*17) matches torch's x.view(B, -1);
    # contiguous reshape => metadata-only in XLA, no extra copy.
    xf = conv_out.reshape(Bp, 64 * lp3)

    out = pl.pallas_call(
        fc_kernel,
        out_shape=jax.ShapeDtypeStruct((Bp, 2), jnp.float32),
        grid=(nb,),
        in_specs=[
            pl.BlockSpec((block_b, 64 * lp3), lambda i: (i, 0)),
            const_spec(p["fw1"].shape), const_spec(p["fb1"].shape),
            const_spec(p["fw2"].shape), const_spec(p["fb2"].shape),
            const_spec(p["fw3"].shape), const_spec(p["fb3"].shape),
        ],
        out_specs=pl.BlockSpec((block_b, 2), lambda i: (i, 0)),
        compiler_params=pltpu.CompilerParams(dimension_semantics=("parallel",)),
    )(xf, p["fw1"], p["fb1"], p["fw2"], p["fb2"], p["fw3"], p["fb3"])
    return out[:B]


# ---------------------------------------------------------------------------
# Deterministic parameter construction + pure-JAX reference
# ---------------------------------------------------------------------------
def make_pool_select(lconv, lpool):
    # Applied to the window-max array of length lconv - 2:
    # sel[l, j] = 1 iff l == 3*j  ("take every 3rd column").
    l = np.arange(lconv - 2)[:, None]
    j = np.arange(lpool)[None, :]
    return jnp.asarray((l == 3 * j).astype(np.float32))


def build_params(key):
    ks = list(jax.random.split(key, 40))
    it = iter(ks)

    def nrm(shape, scale):
        return scale * jax.random.normal(next(it), shape, jnp.float32)

    raw = {}
    for i, (co, ci) in enumerate([(16, 1), (32, 16), (64, 32)], start=1):
        raw[f"cw{i}"] = nrm((co, ci, 3), 0.3)
        raw[f"cb{i}"] = nrm((co,), 0.1)
        raw[f"gamma{i}"] = 1.0 + nrm((co,), 0.1)
        raw[f"beta{i}"] = nrm((co,), 0.1)
        raw[f"mean{i}"] = nrm((co,), 0.05)
        raw[f"var{i}"] = 0.5 + jax.random.uniform(next(it), (co,), jnp.float32)
    raw["fw1"] = nrm((64 * 17, 64), 0.05)
    raw["fb1"] = nrm((64,), 0.1)
    raw["fw2"] = nrm((64, 32), 0.1)
    raw["fb2"] = nrm((32,), 0.1)
    raw["fw3"] = nrm((32, 2), 0.1)
    raw["fb3"] = nrm((2,), 0.1)
    return raw


def fold_params(raw, L):
    """Fold BN (eval mode) into the conv weights/shift + merge the 3 taps."""
    eps = 1e-5
    p = {}
    cur = L
    for i, (co, ci) in enumerate([(16, 1), (32, 16), (64, 32)], start=1):
        lc = cur - 2
        lp = lc // 3
        cur = lp
        scale = raw[f"gamma{i}"] / jnp.sqrt(raw[f"var{i}"] + eps)            # (co,)
        shift = raw[f"beta{i}"] + scale * (raw[f"cb{i}"] - raw[f"mean{i}"])  # (co,)
        wscaled = raw[f"cw{i}"] * scale[:, None, None]                       # (co, ci, 3)
        if i == 1:
            # tap-major (3, co, 1) for the stage-1 VPU broadcast path
            p["w1"] = jnp.transpose(wscaled, (2, 0, 1))
        else:
            # merged-tap (co, 3*ci), column index m = k*ci + c
            p[f"w{i}"] = jnp.transpose(wscaled, (0, 2, 1)).reshape(co, 3 * ci)
        p[f"shift{i}"] = shift[:, None]
        p[f"sel{i}"] = make_pool_select(lc, lp)
    p["fw1"] = raw["fw1"]; p["fb1"] = raw["fb1"][None, :]
    p["fw2"] = raw["fw2"]; p["fb2"] = raw["fb2"][None, :]
    p["fw3"] = raw["fw3"]; p["fb3"] = raw["fb3"][None, :]
    return p


def ref_forward(x, raw):
    eps = 1e-5
    h = x[:, None, :]                                       # (B, 1, L)
    for i in range(1, 4):
        h = lax.conv_general_dilated(h, raw[f"cw{i}"], (1,), "VALID",
                                     dimension_numbers=("NCH", "OIH", "NCH"))
        h = h + raw[f"cb{i}"][None, :, None]
        h = ((h - raw[f"mean{i}"][None, :, None])
             / jnp.sqrt(raw[f"var{i}"][None, :, None] + eps)
             * raw[f"gamma{i}"][None, :, None] + raw[f"beta{i}"][None, :, None])
        h = jnp.maximum(h, 0.0)
        B, C, Lc = h.shape
        lp = Lc // 3
        h = h[:, :, :3 * lp].reshape(B, C, lp, 3).max(axis=-1)
    B = h.shape[0]
    hf = h.reshape(B, -1)
    hf = jnp.maximum(hf @ raw["fw1"] + raw["fb1"], 0.0)
    hf = jnp.maximum(hf @ raw["fw2"] + raw["fb2"], 0.0)
    hf = jnp.maximum(hf @ raw["fw3"] + raw["fb3"], 0.0)
    return hf


# ---------------------------------------------------------------------------
if __name__ == "__main__":
    key = jax.random.PRNGKey(0)
    kx, kp = jax.random.split(key)

    # L=500: 500 -conv-> 498 -pool-> 166 -conv-> 164 -pool-> 54 -conv-> 52 -pool-> 17
    # so the flattened size is 64*17, matching nn.Linear(64*17, 64).
    B, L = 2, 500
    x = jax.random.normal(kx, (B, L), jnp.float32)

    raw = build_params(kp)
    params = fold_params(raw, L)

    out = jax.jit(onedcnn_forward)(x, params)
    out = jax.block_until_ready(out)

    ref = ref_forward(x, raw)
    np.testing.assert_allclose(np.asarray(out), np.asarray(ref), rtol=5e-2, atol=5e-2)
    assert out.shape == (B, 2)
    print("KERNEL_OK")
</pallas_src>

<mosaic_0001>
module attributes {stable_mosaic.version = 11 : i64} {
  func.func @fc_kernel(%arg0: i32, %arg1: memref<8x1088xf32, #tpu.memory_space<vmem>>, %arg2: memref<1088x64xf32, #tpu.memory_space<vmem>>, %arg3: memref<1x64xf32, #tpu.memory_space<vmem>>, %arg4: memref<64x32xf32, #tpu.memory_space<vmem>>, %arg5: memref<1x32xf32, #tpu.memory_space<vmem>>, %arg6: memref<32x2xf32, #tpu.memory_space<vmem>>, %arg7: memref<1x2xf32, #tpu.memory_space<vmem>>, %arg8: memref<8x2xf32, #tpu.memory_space<vmem>>) attributes {dimension_semantics = [#tpu.dimension_semantics<parallel>], iteration_bounds = array<i64: 1>, scalar_prefetch = 0 : i64, scratch_operands = 0 : i64, tpu.core_type = #tpu.core_type<tc>, window_params = [{transform_indices = @transform_0, window_bounds = array<i64: 8, 1088>}, {pipeline_mode = #tpu.pipeline_mode<synchronous>, transform_indices = @transform_1, window_bounds = array<i64: 1088, 64>}, {pipeline_mode = #tpu.pipeline_mode<synchronous>, transform_indices = @transform_2, window_bounds = array<i64: 1, 64>}, {pipeline_mode = #tpu.pipeline_mode<synchronous>, transform_indices = @transform_3, window_bounds = array<i64: 64, 32>}, {pipeline_mode = #tpu.pipeline_mode<synchronous>, transform_indices = @transform_4, window_bounds = array<i64: 1, 32>}, {pipeline_mode = #tpu.pipeline_mode<synchronous>, transform_indices = @transform_5, window_bounds = array<i64: 32, 2>}, {pipeline_mode = #tpu.pipeline_mode<synchronous>, transform_indices = @transform_6, window_bounds = array<i64: 1, 2>}, {transform_indices = @transform_7, window_bounds = array<i64: 8, 2>}]} {
    %c0 = arith.constant 0 : index
    %c0_0 = arith.constant 0 : index
    %0 = vector.load %arg1[%c0, %c0_0] : memref<8x1088xf32, #tpu.memory_space<vmem>>, vector<8x1088xf32>
    %c0_1 = arith.constant 0 : index
    %c0_2 = arith.constant 0 : index
    %1 = vector.load %arg2[%c0_1, %c0_2] : memref<1088x64xf32, #tpu.memory_space<vmem>>, vector<1088x64xf32>
    %cst = arith.constant dense<0.000000e+00> : vector<8x64xf32>
    %2 = tpu.matmul %0, %1, %cst {dimension_numbers = #tpu.dot_dimension_numbers<[1], [0], [0], [1], [0, 0, 1, 1], [], []>} : vector<8x1088xf32>, vector<1088x64xf32>, vector<8x64xf32> -> vector<8x64xf32>
    %c0_3 = arith.constant 0 : index
    %c0_4 = arith.constant 0 : index
    %3 = vector.load %arg3[%c0_3, %c0_4] : memref<1x64xf32, #tpu.memory_space<vmem>>, vector<1x64xf32>
    %4 = vector.broadcast %3 : vector<1x64xf32> to vector<8x64xf32>
    %5 = arith.addf %2, %4 : vector<8x64xf32>
    %cst_5 = arith.constant 0.000000e+00 : f32
    %6 = vector.broadcast %cst_5 : f32 to vector<8x64xf32>
    %7 = arith.maximumf %5, %6 : vector<8x64xf32>
    %c0_6 = arith.constant 0 : index
    %c0_7 = arith.constant 0 : index
    %8 = vector.load %arg4[%c0_6, %c0_7] : memref<64x32xf32, #tpu.memory_space<vmem>>, vector<64x32xf32>
    %cst_8 = arith.constant dense<0.000000e+00> : vector<8x32xf32>
    %9 = tpu.matmul %7, %8, %cst_8 {dimension_numbers = #tpu.dot_dimension_numbers<[1], [0], [0], [1], [0, 0, 1, 1], [], []>} : vector<8x64xf32>, vector<64x32xf32>, vector<8x32xf32> -> vector<8x32xf32>
    %c0_9 = arith.constant 0 : index
    %c0_10 = arith.constant 0 : index
    %10 = vector.load %arg5[%c0_9, %c0_10] : memref<1x32xf32, #tpu.memory_space<vmem>>, vector<1x32xf32>
    %11 = vector.broadcast %10 : vector<1x32xf32> to vector<8x32xf32>
    %12 = arith.addf %9, %11 : vector<8x32xf32>
    %cst_11 = arith.constant 0.000000e+00 : f32
    %13 = vector.broadcast %cst_11 : f32 to vector<8x32xf32>
    %14 = arith.maximumf %12, %13 : vector<8x32xf32>
    %c0_12 = arith.constant 0 : index
    %c0_13 = arith.constant 0 : index
    %15 = vector.load %arg6[%c0_12, %c0_13] : memref<32x2xf32, #tpu.memory_space<vmem>>, vector<32x2xf32>
    %cst_14 = arith.constant dense<0.000000e+00> : vector<8x2xf32>
    %16 = tpu.matmul %14, %15, %cst_14 {dimension_numbers = #tpu.dot_dimension_numbers<[1], [0], [0], [1], [0, 0, 1, 1], [], []>} : vector<8x32xf32>, vector<32x2xf32>, vector<8x2xf32> -> vector<8x2xf32>
    %c0_15 = arith.constant 0 : index
    %c0_16 = arith.constant 0 : index
    %17 = vector.load %arg7[%c0_15, %c0_16] : memref<1x2xf32, #tpu.memory_space<vmem>>, vector<1x2xf32>
    %18 = vector.broadcast %17 : vector<1x2xf32> to vector<8x2xf32>
    %19 = arith.addf %16, %18 : vector<8x2xf32>
    %cst_17 = arith.constant 0.000000e+00 : f32
    %20 = vector.broadcast %cst_17 : f32 to vector<8x2xf32>
    %21 = arith.maximumf %19, %20 : vector<8x2xf32>
    %c0_18 = arith.constant 0 : index
    %c0_19 = arith.constant 0 : index
    %22 = vector.load %arg8[%c0_18, %c0_19] : memref<8x2xf32, #tpu.memory_space<vmem>>, vector<8x2xf32>
    tpu.vector_store %arg8[%c0_18, %c0_19], %21 {strides = array<i32>} : memref<8x2xf32, #tpu.memory_space<vmem>>, vector<8x2xf32>,
    return
  }
  func.func @transform_0(%arg0: i32) -> (i32, i32) {
    %c0_i32 = arith.constant 0 : i32
    %c0_i32_0 = arith.constant 0 : i32
    return %arg0, %c0_i32 : i32, i32
  }
  func.func @transform_1(%arg0: i32) -> (i32, i32) {
    %c0_i32 = arith.constant 0 : i32
    %c0_i32_0 = arith.constant 0 : i32
    %c0_i32_1 = arith.constant 0 : i32
    return %c0_i32, %c0_i32_0 : i32, i32
  }
  func.func @transform_2(%arg0: i32) -> (i32, i32) {
    %c0_i32 = arith.constant 0 : i32
    %c0_i32_0 = arith.constant 0 : i32
    %c0_i32_1 = arith.constant 0 : i32
    return %c0_i32, %c0_i32_0 : i32, i32
  }
  func.func @transform_3(%arg0: i32) -> (i32, i32) {
    %c0_i32 = arith.constant 0 : i32
    %c0_i32_0 = arith.constant 0 : i32
    %c0_i32_1 = arith.constant 0 : i32
    return %c0_i32, %c0_i32_0 : i32, i32
  }
  func.func @transform_4(%arg0: i32) -> (i32, i32) {
    %c0_i32 = arith.constant 0 : i32
    %c0_i32_0 = arith.constant 0 : i32
    %c0_i32_1 = arith.constant 0 : i32
    return %c0_i32, %c0_i32_0 : i32, i32
  }
  func.func @transform_5(%arg0: i32) -> (i32, i32) {
    %c0_i32 = arith.constant 0 : i32
    %c0_i32_0 = arith.constant 0 : i32
    %c0_i32_1 = arith.constant 0 : i32
    return %c0_i32, %c0_i32_0 : i32, i32
  }
  func.func @transform_6(%arg0: i32) -> (i32, i32) {
    %c0_i32 = arith.constant 0 : i32
    %c0_i32_0 = arith.constant 0 : i32
    %c0_i32_1 = arith.constant 0 : i32
    return %c0_i32, %c0_i32_0 : i32, i32
  }
  func.func @transform_7(%arg0: i32) -> (i32, i32) {
    %c0_i32 = arith.constant 0 : i32
    %c0_i32_0 = arith.constant 0 : i32
    return %arg0, %c0_i32 : i32, i32
  }
}

module attributes {stable_mosaic.version = 11 : i64} {
  func.func @conv_stack_kernel(%arg0: i32, %arg1: memref<8x500xf32, #tpu.memory_space<vmem>>, %arg2: memref<3x16x1xf32, #tpu.memory_space<vmem>>, %arg3: memref<16x1xf32, #tpu.memory_space<vmem>>, %arg4: memref<496x166xf32, #tpu.memory_space<vmem>>, %arg5: memref<32x48xf32, #tpu.memory_space<vmem>>, %arg6: memref<32x1xf32, #tpu.memory_space<vmem>>, %arg7: memref<162x54xf32, #tpu.memory_space<vmem>>, %arg8: memref<64x96xf32, #tpu.memory_space<vmem>>, %arg9: memref<64x1xf32, #tpu.memory_space<vmem>>, %arg10: memref<50x17xf32, #tpu.memory_space<vmem>>, %arg11: memref<8x64x17xf32, #tpu.memory_space<vmem>>) attributes {dimension_semantics = [#tpu.dimension_semantics<parallel>], iteration_bounds = array<i64: 1>, scalar_prefetch = 0 : i64, scratch_operands = 0 : i64, tpu.core_type = #tpu.core_type<tc>, window_params = [{transform_indices = @transform_0, window_bounds = array<i64: 8, 500>}, {pipeline_mode = #tpu.pipeline_mode<synchronous>, transform_indices = @transform_1, window_bounds = array<i64: 3, 16, 1>}, {pipeline_mode = #tpu.pipeline_mode<synchronous>, transform_indices = @transform_2, window_bounds = array<i64: 16, 1>}, {pipeline_mode = #tpu.pipeline_mode<synchronous>, transform_indices = @transform_3, window_bounds = array<i64: 496, 166>}, {pipeline_mode = #tpu.pipeline_mode<synchronous>, transform_indices = @transform_4, window_bounds = array<i64: 32, 48>}, {pipeline_mode = #tpu.pipeline_mode<synchronous>, transform_indices = @transform_5, window_bounds = array<i64: 32, 1>}, {pipeline_mode = #tpu.pipeline_mode<synchronous>, transform_indices = @transform_6, window_bounds = array<i64: 162, 54>}, {pipeline_mode = #tpu.pipeline_mode<synchronous>, transform_indices = @transform_7, window_bounds = array<i64: 64, 96>}, {pipeline_mode = #tpu.pipeline_mode<synchronous>, transform_indices = @transform_8, window_bounds = array<i64: 64, 1>}, {pipeline_mode = #tpu.pipeline_mode<synchronous>, transform_indices = @transform_9, window_bounds = array<i64: 50, 17>}, {transform_indices = @transform_10, window_bounds = array<i64: 8, 64, 17>}]} {
    %c0 = arith.constant 0 : index
    %c0_0 = arith.constant 0 : index
    %0 = vector.load %arg1[%c0, %c0_0] : memref<8x500xf32, #tpu.memory_space<vmem>>, vector<1x500xf32>
    %c0_1 = arith.constant 0 : index
    %c0_2 = arith.constant 0 : index
    %c0_3 = arith.constant 0 : index
    %1 = vector.load %arg2[%c0_1, %c0_2, %c0_3] : memref<3x16x1xf32, #tpu.memory_space<vmem>>, vector<1x16x1xf32>
    %2 = vector.shape_cast %1 : vector<1x16x1xf32> to vector<16x1xf32>
    %3 = vector.extract_strided_slice %0 {offsets = [0, 0], sizes = [1, 498], strides = [1, 1]} : vector<1x500xf32> to vector<1x498xf32>
    %4 = vector.broadcast %2 : vector<16x1xf32> to vector<16x498xf32>
    %5 = vector.broadcast %3 : vector<1x498xf32> to vector<16x498xf32>
    %6 = arith.mulf %4, %5 : vector<16x498xf32>
    %c1 = arith.constant 1 : index
    %c0_4 = arith.constant 0 : index
    %c0_5 = arith.constant 0 : index
    %7 = vector.load %arg2[%c1, %c0_4, %c0_5] : memref<3x16x1xf32, #tpu.memory_space<vmem>>, vector<1x16x1xf32>
    %8 = vector.shape_cast %7 : vector<1x16x1xf32> to vector<16x1xf32>
    %9 = vector.extract_strided_slice %0 {offsets = [0, 1], sizes = [1, 498], strides = [1, 1]} : vector<1x500xf32> to vector<1x498xf32>
    %10 = vector.broadcast %8 : vector<16x1xf32> to vector<16x498xf32>
    %11 = vector.broadcast %9 : vector<1x498xf32> to vector<16x498xf32>
    %12 = arith.mulf %10, %11 : vector<16x498xf32>
    %13 = arith.addf %6, %12 : vector<16x498xf32>
    %c2 = arith.constant 2 : index
    %c0_6 = arith.constant 0 : index
    %c0_7 = arith.constant 0 : index
    %14 = vector.load %arg2[%c2, %c0_6, %c0_7] : memref<3x16x1xf32, #tpu.memory_space<vmem>>, vector<1x16x1xf32>
    %15 = vector.shape_cast %14 : vector<1x16x1xf32> to vector<16x1xf32>
    %16 = vector.extract_strided_slice %0 {offsets = [0, 2], sizes = [1, 498], strides = [1, 1]} : vector<1x500xf32> to vector<1x498xf32>
    %17 = vector.broadcast %15 : vector<16x1xf32> to vector<16x498xf32>
    %18 = vector.broadcast %16 : vector<1x498xf32> to vector<16x498xf32>
    %19 = arith.mulf %17, %18 : vector<16x498xf32>
    %20 = arith.addf %13, %19 : vector<16x498xf32>
    %c0_8 = arith.constant 0 : index
    %c0_9 = arith.constant 0 : index
    %21 = vector.load %arg3[%c0_8, %c0_9] : memref<16x1xf32, #tpu.memory_space<vmem>>, vector<16x1xf32>
    %22 = vector.broadcast %21 : vector<16x1xf32> to vector<16x498xf32>
    %23 = arith.addf %20, %22 : vector<16x498xf32>
    %cst = arith.constant 0.000000e+00 : f32
    %24 = vector.broadcast %cst : f32 to vector<16x498xf32>
    %25 = arith.maximumf %23, %24 : vector<16x498xf32>
    %26 = vector.extract_strided_slice %25 {offsets = [0, 0], sizes = [16, 496], strides = [1, 1]} : vector<16x498xf32> to vector<16x496xf32>
    %27 = vector.extract_strided_slice %25 {offsets = [0, 1], sizes = [16, 496], strides = [1, 1]} : vector<16x498xf32> to vector<16x496xf32>
    %28 = arith.maximumf %26, %27 : vector<16x496xf32>
    %29 = vector.extract_strided_slice %25 {offsets = [0, 2], sizes = [16, 496], strides = [1, 1]} : vector<16x498xf32> to vector<16x496xf32>
    %30 = arith.maximumf %28, %29 : vector<16x496xf32>
    %c0_10 = arith.constant 0 : index
    %c0_11 = arith.constant 0 : index
    %31 = vector.load %arg4[%c0_10, %c0_11] : memref<496x166xf32, #tpu.memory_space<vmem>>, vector<496x166xf32>
    %cst_12 = arith.constant dense<0.000000e+00> : vector<16x166xf32>
    %32 = tpu.matmul %30, %31, %cst_12 {dimension_numbers = #tpu.dot_dimension_numbers<[1], [0], [0], [1], [0, 0, 1, 1], [], []>} : vector<16x496xf32>, vector<496x166xf32>, vector<16x166xf32> -> vector<16x166xf32>
    %33 = vector.extract_strided_slice %32 {offsets = [0, 0], sizes = [16, 164], strides = [1, 1]} : vector<16x166xf32> to vector<16x164xf32>
    %34 = vector.extract_strided_slice %32 {offsets = [0, 1], sizes = [16, 164], strides = [1, 1]} : vector<16x166xf32> to vector<16x164xf32>
    %35 = vector.extract_strided_slice %32 {offsets = [0, 2], sizes = [16, 164], strides = [1, 1]} : vector<16x166xf32> to vector<16x164xf32>
    %36 = tpu.concatenate %33, %34, %35 in 0 : vector<16x164xf32>, vector<16x164xf32>, vector<16x164xf32> -> vector<48x164xf32>
    %c0_13 = arith.constant 0 : index
    %c0_14 = arith.constant 0 : index
    %37 = vector.load %arg5[%c0_13, %c0_14] : memref<32x48xf32, #tpu.memory_space<vmem>>, vector<32x48xf32>
    %cst_15 = arith.constant dense<0.000000e+00> : vector<32x164xf32>
    %38 = tpu.matmul %37, %36, %cst_15 {dimension_numbers = #tpu.dot_dimension_numbers<[1], [0], [0], [1], [0, 0, 1, 1], [], []>} : vector<32x48xf32>, vector<48x164xf32>, vector<32x164xf32> -> vector<32x164xf32>
    %c0_16 = arith.constant 0 : index
    %c0_17 = arith.constant 0 : index
    %39 = vector.load %arg6[%c0_16, %c0_17] : memref<32x1xf32, #tpu.memory_space<vmem>>, vector<32x1xf32>
    %40 = vector.broadcast %39 : vector<32x1xf32> to vector<32x164xf32>
    %41 = arith.addf %38, %40 : vector<32x164xf32>
    %cst_18 = arith.constant 0.000000e+00 : f32
    %42 = vector.broadcast %cst_18 : f32 to vector<32x164xf32>
    %43 = arith.maximumf %41, %42 : vector<32x164xf32>
    %44 = vector.extract_strided_slice %43 {offsets = [0, 0], sizes = [32, 162], strides = [1, 1]} : vector<32x164xf32> to vector<32x162xf32>
    %45 = vector.extract_strided_slice %43 {offsets = [0, 1], sizes = [32, 162], strides = [1, 1]} : vector<32x164xf32> to vector<32x162xf32>
    %46 = arith.maximumf %44, %45 : vector<32x162xf32>
    %47 = vector.extract_strided_slice %43 {offsets = [0, 2], sizes = [32, 162], strides = [1, 1]} : vector<32x164xf32> to vector<32x162xf32>
    %48 = arith.maximumf %46, %47 : vector<32x162xf32>
    %c0_19 = arith.constant 0 : index
    %c0_20 = arith.constant 0 : index
    %49 = vector.load %arg7[%c0_19, %c0_20] : memref<162x54xf32, #tpu.memory_space<vmem>>, vector<162x54xf32>
    %cst_21 = arith.constant dense<0.000000e+00> : vector<32x54xf32>
    %50 = tpu.matmul %48, %49, %cst_21 {dimension_numbers = #tpu.dot_dimension_numbers<[1], [0], [0], [1], [0, 0, 1, 1], [], []>} : vector<32x162xf32>, vector<162x54xf32>, vector<32x54xf32> -> vector<32x54xf32>
    %51 = vector.extract_strided_slice %50 {offsets = [0, 0], sizes = [32, 52], strides = [1, 1]} : vector<32x54xf32> to vector<32x52xf32>
    %52 = vector.extract_strided_slice %50 {offsets = [0, 1], sizes = [32, 52], strides = [1, 1]} : vector<32x54xf32> to vector<32x52xf32>
    %53 = vector.extract_strided_slice %50 {offsets = [0, 2], sizes = [32, 52], strides = [1, 1]} : vector<32x54xf32> to vector<32x52xf32>
    %54 = tpu.concatenate %51, %52, %53 in 0 : vector<32x52xf32>, vector<32x52xf32>, vector<32x52xf32> -> vector<96x52xf32>
    %c0_22 = arith.constant 0 : index
    %c0_23 = arith.constant 0 : index
    %55 = vector.load %arg8[%c0_22, %c0_23] : memref<64x96xf32, #tpu.memory_space<vmem>>, vector<64x96xf32>
    %cst_24 = arith.constant dense<0.000000e+00> : vector<64x52xf32>
    %56 = tpu.matmul %55, %54, %cst_24 {dimension_numbers = #tpu.dot_dimension_numbers<[1], [0], [0], [1], [0, 0, 1, 1], [], []>} : vector<64x96xf32>, vector<96x52xf32>, vector<64x52xf32> -> vector<64x52xf32>
    %c0_25 = arith.constant 0 : index
    %c0_26 = arith.constant 0 : index
    %57 = vector.load %arg9[%c0_25, %c0_26] : memref<64x1xf32, #tpu.memory_space<vmem>>, vector<64x1xf32>
    %58 = vector.broadcast %57 : vector<64x1xf32> to vector<64x52xf32>
    %59 = arith.addf %56, %58 : vector<64x52xf32>
    %cst_27 = arith.constant 0.000000e+00 : f32
    %60 = vector.broadcast %cst_27 : f32 to vector<64x52xf32>
    %61 = arith.maximumf %59, %60 : vector<64x52xf32>
    %62 = vector.extract_strided_slice %61 {offsets = [0, 0], sizes = [64, 50], strides = [1, 1]} : vector<64x52xf32> to vector<64x50xf32>
    %63 = vector.extract_strided_slice %61 {offsets = [0, 1], sizes = [64, 50], strides = [1, 1]} : vector<64x52xf32> to vector<64x50xf32>
    %64 = arith.maximumf %62, %63 : vector<64x50xf32>
    %65 = vector.extract_strided_slice %61 {offsets = [0, 2], sizes = [64, 50], strides = [1, 1]} : vector<64x52xf32> to vector<64x50xf32>
    %66 = arith.maximumf %64, %65 : vector<64x50xf32>
    %c0_28 = arith.constant 0 : index
    %c0_29 = arith.constant 0 : index
    %67 = vector.load %arg10[%c0_28, %c0_29] : memref<50x17xf32, #tpu.memory_space<vmem>>, vector<50x17xf32>
    %cst_30 = arith.constant dense<0.000000e+00> : vector<64x17xf32>
    %68 = tpu.matmul %66, %67, %cst_30 {dimension_numbers = #tpu.dot_dimension_numbers<[1], [0], [0], [1], [0, 0, 1, 1], [], []>} : vector<64x50xf32>, vector<50x17xf32>, vector<64x17xf32> -> vector<64x17xf32>
    %c0_31 = arith.constant 0 : index
    %c0_32 = arith.constant 0 : index
    %c0_33 = arith.constant 0 : index
    %69 = vector.load %arg11[%c0_31, %c0_32, %c0_33] : memref<8x64x17xf32, #tpu.memory_space<vmem>>, vector<1x64x17xf32>
    %70 = vector.shape_cast %69 : vector<1x64x17xf32> to vector<64x17xf32>
    %71 = vector.shape_cast %68 : vector<64x17xf32> to vector<1x64x17xf32>
    tpu.vector_store %arg11[%c0_31, %c0_32, %c0_33], %71 {strides = array<i32>} : memref<8x64x17xf32, #tpu.memory_space<vmem>>, vector<1x64x17xf32>,
    %c1_34 = arith.constant 1 : index
    %c0_35 = arith.constant 0 : index
    %72 = vector.load %arg1[%c1_34, %c0_35] : memref<8x500xf32, #tpu.memory_space<vmem>>, vector<1x500xf32>
    %c0_36 = arith.constant 0 : index
    %c0_37 = arith.constant 0 : index
    %c0_38 = arith.constant 0 : index
    %73 = vector.load %arg2[%c0_36, %c0_37, %c0_38] : memref<3x16x1xf32, #tpu.memory_space<vmem>>, vector<1x16x1xf32>
    %74 = vector.shape_cast %73 : vector<1x16x1xf32> to vector<16x1xf32>
    %75 = vector.extract_strided_slice %72 {offsets = [0, 0], sizes = [1, 498], strides = [1, 1]} : vector<1x500xf32> to vector<1x498xf32>
    %76 = vector.broadcast %74 : vector<16x1xf32> to vector<16x498xf32>
    %77 = vector.broadcast %75 : vector<1x498xf32> to vector<16x498xf32>
    %78 = arith.mulf %76, %77 : vector<16x498xf32>
    %c1_39 = arith.constant 1 : index
    %c0_40 = arith.constant 0 : index
    %c0_41 = arith.constant 0 : index
    %79 = vector.load %arg2[%c1_39, %c0_40, %c0_41] : memref<3x16x1xf32, #tpu.memory_space<vmem>>, vector<1x16x1xf32>
    %80 = vector.shape_cast %79 : vector<1x16x1xf32> to vector<16x1xf32>
    %81 = vector.extract_strided_slice %72 {offsets = [0, 1], sizes = [1, 498], strides = [1, 1]} : vector<1x500xf32> to vector<1x498xf32>
    %82 = vector.broadcast %80 : vector<16x1xf32> to vector<16x498xf32>
    %83 = vector.broadcast %81 : vector<1x498xf32> to vector<16x498xf32>
    %84 = arith.mulf %82, %83 : vector<16x498xf32>
    %85 = arith.addf %78, %84 : vector<16x498xf32>
    %c2_42 = arith.constant 2 : index
    %c0_43 = arith.constant 0 : index
    %c0_44 = arith.constant 0 : index
    %86 = vector.load %arg2[%c2_42, %c0_43, %c0_44] : memref<3x16x1xf32, #tpu.memory_space<vmem>>, vector<1x16x1xf32>
    %87 = vector.shape_cast %86 : vector<1x16x1xf32> to vector<16x1xf32>
    %88 = vector.extract_strided_slice %72 {offsets = [0, 2], sizes = [1, 498], strides = [1, 1]} : vector<1x500xf32> to vector<1x498xf32>
    %89 = vector.broadcast %87 : vector<16x1xf32> to vector<16x498xf32>
    %90 = vector.broadcast %88 : vector<1x498xf32> to vector<16x498xf32>
    %91 = arith.mulf %89, %90 : vector<16x498xf32>
    %92 = arith.addf %85, %91 : vector<16x498xf32>
    %c0_45 = arith.constant 0 : index
    %c0_46 = arith.constant 0 : index
    %93 = vector.load %arg3[%c0_45, %c0_46] : memref<16x1xf32, #tpu.memory_space<vmem>>, vector<16x1xf32>
    %94 = vector.broadcast %93 : vector<16x1xf32> to vector<16x498xf32>
    %95 = arith.addf %92, %94 : vector<16x498xf32>
    %cst_47 = arith.constant 0.000000e+00 : f32
    %96 = vector.broadcast %cst_47 : f32 to vector<16x498xf32>
    %97 = arith.maximumf %95, %96 : vector<16x498xf32>
    %98 = vector.extract_strided_slice %97 {offsets = [0, 0], sizes = [16, 496], strides = [1, 1]} : vector<16x498xf32> to vector<16x496xf32>
    %99 = vector.extract_strided_slice %97 {offsets = [0, 1], sizes = [16, 496], strides = [1, 1]} : vector<16x498xf32> to vector<16x496xf32>
    %100 = arith.maximumf %98, %99 : vector<16x496xf32>
    %101 = vector.extract_strided_slice %97 {offsets = [0, 2], sizes = [16, 496], strides = [1, 1]} : vector<16x498xf32> to vector<16x496xf32>
    %102 = arith.maximumf %100, %101 : vector<16x496xf32>
    %c0_48 = arith.constant 0 : index
    %c0_49 = arith.constant 0 : index
    %103 = vector.load %arg4[%c0_48, %c0_49] : memref<496x166xf32, #tpu.memory_space<vmem>>, vector<496x166xf32>
    %cst_50 = arith.constant dense<0.000000e+00> : vector<16x166xf32>
    %104 = tpu.matmul %102, %103, %cst_50 {dimension_numbers = #tpu.dot_dimension_numbers<[1], [0], [0], [1], [0, 0, 1, 1], [], []>} : vector<16x496xf32>, vector<496x166xf32>, vector<16x166xf32> -> vector<16x166xf32>
    %105 = vector.extract_strided_slice %104 {offsets = [0, 0], sizes = [16, 164], strides = [1, 1]} : vector<16x166xf32> to vector<16x164xf32>
    %106 = vector.extract_strided_slice %104 {offsets = [0, 1], sizes = [16, 164], strides = [1, 1]} : vector<16x166xf32> to vector<16x164xf32>
    %107 = vector.extract_strided_slice %104 {offsets = [0, 2], sizes = [16, 164], strides = [1, 1]} : vector<16x166xf32> to vector<16x164xf32>
    %108 = tpu.concatenate %105, %106, %107 in 0 : vector<16x164xf32>, vector<16x164xf32>, vector<16x164xf32> -> vector<48x164xf32>
    %c0_51 = arith.constant 0 : index
    %c0_52 = arith.constant 0 : index
    %109 = vector.load %arg5[%c0_51, %c0_52] : memref<32x48xf32, #tpu.memory_space<vmem>>, vector<32x48xf32>
    %cst_53 = arith.constant dense<0.000000e+00> : vector<32x164xf32>
    %110 = tpu.matmul %109, %108, %cst_53 {dimension_numbers = #tpu.dot_dimension_numbers<[1], [0], [0], [1], [0, 0, 1, 1], [], []>} : vector<32x48xf32>, vector<48x164xf32>, vector<32x164xf32> -> vector<32x164xf32>
    %c0_54 = arith.constant 0 : index
    %c0_55 = arith.constant 0 : index
    %111 = vector.load %arg6[%c0_54, %c0_55] : memref<32x1xf32, #tpu.memory_space<vmem>>, vector<32x1xf32>
    %112 = vector.broadcast %111 : vector<32x1xf32> to vector<32x164xf32>
    %113 = arith.addf %110, %112 : vector<32x164xf32>
    %cst_56 = arith.constant 0.000000e+00 : f32
    %114 = vector.broadcast %cst_56 : f32 to vector<32x164xf32>
    %115 = arith.maximumf %113, %114 : vector<32x164xf32>
    %116 = vector.extract_strided_slice %115 {offsets = [0, 0], sizes = [32, 162], strides = [1, 1]} : vector<32x164xf32> to vector<32x162xf32>
    %117 = vector.extract_strided_slice %115 {offsets = [0, 1], sizes = [32, 162], strides = [1, 1]} : vector<32x164xf32> to vector<32x162xf32>
    %118 = arith.maximumf %116, %117 : vector<32x162xf32>
    %119 = vector.extract_strided_slice %115 {offsets = [0, 2], sizes = [32, 162], strides = [1, 1]} : vector<32x164xf32> to vector<32x162xf32>
    %120 = arith.maximumf %118, %119 : vector<32x162xf32>
    %c0_57 = arith.constant 0 : index
    %c0_58 = arith.constant 0 : index
    %121 = vector.load %arg7[%c0_57, %c0_58] : memref<162x54xf32, #tpu.memory_space<vmem>>, vector<162x54xf32>
    %cst_59 = arith.constant dense<0.000000e+00> : vector<32x54xf32>
    %122 = tpu.matmul %120, %121, %cst_59 {dimension_numbers = #tpu.dot_dimension_numbers<[1], [0], [0], [1], [0, 0, 1, 1], [], []>} : vector<32x162xf32>, vector<162x54xf32>, vector<32x54xf32> -> vector<32x54xf32>
    %123 = vector.extract_strided_slice %122 {offsets = [0, 0], sizes = [32, 52], strides = [1, 1]} : vector<32x54xf32> to vector<32x52xf32>
    %124 = vector.extract_strided_slice %122 {offsets = [0, 1], sizes = [32, 52], strides = [1, 1]} : vector<32x54xf32> to vector<32x52xf32>
    %125 = vector.extract_strided_slice %122 {offsets = [0, 2], sizes = [32, 52], strides = [1, 1]} : vector<32x54xf32> to vector<32x52xf32>
    %126 = tpu.concatenate %123, %124, %125 in 0 : vector<32x52xf32>, vector<32x52xf32>, vector<32x52xf32> -> vector<96x52xf32>
    %c0_60 = arith.constant 0 : index
    %c0_61 = arith.constant 0 : index
    %127 = vector.load %arg8[%c0_60, %c0_61] : memref<64x96xf32, #tpu.memory_space<vmem>>, vector<64x96xf32>
    %cst_62 = arith.constant dense<0.000000e+00> : vector<64x52xf32>
    %128 = tpu.matmul %127, %126, %cst_62 {dimension_numbers = #tpu.dot_dimension_numbers<[1], [0], [0], [1], [0, 0, 1, 1], [], []>} : vector<64x96xf32>, vector<96x52xf32>, vector<64x52xf32> -> vector<64x52xf32>
    %c0_63 = arith.constant 0 : index
    %c0_64 = arith.constant 0 : index
    %129 = vector.load %arg9[%c0_63, %c0_64] : memref<64x1xf32, #tpu.memory_space<vmem>>, vector<64x1xf32>
    %130 = vector.broadcast %129 : vector<64x1xf32> to vector<64x52xf32>
    %131 = arith.addf %128, %130 : vector<64x52xf32>
    %cst_65 = arith.constant 0.000000e+00 : f32
    %132 = vector.broadcast %cst_65 : f32 to vector<64x52xf32>
    %133 = arith.maximumf %131, %132 : vector<64x52xf32>
    %134 = vector.extract_strided_slice %133 {offsets = [0, 0], sizes = [64, 50], strides = [1, 1]} : vector<64x52xf32> to vector<64x50xf32>
    %135 = vector.extract_strided_slice %133 {offsets = [0, 1], sizes = [64, 50], strides = [1, 1]} : vector<64x52xf32> to vector<64x50xf32>
    %136 = arith.maximumf %134, %135 : vector<64x50xf32>
    %137 = vector.extract_strided_slice %133 {offsets = [0, 2], sizes = [64, 50], strides = [1, 1]} : vector<64x52xf32> to vector<64x50xf32>
    %138 = arith.maximumf %136, %137 : vector<64x50xf32>
    %c0_66 = arith.constant 0 : index
    %c0_67 = arith.constant 0 : index
    %139 = vector.load %arg10[%c0_66, %c0_67] : memref<50x17xf32, #tpu.memory_space<vmem>>, vector<50x17xf32>
    %cst_68 = arith.constant dense<0.000000e+00> : vector<64x17xf32>
    %140 = tpu.matmul %138, %139, %cst_68 {dimension_numbers = #tpu.dot_dimension_numbers<[1], [0], [0], [1], [0, 0, 1, 1], [], []>} : vector<64x50xf32>, vector<50x17xf32>, vector<64x17xf32> -> vector<64x17xf32>
    %c1_69 = arith.constant 1 : index
    %c0_70 = arith.constant 0 : index
    %c0_71 = arith.constant 0 : index
    %141 = vector.load %arg11[%c1_69, %c0_70, %c0_71] : memref<8x64x17xf32, #tpu.memory_space<vmem>>, vector<1x64x17xf32>
    %142 = vector.shape_cast %141 : vector<1x64x17xf32> to vector<64x17xf32>
    %143 = vector.shape_cast %140 : vector<64x17xf32> to vector<1x64x17xf32>
    tpu.vector_store %arg11[%c1_69, %c0_70, %c0_71], %143 {strides = array<i32>} : memref<8x64x17xf32, #tpu.memory_space<vmem>>, vector<1x64x17xf32>,
    %c2_72 = arith.constant 2 : index
    %c0_73 = arith.constant 0 : index
    %144 = vector.load %arg1[%c2_72, %c0_73] : memref<8x500xf32, #tpu.memory_space<vmem>>, vector<1x500xf32>
    %c0_74 = arith.constant 0 : index
    %c0_75 = arith.constant 0 : index
    %c0_76 = arith.constant 0 : index
    %145 = vector.load %arg2[%c0_74, %c0_75, %c0_76] : memref<3x16x1xf32, #tpu.memory_space<vmem>>, vector<1x16x1xf32>
    %146 = vector.shape_cast %145 : vector<1x16x1xf32> to vector<16x1xf32>
    %147 = vector.extract_strided_slice %144 {offsets = [0, 0], sizes = [1, 498], strides = [1, 1]} : vector<1x500xf32> to vector<1x498xf32>
    %148 = vector.broadcast %146 : vector<16x1xf32> to vector<16x498xf32>
    %149 = vector.broadcast %147 : vector<1x498xf32> to vector<16x498xf32>
    %150 = arith.mulf %148, %149 : vector<16x498xf32>
    %c1_77 = arith.constant 1 : index
    %c0_78 = arith.constant 0 : index
    %c0_79 = arith.constant 0 : index
    %151 = vector.load %arg2[%c1_77, %c0_78, %c0_79] : memref<3x16x1xf32, #tpu.memory_space<vmem>>, vector<1x16x1xf32>
    %152 = vector.shape_cast %151 : vector<1x16x1xf32> to vector<16x1xf32>
    %153 = vector.extract_strided_slice %144 {offsets = [0, 1], sizes = [1, 498], strides = [1, 1]} : vector<1x500xf32> to vector<1x498xf32>
    %154 = vector.broadcast %152 : vector<16x1xf32> to vector<16x498xf32>
    %155 = vector.broadcast %153 : vector<1x498xf32> to vector<16x498xf32>
    %156 = arith.mulf %154, %155 : vector<16x498xf32>
    %157 = arith.addf %150, %156 : vector<16x498xf32>
    %c2_80 = arith.constant 2 : index
    %c0_81 = arith.constant 0 : index
    %c0_82 = arith.constant 0 : index
    %158 = vector.load %arg2[%c2_80, %c0_81, %c0_82] : memref<3x16x1xf32, #tpu.memory_space<vmem>>, vector<1x16x1xf32>
    %159 = vector.shape_cast %158 : vector<1x16x1xf32> to vector<16x1xf32>
    %160 = vector.extract_strided_slice %144 {offsets = [0, 2], sizes = [1, 498], strides = [1, 1]} : vector<1x500xf32> to vector<1x498xf32>
    %161 = vector.broadcast %159 : vector<16x1xf32> to vector<16x498xf32>
    %162 = vector.broadcast %160 : vector<1x498xf32> to vector<16x498xf32>
    %163 = arith.mulf %161, %162 : vector<16x498xf32>
    %164 = arith.addf %157, %163 : vector<16x498xf32>
    %c0_83 = arith.constant 0 : index
    %c0_84 = arith.constant 0 : index
    %165 = vector.load %arg3[%c0_83, %c0_84] : memref<16x1xf32, #tpu.memory_space<vmem>>, vector<16x1xf32>
    %166 = vector.broadcast %165 : vector<16x1xf32> to vector<16x498xf32>
    %167 = arith.addf %164, %166 : vector<16x498xf32>
    %cst_85 = arith.constant 0.000000e+00 : f32
    %168 = vector.broadcast %cst_85 : f32 to vector<16x498xf32>
    %169 = arith.maximumf %167, %168 : vector<16x498xf32>
    %170 = vector.extract_strided_slice %169 {offsets = [0, 0], sizes = [16, 496], strides = [1, 1]} : vector<16x498xf32> to vector<16x496xf32>
    %171 = vector.extract_strided_slice %169 {offsets = [0, 1], sizes = [16, 496], strides = [1, 1]} : vector<16x498xf32> to vector<16x496xf32>
    %172 = arith.maximumf %170, %171 : vector<16x496xf32>
    %173 = vector.extract_strided_slice %169 {offsets = [0, 2], sizes = [16, 496], strides = [1, 1]} : vector<16x498xf32> to vector<16x496xf32>
    %174 = arith.maximumf %172, %173 : vector<16x496xf32>
    %c0_86 = arith.constant 0 : index
    %c0_87 = arith.constant 0 : index
    %175 = vector.load %arg4[%c0_86, %c0_87] : memref<496x166xf32, #tpu.memory_space<vmem>>, vector<496x166xf32>
    %cst_88 = arith.constant dense<0.000000e+00> : vector<16x166xf32>
    %176 = tpu.matmul %174, %175, %cst_88 {dimension_numbers = #tpu.dot_dimension_numbers<[1], [0], [0], [1], [0, 0, 1, 1], [], []>} : vector<16x496xf32>, vector<496x166xf32>, vector<16x166xf32> -> vector<16x166xf32>
    %177 = vector.extract_strided_slice %176 {offsets = [0, 0], sizes = [16, 164], strides = [1, 1]} : vector<16x166xf32> to vector<16x164xf32>
    %178 = vector.extract_strided_slice %176 {offsets = [0, 1], sizes = [16, 164], strides = [1, 1]} : vector<16x166xf32> to vector<16x164xf32>
    %179 = vector.extract_strided_slice %176 {offsets = [0, 2], sizes = [16, 164], strides = [1, 1]} : vector<16x166xf32> to vector<16x164xf32>
    %180 = tpu.concatenate %177, %178, %179 in 0 : vector<16x164xf32>, vector<16x164xf32>, vector<16x164xf32> -> vector<48x164xf32>
    %c0_89 = arith.constant 0 : index
    %c0_90 = arith.constant 0 : index
    %181 = vector.load %arg5[%c0_89, %c0_90] : memref<32x48xf32, #tpu.memory_space<vmem>>, vector<32x48xf32>
    %cst_91 = arith.constant dense<0.000000e+00> : vector<32x164xf32>
    %182 = tpu.matmul %181, %180, %cst_91 {dimension_numbers = #tpu.dot_dimension_numbers<[1], [0], [0], [1], [0, 0, 1, 1], [], []>} : vector<32x48xf32>, vector<48x164xf32>, vector<32x164xf32> -> vector<32x164xf32>
    %c0_92 = arith.constant 0 : index
    %c0_93 = arith.constant 0 : index
    %183 = vector.load %arg6[%c0_92, %c0_93] : memref<32x1xf32, #tpu.memory_space<vmem>>, vector<32x1xf32>
    %184 = vector.broadcast %183 : vector<32x1xf32> to vector<32x164xf32>
    %185 = arith.addf %182, %184 : vector<32x164xf32>
    %cst_94 = arith.constant 0.000000e+00 : f32
    %186 = vector.broadcast %cst_94 : f32 to vector<32x164xf32>
    %187 = arith.maximumf %185, %186 : vector<32x164xf32>
    %188 = vector.extract_strided_slice %187 {offsets = [0, 0], sizes = [32, 162], strides = [1, 1]} : vector<32x164xf32> to vector<32x162xf32>
    %189 = vector.extract_strided_slice %187 {offsets = [0, 1], sizes = [32, 162], strides = [1, 1]} : vector<32x164xf32> to vector<32x162xf32>
    %190 = arith.maximumf %188, %189 : vector<32x162xf32>
    %191 = vector.extract_strided_slice %187 {offsets = [0, 2], sizes = [32, 162], strides = [1, 1]} : vector<32x164xf32> to vector<32x162xf32>
    %192 = arith.maximumf %190, %191 : vector<32x162xf32>
    %c0_95 = arith.constant 0 : index
    %c0_96 = arith.constant 0 : index
    %193 = vector.load %arg7[%c0_95, %c0_96] : memref<162x54xf32, #tpu.memory_space<vmem>>, vector<162x54xf32>
    %cst_97 = arith.constant dense<0.000000e+00> : vector<32x54xf32>
    %194 = tpu.matmul %192, %193, %cst_97 {dimension_numbers = #tpu.dot_dimension_numbers<[1], [0], [0], [1], [0, 0, 1, 1], [], []>} : vector<32x162xf32>, vector<162x54xf32>, vector<32x54xf32> -> vector<32x54xf32>
    %195 = vector.extract_strided_slice %194 {offsets = [0, 0], sizes = [32, 52], strides = [1, 1]} : vector<32x54xf32> to vector<32x52xf32>
    %196 = vector.extract_strided_slice %194 {offsets = [0, 1], sizes = [32, 52], strides = [1, 1]} : vector<32x54xf32> to vector<32x52xf32>
    %197 = vector.extract_strided_slice %194 {offsets = [0, 2], sizes = [32, 52], strides = [1, 1]} : vector<32x54xf32> to vector<32x52xf32>
    %198 = tpu.concatenate %195, %196, %197 in 0 : vector<32x52xf32>, vector<32x52xf32>, vector<32x52xf32> -> vector<96x52xf32>
    %c0_98 = arith.constant 0 : index
    %c0_99 = arith.constant 0 : index
    %199 = vector.load %arg8[%c0_98, %c0_99] : memref<64x96xf32, #tpu.memory_space<vmem>>, vector<64x96xf32>
    %cst_100 = arith.constant dense<0.000000e+00> : vector<64x52xf32>
    %200 = tpu.matmul %199, %198, %cst_100 {dimension_numbers = #tpu.dot_dimension_numbers<[1], [0], [0], [1], [0, 0, 1, 1], [], []>} : vector<64x96xf32>, vector<96x52xf32>, vector<64x52xf32> -> vector<64x52xf32>
    %c0_101 = arith.constant 0 : index
    %c0_102 = arith.constant 0 : index
    %201 = vector.load %arg9[%c0_101, %c0_102] : memref<64x1xf32, #tpu.memory_space<vmem>>, vector<64x1xf32>
    %202 = vector.broadcast %201 : vector<64x1xf32> to vector<64x52xf32>
    %203 = arith.addf %200, %202 : vector<64x52xf32>
    %cst_103 = arith.constant 0.000000e+00 : f32
    %204 = vector.broadcast %cst_103 : f32 to vector<64x52xf32>
    %205 = arith.maximumf %203, %204 : vector<64x52xf32>
    %206 = vector.extract_strided_slice %205 {offsets = [0, 0], sizes = [64, 50], strides = [1, 1]} : vector<64x52xf32> to vector<64x50xf32>
    %207 = vector.extract_strided_slice %205 {offsets = [0, 1], sizes = [64, 50], strides = [1, 1]} : vector<64x52xf32> to vector<64x50xf32>
    %208 = arith.maximumf %206, %207 : vector<64x50xf32>
    %209 = vector.extract_strided_slice %205 {offsets = [0, 2], sizes = [64, 50], strides = [1, 1]} : vector<64x52xf32> to vector<64x50xf32>
    %210 = arith.maximumf %208, %209 : vector<64x50xf32>
    %c0_104 = arith.constant 0 : index
    %c0_105 = arith.constant 0 : index
    %211 = vector.load %arg10[%c0_104, %c0_105] : memref<50x17xf32, #tpu.memory_space<vmem>>, vector<50x17xf32>
    %cst_106 = arith.constant dense<0.000000e+00> : vector<64x17xf32>
    %212 = tpu.matmul %210, %211, %cst_106 {dimension_numbers = #tpu.dot_dimension_numbers<[1], [0], [0], [1], [0, 0, 1, 1], [], []>} : vector<64x50xf32>, vector<50x17xf32>, vector<64x17xf32> -> vector<64x17xf32>
    %c2_107 = arith.constant 2 : index
    %c0_108 = arith.constant 0 : index
    %c0_109 = arith.constant 0 : index
    %213 = vector.load %arg11[%c2_107, %c0_108, %c0_109] : memref<8x64x17xf32, #tpu.memory_space<vmem>>, vector<1x64x17xf32>
    %214 = vector.shape_cast %213 : vector<1x64x17xf32> to vector<64x17xf32>
    %215 = vector.shape_cast %212 : vector<64x17xf32> to vector<1x64x17xf32>
    tpu.vector_store %arg11[%c2_107, %c0_108, %c0_109], %215 {strides = array<i32>} : memref<8x64x17xf32, #tpu.memory_space<vmem>>, vector<1x64x17xf32>,
    %c3 = arith.constant 3 : index
    %c0_110 = arith.constant 0 : index
    %216 = vector.load %arg1[%c3, %c0_110] : memref<8x500xf32, #tpu.memory_space<vmem>>, vector<1x500xf32>
    %c0_111 = arith.constant 0 : index
    %c0_112 = arith.constant 0 : index
    %c0_113 = arith.constant 0 : index
    %217 = vector.load %arg2[%c0_111, %c0_112, %c0_113] : memref<3x16x1xf32, #tpu.memory_space<vmem>>, vector<1x16x1xf32>
    %218 = vector.shape_cast %217 : vector<1x16x1xf32> to vector<16x1xf32>
    %219 = vector.extract_strided_slice %216 {offsets = [0, 0], sizes = [1, 498], strides = [1, 1]} : vector<1x500xf32> to vector<1x498xf32>
    %220 = vector.broadcast %218 : vector<16x1xf32> to vector<16x498xf32>
    %221 = vector.broadcast %219 : vector<1x498xf32> to vector<16x498xf32>
    %222 = arith.mulf %220, %221 : vector<16x498xf32>
    %c1_114 = arith.constant 1 : index
    %c0_115 = arith.constant 0 : index
    %c0_116 = arith.constant 0 : index
    %223 = vector.load %arg2[%c1_114, %c0_115, %c0_116] : memref<3x16x1xf32, #tpu.memory_space<vmem>>, vector<1x16x1xf32>
    %224 = vector.shape_cast %223 : vector<1x16x1xf32> to vector<16x1xf32>
    %225 = vector.extract_strided_slice %216 {offsets = [0, 1], sizes = [1, 498], strides = [1, 1]} : vector<1x500xf32> to vector<1x498xf32>
    %226 = vector.broadcast %224 : vector<16x1xf32> to vector<16x498xf32>
    %227 = vector.broadcast %225 : vector<1x498xf32> to vector<16x498xf32>
    %228 = arith.mulf %226, %227 : vector<16x498xf32>
    %229 = arith.addf %222, %228 : vector<16x498xf32>
    %c2_117 = arith.constant 2 : index
    %c0_118 = arith.constant 0 : index
    %c0_119 = arith.constant 0 : index
    %230 = vector.load %arg2[%c2_117, %c0_118, %c0_119] : memref<3x16x1xf32, #tpu.memory_space<vmem>>, vector<1x16x1xf32>
    %231 = vector.shape_cast %230 : vector<1x16x1xf32> to vector<16x1xf32>
    %232 = vector.extract_strided_slice %216 {offsets = [0, 2], sizes = [1, 498], strides = [1, 1]} : vector<1x500xf32> to vector<1x498xf32>
    %233 = vector.broadcast %231 : vector<16x1xf32> to vector<16x498xf32>
    %234 = vector.broadcast %232 : vector<1x498xf32> to vector<16x498xf32>
    %235 = arith.mulf %233, %234 : vector<16x498xf32>
    %236 = arith.addf %229, %235 : vector<16x498xf32>
    %c0_120 = arith.constant 0 : index
    %c0_121 = arith.constant 0 : index
    %237 = vector.load %arg3[%c0_120, %c0_121] : memref<16x1xf32, #tpu.memory_space<vmem>>, vector<16x1xf32>
    %238 = vector.broadcast %237 : vector<16x1xf32> to vector<16x498xf32>
    %239 = arith.addf %236, %238 : vector<16x498xf32>
    %cst_122 = arith.constant 0.000000e+00 : f32
    %240 = vector.broadcast %cst_122 : f32 to vector<16x498xf32>
    %241 = arith.maximumf %239, %240 : vector<16x498xf32>
    %242 = vector.extract_strided_slice %241 {offsets = [0, 0], sizes = [16, 496], strides = [1, 1]} : vector<16x498xf32> to vector<16x496xf32>
    %243 = vector.extract_strided_slice %241 {offsets = [0, 1], sizes = [16, 496], strides = [1, 1]} : vector<16x498xf32> to vector<16x496xf32>
    %244 = arith.maximumf %242, %243 : vector<16x496xf32>
    %245 = vector.extract_strided_slice %241 {offsets = [0, 2], sizes = [16, 496], strides = [1, 1]} : vector<16x498xf32> to vector<16x496xf32>
    %246 = arith.maximumf %244, %245 : vector<16x496xf32>
    %c0_123 = arith.constant 0 : index
    %c0_124 = arith.constant 0 : index
    %247 = vector.load %arg4[%c0_123, %c0_124] : memref<496x166xf32, #tpu.memory_space<vmem>>, vector<496x166xf32>
    %cst_125 = arith.constant dense<0.000000e+00> : vector<16x166xf32>
    %248 = tpu.matmul %246, %247, %cst_125 {dimension_numbers = #tpu.dot_dimension_numbers<[1], [0], [0], [1], [0, 0, 1, 1], [], []>} : vector<16x496xf32>, vector<496x166xf32>, vector<16x166xf32> -> vector<16x166xf32>
    %249 = vector.extract_strided_slice %248 {offsets = [0, 0], sizes = [16, 164], strides = [1, 1]} : vector<16x166xf32> to vector<16x164xf32>
    %250 = vector.extract_strided_slice %248 {offsets = [0, 1], sizes = [16, 164], strides = [1, 1]} : vector<16x166xf32> to vector<16x164xf32>
    %251 = vector.extract_strided_slice %248 {offsets = [0, 2], sizes = [16, 164], strides = [1, 1]} : vector<16x166xf32> to vector<16x164xf32>
    %252 = tpu.concatenate %249, %250, %251 in 0 : vector<16x164xf32>, vector<16x164xf32>, vector<16x164xf32> -> vector<48x164xf32>
    %c0_126 = arith.constant 0 : index
    %c0_127 = arith.constant 0 : index
    %253 = vector.load %arg5[%c0_126, %c0_127] : memref<32x48xf32, #tpu.memory_space<vmem>>, vector<32x48xf32>
    %cst_128 = arith.constant dense<0.000000e+00> : vector<32x164xf32>
    %254 = tpu.matmul %253, %252, %cst_128 {dimension_numbers = #tpu.dot_dimension_numbers<[1], [0], [0], [1], [0, 0, 1, 1], [], []>} : vector<32x48xf32>, vector<48x164xf32>, vector<32x164xf32> -> vector<32x164xf32>
    %c0_129 = arith.constant 0 : index
    %c0_130 = arith.constant 0 : index
    %255 = vector.load %arg6[%c0_129, %c0_130] : memref<32x1xf32, #tpu.memory_space<vmem>>, vector<32x1xf32>
    %256 = vector.broadcast %255 : vector<32x1xf32> to vector<32x164xf32>
    %257 = arith.addf %254, %256 : vector<32x164xf32>
    %cst_131 = arith.constant 0.000000e+00 : f32
    %258 = vector.broadcast %cst_131 : f32 to vector<32x164xf32>
    %259 = arith.maximumf %257, %258 : vector<32x164xf32>
    %260 = vector.extract_strided_slice %259 {offsets = [0, 0], sizes = [32, 162], strides = [1, 1]} : vector<32x164xf32> to vector<32x162xf32>
    %261 = vector.extract_strided_slice %259 {offsets = [0, 1], sizes = [32, 162], strides = [1, 1]} : vector<32x164xf32> to vector<32x162xf32>
    %262 = arith.maximumf %260, %261 : vector<32x162xf32>
    %263 = vector.extract_strided_slice %259 {offsets = [0, 2], sizes = [32, 162], strides = [1, 1]} : vector<32x164xf32> to vector<32x162xf32>
    %264 = arith.maximumf %262, %263 : vector<32x162xf32>
    %c0_132 = arith.constant 0 : index
    %c0_133 = arith.constant 0 : index
    %265 = vector.load %arg7[%c0_132, %c0_133] : memref<162x54xf32, #tpu.memory_space<vmem>>, vector<162x54xf32>
    %cst_134 = arith.constant dense<0.000000e+00> : vector<32x54xf32>
    %266 = tpu.matmul %264, %265, %cst_134 {dimension_numbers = #tpu.dot_dimension_numbers<[1], [0], [0], [1], [0, 0, 1, 1], [], []>} : vector<32x162xf32>, vector<162x54xf32>, vector<32x54xf32> -> vector<32x54xf32>
    %267 = vector.extract_strided_slice %266 {offsets = [0, 0], sizes = [32, 52], strides = [1, 1]} : vector<32x54xf32> to vector<32x52xf32>
    %268 = vector.extract_strided_slice %266 {offsets = [0, 1], sizes = [32, 52], strides = [1, 1]} : vector<32x54xf32> to vector<32x52xf32>
    %269 = vector.extract_strided_slice %266 {offsets = [0, 2], sizes = [32, 52], strides = [1, 1]} : vector<32x54xf32> to vector<32x52xf32>
    %270 = tpu.concatenate %267, %268, %269 in 0 : vector<32x52xf32>, vector<32x52xf32>, vector<32x52xf32> -> vector<96x52xf32>
    %c0_135 = arith.constant 0 : index
    %c0_136 = arith.constant 0 : index
    %271 = vector.load %arg8[%c0_135, %c0_136] : memref<64x96xf32, #tpu.memory_space<vmem>>, vector<64x96xf32>
    %cst_137 = arith.constant dense<0.000000e+00> : vector<64x52xf32>
    %272 = tpu.matmul %271, %270, %cst_137 {dimension_numbers = #tpu.dot_dimension_numbers<[1], [0], [0], [1], [0, 0, 1, 1], [], []>} : vector<64x96xf32>, vector<96x52xf32>, vector<64x52xf32> -> vector<64x52xf32>
    %c0_138 = arith.constant 0 : index
    %c0_139 = arith.constant 0 : index
    %273 = vector.load %arg9[%c0_138, %c0_139] : memref<64x1xf32, #tpu.memory_space<vmem>>, vector<64x1xf32>
    %274 = vector.broadcast %273 : vector<64x1xf32> to vector<64x52xf32>
    %275 = arith.addf %272, %274 : vector<64x52xf32>
    %cst_140 = arith.constant 0.000000e+00 : f32
    %276 = vector.broadcast %cst_140 : f32 to vector<64x52xf32>
    %277 = arith.maximumf %275, %276 : vector<64x52xf32>
    %278 = vector.extract_strided_slice %277 {offsets = [0, 0], sizes = [64, 50], strides = [1, 1]} : vector<64x52xf32> to vector<64x50xf32>
    %279 = vector.extract_strided_slice %277 {offsets = [0, 1], sizes = [64, 50], strides = [1, 1]} : vector<64x52xf32> to vector<64x50xf32>
    %280 = arith.maximumf %278, %279 : vector<64x50xf32>
    %281 = vector.extract_strided_slice %277 {offsets = [0, 2], sizes = [64, 50], strides = [1, 1]} : vector<64x52xf32> to vector<64x50xf32>
    %282 = arith.maximumf %280, %281 : vector<64x50xf32>
    %c0_141 = arith.constant 0 : index
    %c0_142 = arith.constant 0 : index
    %283 = vector.load %arg10[%c0_141, %c0_142] : memref<50x17xf32, #tpu.memory_space<vmem>>, vector<50x17xf32>
    %cst_143 = arith.constant dense<0.000000e+00> : vector<64x17xf32>
    %284 = tpu.matmul %282, %283, %cst_143 {dimension_numbers = #tpu.dot_dimension_numbers<[1], [0], [0], [1], [0, 0, 1, 1], [], []>} : vector<64x50xf32>, vector<50x17xf32>, vector<64x17xf32> -> vector<64x17xf32>
    %c3_144 = arith.constant 3 : index
    %c0_145 = arith.constant 0 : index
    %c0_146 = arith.constant 0 : index
    %285 = vector.load %arg11[%c3_144, %c0_145, %c0_146] : memref<8x64x17xf32, #tpu.memory_space<vmem>>, vector<1x64x17xf32>
    %286 = vector.shape_cast %285 : vector<1x64x17xf32> to vector<64x17xf32>
    %287 = vector.shape_cast %284 : vector<64x17xf32> to vector<1x64x17xf32>
    tpu.vector_store %arg11[%c3_144, %c0_145, %c0_146], %287 {strides = array<i32>} : memref<8x64x17xf32, #tpu.memory_space<vmem>>, vector<1x64x17xf32>,
    %c4 = arith.constant 4 : index
    %c0_147 = arith.constant 0 : index
    %288 = vector.load %arg1[%c4, %c0_147] : memref<8x500xf32, #tpu.memory_space<vmem>>, vector<1x500xf32>
    %c0_148 = arith.constant 0 : index
    %c0_149 = arith.constant 0 : index
    %c0_150 = arith.constant 0 : index
    %289 = vector.load %arg2[%c0_148, %c0_149, %c0_150] : memref<3x16x1xf32, #tpu.memory_space<vmem>>, vector<1x16x1xf32>
    %290 = vector.shape_cast %289 : vector<1x16x1xf32> to vector<16x1xf32>
    %291 = vector.extract_strided_slice %288 {offsets = [0, 0], sizes = [1, 498], strides = [1, 1]} : vector<1x500xf32> to vector<1x498xf32>
    %292 = vector.broadcast %290 : vector<16x1xf32> to vector<16x498xf32>
    %293 = vector.broadcast %291 : vector<1x498xf32> to vector<16x498xf32>
    %294 = arith.mulf %292, %293 : vector<16x498xf32>
    %c1_151 = arith.constant 1 : index
    %c0_152 = arith.constant 0 : index
    %c0_153 = arith.constant 0 : index
    %295 = vector.load %arg2[%c1_151, %c0_152, %c0_153] : memref<3x16x1xf32, #tpu.memory_space<vmem>>, vector<1x16x1xf32>
    %296 = vector.shape_cast %295 : vector<1x16x1xf32> to vector<16x1xf32>
    %297 = vector.extract_strided_slice %288 {offsets = [0, 1], sizes = [1, 498], strides = [1, 1]} : vector<1x500xf32> to vector<1x498xf32>
    %298 = vector.broadcast %296 : vector<16x1xf32> to vector<16x498xf32>
    %299 = vector.broadcast %297 : vector<1x498xf32> to vector<16x498xf32>
    %300 = arith.mulf %298, %299 : vector<16x498xf32>
    %301 = arith.addf %294, %300 : vector<16x498xf32>
    %c2_154 = arith.constant 2 : index
    %c0_155 = arith.constant 0 : index
    %c0_156 = arith.constant 0 : index
    %302 = vector.load %arg2[%c2_154, %c0_155, %c0_156] : memref<3x16x1xf32, #tpu.memory_space<vmem>>, vector<1x16x1xf32>
    %303 = vector.shape_cast %302 : vector<1x16x1xf32> to vector<16x1xf32>
    %304 = vector.extract_strided_slice %288 {offsets = [0, 2], sizes = [1, 498], strides = [1, 1]} : vector<1x500xf32> to vector<1x498xf32>
    %305 = vector.broadcast %303 : vector<16x1xf32> to vector<16x498xf32>
    %306 = vector.broadcast %304 : vector<1x498xf32> to vector<16x498xf32>
    %307 = arith.mulf %305, %306 : vector<16x498xf32>
    %308 = arith.addf %301, %307 : vector<16x498xf32>
    %c0_157 = arith.constant 0 : index
    %c0_158 = arith.constant 0 : index
    %309 = vector.load %arg3[%c0_157, %c0_158] : memref<16x1xf32, #tpu.memory_space<vmem>>, vector<16x1xf32>
    %310 = vector.broadcast %309 : vector<16x1xf32> to vector<16x498xf32>
    %311 = arith.addf %308, %310 : vector<16x498xf32>
    %cst_159 = arith.constant 0.000000e+00 : f32
    %312 = vector.broadcast %cst_159 : f32 to vector<16x498xf32>
    %313 = arith.maximumf %311, %312 : vector<16x498xf32>
    %314 = vector.extract_strided_slice %313 {offsets = [0, 0], sizes = [16, 496], strides = [1, 1]} : vector<16x498xf32> to vector<16x496xf32>
    %315 = vector.extract_strided_slice %313 {offsets = [0, 1], sizes = [16, 496], strides = [1, 1]} : vector<16x498xf32> to vector<16x496xf32>
    %316 = arith.maximumf %314, %315 : vector<16x496xf32>
    %317 = vector.extract_strided_slice %313 {offsets = [0, 2], sizes = [16, 496], strides = [1, 1]} : vector<16x498xf32> to vector<16x496xf32>
    %318 = arith.maximumf %316, %317 : vector<16x496xf32>
    %c0_160 = arith.constant 0 : index
    %c0_161 = arith.constant 0 : index
    %319 = vector.load %arg4[%c0_160, %c0_161] : memref<496x166xf32, #tpu.memory_space<vmem>>, vector<496x166xf32>
    %cst_162 = arith.constant dense<0.000000e+00> : vector<16x166xf32>
    %320 = tpu.matmul %318, %319, %cst_162 {dimension_numbers = #tpu.dot_dimension_numbers<[1], [0], [0], [1], [0, 0, 1, 1], [], []>} : vector<16x496xf32>, vector<496x166xf32>, vector<16x166xf32> -> vector<16x166xf32>
    %321 = vector.extract_strided_slice %320 {offsets = [0, 0], sizes = [16, 164], strides = [1, 1]} : vector<16x166xf32> to vector<16x164xf32>
    %322 = vector.extract_strided_slice %320 {offsets = [0, 1], sizes = [16, 164], strides = [1, 1]} : vector<16x166xf32> to vector<16x164xf32>
    %323 = vector.extract_strided_slice %320 {offsets = [0, 2], sizes = [16, 164], strides = [1, 1]} : vector<16x166xf32> to vector<16x164xf32>
    %324 = tpu.concatenate %321, %322, %323 in 0 : vector<16x164xf32>, vector<16x164xf32>, vector<16x164xf32> -> vector<48x164xf32>
    %c0_163 = arith.constant 0 : index
    %c0_164 = arith.constant 0 : index
    %325 = vector.load %arg5[%c0_163, %c0_164] : memref<32x48xf32, #tpu.memory_space<vmem>>, vector<32x48xf32>
    %cst_165 = arith.constant dense<0.000000e+00> : vector<32x164xf32>
    %326 = tpu.matmul %325, %324, %cst_165 {dimension_numbers = #tpu.dot_dimension_numbers<[1], [0], [0], [1], [0, 0, 1, 1], [], []>} : vector<32x48xf32>, vector<48x164xf32>, vector<32x164xf32> -> vector<32x164xf32>
    %c0_166 = arith.constant 0 : index
    %c0_167 = arith.constant 0 : index
    %327 = vector.load %arg6[%c0_166, %c0_167] : memref<32x1xf32, #tpu.memory_space<vmem>>, vector<32x1xf32>
    %328 = vector.broadcast %327 : vector<32x1xf32> to vector<32x164xf32>
    %329 = arith.addf %326, %328 : vector<32x164xf32>
    %cst_168 = arith.constant 0.000000e+00 : f32
    %330 = vector.broadcast %cst_168 : f32 to vector<32x164xf32>
    %331 = arith.maximumf %329, %330 : vector<32x164xf32>
    %332 = vector.extract_strided_slice %331 {offsets = [0, 0], sizes = [32, 162], strides = [1, 1]} : vector<32x164xf32> to vector<32x162xf32>
    %333 = vector.extract_strided_slice %331 {offsets = [0, 1], sizes = [32, 162], strides = [1, 1]} : vector<32x164xf32> to vector<32x162xf32>
    %334 = arith.maximumf %332, %333 : vector<32x162xf32>
    %335 = vector.extract_strided_slice %331 {offsets = [0, 2], sizes = [32, 162], strides = [1, 1]} : vector<32x164xf32> to vector<32x162xf32>
    %336 = arith.maximumf %334, %335 : vector<32x162xf32>
    %c0_169 = arith.constant 0 : index
    %c0_170 = arith.constant 0 : index
    %337 = vector.load %arg7[%c0_169, %c0_170] : memref<162x54xf32, #tpu.memory_space<vmem>>, vector<162x54xf32>
    %cst_171 = arith.constant dense<0.000000e+00> : vector<32x54xf32>
    %338 = tpu.matmul %336, %337, %cst_171 {dimension_numbers = #tpu.dot_dimension_numbers<[1], [0], [0], [1], [0, 0, 1, 1], [], []>} : vector<32x162xf32>, vector<162x54xf32>, vector<32x54xf32> -> vector<32x54xf32>
    %339 = vector.extract_strided_slice %338 {offsets = [0, 0], sizes = [32, 52], strides = [1, 1]} : vector<32x54xf32> to vector<32x52xf32>
    %340 = vector.extract_strided_slice %338 {offsets = [0, 1], sizes = [32, 52], strides = [1, 1]} : vector<32x54xf32> to vector<32x52xf32>
    %341 = vector.extract_strided_slice %338 {offsets = [0, 2], sizes = [32, 52], strides = [1, 1]} : vector<32x54xf32> to vector<32x52xf32>
    %342 = tpu.concatenate %339, %340, %341 in 0 : vector<32x52xf32>, vector<32x52xf32>, vector<32x52xf32> -> vector<96x52xf32>
    %c0_172 = arith.constant 0 : index
    %c0_173 = arith.constant 0 : index
    %343 = vector.load %arg8[%c0_172, %c0_173] : memref<64x96xf32, #tpu.memory_space<vmem>>, vector<64x96xf32>
    %cst_174 = arith.constant dense<0.000000e+00> : vector<64x52xf32>
    %344 = tpu.matmul %343, %342, %cst_174 {dimension_numbers = #tpu.dot_dimension_numbers<[1], [0], [0], [1], [0, 0, 1, 1], [], []>} : vector<64x96xf32>, vector<96x52xf32>, vector<64x52xf32> -> vector<64x52xf32>
    %c0_175 = arith.constant 0 : index
    %c0_176 = arith.constant 0 : index
    %345 = vector.load %arg9[%c0_175, %c0_176] : memref<64x1xf32, #tpu.memory_space<vmem>>, vector<64x1xf32>
    %346 = vector.broadcast %345 : vector<64x1xf32> to vector<64x52xf32>
    %347 = arith.addf %344, %346 : vector<64x52xf32>
    %cst_177 = arith.constant 0.000000e+00 : f32
    %348 = vector.broadcast %cst_177 : f32 to vector<64x52xf32>
    %349 = arith.maximumf %347, %348 : vector<64x52xf32>
    %350 = vector.extract_strided_slice %349 {offsets = [0, 0], sizes = [64, 50], strides = [1, 1]} : vector<64x52xf32> to vector<64x50xf32>
    %351 = vector.extract_strided_slice %349 {offsets = [0, 1], sizes = [64, 50], strides = [1, 1]} : vector<64x52xf32> to vector<64x50xf32>
    %352 = arith.maximumf %350, %351 : vector<64x50xf32>
    %353 = vector.extract_strided_slice %349 {offsets = [0, 2], sizes = [64, 50], strides = [1, 1]} : vector<64x52xf32> to vector<64x50xf32>
    %354 = arith.maximumf %352, %353 : vector<64x50xf32>
    %c0_178 = arith.constant 0 : index
    %c0_179 = arith.constant 0 : index
    %355 = vector.load %arg10[%c0_178, %c0_179] : memref<50x17xf32, #tpu.memory_space<vmem>>, vector<50x17xf32>
    %cst_180 = arith.constant dense<0.000000e+00> : vector<64x17xf32>
    %356 = tpu.matmul %354, %355, %cst_180 {dimension_numbers = #tpu.dot_dimension_numbers<[1], [0], [0], [1], [0, 0, 1, 1], [], []>} : vector<64x50xf32>, vector<50x17xf32>, vector<64x17xf32> -> vector<64x17xf32>
    %c4_181 = arith.constant 4 : index
    %c0_182 = arith.constant 0 : index
    %c0_183 = arith.constant 0 : index
    %357 = vector.load %arg11[%c4_181, %c0_182, %c0_183] : memref<8x64x17xf32, #tpu.memory_space<vmem>>, vector<1x64x17xf32>
    %358 = vector.shape_cast %357 : vector<1x64x17xf32> to vector<64x17xf32>
    %359 = vector.shape_cast %356 : vector<64x17xf32> to vector<1x64x17xf32>
    tpu.vector_store %arg11[%c4_181, %c0_182, %c0_183], %359 {strides = array<i32>} : memref<8x64x17xf32, #tpu.memory_space<vmem>>, vector<1x64x17xf32>,
    %c5 = arith.constant 5 : index
    %c0_184 = arith.constant 0 : index
    %360 = vector.load %arg1[%c5, %c0_184] : memref<8x500xf32, #tpu.memory_space<vmem>>, vector<1x500xf32>
    %c0_185 = arith.constant 0 : index
    %c0_186 = arith.constant 0 : index
    %c0_187 = arith.constant 0 : index
    %361 = vector.load %arg2[%c0_185, %c0_186, %c0_187] : memref<3x16x1xf32, #tpu.memory_space<vmem>>, vector<1x16x1xf32>
    %362 = vector.shape_cast %361 : vector<1x16x1xf32> to vector<16x1xf32>
    %363 = vector.extract_strided_slice %360 {offsets = [0, 0], sizes = [1, 498], strides = [1, 1]} : vector<1x500xf32> to vector<1x498xf32>
    %364 = vector.broadcast %362 : vector<16x1xf32> to vector<16x498xf32>
    %365 = vector.broadcast %363 : vector<1x498xf32> to vector<16x498xf32>
    %366 = arith.mulf %364, %365 : vector<16x498xf32>
    %c1_188 = arith.constant 1 : index
    %c0_189 = arith.constant 0 : index
    %c0_190 = arith.constant 0 : index
    %367 = vector.load %arg2[%c1_188, %c0_189, %c0_190] : memref<3x16x1xf32, #tpu.memory_space<vmem>>, vector<1x16x1xf32>
    %368 = vector.shape_cast %367 : vector<1x16x1xf32> to vector<16x1xf32>
    %369 = vector.extract_strided_slice %360 {offsets = [0, 1], sizes = [1, 498], strides = [1, 1]} : vector<1x500xf32> to vector<1x498xf32>
    %370 = vector.broadcast %368 : vector<16x1xf32> to vector<16x498xf32>
    %371 = vector.broadcast %369 : vector<1x498xf32> to vector<16x498xf32>
    %372 = arith.mulf %370, %371 : vector<16x498xf32>
    %373 = arith.addf %366, %372 : vector<16x498xf32>
    %c2_191 = arith.constant 2 : index
    %c0_192 = arith.constant 0 : index
    %c0_193 = arith.constant 0 : index
    %374 = vector.load %arg2[%c2_191, %c0_192, %c0_193] : memref<3x16x1xf32, #tpu.memory_space<vmem>>, vector<1x16x1xf32>
    %375 = vector.shape_cast %374 : vector<1x16x1xf32> to vector<16x1xf32>
    %376 = vector.extract_strided_slice %360 {offsets = [0, 2], sizes = [1, 498], strides = [1, 1]} : vector<1x500xf32> to vector<1x498xf32>
    %377 = vector.broadcast %375 : vector<16x1xf32> to vector<16x498xf32>
    %378 = vector.broadcast %376 : vector<1x498xf32> to vector<16x498xf32>
    %379 = arith.mulf %377, %378 : vector<16x498xf32>
    %380 = arith.addf %373, %379 : vector<16x498xf32>
    %c0_194 = arith.constant 0 : index
    %c0_195 = arith.constant 0 : index
    %381 = vector.load %arg3[%c0_194, %c0_195] : memref<16x1xf32, #tpu.memory_space<vmem>>, vector<16x1xf32>
    %382 = vector.broadcast %381 : vector<16x1xf32> to vector<16x498xf32>
    %383 = arith.addf %380, %382 : vector<16x498xf32>
    %cst_196 = arith.constant 0.000000e+00 : f32
    %384 = vector.broadcast %cst_196 : f32 to vector<16x498xf32>
    %385 = arith.maximumf %383, %384 : vector<16x498xf32>
    %386 = vector.extract_strided_slice %385 {offsets = [0, 0], sizes = [16, 496], strides = [1, 1]} : vector<16x498xf32> to vector<16x496xf32>
    %387 = vector.extract_strided_slice %385 {offsets = [0, 1], sizes = [16, 496], strides = [1, 1]} : vector<16x498xf32> to vector<16x496xf32>
    %388 = arith.maximumf %386, %387 : vector<16x496xf32>
    %389 = vector.extract_strided_slice %385 {offsets = [0, 2], sizes = [16, 496], strides = [1, 1]} : vector<16x498xf32> to vector<16x496xf32>
    %390 = arith.maximumf %388, %389 : vector<16x496xf32>
    %c0_197 = arith.constant 0 : index
    %c0_198 = arith.constant 0 : index
    %391 = vector.load %arg4[%c0_197, %c0_198] : memref<496x166xf32, #tpu.memory_space<vmem>>, vector<496x166xf32>
    %cst_199 = arith.constant dense<0.000000e+00> : vector<16x166xf32>
    %392 = tpu.matmul %390, %391, %cst_199 {dimension_numbers = #tpu.dot_dimension_numbers<[1], [0], [0], [1], [0, 0, 1, 1], [], []>} : vector<16x496xf32>, vector<496x166xf32>, vector<16x166xf32> -> vector<16x166xf32>
    %393 = vector.extract_strided_slice %392 {offsets = [0, 0], sizes = [16, 164], strides = [1, 1]} : vector<16x166xf32> to vector<16x164xf32>
    %394 = vector.extract_strided_slice %392 {offsets = [0, 1], sizes = [16, 164], strides = [1, 1]} : vector<16x166xf32> to vector<16x164xf32>
    %395 = vector.extract_strided_slice %392 {offsets = [0, 2], sizes = [16, 164], strides = [1, 1]} : vector<16x166xf32> to vector<16x164xf32>
    %396 = tpu.concatenate %393, %394, %395 in 0 : vector<16x164xf32>, vector<16x164xf32>, vector<16x164xf32> -> vector<48x164xf32>
    %c0_200 = arith.constant 0 : index
    %c0_201 = arith.constant 0 : index
    %397 = vector.load %arg5[%c0_200, %c0_201] : memref<32x48xf32, #tpu.memory_space<vmem>>, vector<32x48xf32>
    %cst_202 = arith.constant dense<0.000000e+00> : vector<32x164xf32>
    %398 = tpu.matmul %397, %396, %cst_202 {dimension_numbers = #tpu.dot_dimension_numbers<[1], [0], [0], [1], [0, 0, 1, 1], [], []>} : vector<32x48xf32>, vector<48x164xf32>, vector<32x164xf32> -> vector<32x164xf32>
    %c0_203 = arith.constant 0 : index
    %c0_204 = arith.constant 0 : index
    %399 = vector.load %arg6[%c0_203, %c0_204] : memref<32x1xf32, #tpu.memory_space<vmem>>, vector<32x1xf32>
    %400 = vector.broadcast %399 : vector<32x1xf32> to vector<32x164xf32>
    %401 = arith.addf %398, %400 : vector<32x164xf32>
    %cst_205 = arith.constant 0.000000e+00 : f32
    %402 = vector.broadcast %cst_205 : f32 to vector<32x164xf32>
    %403 = arith.maximumf %401, %402 : vector<32x164xf32>
    %404 = vector.extract_strided_slice %403 {offsets = [0, 0], sizes = [32, 162], strides = [1, 1]} : vector<32x164xf32> to vector<32x162xf32>
    %405 = vector.extract_strided_slice %403 {offsets = [0, 1], sizes = [32, 162], strides = [1, 1]} : vector<32x164xf32> to vector<32x162xf32>
    %406 = arith.maximumf %404, %405 : vector<32x162xf32>
    %407 = vector.extract_strided_slice %403 {offsets = [0, 2], sizes = [32, 162], strides = [1, 1]} : vector<32x164xf32> to vector<32x162xf32>
    %408 = arith.maximumf %406, %407 : vector<32x162xf32>
    %c0_206 = arith.constant 0 : index
    %c0_207 = arith.constant 0 : index
    %409 = vector.load %arg7[%c0_206, %c0_207] : memref<162x54xf32, #tpu.memory_space<vmem>>, vector<162x54xf32>
    %cst_208 = arith.constant dense<0.000000e+00> : vector<32x54xf32>
    %410 = tpu.matmul %408, %409, %cst_208 {dimension_numbers = #tpu.dot_dimension_numbers<[1], [0], [0], [1], [0, 0, 1, 1], [], []>} : vector<32x162xf32>, vector<162x54xf32>, vector<32x54xf32> -> vector<32x54xf32>
    %411 = vector.extract_strided_slice %410 {offsets = [0, 0], sizes = [32, 52], strides = [1, 1]} : vector<32x54xf32> to vector<32x52xf32>
    %412 = vector.extract_strided_slice %410 {offsets = [0, 1], sizes = [32, 52], strides = [1, 1]} : vector<32x54xf32> to vector<32x52xf32>
    %413 = vector.extract_strided_slice %410 {offsets = [0, 2], sizes = [32, 52], strides = [1, 1]} : vector<32x54xf32> to vector<32x52xf32>
    %414 = tpu.concatenate %411, %412, %413 in 0 : vector<32x52xf32>, vector<32x52xf32>, vector<32x52xf32> -> vector<96x52xf32>
    %c0_209 = arith.constant 0 : index
    %c0_210 = arith.constant 0 : index
    %415 = vector.load %arg8[%c0_209, %c0_210] : memref<64x96xf32, #tpu.memory_space<vmem>>, vector<64x96xf32>
    %cst_211 = arith.constant dense<0.000000e+00> : vector<64x52xf32>
    %416 = tpu.matmul %415, %414, %cst_211 {dimension_numbers = #tpu.dot_dimension_numbers<[1], [0], [0], [1], [0, 0, 1, 1], [], []>} : vector<64x96xf32>, vector<96x52xf32>, vector<64x52xf32> -> vector<64x52xf32>
    %c0_212 = arith.constant 0 : index
    %c0_213 = arith.constant 0 : index
    %417 = vector.load %arg9[%c0_212, %c0_213] : memref<64x1xf32, #tpu.memory_space<vmem>>, vector<64x1xf32>
    %418 = vector.broadcast %417 : vector<64x1xf32> to vector<64x52xf32>
    %419 = arith.addf %416, %418 : vector<64x52xf32>
    %cst_214 = arith.constant 0.000000e+00 : f32
    %420 = vector.broadcast %cst_214 : f32 to vector<64x52xf32>
    %421 = arith.maximumf %419, %420 : vector<64x52xf32>
    %422 = vector.extract_strided_slice %421 {offsets = [0, 0], sizes = [64, 50], strides = [1, 1]} : vector<64x52xf32> to vector<64x50xf32>
    %423 = vector.extract_strided_slice %421 {offsets = [0, 1], sizes = [64, 50], strides = [1, 1]} : vector<64x52xf32> to vector<64x50xf32>
    %424 = arith.maximumf %422, %423 : vector<64x50xf32>
    %425 = vector.extract_strided_slice %421 {offsets = [0, 2], sizes = [64, 50], strides = [1, 1]} : vector<64x52xf32> to vector<64x50xf32>
    %426 = arith.maximumf %424, %425 : vector<64x50xf32>
    %c0_215 = arith.constant 0 : index
    %c0_216 = arith.constant 0 : index
    %427 = vector.load %arg10[%c0_215, %c0_216] : memref<50x17xf32, #tpu.memory_space<vmem>>, vector<50x17xf32>
    %cst_217 = arith.constant dense<0.000000e+00> : vector<64x17xf32>
    %428 = tpu.matmul %426, %427, %cst_217 {dimension_numbers = #tpu.dot_dimension_numbers<[1], [0], [0], [1], [0, 0, 1, 1], [], []>} : vector<64x50xf32>, vector<50x17xf32>, vector<64x17xf32> -> vector<64x17xf32>
    %c5_218 = arith.constant 5 : index
    %c0_219 = arith.constant 0 : index
    %c0_220 = arith.constant 0 : index
    %429 = vector.load %arg11[%c5_218, %c0_219, %c0_220] : memref<8x64x17xf32, #tpu.memory_space<vmem>>, vector<1x64x17xf32>
    %430 = vector.shape_cast %429 : vector<1x64x17xf32> to vector<64x17xf32>
    %431 = vector.shape_cast %428 : vector<64x17xf32> to vector<1x64x17xf32>
    tpu.vector_store %arg11[%c5_218, %c0_219, %c0_220], %431 {strides = array<i32>} : memref<8x64x17xf32, #tpu.memory_space<vmem>>, vector<1x64x17xf32>,
    %c6 = arith.constant 6 : index
    %c0_221 = arith.constant 0 : index
    %432 = vector.load %arg1[%c6, %c0_221] : memref<8x500xf32, #tpu.memory_space<vmem>>, vector<1x500xf32>
    %c0_222 = arith.constant 0 : index
    %c0_223 = arith.constant 0 : index
    %c0_224 = arith.constant 0 : index
    %433 = vector.load %arg2[%c0_222, %c0_223, %c0_224] : memref<3x16x1xf32, #tpu.memory_space<vmem>>, vector<1x16x1xf32>
    %434 = vector.shape_cast %433 : vector<1x16x1xf32> to vector<16x1xf32>
    %435 = vector.extract_strided_slice %432 {offsets = [0, 0], sizes = [1, 498], strides = [1, 1]} : vector<1x500xf32> to vector<1x498xf32>
    %436 = vector.broadcast %434 : vector<16x1xf32> to vector<16x498xf32>
    %437 = vector.broadcast %435 : vector<1x498xf32> to vector<16x498xf32>
    %438 = arith.mulf %436, %437 : vector<16x498xf32>
    %c1_225 = arith.constant 1 : index
    %c0_226 = arith.constant 0 : index
    %c0_227 = arith.constant 0 : index
    %439 = vector.load %arg2[%c1_225, %c0_226, %c0_227] : memref<3x16x1xf32, #tpu.memory_space<vmem>>, vector<1x16x1xf32>
    %440 = vector.shape_cast %439 : vector<1x16x1xf32> to vector<16x1xf32>
    %441 = vector.extract_strided_slice %432 {offsets = [0, 1], sizes = [1, 498], strides = [1, 1]} : vector<1x500xf32> to vector<1x498xf32>
    %442 = vector.broadcast %440 : vector<16x1xf32> to vector<16x498xf32>
    %443 = vector.broadcast %441 : vector<1x498xf32> to vector<16x498xf32>
    %444 = arith.mulf %442, %443 : vector<16x498xf32>
    %445 = arith.addf %438, %444 : vector<16x498xf32>
    %c2_228 = arith.constant 2 : index
    %c0_229 = arith.constant 0 : index
    %c0_230 = arith.constant 0 : index
    %446 = vector.load %arg2[%c2_228, %c0_229, %c0_230] : memref<3x16x1xf32, #tpu.memory_space<vmem>>, vector<1x16x1xf32>
    %447 = vector.shape_cast %446 : vector<1x16x1xf32> to vector<16x1xf32>
    %448 = vector.extract_strided_slice %432 {offsets = [0, 2], sizes = [1, 498], strides = [1, 1]} : vector<1x500xf32> to vector<1x498xf32>
    %449 = vector.broadcast %447 : vector<16x1xf32> to vector<16x498xf32>
    %450 = vector.broadcast %448 : vector<1x498xf32> to vector<16x498xf32>
    %451 = arith.mulf %449, %450 : vector<16x498xf32>
    %452 = arith.addf %445, %451 : vector<16x498xf32>
    %c0_231 = arith.constant 0 : index
    %c0_232 = arith.constant 0 : index
    %453 = vector.load %arg3[%c0_231, %c0_232] : memref<16x1xf32, #tpu.memory_space<vmem>>, vector<16x1xf32>
    %454 = vector.broadcast %453 : vector<16x1xf32> to vector<16x498xf32>
    %455 = arith.addf %452, %454 : vector<16x498xf32>
    %cst_233 = arith.constant 0.000000e+00 : f32
    %456 = vector.broadcast %cst_233 : f32 to vector<16x498xf32>
    %457 = arith.maximumf %455, %456 : vector<16x498xf32>
    %458 = vector.extract_strided_slice %457 {offsets = [0, 0], sizes = [16, 496], strides = [1, 1]} : vector<16x498xf32> to vector<16x496xf32>
    %459 = vector.extract_strided_slice %457 {offsets = [0, 1], sizes = [16, 496], strides = [1, 1]} : vector<16x498xf32> to vector<16x496xf32>
    %460 = arith.maximumf %458, %459 : vector<16x496xf32>
    %461 = vector.extract_strided_slice %457 {offsets = [0, 2], sizes = [16, 496], strides = [1, 1]} : vector<16x498xf32> to vector<16x496xf32>
    %462 = arith.maximumf %460, %461 : vector<16x496xf32>
    %c0_234 = arith.constant 0 : index
    %c0_235 = arith.constant 0 : index
    %463 = vector.load %arg4[%c0_234, %c0_235] : memref<496x166xf32, #tpu.memory_space<vmem>>, vector<496x166xf32>
    %cst_236 = arith.constant dense<0.000000e+00> : vector<16x166xf32>
    %464 = tpu.matmul %462, %463, %cst_236 {dimension_numbers = #tpu.dot_dimension_numbers<[1], [0], [0], [1], [0, 0, 1, 1], [], []>} : vector<16x496xf32>, vector<496x166xf32>, vector<16x166xf32> -> vector<16x166xf32>
    %465 = vector.extract_strided_slice %464 {offsets = [0, 0], sizes = [16, 164], strides = [1, 1]} : vector<16x166xf32> to vector<16x164xf32>
    %466 = vector.extract_strided_slice %464 {offsets = [0, 1], sizes = [16, 164], strides = [1, 1]} : vector<16x166xf32> to vector<16x164xf32>
    %467 = vector.extract_strided_slice %464 {offsets = [0, 2], sizes = [16, 164], strides = [1, 1]} : vector<16x166xf32> to vector<16x164xf32>
    %468 = tpu.concatenate %465, %466, %467 in 0 : vector<16x164xf32>, vector<16x164xf32>, vector<16x164xf32> -> vector<48x164xf32>
    %c0_237 = arith.constant 0 : index
    %c0_238 = arith.constant 0 : index
    %469 = vector.load %arg5[%c0_237, %c0_238] : memref<32x48xf32, #tpu.memory_space<vmem>>, vector<32x48xf32>
    %cst_239 = arith.constant dense<0.000000e+00> : vector<32x164xf32>
    %470 = tpu.matmul %469, %468, %cst_239 {dimension_numbers = #tpu.dot_dimension_numbers<[1], [0], [0], [1], [0, 0, 1, 1], [], []>} : vector<32x48xf32>, vector<48x164xf32>, vector<32x164xf32> -> vector<32x164xf32>
    %c0_240 = arith.constant 0 : index
    %c0_241 = arith.constant 0 : index
    %471 = vector.load %arg6[%c0_240, %c0_241] : memref<32x1xf32, #tpu.memory_space<vmem>>, vector<32x1xf32>
    %472 = vector.broadcast %471 : vector<32x1xf32> to vector<32x164xf32>
    %473 = arith.addf %470, %472 : vector<32x164xf32>
    %cst_242 = arith.constant 0.000000e+00 : f32
    %474 = vector.broadcast %cst_242 : f32 to vector<32x164xf32>
    %475 = arith.maximumf %473, %474 : vector<32x164xf32>
    %476 = vector.extract_strided_slice %475 {offsets = [0, 0], sizes = [32, 162], strides = [1, 1]} : vector<32x164xf32> to vector<32x162xf32>
    %477 = vector.extract_strided_slice %475 {offsets = [0, 1], sizes = [32, 162], strides = [1, 1]} : vector<32x164xf32> to vector<32x162xf32>
    %478 = arith.maximumf %476, %477 : vector<32x162xf32>
    %479 = vector.extract_strided_slice %475 {offsets = [0, 2], sizes = [32, 162], strides = [1, 1]} : vector<32x164xf32> to vector<32x162xf32>
    %480 = arith.maximumf %478, %479 : vector<32x162xf32>
    %c0_243 = arith.constant 0 : index
    %c0_244 = arith.constant 0 : index
    %481 = vector.load %arg7[%c0_243, %c0_244] : memref<162x54xf32, #tpu.memory_space<vmem>>, vector<162x54xf32>
    %cst_245 = arith.constant dense<0.000000e+00> : vector<32x54xf32>
    %482 = tpu.matmul %480, %481, %cst_245 {dimension_numbers = #tpu.dot_dimension_numbers<[1], [0], [0], [1], [0, 0, 1, 1], [], []>} : vector<32x162xf32>, vector<162x54xf32>, vector<32x54xf32> -> vector<32x54xf32>
    %483 = vector.extract_strided_slice %482 {offsets = [0, 0], sizes = [32, 52], strides = [1, 1]} : vector<32x54xf32> to vector<32x52xf32>
    %484 = vector.extract_strided_slice %482 {offsets = [0, 1], sizes = [32, 52], strides = [1, 1]} : vector<32x54xf32> to vector<32x52xf32>
    %485 = vector.extract_strided_slice %482 {offsets = [0, 2], sizes = [32, 52], strides = [1, 1]} : vector<32x54xf32> to vector<32x52xf32>
    %486 = tpu.concatenate %483, %484, %485 in 0 : vector<32x52xf32>, vector<32x52xf32>, vector<32x52xf32> -> vector<96x52xf32>
    %c0_246 = arith.constant 0 : index
    %c0_247 = arith.constant 0 : index
    %487 = vector.load %arg8[%c0_246, %c0_247] : memref<64x96xf32, #tpu.memory_space<vmem>>, vector<64x96xf32>
    %cst_248 = arith.constant dense<0.000000e+00> : vector<64x52xf32>
    %488 = tpu.matmul %487, %486, %cst_248 {dimension_numbers = #tpu.dot_dimension_numbers<[1], [0], [0], [1], [0, 0, 1, 1], [], []>} : vector<64x96xf32>, vector<96x52xf32>, vector<64x52xf32> -> vector<64x52xf32>
    %c0_249 = arith.constant 0 : index
    %c0_250 = arith.constant 0 : index
    %489 = vector.load %arg9[%c0_249, %c0_250] : memref<64x1xf32, #tpu.memory_space<vmem>>, vector<64x1xf32>
    %490 = vector.broadcast %489 : vector<64x1xf32> to vector<64x52xf32>
    %491 = arith.addf %488, %490 : vector<64x52xf32>
    %cst_251 = arith.constant 0.000000e+00 : f32
    %492 = vector.broadcast %cst_251 : f32 to vector<64x52xf32>
    %493 = arith.maximumf %491, %492 : vector<64x52xf32>
    %494 = vector.extract_strided_slice %493 {offsets = [0, 0], sizes = [64, 50], strides = [1, 1]} : vector<64x52xf32> to vector<64x50xf32>
    %495 = vector.extract_strided_slice %493 {offsets = [0, 1], sizes = [64, 50], strides = [1, 1]} : vector<64x52xf32> to vector<64x50xf32>
    %496 = arith.maximumf %494, %495 : vector<64x50xf32>
    %497 = vector.extract_strided_slice %493 {offsets = [0, 2], sizes = [64, 50], strides = [1, 1]} : vector<64x52xf32> to vector<64x50xf32>
    %498 = arith.maximumf %496, %497 : vector<64x50xf32>
    %c0_252 = arith.constant 0 : index
    %c0_253 = arith.constant 0 : index
    %499 = vector.load %arg10[%c0_252, %c0_253] : memref<50x17xf32, #tpu.memory_space<vmem>>, vector<50x17xf32>
    %cst_254 = arith.constant dense<0.000000e+00> : vector<64x17xf32>
    %500 = tpu.matmul %498, %499, %cst_254 {dimension_numbers = #tpu.dot_dimension_numbers<[1], [0], [0], [1], [0, 0, 1, 1], [], []>} : vector<64x50xf32>, vector<50x17xf32>, vector<64x17xf32> -> vector<64x17xf32>
    %c6_255 = arith.constant 6 : index
    %c0_256 = arith.constant 0 : index
    %c0_257 = arith.constant 0 : index
    %501 = vector.load %arg11[%c6_255, %c0_256, %c0_257] : memref<8x64x17xf32, #tpu.memory_space<vmem>>, vector<1x64x17xf32>
    %502 = vector.shape_cast %501 : vector<1x64x17xf32> to vector<64x17xf32>
    %503 = vector.shape_cast %500 : vector<64x17xf32> to vector<1x64x17xf32>
    tpu.vector_store %arg11[%c6_255, %c0_256, %c0_257], %503 {strides = array<i32>} : memref<8x64x17xf32, #tpu.memory_space<vmem>>, vector<1x64x17xf32>,
    %c7 = arith.constant 7 : index
    %c0_258 = arith.constant 0 : index
    %504 = vector.load %arg1[%c7, %c0_258] : memref<8x500xf32, #tpu.memory_space<vmem>>, vector<1x500xf32>
    %c0_259 = arith.constant 0 : index
    %c0_260 = arith.constant 0 : index
    %c0_261 = arith.constant 0 : index
    %505 = vector.load %arg2[%c0_259, %c0_260, %c0_261] : memref<3x16x1xf32, #tpu.memory_space<vmem>>, vector<1x16x1xf32>
    %506 = vector.shape_cast %505 : vector<1x16x1xf32> to vector<16x1xf32>
    %507 = vector.extract_strided_slice %504 {offsets = [0, 0], sizes = [1, 498], strides = [1, 1]} : vector<1x500xf32> to vector<1x498xf32>
    %508 = vector.broadcast %506 : vector<16x1xf32> to vector<16x498xf32>
    %509 = vector.broadcast %507 : vector<1x498xf32> to vector<16x498xf32>
    %510 = arith.mulf %508, %509 : vector<16x498xf32>
    %c1_262 = arith.constant 1 : index
    %c0_263 = arith.constant 0 : index
    %c0_264 = arith.constant 0 : index
    %511 = vector.load %arg2[%c1_262, %c0_263, %c0_264] : memref<3x16x1xf32, #tpu.memory_space<vmem>>, vector<1x16x1xf32>
    %512 = vector.shape_cast %511 : vector<1x16x1xf32> to vector<16x1xf32>
    %513 = vector.extract_strided_slice %504 {offsets = [0, 1], sizes = [1, 498], strides = [1, 1]} : vector<1x500xf32> to vector<1x498xf32>
    %514 = vector.broadcast %512 : vector<16x1xf32> to vector<16x498xf32>
    %515 = vector.broadcast %513 : vector<1x498xf32> to vector<16x498xf32>
    %516 = arith.mulf %514, %515 : vector<16x498xf32>
    %517 = arith.addf %510, %516 : vector<16x498xf32>
    %c2_265 = arith.constant 2 : index
    %c0_266 = arith.constant 0 : index
    %c0_267 = arith.constant 0 : index
    %518 = vector.load %arg2[%c2_265, %c0_266, %c0_267] : memref<3x16x1xf32, #tpu.memory_space<vmem>>, vector<1x16x1xf32>
    %519 = vector.shape_cast %518 : vector<1x16x1xf32> to vector<16x1xf32>
    %520 = vector.extract_strided_slice %504 {offsets = [0, 2], sizes = [1, 498], strides = [1, 1]} : vector<1x500xf32> to vector<1x498xf32>
    %521 = vector.broadcast %519 : vector<16x1xf32> to vector<16x498xf32>
    %522 = vector.broadcast %520 : vector<1x498xf32> to vector<16x498xf32>
    %523 = arith.mulf %521, %522 : vector<16x498xf32>
    %524 = arith.addf %517, %523 : vector<16x498xf32>
    %c0_268 = arith.constant 0 : index
    %c0_269 = arith.constant 0 : index
    %525 = vector.load %arg3[%c0_268, %c0_269] : memref<16x1xf32, #tpu.memory_space<vmem>>, vector<16x1xf32>
    %526 = vector.broadcast %525 : vector<16x1xf32> to vector<16x498xf32>
    %527 = arith.addf %524, %526 : vector<16x498xf32>
    %cst_270 = arith.constant 0.000000e+00 : f32
    %528 = vector.broadcast %cst_270 : f32 to vector<16x498xf32>
    %529 = arith.maximumf %527, %528 : vector<16x498xf32>
    %530 = vector.extract_strided_slice %529 {offsets = [0, 0], sizes = [16, 496], strides = [1, 1]} : vector<16x498xf32> to vector<16x496xf32>
    %531 = vector.extract_strided_slice %529 {offsets = [0, 1], sizes = [16, 496], strides = [1, 1]} : vector<16x498xf32> to vector<16x496xf32>
    %532 = arith.maximumf %530, %531 : vector<16x496xf32>
    %533 = vector.extract_strided_slice %529 {offsets = [0, 2], sizes = [16, 496], strides = [1, 1]} : vector<16x498xf32> to vector<16x496xf32>
    %534 = arith.maximumf %532, %533 : vector<16x496xf32>
    %c0_271 = arith.constant 0 : index
    %c0_272 = arith.constant 0 : index
    %535 = vector.load %arg4[%c0_271, %c0_272] : memref<496x166xf32, #tpu.memory_space<vmem>>, vector<496x166xf32>
    %cst_273 = arith.constant dense<0.000000e+00> : vector<16x166xf32>
    %536 = tpu.matmul %534, %535, %cst_273 {dimension_numbers = #tpu.dot_dimension_numbers<[1], [0], [0], [1], [0, 0, 1, 1], [], []>} : vector<16x496xf32>, vector<496x166xf32>, vector<16x166xf32> -> vector<16x166xf32>
    %537 = vector.extract_strided_slice %536 {offsets = [0, 0], sizes = [16, 164], strides = [1, 1]} : vector<16x166xf32> to vector<16x164xf32>
    %538 = vector.extract_strided_slice %536 {offsets = [0, 1], sizes = [16, 164], strides = [1, 1]} : vector<16x166xf32> to vector<16x164xf32>
    %539 = vector.extract_strided_slice %536 {offsets = [0, 2], sizes = [16, 164], strides = [1, 1]} : vector<16x166xf32> to vector<16x164xf32>
    %540 = tpu.concatenate %537, %538, %539 in 0 : vector<16x164xf32>, vector<16x164xf32>, vector<16x164xf32> -> vector<48x164xf32>
    %c0_274 = arith.constant 0 : index
    %c0_275 = arith.constant 0 : index
    %541 = vector.load %arg5[%c0_274, %c0_275] : memref<32x48xf32, #tpu.memory_space<vmem>>, vector<32x48xf32>
    %cst_276 = arith.constant dense<0.000000e+00> : vector<32x164xf32>
    %542 = tpu.matmul %541, %540, %cst_276 {dimension_numbers = #tpu.dot_dimension_numbers<[1], [0], [0], [1], [0, 0, 1, 1], [], []>} : vector<32x48xf32>, vector<48x164xf32>, vector<32x164xf32> -> vector<32x164xf32>
    %c0_277 = arith.constant 0 : index
    %c0_278 = arith.constant 0 : index
    %543 = vector.load %arg6[%c0_277, %c0_278] : memref<32x1xf32, #tpu.memory_space<vmem>>, vector<32x1xf32>
    %544 = vector.broadcast %543 : vector<32x1xf32> to vector<32x164xf32>
    %545 = arith.addf %542, %544 : vector<32x164xf32>
    %cst_279 = arith.constant 0.000000e+00 : f32
    %546 = vector.broadcast %cst_279 : f32 to vector<32x164xf32>
    %547 = arith.maximumf %545, %546 : vector<32x164xf32>
    %548 = vector.extract_strided_slice %547 {offsets = [0, 0], sizes = [32, 162], strides = [1, 1]} : vector<32x164xf32> to vector<32x162xf32>
    %549 = vector.extract_strided_slice %547 {offsets = [0, 1], sizes = [32, 162], strides = [1, 1]} : vector<32x164xf32> to vector<32x162xf32>
    %550 = arith.maximumf %548, %549 : vector<32x162xf32>
    %551 = vector.extract_strided_slice %547 {offsets = [0, 2], sizes = [32, 162], strides = [1, 1]} : vector<32x164xf32> to vector<32x162xf32>
    %552 = arith.maximumf %550, %551 : vector<32x162xf32>
    %c0_280 = arith.constant 0 : index
    %c0_281 = arith.constant 0 : index
    %553 = vector.load %arg7[%c0_280, %c0_281] : memref<162x54xf32, #tpu.memory_space<vmem>>, vector<162x54xf32>
    %cst_282 = arith.constant dense<0.000000e+00> : vector<32x54xf32>
    %554 = tpu.matmul %552, %553, %cst_282 {dimension_numbers = #tpu.dot_dimension_numbers<[1], [0], [0], [1], [0, 0, 1, 1], [], []>} : vector<32x162xf32>, vector<162x54xf32>, vector<32x54xf32> -> vector<32x54xf32>
    %555 = vector.extract_strided_slice %554 {offsets = [0, 0], sizes = [32, 52], strides = [1, 1]} : vector<32x54xf32> to vector<32x52xf32>
    %556 = vector.extract_strided_slice %554 {offsets = [0, 1], sizes = [32, 52], strides = [1, 1]} : vector<32x54xf32> to vector<32x52xf32>
    %557 = vector.extract_strided_slice %554 {offsets = [0, 2], sizes = [32, 52], strides = [1, 1]} : vector<32x54xf32> to vector<32x52xf32>
    %558 = tpu.concatenate %555, %556, %557 in 0 : vector<32x52xf32>, vector<32x52xf32>, vector<32x52xf32> -> vector<96x52xf32>
    %c0_283 = arith.constant 0 : index
    %c0_284 = arith.constant 0 : index
    %559 = vector.load %arg8[%c0_283, %c0_284] : memref<64x96xf32, #tpu.memory_space<vmem>>, vector<64x96xf32>
    %cst_285 = arith.constant dense<0.000000e+00> : vector<64x52xf32>
    %560 = tpu.matmul %559, %558, %cst_285 {dimension_numbers = #tpu.dot_dimension_numbers<[1], [0], [0], [1], [0, 0, 1, 1], [], []>} : vector<64x96xf32>, vector<96x52xf32>, vector<64x52xf32> -> vector<64x52xf32>
    %c0_286 = arith.constant 0 : index
    %c0_287 = arith.constant 0 : index
    %561 = vector.load %arg9[%c0_286, %c0_287] : memref<64x1xf32, #tpu.memory_space<vmem>>, vector<64x1xf32>
    %562 = vector.broadcast %561 : vector<64x1xf32> to vector<64x52xf32>
    %563 = arith.addf %560, %562 : vector<64x52xf32>
    %cst_288 = arith.constant 0.000000e+00 : f32
    %564 = vector.broadcast %cst_288 : f32 to vector<64x52xf32>
    %565 = arith.maximumf %563, %564 : vector<64x52xf32>
    %566 = vector.extract_strided_slice %565 {offsets = [0, 0], sizes = [64, 50], strides = [1, 1]} : vector<64x52xf32> to vector<64x50xf32>
    %567 = vector.extract_strided_slice %565 {offsets = [0, 1], sizes = [64, 50], strides = [1, 1]} : vector<64x52xf32> to vector<64x50xf32>
    %568 = arith.maximumf %566, %567 : vector<64x50xf32>
    %569 = vector.extract_strided_slice %565 {offsets = [0, 2], sizes = [64, 50], strides = [1, 1]} : vector<64x52xf32> to vector<64x50xf32>
    %570 = arith.maximumf %568, %569 : vector<64x50xf32>
    %c0_289 = arith.constant 0 : index
    %c0_290 = arith.constant 0 : index
    %571 = vector.load %arg10[%c0_289, %c0_290] : memref<50x17xf32, #tpu.memory_space<vmem>>, vector<50x17xf32>
    %cst_291 = arith.constant dense<0.000000e+00> : vector<64x17xf32>
    %572 = tpu.matmul %570, %571, %cst_291 {dimension_numbers = #tpu.dot_dimension_numbers<[1], [0], [0], [1], [0, 0, 1, 1], [], []>} : vector<64x50xf32>, vector<50x17xf32>, vector<64x17xf32> -> vector<64x17xf32>
    %c7_292 = arith.constant 7 : index
    %c0_293 = arith.constant 0 : index
    %c0_294 = arith.constant 0 : index
    %573 = vector.load %arg11[%c7_292, %c0_293, %c0_294] : memref<8x64x17xf32, #tpu.memory_space<vmem>>, vector<1x64x17xf32>
    %574 = vector.shape_cast %573 : vector<1x64x17xf32> to vector<64x17xf32>
    %575 = vector.shape_cast %572 : vector<64x17xf32> to vector<1x64x17xf32>
    tpu.vector_store %arg11[%c7_292, %c0_293, %c0_294], %575 {strides = array<i32>} : memref<8x64x17xf32, #tpu.memory_space<vmem>>, vector<1x64x17xf32>,
    return
  }
  func.func @transform_0(%arg0: i32) -> (i32, i32) {
    %c0_i32 = arith.constant 0 : i32
    %c0_i32_0 = arith.constant 0 : i32
    return %arg0, %c0_i32 : i32, i32
  }
  func.func @transform_1(%arg0: i32) -> (i32, i32, i32) {
    %c0_i32 = arith.constant 0 : i32
    %c0_i32_0 = arith.constant 0 : i32
    %c0_i32_1 = arith.constant 0 : i32
    %c0_i32_2 = arith.constant 0 : i32
    return %c0_i32, %c0_i32_0, %c0_i32_1 : i32, i32, i32
  }
  func.func @transform_2(%arg0: i32) -> (i32, i32) {
    %c0_i32 = arith.constant 0 : i32
    %c0_i32_0 = arith.constant 0 : i32
    %c0_i32_1 = arith.constant 0 : i32
    return %c0_i32, %c0_i32_0 : i32, i32
  }
  func.func @transform_3(%arg0: i32) -> (i32, i32) {
    %c0_i32 = arith.constant 0 : i32
    %c0_i32_0 = arith.constant 0 : i32
    %c0_i32_1 = arith.constant 0 : i32
    return %c0_i32, %c0_i32_0 : i32, i32
  }
  func.func @transform_4(%arg0: i32) -> (i32, i32) {
    %c0_i32 = arith.constant 0 : i32
    %c0_i32_0 = arith.constant 0 : i32
    %c0_i32_1 = arith.constant 0 : i32
    return %c0_i32, %c0_i32_0 : i32, i32
  }
  func.func @transform_5(%arg0: i32) -> (i32, i32) {
    %c0_i32 = arith.constant 0 : i32
    %c0_i32_0 = arith.constant 0 : i32
    %c0_i32_1 = arith.constant 0 : i32
    return %c0_i32, %c0_i32_0 : i32, i32
  }
  func.func @transform_6(%arg0: i32) -> (i32, i32) {
    %c0_i32 = arith.constant 0 : i32
    %c0_i32_0 = arith.constant 0 : i32
    %c0_i32_1 = arith.constant 0 : i32
    return %c0_i32, %c0_i32_0 : i32, i32
  }
  func.func @transform_7(%arg0: i32) -> (i32, i32) {
    %c0_i32 = arith.constant 0 : i32
    %c0_i32_0 = arith.constant 0 : i32
    %c0_i32_1 = arith.constant 0 : i32
    return %c0_i32, %c0_i32_0 : i32, i32
  }
  func.func @transform_8(%arg0: i32) -> (i32, i32) {
    %c0_i32 = arith.constant 0 : i32
    %c0_i32_0 = arith.constant 0 : i32
    %c0_i32_1 = arith.constant 0 : i32
    return %c0_i32, %c0_i32_0 : i32, i32
  }
  func.func @transform_9(%arg0: i32) -> (i32, i32) {
    %c0_i32 = arith.constant 0 : i32
    %c0_i32_0 = arith.constant 0 : i32
    %c0_i32_1 = arith.constant 0 : i32
    return %c0_i32, %c0_i32_0 : i32, i32
  }
  func.func @transform_10(%arg0: i32) -> (i32, i32, i32) {
    %c0_i32 = arith.constant 0 : i32
    %c0_i32_0 = arith.constant 0 : i32
    %c0_i32_1 = arith.constant 0 : i32
    return %arg0, %c0_i32, %c0_i32_0 : i32, i32, i32
  }
}

</mosaic_0001>

<llo_original>
// kernel: onedcnn_forward.3
$region0: #{onedcnn_forward.3}
  #allocation0 [shape = 'u32[]', space=smem, size = 0x4, offset = 0x4, fixed_abs, tag = 'smem constant byte address 0x4 - core index']
  #allocation1 [shape = 'u32[144,128]{1,0:T(1,128)}', space=vmem, size = 0x12000, scoped, tag = 'internal scratch']
  %s0 = inlined_call_operand.vmem [shape: f32[8,1088], index: 0, kind: input, shape index: {}]
  %s1 = inlined_call_operand.vmem [shape: f32[1088,64], index: 1, kind: input, shape index: {}]
  %s2 = inlined_call_operand.vmem [shape: f32[1,64], index: 2, kind: input, shape index: {}]
  %s3 = inlined_call_operand.vmem [shape: f32[64,32], index: 3, kind: input, shape index: {}]
  %s4 = inlined_call_operand.vmem [shape: f32[1,32], index: 4, kind: input, shape index: {}]
  %s5 = inlined_call_operand.vmem [shape: f32[32,2], index: 5, kind: input, shape index: {}]
  %s6 = inlined_call_operand.vmem [shape: f32[1,2], index: 6, kind: input, shape index: {}]
  %s7 = inlined_call_operand.vmem [shape: f32[8,2], index: 7, kind: output, shape index: {}]
  %s8 = sld [smem:[#allocation0]]
  $region38: #{onedcnn_forward.3} parent=0
    _
  %s10 = ssub.s32 1, %s8
  %s11 = scalar_select 0, %s10, %s8
  // Predicated region
  $region2: #{onedcnn_forward.3} parent=0 // pred_check
    _
  $region3: #{onedcnn_forward.3} parent=0 // pred_check_branch
    %13 = sbr.rel (0) target = $region5
  $region4: #{onedcnn_forward.3} parent=0 // pred_region
    _
  $region5: #{onedcnn_forward.3} parent=0 // pred_fallthru
    _
  // Predicated region
  $region6: #{onedcnn_forward.3} parent=0 // pred_check
    _
  $region7: #{onedcnn_forward.3} parent=0 // pred_check_branch
    %15 = sbr.rel (0) target = $region9
  $region8: #{onedcnn_forward.3} parent=0 // pred_region
    _
  $region9: #{onedcnn_forward.3} parent=0 // pred_fallthru
    _
  // Predicated region
  $region10: #{onedcnn_forward.3} parent=0 // pred_check
    _
  $region11: #{onedcnn_forward.3} parent=0 // pred_check_branch
    %17 = sbr.rel (0) target = $region13
  $region12: #{onedcnn_forward.3} parent=0 // pred_region
    _
  $region13: #{onedcnn_forward.3} parent=0 // pred_fallthru
    _
  // Predicated region
  $region14: #{onedcnn_forward.3} parent=0 // pred_check
    _
  $region15: #{onedcnn_forward.3} parent=0 // pred_check_branch
    %19 = sbr.rel (0) target = $region17
  $region16: #{onedcnn_forward.3} parent=0 // pred_region
    _
  $region17: #{onedcnn_forward.3} parent=0 // pred_fallthru
    _
  // Predicated region
  $region18: #{onedcnn_forward.3} parent=0 // pred_check
    _
  $region19: #{onedcnn_forward.3} parent=0 // pred_check_branch
    %21 = sbr.rel (0) target = $region21
  $region20: #{onedcnn_forward.3} parent=0 // pred_region
    _
  $region21: #{onedcnn_forward.3} parent=0 // pred_fallthru
    _
  // Predicated region
  $region22: #{onedcnn_forward.3} parent=0 // pred_check
    _
  $region23: #{onedcnn_forward.3} parent=0 // pred_check_branch
    %23 = sbr.rel (0) target = $region25
  $region24: #{onedcnn_forward.3} parent=0 // pred_region
    _
  $region25: #{onedcnn_forward.3} parent=0 // pred_fallthru
    _
  // Predicated region
  $region26: #{onedcnn_forward.3} parent=0 // pred_check
    _
  $region27: #{onedcnn_forward.3} parent=0 // pred_check_branch
    %25 = sbr.rel (0) target = $region29
  $region28: #{onedcnn_forward.3} parent=0 // pred_region
    _
  $region29: #{onedcnn_forward.3} parent=0 // pred_fallthru
    _
  %v26 = vld [vmem:[%s0] sm:$0xff]
  %v27 = vld [vmem:[%s0 + $0x8] sm:$0xff]
  %v28 = vld [vmem:[%s0 + $0x10] sm:$0xff]
  %v29 = vld [vmem:[%s0 + $0x18] sm:$0xff]
  %v30 = vld [vmem:[%s0 + $0x20] sm:$0xff]
  %v31 = vld [vmem:[%s0 + $0x28] sm:$0xff]
  %v32 = vld [vmem:[%s0 + $0x30] sm:$0xff]
  %v33 = vld [vmem:[%s0 + $0x38] sm:$0xff]
  %v34 = vld [vmem:[%s0 + $0x40] sm:$0xff]
  %v35 = vld [vmem:[%s1] sm:$0xff]
  %v36 = vld [vmem:[%s1 + $0x8] sm:$0xff]
  %v37 = vld [vmem:[%s1 + $0x10] sm:$0xff]
  %v38 = vld [vmem:[%s1 + $0x18] sm:$0xff]
  %v39 = vld [vmem:[%s1 + $0x20] sm:$0xff]
  %v40 = vld [vmem:[%s1 + $0x28] sm:$0xff]
  %v41 = vld [vmem:[%s1 + $0x30] sm:$0xff]
  %v42 = vld [vmem:[%s1 + $0x38] sm:$0xff]
  %v43 = vld [vmem:[%s1 + $0x40] sm:$0xff]
  %v44 = vld [vmem:[%s1 + $0x48] sm:$0xff]
  %v45 = vld [vmem:[%s1 + $0x50] sm:$0xff]
  %v46 = vld [vmem:[%s1 + $0x58] sm:$0xff]
  %v47 = vld [vmem:[%s1 + $0x60] sm:$0xff]
  %v48 = vld [vmem:[%s1 + $0x68] sm:$0xff]
  %v49 = vld [vmem:[%s1 + $0x70] sm:$0xff]
  %v50 = vld [vmem:[%s1 + $0x78] sm:$0xff]
  %v51 = vld [vmem:[%s1 + $0x80] sm:$0xff]
  %v52 = vld [vmem:[%s1 + $0x88] sm:$0xff]
  %v53 = vld [vmem:[%s1 + $0x90] sm:$0xff]
  %v54 = vld [vmem:[%s1 + $0x98] sm:$0xff]
  %v55 = vld [vmem:[%s1 + $0xa0] sm:$0xff]
  %v56 = vld [vmem:[%s1 + $0xa8] sm:$0xff]
  %v57 = vld [vmem:[%s1 + $0xb0] sm:$0xff]
  %v58 = vld [vmem:[%s1 + $0xb8] sm:$0xff]
  %v59 = vld [vmem:[%s1 + $0xc0] sm:$0xff]
  %v60 = vld [vmem:[%s1 + $0xc8] sm:$0xff]
  %v61 = vld [vmem:[%s1 + $0xd0] sm:$0xff]
  %v62 = vld [vmem:[%s1 + $0xd8] sm:$0xff]
  %v63 = vld [vmem:[%s1 + $0xe0] sm:$0xff]
  %v64 = vld [vmem:[%s1 + $0xe8] sm:$0xff]
  %v65 = vld [vmem:[%s1 + $0xf0] sm:$0xff]
  %v66 = vld [vmem:[%s1 + $0xf8] sm:$0xff]
  %v67 = vld [vmem:[%s1 + $0x100] sm:$0xff]
  %v68 = vld [vmem:[%s1 + $0x108] sm:$0xff]
  %v69 = vld [vmem:[%s1 + $0x110] sm:$0xff]
  %v70 = vld [vmem:[%s1 + $0x118] sm:$0xff]
  %v71 = vld [vmem:[%s1 + $0x120] sm:$0xff]
  %v72 = vld [vmem:[%s1 + $0x128] sm:$0xff]
  %v73 = vld [vmem:[%s1 + $0x130] sm:$0xff]
  %v74 = vld [vmem:[%s1 + $0x138] sm:$0xff]
  %v75 = vld [vmem:[%s1 + $0x140] sm:$0xff]
  %v76 = vld [vmem:[%s1 + $0x148] sm:$0xff]
  %v77 = vld [vmem:[%s1 + $0x150] sm:$0xff]
  %v78 = vld [vmem:[%s1 + $0x158] sm:$0xff]
  %v79 = vld [vmem:[%s1 + $0x160] sm:$0xff]
  %v80 = vld [vmem:[%s1 + $0x168] sm:$0xff]
  %v81 = vld [vmem:[%s1 + $0x170] sm:$0xff]
  %v82 = vld [vmem:[%s1 + $0x178] sm:$0xff]
  %v83 = vld [vmem:[%s1 + $0x180] sm:$0xff]
  %v84 = vld [vmem:[%s1 + $0x188] sm:$0xff]
  %v85 = vld [vmem:[%s1 + $0x190] sm:$0xff]
  %v86 = vld [vmem:[%s1 + $0x198] sm:$0xff]
  %v87 = vld [vmem:[%s1 + $0x1a0] sm:$0xff]
  %v88 = vld [vmem:[%s1 + $0x1a8] sm:$0xff]
  %v89 = vld [vmem:[%s1 + $0x1b0] sm:$0xff]
  %v90 = vld [vmem:[%s1 + $0x1b8] sm:$0xff]
  %v91 = vld [vmem:[%s1 + $0x1c0] sm:$0xff]
  %v92 = vld [vmem:[%s1 + $0x1c8] sm:$0xff]
  %v93 = vld [vmem:[%s1 + $0x1d0] sm:$0xff]
  %v94 = vld [vmem:[%s1 + $0x1d8] sm:$0xff]
  %v95 = vld [vmem:[%s1 + $0x1e0] sm:$0xff]
  %v96 = vld [vmem:[%s1 + $0x1e8] sm:$0xff]
  %v97 = vld [vmem:[%s1 + $0x1f0] sm:$0xff]
  %v98 = vld [vmem:[%s1 + $0x1f8] sm:$0xff]
  %v99 = vld [vmem:[%s1 + $0x200] sm:$0xff]
  %v100 = vld [vmem:[%s1 + $0x208] sm:$0xff]
  %v101 = vld [vmem:[%s1 + $0x210] sm:$0xff]
  %v102 = vld [vmem:[%s1 + $0x218] sm:$0xff]
  %v103 = vld [vmem:[%s1 + $0x220] sm:$0xff]
  %v104 = vld [vmem:[%s1 + $0x228] sm:$0xff]
  %v105 = vld [vmem:[%s1 + $0x230] sm:$0xff]
  %v106 = vld [vmem:[%s1 + $0x238] sm:$0xff]
  %v107 = vld [vmem:[%s1 + $0x240] sm:$0xff]
  %v108 = vld [vmem:[%s1 + $0x248] sm:$0xff]
  %v109 = vld [vmem:[%s1 + $0x250] sm:$0xff]
  %v110 = vld [vmem:[%s1 + $0x258] sm:$0xff]
  %v111 = vld [vmem:[%s1 + $0x260] sm:$0xff]
  %v112 = vld [vmem:[%s1 + $0x268] sm:$0xff]
  %v113 = vld [vmem:[%s1 + $0x270] sm:$0xff]
  %v114 = vld [vmem:[%s1 + $0x278] sm:$0xff]
  %v115 = vld [vmem:[%s1 + $0x280] sm:$0xff]
  %v116 = vld [vmem:[%s1 + $0x288] sm:$0xff]
  %v117 = vld [vmem:[%s1 + $0x290] sm:$0xff]
  %v118 = vld [vmem:[%s1 + $0x298] sm:$0xff]
  %v119 = vld [vmem:[%s1 + $0x2a0] sm:$0xff]
  %v120 = vld [vmem:[%s1 + $0x2a8] sm:$0xff]
  %v121 = vld [vmem:[%s1 + $0x2b0] sm:$0xff]
  %v122 = vld [vmem:[%s1 + $0x2b8] sm:$0xff]
  %v123 = vld [vmem:[%s1 + $0x2c0] sm:$0xff]
  %v124 = vld [vmem:[%s1 + $0x2c8] sm:$0xff]
  %v125 = vld [vmem:[%s1 + $0x2d0] sm:$0xff]
  %v126 = vld [vmem:[%s1 + $0x2d8] sm:$0xff]
  %v127 = vld [vmem:[%s1 + $0x2e0] sm:$0xff]
  %v128 = vld [vmem:[%s1 + $0x2e8] sm:$0xff]
  %v129 = vld [vmem:[%s1 + $0x2f0] sm:$0xff]
  %v130 = vld [vmem:[%s1 + $0x2f8] sm:$0xff]
  %v131 = vld [vmem:[%s1 + $0x300] sm:$0xff]
  %v132 = vld [vmem:[%s1 + $0x308] sm:$0xff]
  %v133 = vld [vmem:[%s1 + $0x310] sm:$0xff]
  %v134 = vld [vmem:[%s1 + $0x318] sm:$0xff]
  %v135 = vld [vmem:[%s1 + $0x320] sm:$0xff]
  %v136 = vld [vmem:[%s1 + $0x328] sm:$0xff]
  %v137 = vld [vmem:[%s1 + $0x330] sm:$0xff]
  %v138 = vld [vmem:[%s1 + $0x338] sm:$0xff]
  %v139 = vld [vmem:[%s1 + $0x340] sm:$0xff]
  %v140 = vld [vmem:[%s1 + $0x348] sm:$0xff]
  %v141 = vld [vmem:[%s1 + $0x350] sm:$0xff]
  %v142 = vld [vmem:[%s1 + $0x358] sm:$0xff]
  %v143 = vld [vmem:[%s1 + $0x360] sm:$0xff]
  %v144 = vld [vmem:[%s1 + $0x368] sm:$0xff]
  %v145 = vld [vmem:[%s1 + $0x370] sm:$0xff]
  %v146 = vld [vmem:[%s1 + $0x378] sm:$0xff]
  %v147 = vld [vmem:[%s1 + $0x380] sm:$0xff]
  %v148 = vld [vmem:[%s1 + $0x388] sm:$0xff]
  %v149 = vld [vmem:[%s1 + $0x390] sm:$0xff]
  %v150 = vld [vmem:[%s1 + $0x398] sm:$0xff]
  %v151 = vld [vmem:[%s1 + $0x3a0] sm:$0xff]
  %v152 = vld [vmem:[%s1 + $0x3a8] sm:$0xff]
  %v153 = vld [vmem:[%s1 + $0x3b0] sm:$0xff]
  %v154 = vld [vmem:[%s1 + $0x3b8] sm:$0xff]
  %v155 = vld [vmem:[%s1 + $0x3c0] sm:$0xff]
  %v156 = vld [vmem:[%s1 + $0x3c8] sm:$0xff]
  %v157 = vld [vmem:[%s1 + $0x3d0] sm:$0xff]
  %v158 = vld [vmem:[%s1 + $0x3d8] sm:$0xff]
  %v159 = vld [vmem:[%s1 + $0x3e0] sm:$0xff]
  %v160 = vld [vmem:[%s1 + $0x3e8] sm:$0xff]
  %v161 = vld [vmem:[%s1 + $0x3f0] sm:$0xff]
  %v162 = vld [vmem:[%s1 + $0x3f8] sm:$0xff]
  %v163 = vld [vmem:[%s1 + $0x400] sm:$0xff]
  %v164 = vld [vmem:[%s1 + $0x408] sm:$0xff]
  %v165 = vld [vmem:[%s1 + $0x410] sm:$0xff]
  %v166 = vld [vmem:[%s1 + $0x418] sm:$0xff]
  %v167 = vld [vmem:[%s1 + $0x420] sm:$0xff]
  %v168 = vld [vmem:[%s1 + $0x428] sm:$0xff]
  %v169 = vld [vmem:[%s1 + $0x430] sm:$0xff]
  %v170 = vld [vmem:[%s1 + $0x438] sm:$0xff]
  %v171 = vld [vmem:[%s2] sm:$0x1]
  %v173 = vlaneseq
  %v174 = vshrl.u32 %v173, 7
  %v175 = vsub.s32 0, %v174
  %v176 = vrot.slane %v171, %v175
  %vm178 = vcmask 523264
  %v180 = vsel %vm178, %v34, 0
  %182 = vmatprep.subr.mxu0 0.0
  %183 = vmatpush1.msra.mxu0 %v50
  %184 = vmatprep.subr.mxu0 0.0
  %185 = vmatpush1.msra.mxu0 %v49
  %186 = vmatprep.subr.mxu0 0.0
  %187 = vmatpush1.msra.mxu0 %v48
  %188 = vmatprep.subr.mxu0 0.0
  %189 = vmatpush1.msra.mxu0 %v47
  %190 = vmatprep.subr.mxu0 0.0
  %191 = vmatpush1.msra.mxu0 %v46
  %192 = vmatprep.subr.mxu0 0.0
  %193 = vmatpush1.msra.mxu0 %v45
  %194 = vmatprep.subr.mxu0 0.0
  %195 = vmatpush1.msra.mxu0 %v44
  %196 = vmatprep.subr.mxu0 0.0
  %197 = vmatpush1.msra.mxu0 %v43
  %198 = vmatprep.subr.mxu0 0.0
  %199 = vmatpush1.msra.mxu0 %v42
  %200 = vmatprep.subr.mxu0 0.0
  %201 = vmatpush1.msra.mxu0 %v41
  %202 = vmatprep.subr.mxu0 0.0
  %203 = vmatpush1.msra.mxu0 %v40
  %204 = vmatprep.subr.mxu0 0.0
  %205 = vmatpush1.msra.mxu0 %v39
  %206 = vmatprep.subr.mxu0 0.0
  %207 = vmatpush1.msra.mxu0 %v38
  %208 = vmatprep.subr.mxu0 0.0
  %209 = vmatpush1.msra.mxu0 %v37
  %210 = vmatprep.subr.mxu0 0.0
  %211 = vmatpush1.msra.mxu0 %v36
  %212 = vmatprep.subr.mxu0 0.0
  %213 = vmatpush1.msra.mxu0 %v35
  %214 = vmatprep.subr.mxu0 0.0
  %215 = vmatpush2.msra.mxu0 %v66
  %216 = vmatprep.subr.mxu0 0.0
  %217 = vmatpush2.msra.mxu0 %v65
  %218 = vmatprep.subr.mxu0 0.0
  %219 = vmatpush2.msra.mxu0 %v64
  %220 = vmatprep.subr.mxu0 0.0
  %221 = vmatpush2.msra.mxu0 %v63
  %222 = vmatprep.subr.mxu0 0.0
  %223 = vmatpush2.msra.mxu0 %v62
  %224 = vmatprep.subr.mxu0 0.0
  %225 = vmatpush2.msra.mxu0 %v61
  %226 = vmatprep.subr.mxu0 0.0
  %227 = vmatpush2.msra.mxu0 %v60
  %228 = vmatprep.subr.mxu0 0.0
  %229 = vmatpush2.msra.mxu0 %v59
  %230 = vmatprep.subr.mxu0 0.0
  %231 = vmatpush2.msra.mxu0 %v58
  %232 = vmatprep.subr.mxu0 0.0
  %233 = vmatpush2.msra.mxu0 %v57
  %234 = vmatprep.subr.mxu0 0.0
  %235 = vmatpush2.msra.mxu0 %v56
  %236 = vmatprep.subr.mxu0 0.0
  %237 = vmatpush2.msra.mxu0 %v55
  %238 = vmatprep.subr.mxu0 0.0
  %239 = vmatpush2.msra.mxu0 %v54
  %240 = vmatprep.subr.mxu0 0.0
  %241 = vmatpush2.msra.mxu0 %v53
  %242 = vmatprep.subr.mxu0 0.0
  %243 = vmatpush2.msra.mxu0 %v52
  %244 = vmatprep.subr.mxu0 0.0
  %245 = vmatpush2.msra.mxu0 %v51
  %246 = vmatprep.mubr.f32.mxu0 %v27
  %247 = vmatmul.mubr.f32.gmra.mxu0 %v26
  %v248 = vpop.f32.mrf.mxu0
  %v249 = vadd.f32 %v176, %v248
  %v250 = vpop.f32.mrf.mxu0
  %251 = vdwg.mxu0
  %252 = vmatprep.subr.mxu0 0.0
  %253 = vmatpush1.msra.mxu0 %v82
  %254 = vmatprep.subr.mxu0 0.0
  %255 = vmatpush1.msra.mxu0 %v81
  %256 = vmatprep.subr.mxu0 0.0
  %257 = vmatpush1.msra.mxu0 %v80
  %258 = vmatprep.subr.mxu0 0.0
  %259 = vmatpush1.msra.mxu0 %v79
  %260 = vmatprep.subr.mxu0 0.0
  %261 = vmatpush1.msra.mxu0 %v78
  %262 = vmatprep.subr.mxu0 0.0
  %263 = vmatpush1.msra.mxu0 %v77
  %264 = vmatprep.subr.mxu0 0.0
  %265 = vmatpush1.msra.mxu0 %v76
  %266 = vmatprep.subr.mxu0 0.0
  %267 = vmatpush1.msra.mxu0 %v75
  %268 = vmatprep.subr.mxu0 0.0
  %269 = vmatpush1.msra.mxu0 %v74
  %270 = vmatprep.subr.mxu0 0.0
  %271 = vmatpush1.msra.mxu0 %v73
  %272 = vmatprep.subr.mxu0 0.0
  %273 = vmatpush1.msra.mxu0 %v72
  %274 = vmatprep.subr.mxu0 0.0
  %275 = vmatpush1.msra.mxu0 %v71
  %276 = vmatprep.subr.mxu0 0.0
  %277 = vmatpush1.msra.mxu0 %v70
  %278 = vmatprep.subr.mxu0 0.0
  %279 = vmatpush1.msra.mxu0 %v69
  %280 = vmatprep.subr.mxu0 0.0
  %281 = vmatpush1.msra.mxu0 %v68
  %282 = vmatprep.subr.mxu0 0.0
  %283 = vmatpush1.msra.mxu0 %v67
  %284 = vmatprep.subr.mxu0 0.0
  %285 = vmatpush2.msra.mxu0 %v98
  %286 = vmatprep.subr.mxu0 0.0
  %287 = vmatpush2.msra.mxu0 %v97
  %288 = vmatprep.subr.mxu0 0.0
  %289 = vmatpush2.msra.mxu0 %v96
  %290 = vmatprep.subr.mxu0 0.0
  %291 = vmatpush2.msra.mxu0 %v95
  %292 = vmatprep.subr.mxu0 0.0
  %293 = vmatpush2.msra.mxu0 %v94
  %294 = vmatprep.subr.mxu0 0.0
  %295 = vmatpush2.msra.mxu0 %v93
  %296 = vmatprep.subr.mxu0 0.0
  %297 = vmatpush2.msra.mxu0 %v92
  %298 = vmatprep.subr.mxu0 0.0
  %299 = vmatpush2.msra.mxu0 %v91
  %300 = vmatprep.subr.mxu0 0.0
  %301 = vmatpush2.msra.mxu0 %v90
  %302 = vmatprep.subr.mxu0 0.0
  %303 = vmatpush2.msra.mxu0 %v89
  %304 = vmatprep.subr.mxu0 0.0
  %305 = vmatpush2.msra.mxu0 %v88
  %306 = vmatprep.subr.mxu0 0.0
  %307 = vmatpush2.msra.mxu0 %v87
  %308 = vmatprep.subr.mxu0 0.0
  %309 = vmatpush2.msra.mxu0 %v86
  %310 = vmatprep.subr.mxu0 0.0
  %311 = vmatpush2.msra.mxu0 %v85
  %312 = vmatprep.subr.mxu0 0.0
  %313 = vmatpush2.msra.mxu0 %v84
  %314 = vmatprep.subr.mxu0 0.0
  %315 = vmatpush2.msra.mxu0 %v83
  %316 = vmatprep.mubr.f32.mxu0 %v29
  %317 = vmatmul.mubr.f32.gmra.mxu0 %v28
  %v318 = vpop.f32.mrf.mxu0
  %v319 = vadd.f32 %v249, %v318
  %v320 = vpop.f32.mrf.mxu0
  %321 = vdwg.mxu0
  %322 = vmatprep.subr.mxu0 0.0
  %323 = vmatpush1.msra.mxu0 %v114
  %324 = vmatprep.subr.mxu0 0.0
  %325 = vmatpush1.msra.mxu0 %v113
  %326 = vmatprep.subr.mxu0 0.0
  %327 = vmatpush1.msra.mxu0 %v112
  %328 = vmatprep.subr.mxu0 0.0
  %329 = vmatpush1.msra.mxu0 %v111
  %330 = vmatprep.subr.mxu0 0.0
  %331 = vmatpush1.msra.mxu0 %v110
  %332 = vmatprep.subr.mxu0 0.0
  %333 = vmatpush1.msra.mxu0 %v109
  %334 = vmatprep.subr.mxu0 0.0
  %335 = vmatpush1.msra.mxu0 %v108
  %336 = vmatprep.subr.mxu0 0.0
  %337 = vmatpush1.msra.mxu0 %v107
  %338 = vmatprep.subr.mxu0 0.0
  %339 = vmatpush1.msra.mxu0 %v106
  %340 = vmatprep.subr.mxu0 0.0
  %341 = vmatpush1.msra.mxu0 %v105
  %342 = vmatprep.subr.mxu0 0.0
  %343 = vmatpush1.msra.mxu0 %v104
  %344 = vmatprep.subr.mxu0 0.0
  %345 = vmatpush1.msra.mxu0 %v103
  %346 = vmatprep.subr.mxu0 0.0
  %347 = vmatpush1.msra.mxu0 %v102
  %348 = vmatprep.subr.mxu0 0.0
  %349 = vmatpush1.msra.mxu0 %v101
  %350 = vmatprep.subr.mxu0 0.0
  %351 = vmatpush1.msra.mxu0 %v100
  %352 = vmatprep.subr.mxu0 0.0
  %353 = vmatpush1.msra.mxu0 %v99
  %354 = vmatprep.subr.mxu0 0.0
  %355 = vmatpush2.msra.mxu0 %v130
  %356 = vmatprep.subr.mxu0 0.0
  %357 = vmatpush2.msra.mxu0 %v129
  %358 = vmatprep.subr.mxu0 0.0
  %359 = vmatpush2.msra.mxu0 %v128
  %360 = vmatprep.subr.mxu0 0.0
  %361 = vmatpush2.msra.mxu0 %v127
  %362 = vmatprep.subr.mxu0 0.0
  %363 = vmatpush2.msra.mxu0 %v126
  %364 = vmatprep.subr.mxu0 0.0
  %365 = vmatpush2.msra.mxu0 %v125
  %366 = vmatprep.subr.mxu0 0.0
  %367 = vmatpush2.msra.mxu0 %v124
  %368 = vmatprep.subr.mxu0 0.0
  %369 = vmatpush2.msra.mxu0 %v123
  %370 = vmatprep.subr.mxu0 0.0
  %371 = vmatpush2.msra.mxu0 %v122
  %372 = vmatprep.subr.mxu0 0.0
  %373 = vmatpush2.msra.mxu0 %v121
  %374 = vmatprep.subr.mxu0 0.0
  %375 = vmatpush2.msra.mxu0 %v120
  %376 = vmatprep.subr.mxu0 0.0
  %377 = vmatpush2.msra.mxu0 %v119
  %378 = vmatprep.subr.mxu0 0.0
  %379 = vmatpush2.msra.mxu0 %v118
  %380 = vmatprep.subr.mxu0 0.0
  %381 = vmatpush2.msra.mxu0 %v117
  %382 = vmatprep.subr.mxu0 0.0
  %383 = vmatpush2.msra.mxu0 %v116
  %384 = vmatprep.subr.mxu0 0.0
  %385 = vmatpush2.msra.mxu0 %v115
  %386 = vmatprep.mubr.f32.mxu0 %v31
  %387 = vmatmul.mubr.f32.gmra.mxu0 %v30
  %v388 = vpop.f32.mrf.mxu0
  %v389 = vadd.f32 %v319, %v388
  %v390 = vpop.f32.mrf.mxu0
  %391 = vdwg.mxu0
  %392 = vmatprep.subr.mxu0 0.0
  %393 = vmatpush1.msra.mxu0 %v146
  %394 = vmatprep.subr.mxu0 0.0
  %395 = vmatpush1.msra.mxu0 %v145
  %396 = vmatprep.subr.mxu0 0.0
  %397 = vmatpush1.msra.mxu0 %v144
  %398 = vmatprep.subr.mxu0 0.0
  %399 = vmatpush1.msra.mxu0 %v143
  %400 = vmatprep.subr.mxu0 0.0
  %401 = vmatpush1.msra.mxu0 %v142
  %402 = vmatprep.subr.mxu0 0.0
  %403 = vmatpush1.msra.mxu0 %v141
  %404 = vmatprep.subr.mxu0 0.0
  %405 = vmatpush1.msra.mxu0 %v140
  %406 = vmatprep.subr.mxu0 0.0
  %407 = vmatpush1.msra.mxu0 %v139
  %408 = vmatprep.subr.mxu0 0.0
  %409 = vmatpush1.msra.mxu0 %v138
  %410 = vmatprep.subr.mxu0 0.0
  %411 = vmatpush1.msra.mxu0 %v137
  %412 = vmatprep.subr.mxu0 0.0
  %413 = vmatpush1.msra.mxu0 %v136
  %414 = vmatprep.subr.mxu0 0.0
  %415 = vmatpush1.msra.mxu0 %v135
  %416 = vmatprep.subr.mxu0 0.0
  %417 = vmatpush1.msra.mxu0 %v134
  %418 = vmatprep.subr.mxu0 0.0
  %419 = vmatpush1.msra.mxu0 %v133
  %420 = vmatprep.subr.mxu0 0.0
  %421 = vmatpush1.msra.mxu0 %v132
  %422 = vmatprep.subr.mxu0 0.0
  %423 = vmatpush1.msra.mxu0 %v131
  %424 = vmatprep.subr.mxu0 0.0
  %425 = vmatpush2.msra.mxu0 %v162
  %426 = vmatprep.subr.mxu0 0.0
  %427 = vmatpush2.msra.mxu0 %v161
  %428 = vmatprep.subr.mxu0 0.0
  %429 = vmatpush2.msra.mxu0 %v160
  %430 = vmatprep.subr.mxu0 0.0
  %431 = vmatpush2.msra.mxu0 %v159
  %432 = vmatprep.subr.mxu0 0.0
  %433 = vmatpush2.msra.mxu0 %v158
  %434 = vmatprep.subr.mxu0 0.0
  %435 = vmatpush2.msra.mxu0 %v157
  %436 = vmatprep.subr.mxu0 0.0
  %437 = vmatpush2.msra.mxu0 %v156
  %438 = vmatprep.subr.mxu0 0.0
  %439 = vmatpush2.msra.mxu0 %v155
  %440 = vmatprep.subr.mxu0 0.0
  %441 = vmatpush2.msra.mxu0 %v154
  %442 = vmatprep.subr.mxu0 0.0
  %443 = vmatpush2.msra.mxu0 %v153
  %444 = vmatprep.subr.mxu0 0.0
  %445 = vmatpush2.msra.mxu0 %v152
  %446 = vmatprep.subr.mxu0 0.0
  %447 = vmatpush2.msra.mxu0 %v151
  %448 = vmatprep.subr.mxu0 0.0
  %449 = vmatpush2.msra.mxu0 %v150
  %450 = vmatprep.subr.mxu0 0.0
  %451 = vmatpush2.msra.mxu0 %v149
  %452 = vmatprep.subr.mxu0 0.0
  %453 = vmatpush2.msra.mxu0 %v148
  %454 = vmatprep.subr.mxu0 0.0
  %455 = vmatpush2.msra.mxu0 %v147
  %456 = vmatprep.mubr.f32.mxu0 %v33
  %457 = vmatmul.mubr.f32.gmra.mxu0 %v32
  %v458 = vpop.f32.mrf.mxu0
  %v459 = vadd.f32 %v389, %v458
  %v460 = vpop.f32.mrf.mxu0
  %461 = vdwg.mxu0
  %462 = vmatprep.subr.mxu0 0.0
  %463 = vmatpush1.msra.mxu0 0.0
  %464 = vmatprep.subr.mxu0 0.0
  %465 = vmatpush1.msra.mxu0 0.0
  %466 = vmatprep.subr.mxu0 0.0
  %467 = vmatpush1.msra.mxu0 0.0
  %468 = vmatprep.subr.mxu0 0.0
  %469 = vmatpush1.msra.mxu0 0.0
  %470 = vmatprep.subr.mxu0 0.0
  %471 = vmatpush1.msra.mxu0 0.0
  %472 = vmatprep.subr.mxu0 0.0
  %473 = vmatpush1.msra.mxu0 0.0
  %474 = vmatprep.subr.mxu0 0.0
  %475 = vmatpush1.msra.mxu0 0.0
  %476 = vmatprep.subr.mxu0 0.0
  %477 = vmatpush1.msra.mxu0 0.0
  %478 = vmatprep.subr.mxu0 0.0
  %479 = vmatpush1.msra.mxu0 %v170
  %480 = vmatprep.subr.mxu0 0.0
  %481 = vmatpush1.msra.mxu0 %v169
  %482 = vmatprep.subr.mxu0 0.0
  %483 = vmatpush1.msra.mxu0 %v168
  %484 = vmatprep.subr.mxu0 0.0
  %485 = vmatpush1.msra.mxu0 %v167
  %486 = vmatprep.subr.mxu0 0.0
  %487 = vmatpush1.msra.mxu0 %v166
  %488 = vmatprep.subr.mxu0 0.0
  %489 = vmatpush1.msra.mxu0 %v165
  %490 = vmatprep.subr.mxu0 0.0
  %491 = vmatpush1.msra.mxu0 %v164
  %492 = vmatprep.subr.mxu0 0.0
  %493 = vmatpush1.msra.mxu0 %v163
  %494 = vmatprep.subr.mxu0 0.0
  %495 = vmatpush2.msra.mxu0 0.0
  %496 = vmatprep.subr.mxu0 0.0
  %497 = vmatpush2.msra.mxu0 0.0
  %498 = vmatprep.subr.mxu0 0.0
  %499 = vmatpush2.msra.mxu0 0.0
  %500 = vmatprep.subr.mxu0 0.0
  %501 = vmatpush2.msra.mxu0 0.0
  %502 = vmatprep.subr.mxu0 0.0
  %503 = vmatpush2.msra.mxu0 0.0
  %504 = vmatprep.subr.mxu0 0.0
  %505 = vmatpush2.msra.mxu0 0.0
  %506 = vmatprep.subr.mxu0 0.0
  %507 = vmatpush2.msra.mxu0 0.0
  %508 = vmatprep.subr.mxu0 0.0
  %509 = vmatpush2.msra.mxu0 0.0
  %510 = vmatprep.subr.mxu0 0.0
  %511 = vmatpush2.msra.mxu0 0.0
  %512 = vmatprep.subr.mxu0 0.0
  %513 = vmatpush2.msra.mxu0 0.0
  %514 = vmatprep.subr.mxu0 0.0
  %515 = vmatpush2.msra.mxu0 0.0
  %516 = vmatprep.subr.mxu0 0.0
  %517 = vmatpush2.msra.mxu0 0.0
  %518 = vmatprep.subr.mxu0 0.0
  %519 = vmatpush2.msra.mxu0 0.0
  %520 = vmatprep.subr.mxu0 0.0
  %521 = vmatpush2.msra.mxu0 0.0
  %522 = vmatprep.subr.mxu0 0.0
  %523 = vmatpush2.msra.mxu0 0.0
  %524 = vmatprep.subr.mxu0 0.0
  %525 = vmatpush2.msra.mxu0 0.0
  %526 = vmatprep.mubr.f32.mxu0 0.0
  %527 = vmatmul.mubr.f32.gmra.mxu0 %v180
  %v528 = vpop.f32.mrf.mxu0
  %v529 = vadd.f32 %v459, %v528
  %v530 = vpop.f32.mrf.mxu0
  %531 = vdwg.mxu0
  %v532 = vmax.f32 %v529, 0.0
  %v533 = vld [vmem:[%s3] sm:$0xff]
  %v534 = vld [vmem:[%s3 + $0x8] sm:$0xff]
  %v535 = vld [vmem:[%s3 + $0x10] sm:$0xff]
  %v536 = vld [vmem:[%s3 + $0x18] sm:$0xff]
  %v537 = vld [vmem:[%s3 + $0x20] sm:$0xff]
  %v538 = vld [vmem:[%s3 + $0x28] sm:$0xff]
  %v539 = vld [vmem:[%s3 + $0x30] sm:$0xff]
  %v540 = vld [vmem:[%s3 + $0x38] sm:$0xff]
  %v541 = vld [vmem:[%s4] sm:$0x1]
  %v543 = vlaneseq
  %v544 = vshrl.u32 %v543, 7
  %v545 = vsub.s32 0, %v544
  %v546 = vrot.slane %v541, %v545
  %v549 = vsel %vm178, %v532, 0
  %551 = vmatprep.subr.mxu0 0.0
  %552 = vmatpush1.msra.mxu0 0.0
  %553 = vmatprep.subr.mxu0 0.0
  %554 = vmatpush1.msra.mxu0 0.0
  %555 = vmatprep.subr.mxu0 0.0
  %556 = vmatpush1.msra.mxu0 0.0
  %557 = vmatprep.subr.mxu0 0.0
  %558 = vmatpush1.msra.mxu0 0.0
  %559 = vmatprep.subr.mxu0 0.0
  %560 = vmatpush1.msra.mxu0 0.0
  %561 = vmatprep.subr.mxu0 0.0
  %562 = vmatpush1.msra.mxu0 0.0
  %563 = vmatprep.subr.mxu0 0.0
  %564 = vmatpush1.msra.mxu0 0.0
  %565 = vmatprep.subr.mxu0 0.0
  %566 = vmatpush1.msra.mxu0 0.0
  %567 = vmatprep.subr.mxu0 0.0
  %568 = vmatpush1.msra.mxu0 %v540
  %569 = vmatprep.subr.mxu0 0.0
  %570 = vmatpush1.msra.mxu0 %v539
  %571 = vmatprep.subr.mxu0 0.0
  %572 = vmatpush1.msra.mxu0 %v538
  %573 = vmatprep.subr.mxu0 0.0
  %574 = vmatpush1.msra.mxu0 %v537
  %575 = vmatprep.subr.mxu0 0.0
  %576 = vmatpush1.msra.mxu0 %v536
  %577 = vmatprep.subr.mxu0 0.0
  %578 = vmatpush1.msra.mxu0 %v535
  %579 = vmatprep.subr.mxu0 0.0
  %580 = vmatpush1.msra.mxu0 %v534
  %581 = vmatprep.subr.mxu0 0.0
  %582 = vmatpush1.msra.mxu0 %v533
  %583 = vmatprep.subr.mxu0 0.0
  %584 = vmatpush2.msra.mxu0 0.0
  %585 = vmatprep.subr.mxu0 0.0
  %586 = vmatpush2.msra.mxu0 0.0
  %587 = vmatprep.subr.mxu0 0.0
  %588 = vmatpush2.msra.mxu0 0.0
  %589 = vmatprep.subr.mxu0 0.0
  %590 = vmatpush2.msra.mxu0 0.0
  %591 = vmatprep.subr.mxu0 0.0
  %592 = vmatpush2.msra.mxu0 0.0
  %593 = vmatprep.subr.mxu0 0.0
  %594 = vmatpush2.msra.mxu0 0.0
  %595 = vmatprep.subr.mxu0 0.0
  %596 = vmatpush2.msra.mxu0 0.0
  %597 = vmatprep.subr.mxu0 0.0
  %598 = vmatpush2.msra.mxu0 0.0
  %599 = vmatprep.subr.mxu0 0.0
  %600 = vmatpush2.msra.mxu0 0.0
  %601 = vmatprep.subr.mxu0 0.0
  %602 = vmatpush2.msra.mxu0 0.0
  %603 = vmatprep.subr.mxu0 0.0
  %604 = vmatpush2.msra.mxu0 0.0
  %605 = vmatprep.subr.mxu0 0.0
  %606 = vmatpush2.msra.mxu0 0.0
  %607 = vmatprep.subr.mxu0 0.0
  %608 = vmatpush2.msra.mxu0 0.0
  %609 = vmatprep.subr.mxu0 0.0
  %610 = vmatpush2.msra.mxu0 0.0
  %611 = vmatprep.subr.mxu0 0.0
  %612 = vmatpush2.msra.mxu0 0.0
  %613 = vmatprep.subr.mxu0 0.0
  %614 = vmatpush2.msra.mxu0 0.0
  %615 = vmatprep.mubr.f32.mxu0 0.0
  %616 = vmatmul.mubr.f32.gmra.mxu0 %v549
  %v617 = vpop.f32.mrf.mxu0
  %v618 = vadd.f32 %v546, %v617
  %v619 = vpop.f32.mrf.mxu0
  %620 = vdwg.mxu0
  %v621 = vmax.f32 %v618, 0.0
  %v622 = vld [vmem:[%s5] sm:$0xff]
  %v623 = vld [vmem:[%s5 + $0x8] sm:$0xff]
  %v624 = vld [vmem:[%s5 + $0x10] sm:$0xff]
  %v625 = vld [vmem:[%s5 + $0x18] sm:$0xff]
  %v626 = vld [vmem:[%s6] sm:$0x1]
  %v628 = vlaneseq
  %v629 = vshrl.u32 %v628, 7
  %v630 = vsub.s32 0, %v629
  %v631 = vrot.slane %v626, %v630
  %vm633 = vcmask 261120
  %v635 = vsel %vm633, %v621, 0
  %637 = vmatprep.subr.mxu0 0.0
  %638 = vmatpush1.msra.mxu0 0.0
  %639 = vmatprep.subr.mxu0 0.0
  %640 = vmatpush1.msra.mxu0 0.0
  %641 = vmatprep.subr.mxu0 0.0
  %642 = vmatpush1.msra.mxu0 0.0
  %643 = vmatprep.subr.mxu0 0.0
  %644 = vmatpush1.msra.mxu0 0.0
  %645 = vmatprep.subr.mxu0 0.0
  %646 = vmatpush1.msra.mxu0 0.0
  %647 = vmatprep.subr.mxu0 0.0
  %648 = vmatpush1.msra.mxu0 0.0
  %649 = vmatprep.subr.mxu0 0.0
  %650 = vmatpush1.msra.mxu0 0.0
  %651 = vmatprep.subr.mxu0 0.0
  %652 = vmatpush1.msra.mxu0 0.0
  %653 = vmatprep.subr.mxu0 0.0
  %654 = vmatpush1.msra.mxu0 0.0
  %655 = vmatprep.subr.mxu0 0.0
  %656 = vmatpush1.msra.mxu0 0.0
  %657 = vmatprep.subr.mxu0 0.0
  %658 = vmatpush1.msra.mxu0 0.0
  %659 = vmatprep.subr.mxu0 0.0
  %660 = vmatpush1.msra.mxu0 0.0
  %661 = vmatprep.subr.mxu0 0.0
  %662 = vmatpush1.msra.mxu0 %v625
  %663 = vmatprep.subr.mxu0 0.0
  %664 = vmatpush1.msra.mxu0 %v624
  %665 = vmatprep.subr.mxu0 0.0
  %666 = vmatpush1.msra.mxu0 %v623
  %667 = vmatprep.subr.mxu0 0.0
  %668 = vmatpush1.msra.mxu0 %v622
  %669 = vmatprep.subr.mxu0 0.0
  %670 = vmatpush2.msra.mxu0 0.0
  %671 = vmatprep.subr.mxu0 0.0
  %672 = vmatpush2.msra.mxu0 0.0
  %673 = vmatprep.subr.mxu0 0.0
  %674 = vmatpush2.msra.mxu0 0.0
  %675 = vmatprep.subr.mxu0 0.0
  %676 = vmatpush2.msra.mxu0 0.0
  %677 = vmatprep.subr.mxu0 0.0
  %678 = vmatpush2.msra.mxu0 0.0
  %679 = vmatprep.subr.mxu0 0.0
  %680 = vmatpush2.msra.mxu0 0.0
  %681 = vmatprep.subr.mxu0 0.0
  %682 = vmatpush2.msra.mxu0 0.0
  %683 = vmatprep.subr.mxu0 0.0
  %684 = vmatpush2.msra.mxu0 0.0
  %685 = vmatprep.subr.mxu0 0.0
  %686 = vmatpush2.msra.mxu0 0.0
  %687 = vmatprep.subr.mxu0 0.0
  %688 = vmatpush2.msra.mxu0 0.0
  %689 = vmatprep.subr.mxu0 0.0
  %690 = vmatpush2.msra.mxu0 0.0
  %691 = vmatprep.subr.mxu0 0.0
  %692 = vmatpush2.msra.mxu0 0.0
  %693 = vmatprep.subr.mxu0 0.0
  %694 = vmatpush2.msra.mxu0 0.0
  %695 = vmatprep.subr.mxu0 0.0
  %696 = vmatpush2.msra.mxu0 0.0
  %697 = vmatprep.subr.mxu0 0.0
  %698 = vmatpush2.msra.mxu0 0.0
  %699 = vmatprep.subr.mxu0 0.0
  %700 = vmatpush2.msra.mxu0 0.0
  %701 = vmatprep.mubr.f32.mxu0 0.0
  %702 = vmatmul.mubr.f32.gmra.mxu0 %v635
  %v703 = vpop.f32.mrf.mxu0
  %v704 = vadd.f32 %v631, %v703
  %v705 = vpop.f32.mrf.mxu0
  %706 = vdwg.mxu0
  %v707 = vmax.f32 %v704, 0.0
  %vm708 = vcmask 15360
  %709 = vst.msk [vmem:[%s7] sm:$0xff] %vm708, %v707
  // Predicated region
  $region30: #{onedcnn_forward.3} parent=0 // pred_check
    _
  $region31: #{onedcnn_forward.3} parent=0 // pred_check_branch
    %711 = sbr.rel (0) target = $region33
  $region32: #{onedcnn_forward.3} parent=0 // pred_region
    _
  $region33: #{onedcnn_forward.3} parent=0 // pred_fallthru
    _
  // Predicated region
  $region34: #{onedcnn_forward.3} parent=0 // pred_check
    _
  $region35: #{onedcnn_forward.3} parent=0 // pred_check_branch
    %713 = sbr.rel (0) target = $region37
  $region36: #{onedcnn_forward.3} parent=0 // pred_region
    _
  $region37: #{onedcnn_forward.3} parent=0 // pred_fallthru
    _

// kernel: onedcnn_forward.2
$region0: #{onedcnn_forward.2}
  #allocation0 [shape = 'u32[]', space=smem, size = 0x4, offset = 0x4, fixed_abs, tag = 'smem constant byte address 0x4 - core index']
  #allocation1 [shape = 'u32[144,128]{1,0:T(1,128)}', space=vmem, size = 0x12000, scoped, tag = 'internal scratch']
  %s0 = inlined_call_operand.vmem [shape: f32[8,500], index: 0, kind: input, shape index: {}]
  %s1 = inlined_call_operand.vmem [shape: f32[3,16,1], index: 1, kind: input, shape index: {}]
  %s2 = inlined_call_operand.vmem [shape: f32[16,1], index: 2, kind: input, shape index: {}]
  %s3 = inlined_call_operand.vmem [shape: f32[496,166], index: 3, kind: input, shape index: {}]
  %s4 = inlined_call_operand.vmem [shape: f32[32,48], index: 4, kind: input, shape index: {}]
  %s5 = inlined_call_operand.vmem [shape: f32[32,1], index: 5, kind: input, shape index: {}]
  %s6 = inlined_call_operand.vmem [shape: f32[162,54], index: 6, kind: input, shape index: {}]
  %s7 = inlined_call_operand.vmem [shape: f32[64,96], index: 7, kind: input, shape index: {}]
  %s8 = inlined_call_operand.vmem [shape: f32[64,1], index: 8, kind: input, shape index: {}]
  %s9 = inlined_call_operand.vmem [shape: f32[50,17], index: 9, kind: input, shape index: {}]
  %s10 = inlined_call_operand.vmem [shape: f32[8,64,17], index: 10, kind: output, shape index: {}]
  %s11 = sld [smem:[#allocation0]]
  $region50: #{onedcnn_forward.2} parent=0
    _
  %s13 = ssub.s32 1, %s11
  %s14 = scalar_select 0, %s13, %s11
  // Predicated region
  $region2: #{onedcnn_forward.2} parent=0 // pred_check
    _
  $region3: #{onedcnn_forward.2} parent=0 // pred_check_branch
    %16 = sbr.rel (0) target = $region5
  $region4: #{onedcnn_forward.2} parent=0 // pred_region
    _
  $region5: #{onedcnn_forward.2} parent=0 // pred_fallthru
    _
  // Predicated region
  $region6: #{onedcnn_forward.2} parent=0 // pred_check
    _
  $region7: #{onedcnn_forward.2} parent=0 // pred_check_branch
    %18 = sbr.rel (0) target = $region9
  $region8: #{onedcnn_forward.2} parent=0 // pred_region
    _
  $region9: #{onedcnn_forward.2} parent=0 // pred_fallthru
    _
  // Predicated region
  $region10: #{onedcnn_forward.2} parent=0 // pred_check
    _
  $region11: #{onedcnn_forward.2} parent=0 // pred_check_branch
    %20 = sbr.rel (0) target = $region13
  $region12: #{onedcnn_forward.2} parent=0 // pred_region
    _
  $region13: #{onedcnn_forward.2} parent=0 // pred_fallthru
    _
  // Predicated region
  $region14: #{onedcnn_forward.2} parent=0 // pred_check
    _
  $region15: #{onedcnn_forward.2} parent=0 // pred_check_branch
    %22 = sbr.rel (0) target = $region17
  $region16: #{onedcnn_forward.2} parent=0 // pred_region
    _
  $region17: #{onedcnn_forward.2} parent=0 // pred_fallthru
    _
  // Predicated region
  $region18: #{onedcnn_forward.2} parent=0 // pred_check
    _
  $region19: #{onedcnn_forward.2} parent=0 // pred_check_branch
    %24 = sbr.rel (0) target = $region21
  $region20: #{onedcnn_forward.2} parent=0 // pred_region
    _
  $region21: #{onedcnn_forward.2} parent=0 // pred_fallthru
    _
  // Predicated region
  $region22: #{onedcnn_forward.2} parent=0 // pred_check
    _
  $region23: #{onedcnn_forward.2} parent=0 // pred_check_branch
    %26 = sbr.rel (0) target = $region25
  $region24: #{onedcnn_forward.2} parent=0 // pred_region
    _
  $region25: #{onedcnn_forward.2} parent=0 // pred_fallthru
    _
  // Predicated region
  $region26: #{onedcnn_forward.2} parent=0 // pred_check
    _
  $region27: #{onedcnn_forward.2} parent=0 // pred_check_branch
    %28 = sbr.rel (0) target = $region29
  $region28: #{onedcnn_forward.2} parent=0 // pred_region
    _
  $region29: #{onedcnn_forward.2} parent=0 // pred_fallthru
    _
  // Predicated region
  $region30: #{onedcnn_forward.2} parent=0 // pred_check
    _
  $region31: #{onedcnn_forward.2} parent=0 // pred_check_branch
    %30 = sbr.rel (0) target = $region33
  $region32: #{onedcnn_forward.2} parent=0 // pred_region
    _
  $region33: #{onedcnn_forward.2} parent=0 // pred_fallthru
    _
  // Predicated region
  $region34: #{onedcnn_forward.2} parent=0 // pred_check
    _
  $region35: #{onedcnn_forward.2} parent=0 // pred_check_branch
    %32 = sbr.rel (0) target = $region37
  $region36: #{onedcnn_forward.2} parent=0 // pred_region
    _
  $region37: #{onedcnn_forward.2} parent=0 // pred_fallthru
    _
  // Predicated region
  $region38: #{onedcnn_forward.2} parent=0 // pred_check
    _
  $region39: #{onedcnn_forward.2} parent=0 // pred_check_branch
    %34 = sbr.rel (0) target = $region41
  $region40: #{onedcnn_forward.2} parent=0 // pred_region
    _
  $region41: #{onedcnn_forward.2} parent=0 // pred_fallthru
    _
  %v35 = vld [vmem:[%s0] ss:$8 sm:$0xf]
  %v36 = vld [vmem:[%s1] sm:$0xff]
  %v37 = vld [vmem:[%s1 + $0x8] sm:$0xff]
  %39 = vset.pattern.permute.xlu0 0
  %40 = vperm.xlu0 %39, %v36
  %v41 = vpop.permute.xlu0 %40
  %44 = vset.pattern.permute.xlu0 0
  %45 = vperm.xlu0 %44, %v37
  %v46 = vpop.permute.xlu0 %45
  %v49 = vlaneseq
  %v50 = vshrl.u32 %v49, 7
  %v51 = vsub.s32 0, %v50
  %v52 = vrot.slane %v35, %v51
  %v53 = vlaneseq
  %v54 = vshrl.u32 %v53, 7
  %v55 = vsub.s32 1, %v54
  %v56 = vrot.slane %v35, %v55
  %v57 = vlaneseq
  %v58 = vshrl.u32 %v57, 7
  %v59 = vsub.s32 2, %v58
  %v60 = vrot.slane %v35, %v59
  %v61 = vlaneseq
  %v62 = vshrl.u32 %v61, 7
  %v63 = vsub.s32 3, %v62
  %v64 = vrot.slane %v35, %v63
  %v69 = vmul.f32 %v41, %v52
  %v70 = vmul.f32 %v41, %v56
  %v71 = vmul.f32 %v41, %v60
  %v72 = vmul.f32 %v41, %v64
  %v73 = vmul.f32 %v46, %v52
  %v74 = vmul.f32 %v46, %v56
  %v75 = vmul.f32 %v46, %v60
  %v76 = vmul.f32 %v46, %v64
  %s77 = scalar_lea.vmem %s1, 16
  %v78 = vld [vmem:[%s77] sm:$0xff]
  %v79 = vld [vmem:[%s77 + $0x8] sm:$0xff]
  %81 = vset.pattern.permute.xlu0 0
  %82 = vperm.xlu0 %81, %v78
  %v83 = vpop.permute.xlu0 %82
  %86 = vset.pattern.permute.xlu0 0
  %87 = vperm.xlu0 %86, %v79
  %v88 = vpop.permute.xlu0 %87
  %v90 = vmul.f32 %v83, %v52
  %v91 = vmul.f32 %v83, %v56
  %v92 = vmul.f32 %v83, %v60
  %v93 = vmul.f32 %v83, %v64
  %v94 = vmul.f32 %v88, %v52
  %v95 = vmul.f32 %v88, %v56
  %v96 = vmul.f32 %v88, %v60
  %v97 = vmul.f32 %v88, %v64
  %106 = vrot.lane.b32.xlu0 %v90, 127
  %v107 = vpop.permute.xlu0 %106
  %108 = vrot.lane.b32.xlu0 %v91, 127
  %v109 = vpop.permute.xlu0 %108
  %110 = vrot.lane.b32.xlu0 %v92, 127
  %v111 = vpop.permute.xlu0 %110
  %112 = vrot.lane.b32.xlu0 %v93, 127
  %v113 = vpop.permute.xlu0 %112
  %114 = vrot.lane.b32.xlu0 %v94, 127
  %v115 = vpop.permute.xlu0 %114
  %116 = vrot.lane.b32.xlu0 %v95, 127
  %v117 = vpop.permute.xlu0 %116
  %118 = vrot.lane.b32.xlu0 %v96, 127
  %v119 = vpop.permute.xlu0 %118
  %120 = vrot.lane.b32.xlu0 %v97, 127
  %v121 = vpop.permute.xlu0 %120
  %vm122 = vcmask 1039360
  %v123 = vsel %vm122, %v107, %v109
  %v124 = vsel %vm122, %v109, %v111
  %v125 = vsel %vm122, %v111, %v113
  %v126 = vsel %vm122, %v115, %v117
  %v127 = vsel %vm122, %v117, %v119
  %v128 = vsel %vm122, %v119, %v121
  %v137 = vadd.f32 %v69, %v123
  %v138 = vadd.f32 %v70, %v124
  %v139 = vadd.f32 %v71, %v125
  %v140 = vadd.f32 %v72, %v113
  %v141 = vadd.f32 %v73, %v126
  %v142 = vadd.f32 %v74, %v127
  %v143 = vadd.f32 %v75, %v128
  %v144 = vadd.f32 %v76, %v121
  %s145 = scalar_lea.vmem %s1, 32
  %v146 = vld [vmem:[%s145] sm:$0xff]
  %v147 = vld [vmem:[%s145 + $0x8] sm:$0xff]
  %149 = vset.pattern.permute.xlu0 0
  %150 = vperm.xlu0 %149, %v146
  %v151 = vpop.permute.xlu0 %150
  %154 = vset.pattern.permute.xlu0 0
  %155 = vperm.xlu0 %154, %v147
  %v156 = vpop.permute.xlu0 %155
  %v158 = vmul.f32 %v151, %v52
  %v159 = vmul.f32 %v151, %v56
  %v160 = vmul.f32 %v151, %v60
  %v161 = vmul.f32 %v151, %v64
  %v162 = vmul.f32 %v156, %v52
  %v163 = vmul.f32 %v156, %v56
  %v164 = vmul.f32 %v156, %v60
  %v165 = vmul.f32 %v156, %v64
  %174 = vrot.lane.b32.xlu0 %v158, 126
  %v175 = vpop.permute.xlu0 %174
  %176 = vrot.lane.b32.xlu0 %v159, 126
  %v177 = vpop.permute.xlu0 %176
  %178 = vrot.lane.b32.xlu0 %v160, 126
  %v179 = vpop.permute.xlu0 %178
  %180 = vrot.lane.b32.xlu0 %v161, 126
  %v181 = vpop.permute.xlu0 %180
  %182 = vrot.lane.b32.xlu0 %v162, 126
  %v183 = vpop.permute.xlu0 %182
  %184 = vrot.lane.b32.xlu0 %v163, 126
  %v185 = vpop.permute.xlu0 %184
  %186 = vrot.lane.b32.xlu0 %v164, 126
  %v187 = vpop.permute.xlu0 %186
  %188 = vrot.lane.b32.xlu0 %v165, 126
  %v189 = vpop.permute.xlu0 %188
  %vm190 = vcmask 1031168
  %v191 = vsel %vm190, %v175, %v177
  %v192 = vsel %vm190, %v177, %v179
  %v193 = vsel %vm190, %v179, %v181
  %v194 = vsel %vm190, %v183, %v185
  %v195 = vsel %vm190, %v185, %v187
  %v196 = vsel %vm190, %v187, %v189
  %v205 = vadd.f32 %v137, %v191
  %v206 = vadd.f32 %v138, %v192
  %v207 = vadd.f32 %v139, %v193
  %v208 = vadd.f32 %v140, %v181
  %v209 = vadd.f32 %v141, %v194
  %v210 = vadd.f32 %v142, %v195
  %v211 = vadd.f32 %v143, %v196
  %v212 = vadd.f32 %v144, %v189
  %v213 = vld [vmem:[%s2] sm:$0xff]
  %v214 = vld [vmem:[%s2 + $0x8] sm:$0xff]
  %216 = vset.pattern.permute.xlu0 0
  %217 = vperm.xlu0 %216, %v213
  %v218 = vpop.permute.xlu0 %217
  %221 = vset.pattern.permute.xlu0 0
  %222 = vperm.xlu0 %221, %v214
  %v223 = vpop.permute.xlu0 %222
  %v225 = vadd.f32 %v205, %v218
  %v226 = vadd.f32 %v206, %v218
  %v227 = vadd.f32 %v207, %v218
  %v228 = vadd.f32 %v208, %v218
  %v229 = vadd.f32 %v209, %v223
  %v230 = vadd.f32 %v210, %v223
  %v231 = vadd.f32 %v211, %v223
  %v232 = vadd.f32 %v212, %v223
  %v233 = vmax.f32 %v225, 0.0
  %v234 = vmax.f32 %v226, 0.0
  %v235 = vmax.f32 %v227, 0.0
  %v236 = vmax.f32 %v228, 0.0
  %v237 = vmax.f32 %v229, 0.0
  %v238 = vmax.f32 %v230, 0.0
  %v239 = vmax.f32 %v231, 0.0
  %v240 = vmax.f32 %v232, 0.0
  %249 = vrot.lane.b32.xlu0 %v233, 127
  %v250 = vpop.permute.xlu0 %249
  %251 = vrot.lane.b32.xlu0 %v234, 127
  %v252 = vpop.permute.xlu0 %251
  %253 = vrot.lane.b32.xlu0 %v235, 127
  %v254 = vpop.permute.xlu0 %253
  %255 = vrot.lane.b32.xlu0 %v236, 127
  %v256 = vpop.permute.xlu0 %255
  %257 = vrot.lane.b32.xlu0 %v237, 127
  %v258 = vpop.permute.xlu0 %257
  %259 = vrot.lane.b32.xlu0 %v238, 127
  %v260 = vpop.permute.xlu0 %259
  %261 = vrot.lane.b32.xlu0 %v239, 127
  %v262 = vpop.permute.xlu0 %261
  %263 = vrot.lane.b32.xlu0 %v240, 127
  %v264 = vpop.permute.xlu0 %263
  %v265 = vsel %vm122, %v250, %v252
  %v266 = vsel %vm122, %v252, %v254
  %v267 = vsel %vm122, %v254, %v256
  %v268 = vsel %vm122, %v258, %v260
  %v269 = vsel %vm122, %v260, %v262
  %v270 = vsel %vm122, %v262, %v264
  %v279 = vmax.f32 %v233, %v265
  %v280 = vmax.f32 %v234, %v266
  %v281 = vmax.f32 %v235, %v267
  %v282 = vmax.f32 %v236, %v256
  %v283 = vmax.f32 %v237, %v268
  %v284 = vmax.f32 %v238, %v269
  %v285 = vmax.f32 %v239, %v270
  %v286 = vmax.f32 %v240, %v264
  %287 = vrot.lane.b32.xlu0 %v233, 126
  %v288 = vpop.permute.xlu0 %287
  %289 = vrot.lane.b32.xlu0 %v234, 126
  %v290 = vpop.permute.xlu0 %289
  %291 = vrot.lane.b32.xlu0 %v235, 126
  %v292 = vpop.permute.xlu0 %291
  %293 = vrot.lane.b32.xlu0 %v236, 126
  %v294 = vpop.permute.xlu0 %293
  %295 = vrot.lane.b32.xlu0 %v237, 126
  %v296 = vpop.permute.xlu0 %295
  %297 = vrot.lane.b32.xlu0 %v238, 126
  %v298 = vpop.permute.xlu0 %297
  %299 = vrot.lane.b32.xlu0 %v239, 126
  %v300 = vpop.permute.xlu0 %299
  %301 = vrot.lane.b32.xlu0 %v240, 126
  %v302 = vpop.permute.xlu0 %301
  %v303 = vsel %vm190, %v288, %v290
  %v304 = vsel %vm190, %v290, %v292
  %v305 = vsel %vm190, %v292, %v294
  %v306 = vsel %vm190, %v296, %v298
  %v307 = vsel %vm190, %v298, %v300
  %v308 = vsel %vm190, %v300, %v302
  %v317 = vmax.f32 %v279, %v303
  %v318 = vmax.f32 %v280, %v304
  %v319 = vmax.f32 %v281, %v305
  %v320 = vmax.f32 %v282, %v294
  %v321 = vmax.f32 %v283, %v306
  %v322 = vmax.f32 %v284, %v307
  %v323 = vmax.f32 %v285, %v308
  %v324 = vmax.f32 %v286, %v302
  %v325 = vld [vmem:[%s3] sm:$0xff]
  %v326 = vld [vmem:[%s3 + $0x8] sm:$0xff]
  %v327 = vld [vmem:[%s3 + $0x10] sm:$0xff]
  %v328 = vld [vmem:[%s3 + $0x18] sm:$0xff]
  %v329 = vld [vmem:[%s3 + $0x20] sm:$0xff]
  %v330 = vld [vmem:[%s3 + $0x28] sm:$0xff]
  %v331 = vld [vmem:[%s3 + $0x30] sm:$0xff]
  %v332 = vld [vmem:[%s3 + $0x38] sm:$0xff]
  %v333 = vld [vmem:[%s3 + $0x40] sm:$0xff]
  %v334 = vld [vmem:[%s3 + $0x48] sm:$0xff]
  %v335 = vld [vmem:[%s3 + $0x50] sm:$0xff]
  %v336 = vld [vmem:[%s3 + $0x58] sm:$0xff]
  %v337 = vld [vmem:[%s3 + $0x60] sm:$0xff]
  %v338 = vld [vmem:[%s3 + $0x68] sm:$0xff]
  %v339 = vld [vmem:[%s3 + $0x70] sm:$0xff]
  %v340 = vld [vmem:[%s3 + $0x78] sm:$0xff]
  %v341 = vld [vmem:[%s3 + $0x80] sm:$0xff]
  %v342 = vld [vmem:[%s3 + $0x88] sm:$0xff]
  %v343 = vld [vmem:[%s3 + $0x90] sm:$0xff]
  %v344 = vld [vmem:[%s3 + $0x98] sm:$0xff]
  %v345 = vld [vmem:[%s3 + $0xa0] sm:$0xff]
  %v346 = vld [vmem:[%s3 + $0xa8] sm:$0xff]
  %v347 = vld [vmem:[%s3 + $0xb0] sm:$0xff]
  %v348 = vld [vmem:[%s3 + $0xb8] sm:$0xff]
  %v349 = vld [vmem:[%s3 + $0xc0] sm:$0xff]
  %v350 = vld [vmem:[%s3 + $0xc8] sm:$0xff]
  %v351 = vld [vmem:[%s3 + $0xd0] sm:$0xff]
  %v352 = vld [vmem:[%s3 + $0xd8] sm:$0xff]
  %v353 = vld [vmem:[%s3 + $0xe0] sm:$0xff]
  %v354 = vld [vmem:[%s3 + $0xe8] sm:$0xff]
  %v355 = vld [vmem:[%s3 + $0xf0] sm:$0xff]
  %v356 = vld [vmem:[%s3 + $0xf8] sm:$0xff]
  %v357 = vld [vmem:[%s3 + $0x100] sm:$0xff]
  %v358 = vld [vmem:[%s3 + $0x108] sm:$0xff]
  %v359 = vld [vmem:[%s3 + $0x110] sm:$0xff]
  %v360 = vld [vmem:[%s3 + $0x118] sm:$0xff]
  %v361 = vld [vmem:[%s3 + $0x120] sm:$0xff]
  %v362 = vld [vmem:[%s3 + $0x128] sm:$0xff]
  %v363 = vld [vmem:[%s3 + $0x130] sm:$0xff]
  %v364 = vld [vmem:[%s3 + $0x138] sm:$0xff]
  %v365 = vld [vmem:[%s3 + $0x140] sm:$0xff]
  %v366 = vld [vmem:[%s3 + $0x148] sm:$0xff]
  %v367 = vld [vmem:[%s3 + $0x150] sm:$0xff]
  %v368 = vld [vmem:[%s3 + $0x158] sm:$0xff]
  %v369 = vld [vmem:[%s3 + $0x160] sm:$0xff]
  %v370 = vld [vmem:[%s3 + $0x168] sm:$0xff]
  %v371 = vld [vmem:[%s3 + $0x170] sm:$0xff]
  %v372 = vld [vmem:[%s3 + $0x178] sm:$0xff]
  %v373 = vld [vmem:[%s3 + $0x180] sm:$0xff]
  %v374 = vld [vmem:[%s3 + $0x188] sm:$0xff]
  %v375 = vld [vmem:[%s3 + $0x190] sm:$0xff]
  %v376 = vld [vmem:[%s3 + $0x198] sm:$0xff]
  %v377 = vld [vmem:[%s3 + $0x1a0] sm:$0xff]
  %v378 = vld [vmem:[%s3 + $0x1a8] sm:$0xff]
  %v379 = vld [vmem:[%s3 + $0x1b0] sm:$0xff]
  %v380 = vld [vmem:[%s3 + $0x1b8] sm:$0xff]
  %v381 = vld [vmem:[%s3 + $0x1c0] sm:$0xff]
  %v382 = vld [vmem:[%s3 + $0x1c8] sm:$0xff]
  %v383 = vld [vmem:[%s3 + $0x1d0] sm:$0xff]
  %v384 = vld [vmem:[%s3 + $0x1d8] sm:$0xff]
  %v385 = vld [vmem:[%s3 + $0x1e0] sm:$0xff]
  %v386 = vld [vmem:[%s3 + $0x1e8] sm:$0xff]
  %v387 = vld [vmem:[%s3 + $0x1f0] sm:$0xff]
  %v388 = vld [vmem:[%s3 + $0x1f8] sm:$0xff]
  %v389 = vld [vmem:[%s3 + $0x200] sm:$0xff]
  %v390 = vld [vmem:[%s3 + $0x208] sm:$0xff]
  %v391 = vld [vmem:[%s3 + $0x210] sm:$0xff]
  %v392 = vld [vmem:[%s3 + $0x218] sm:$0xff]
  %v393 = vld [vmem:[%s3 + $0x220] sm:$0xff]
  %v394 = vld [vmem:[%s3 + $0x228] sm:$0xff]
  %v395 = vld [vmem:[%s3 + $0x230] sm:$0xff]
  %v396 = vld [vmem:[%s3 + $0x238] sm:$0xff]
  %v397 = vld [vmem:[%s3 + $0x240] sm:$0xff]
  %v398 = vld [vmem:[%s3 + $0x248] sm:$0xff]
  %v399 = vld [vmem:[%s3 + $0x250] sm:$0xff]
  %v400 = vld [vmem:[%s3 + $0x258] sm:$0xff]
  %v401 = vld [vmem:[%s3 + $0x260] sm:$0xff]
  %v402 = vld [vmem:[%s3 + $0x268] sm:$0xff]
  %v403 = vld [vmem:[%s3 + $0x270] sm:$0xff]
  %v404 = vld [vmem:[%s3 + $0x278] sm:$0xff]
  %v405 = vld [vmem:[%s3 + $0x280] sm:$0xff]
  %v406 = vld [vmem:[%s3 + $0x288] sm:$0xff]
  %v407 = vld [vmem:[%s3 + $0x290] sm:$0xff]
  %v408 = vld [vmem:[%s3 + $0x298] sm:$0xff]
  %v409 = vld [vmem:[%s3 + $0x2a0] sm:$0xff]
  %v410 = vld [vmem:[%s3 + $0x2a8] sm:$0xff]
  %v411 = vld [vmem:[%s3 + $0x2b0] sm:$0xff]
  %v412 = vld [vmem:[%s3 + $0x2b8] sm:$0xff]
  %v413 = vld [vmem:[%s3 + $0x2c0] sm:$0xff]
  %v414 = vld [vmem:[%s3 + $0x2c8] sm:$0xff]
  %v415 = vld [vmem:[%s3 + $0x2d0] sm:$0xff]
  %v416 = vld [vmem:[%s3 + $0x2d8] sm:$0xff]
  %v417 = vld [vmem:[%s3 + $0x2e0] sm:$0xff]
  %v418 = vld [vmem:[%s3 + $0x2e8] sm:$0xff]
  %v419 = vld [vmem:[%s3 + $0x2f0] sm:$0xff]
  %v420 = vld [vmem:[%s3 + $0x2f8] sm:$0xff]
  %v421 = vld [vmem:[%s3 + $0x300] sm:$0xff]
  %v422 = vld [vmem:[%s3 + $0x308] sm:$0xff]
  %v423 = vld [vmem:[%s3 + $0x310] sm:$0xff]
  %v424 = vld [vmem:[%s3 + $0x318] sm:$0xff]
  %v425 = vld [vmem:[%s3 + $0x320] sm:$0xff]
  %v426 = vld [vmem:[%s3 + $0x328] sm:$0xff]
  %v427 = vld [vmem:[%s3 + $0x330] sm:$0xff]
  %v428 = vld [vmem:[%s3 + $0x338] sm:$0xff]
  %v429 = vld [vmem:[%s3 + $0x340] sm:$0xff]
  %v430 = vld [vmem:[%s3 + $0x348] sm:$0xff]
  %v431 = vld [vmem:[%s3 + $0x350] sm:$0xff]
  %v432 = vld [vmem:[%s3 + $0x358] sm:$0xff]
  %v433 = vld [vmem:[%s3 + $0x360] sm:$0xff]
  %v434 = vld [vmem:[%s3 + $0x368] sm:$0xff]
  %v435 = vld [vmem:[%s3 + $0x370] sm:$0xff]
  %v436 = vld [vmem:[%s3 + $0x378] sm:$0xff]
  %v437 = vld [vmem:[%s3 + $0x380] sm:$0xff]
  %v438 = vld [vmem:[%s3 + $0x388] sm:$0xff]
  %v439 = vld [vmem:[%s3 + $0x390] sm:$0xff]
  %v440 = vld [vmem:[%s3 + $0x398] sm:$0xff]
  %v441 = vld [vmem:[%s3 + $0x3a0] sm:$0xff]
  %v442 = vld [vmem:[%s3 + $0x3a8] sm:$0xff]
  %v443 = vld [vmem:[%s3 + $0x3b0] sm:$0xff]
  %v444 = vld [vmem:[%s3 + $0x3b8] sm:$0xff]
  %v445 = vld [vmem:[%s3 + $0x3c0] sm:$0xff]
  %v446 = vld [vmem:[%s3 + $0x3c8] sm:$0xff]
  %v447 = vld [vmem:[%s3 + $0x3d0] sm:$0xff]
  %v448 = vld [vmem:[%s3 + $0x3d8] sm:$0xff]
  %vm449 = vcmask 916480
  %v451 = vsel %vm449, %v320, 0
  %v454 = vsel %vm449, %v324, 0
  %456 = vmatprep.subr.mxu0 %v356
  %457 = vmatpush1.msra.mxu0 %v355
  %458 = vmatprep.subr.mxu0 %v354
  %459 = vmatpush1.msra.mxu0 %v353
  %460 = vmatprep.subr.mxu0 %v352
  %461 = vmatpush1.msra.mxu0 %v351
  %462 = vmatprep.subr.mxu0 %v350
  %463 = vmatpush1.msra.mxu0 %v349
  %464 = vmatprep.subr.mxu0 %v348
  %465 = vmatpush1.msra.mxu0 %v347
  %466 = vmatprep.subr.mxu0 %v346
  %467 = vmatpush1.msra.mxu0 %v345
  %468 = vmatprep.subr.mxu0 %v344
  %469 = vmatpush1.msra.mxu0 %v343
  %470 = vmatprep.subr.mxu0 %v342
  %471 = vmatpush1.msra.mxu0 %v341
  %472 = vmatprep.subr.mxu0 %v340
  %473 = vmatpush1.msra.mxu0 %v339
  %474 = vmatprep.subr.mxu0 %v338
  %475 = vmatpush1.msra.mxu0 %v337
  %476 = vmatprep.subr.mxu0 %v336
  %477 = vmatpush1.msra.mxu0 %v335
  %478 = vmatprep.subr.mxu0 %v334
  %479 = vmatpush1.msra.mxu0 %v333
  %480 = vmatprep.subr.mxu0 %v332
  %481 = vmatpush1.msra.mxu0 %v331
  %482 = vmatprep.subr.mxu0 %v330
  %483 = vmatpush1.msra.mxu0 %v329
  %484 = vmatprep.subr.mxu0 %v328
  %485 = vmatpush1.msra.mxu0 %v327
  %486 = vmatprep.subr.mxu0 %v326
  %487 = vmatpush1.msra.mxu0 %v325
  %488 = vmatprep.subr.mxu0 %v388
  %489 = vmatpush2.msra.mxu0 %v387
  %490 = vmatprep.subr.mxu0 %v386
  %491 = vmatpush2.msra.mxu0 %v385
  %492 = vmatprep.subr.mxu0 %v384
  %493 = vmatpush2.msra.mxu0 %v383
  %494 = vmatprep.subr.mxu0 %v382
  %495 = vmatpush2.msra.mxu0 %v381
  %496 = vmatprep.subr.mxu0 %v380
  %497 = vmatpush2.msra.mxu0 %v379
  %498 = vmatprep.subr.mxu0 %v378
  %499 = vmatpush2.msra.mxu0 %v377
  %500 = vmatprep.subr.mxu0 %v376
  %501 = vmatpush2.msra.mxu0 %v375
  %502 = vmatprep.subr.mxu0 %v374
  %503 = vmatpush2.msra.mxu0 %v373
  %504 = vmatprep.subr.mxu0 %v372
  %505 = vmatpush2.msra.mxu0 %v371
  %506 = vmatprep.subr.mxu0 %v370
  %507 = vmatpush2.msra.mxu0 %v369
  %508 = vmatprep.subr.mxu0 %v368
  %509 = vmatpush2.msra.mxu0 %v367
  %510 = vmatprep.subr.mxu0 %v366
  %511 = vmatpush2.msra.mxu0 %v365
  %512 = vmatprep.subr.mxu0 %v364
  %513 = vmatpush2.msra.mxu0 %v363
  %514 = vmatprep.subr.mxu0 %v362
  %515 = vmatpush2.msra.mxu0 %v361
  %516 = vmatprep.subr.mxu0 %v360
  %517 = vmatpush2.msra.mxu0 %v359
  %518 = vmatprep.subr.mxu0 %v358
  %519 = vmatpush2.msra.mxu0 %v357
  %520 = vmatprep.mubr.f32.mxu0 %v318
  %521 = vmatmul.mubr.f32.gmra.mxu0 %v317
  %v522 = vpop.f32.mrf.mxu0
  %v523 = vadd.f32 0.0, %v522
  %v524 = vpop.f32.mrf.mxu0
  %v525 = vadd.f32 0.0, %v524
  %526 = vmatprep.mubr.f32.mxu0 %v322
  %527 = vmatmul.mubr.f32.gmra.mxu0 %v321
  %v528 = vpop.f32.mrf.mxu0
  %v529 = vadd.f32 0.0, %v528
  %v530 = vpop.f32.mrf.mxu0
  %v531 = vadd.f32 0.0, %v530
  %532 = vdwg.mxu0
  %533 = vmatprep.subr.mxu0 %v420
  %534 = vmatpush1.msra.mxu0 %v419
  %535 = vmatprep.subr.mxu0 %v418
  %536 = vmatpush1.msra.mxu0 %v417
  %537 = vmatprep.subr.mxu0 %v416
  %538 = vmatpush1.msra.mxu0 %v415
  %539 = vmatprep.subr.mxu0 %v414
  %540 = vmatpush1.msra.mxu0 %v413
  %541 = vmatprep.subr.mxu0 %v412
  %542 = vmatpush1.msra.mxu0 %v411
  %543 = vmatprep.subr.mxu0 %v410
  %544 = vmatpush1.msra.mxu0 %v409
  %545 = vmatprep.subr.mxu0 %v408
  %546 = vmatpush1.msra.mxu0 %v407
  %547 = vmatprep.subr.mxu0 %v406
  %548 = vmatpush1.msra.mxu0 %v405
  %549 = vmatprep.subr.mxu0 %v404
  %550 = vmatpush1.msra.mxu0 %v403
  %551 = vmatprep.subr.mxu0 %v402
  %552 = vmatpush1.msra.mxu0 %v401
  %553 = vmatprep.subr.mxu0 %v400
  %554 = vmatpush1.msra.mxu0 %v399
  %555 = vmatprep.subr.mxu0 %v398
  %556 = vmatpush1.msra.mxu0 %v397
  %557 = vmatprep.subr.mxu0 %v396
  %558 = vmatpush1.msra.mxu0 %v395
  %559 = vmatprep.subr.mxu0 %v394
  %560 = vmatpush1.msra.mxu0 %v393
  %561 = vmatprep.subr.mxu0 %v392
  %562 = vmatpush1.msra.mxu0 %v391
  %563 = vmatprep.subr.mxu0 %v390
  %564 = vmatpush1.msra.mxu0 %v389
  %565 = vmatprep.subr.mxu0 0.0
  %566 = vmatpush2.msra.mxu0 0.0
  %567 = vmatprep.subr.mxu0 0.0
  %568 = vmatpush2.msra.mxu0 0.0
  %569 = vmatprep.subr.mxu0 %v448
  %570 = vmatpush2.msra.mxu0 %v447
  %571 = vmatprep.subr.mxu0 %v446
  %572 = vmatpush2.msra.mxu0 %v445
  %573 = vmatprep.subr.mxu0 %v444
  %574 = vmatpush2.msra.mxu0 %v443
  %575 = vmatprep.subr.mxu0 %v442
  %576 = vmatpush2.msra.mxu0 %v441
  %577 = vmatprep.subr.mxu0 %v440
  %578 = vmatpush2.msra.mxu0 %v439
  %579 = vmatprep.subr.mxu0 %v438
  %580 = vmatpush2.msra.mxu0 %v437
  %581 = vmatprep.subr.mxu0 %v436
  %582 = vmatpush2.msra.mxu0 %v435
  %583 = vmatprep.subr.mxu0 %v434
  %584 = vmatpush2.msra.mxu0 %v433
  %585 = vmatprep.subr.mxu0 %v432
  %586 = vmatpush2.msra.mxu0 %v431
  %587 = vmatprep.subr.mxu0 %v430
  %588 = vmatpush2.msra.mxu0 %v429
  %589 = vmatprep.subr.mxu0 %v428
  %590 = vmatpush2.msra.mxu0 %v427
  %591 = vmatprep.subr.mxu0 %v426
  %592 = vmatpush2.msra.mxu0 %v425
  %593 = vmatprep.subr.mxu0 %v424
  %594 = vmatpush2.msra.mxu0 %v423
  %595 = vmatprep.subr.mxu0 %v422
  %596 = vmatpush2.msra.mxu0 %v421
  %597 = vmatprep.mubr.f32.mxu0 %v451
  %598 = vmatmul.mubr.f32.gmra.mxu0 %v319
  %v599 = vpop.f32.mrf.mxu0
  %v600 = vadd.f32 %v523, %v599
  %v601 = vpop.f32.mrf.mxu0
  %v602 = vadd.f32 %v525, %v601
  %603 = vmatprep.mubr.f32.mxu0 %v454
  %604 = vmatmul.mubr.f32.gmra.mxu0 %v323
  %v605 = vpop.f32.mrf.mxu0
  %v606 = vadd.f32 %v529, %v605
  %v607 = vpop.f32.mrf.mxu0
  %v608 = vadd.f32 %v531, %v607
  %609 = vdwg.mxu0
  %614 = vrot.lane.b32.xlu0 %v600, 127
  %v615 = vpop.permute.xlu0 %614
  %616 = vrot.lane.b32.xlu0 %v602, 127
  %v617 = vpop.permute.xlu0 %616
  %618 = vrot.lane.b32.xlu0 %v606, 127
  %v619 = vpop.permute.xlu0 %618
  %620 = vrot.lane.b32.xlu0 %v608, 127
  %v621 = vpop.permute.xlu0 %620
  %v622 = vsel %vm122, %v615, %v617
  %v623 = vsel %vm122, %v619, %v621
  %628 = vrot.lane.b32.xlu0 %v600, 126
  %v629 = vpop.permute.xlu0 %628
  %630 = vrot.lane.b32.xlu0 %v602, 126
  %v631 = vpop.permute.xlu0 %630
  %632 = vrot.lane.b32.xlu0 %v606, 126
  %v633 = vpop.permute.xlu0 %632
  %634 = vrot.lane.b32.xlu0 %v608, 126
  %v635 = vpop.permute.xlu0 %634
  %v636 = vsel %vm190, %v629, %v631
  %v637 = vsel %vm190, %v633, %v635
  %v642 = vld [vmem:[%s4] sm:$0xff]
  %v643 = vld [vmem:[%s4 + $0x8] sm:$0xff]
  %v644 = vld [vmem:[%s4 + $0x10] sm:$0xff]
  %v645 = vld [vmem:[%s4 + $0x18] sm:$0xff]
  %v646 = vld [vmem:[%s5] sm:$0xff]
  %v647 = vld [vmem:[%s5 + $0x8] sm:$0xff]
  %v648 = vld [vmem:[%s5 + $0x10] sm:$0xff]
  %v649 = vld [vmem:[%s5 + $0x18] sm:$0xff]
  %651 = vset.pattern.permute.xlu0 0
  %652 = vperm.xlu0 %651, %v646
  %v653 = vpop.permute.xlu0 %652
  %656 = vset.pattern.permute.xlu0 0
  %657 = vperm.xlu0 %656, %v647
  %v658 = vpop.permute.xlu0 %657
  %661 = vset.pattern.permute.xlu0 0
  %662 = vperm.xlu0 %661, %v648
  %v663 = vpop.permute.xlu0 %662
  %666 = vset.pattern.permute.xlu0 0
  %667 = vperm.xlu0 %666, %v649
  %v668 = vpop.permute.xlu0 %667
  %vm670 = vcmask 392192
  %v672 = vsel %vm670, %v642, 0
  %v675 = vsel %vm670, %v643, 0
  %v678 = vsel %vm670, %v644, 0
  %v681 = vsel %vm670, %v645, 0
  %683 = vmatprep.subr.mxu0 0.0
  %684 = vmatpush1.msra.mxu0 0.0
  %685 = vmatprep.subr.mxu0 0.0
  %686 = vmatpush1.msra.mxu0 0.0
  %687 = vmatprep.subr.mxu0 0.0
  %688 = vmatpush1.msra.mxu0 0.0
  %689 = vmatprep.subr.mxu0 0.0
  %690 = vmatpush1.msra.mxu0 0.0
  %691 = vmatprep.subr.mxu0 0.0
  %692 = vmatpush1.msra.mxu0 0.0
  %693 = vmatprep.subr.mxu0 0.0
  %694 = vmatpush1.msra.mxu0 0.0
  %695 = vmatprep.subr.mxu0 0.0
  %696 = vmatpush1.msra.mxu0 0.0
  %697 = vmatprep.subr.mxu0 0.0
  %698 = vmatpush1.msra.mxu0 0.0
  %699 = vmatprep.subr.mxu0 0.0
  %700 = vmatpush1.msra.mxu0 0.0
  %701 = vmatprep.subr.mxu0 0.0
  %702 = vmatpush1.msra.mxu0 0.0
  %703 = vmatprep.subr.mxu0 %v635
  %704 = vmatpush1.msra.mxu0 %v637
  %705 = vmatprep.subr.mxu0 %v631
  %706 = vmatpush1.msra.mxu0 %v636
  %707 = vmatprep.subr.mxu0 %v621
  %708 = vmatpush1.msra.mxu0 %v623
  %709 = vmatprep.subr.mxu0 %v617
  %710 = vmatpush1.msra.mxu0 %v622
  %711 = vmatprep.subr.mxu0 %v608
  %712 = vmatpush1.msra.mxu0 %v606
  %713 = vmatprep.subr.mxu0 %v602
  %714 = vmatpush1.msra.mxu0 %v600
  %715 = vmatprep.subr.mxu0 0.0
  %716 = vmatpush2.msra.mxu0 0.0
  %717 = vmatprep.subr.mxu0 0.0
  %718 = vmatpush2.msra.mxu0 0.0
  %719 = vmatprep.subr.mxu0 0.0
  %720 = vmatpush2.msra.mxu0 0.0
  %721 = vmatprep.subr.mxu0 0.0
  %722 = vmatpush2.msra.mxu0 0.0
  %723 = vmatprep.subr.mxu0 0.0
  %724 = vmatpush2.msra.mxu0 0.0
  %725 = vmatprep.subr.mxu0 0.0
  %726 = vmatpush2.msra.mxu0 0.0
  %727 = vmatprep.subr.mxu0 0.0
  %728 = vmatpush2.msra.mxu0 0.0
  %729 = vmatprep.subr.mxu0 0.0
  %730 = vmatpush2.msra.mxu0 0.0
  %731 = vmatprep.subr.mxu0 0.0
  %732 = vmatpush2.msra.mxu0 0.0
  %733 = vmatprep.subr.mxu0 0.0
  %734 = vmatpush2.msra.mxu0 0.0
  %735 = vmatprep.subr.mxu0 0.0
  %736 = vmatpush2.msra.mxu0 0.0
  %737 = vmatprep.subr.mxu0 0.0
  %738 = vmatpush2.msra.mxu0 0.0
  %739 = vmatprep.subr.mxu0 0.0
  %740 = vmatpush2.msra.mxu0 0.0
  %741 = vmatprep.subr.mxu0 0.0
  %742 = vmatpush2.msra.mxu0 0.0
  %743 = vmatprep.subr.mxu0 0.0
  %744 = vmatpush2.msra.mxu0 0.0
  %745 = vmatprep.subr.mxu0 0.0
  %746 = vmatpush2.msra.mxu0 0.0
  %747 = vmatprep.mubr.f32.mxu0 0.0
  %748 = vmatmul.mubr.f32.gmra.mxu0 %v672
  %v749 = vpop.f32.mrf.mxu0
  %v750 = vadd.f32 %v653, %v749
  %v751 = vpop.f32.mrf.mxu0
  %v752 = vadd.f32 %v653, %v751
  %753 = vmatprep.mubr.f32.mxu0 0.0
  %754 = vmatmul.mubr.f32.gmra.mxu0 %v675
  %v755 = vpop.f32.mrf.mxu0
  %v756 = vadd.f32 %v658, %v755
  %v757 = vpop.f32.mrf.mxu0
  %v758 = vadd.f32 %v658, %v757
  %759 = vmatprep.mubr.f32.mxu0 0.0
  %760 = vmatmul.mubr.f32.gmra.mxu0 %v678
  %v761 = vpop.f32.mrf.mxu0
  %v762 = vadd.f32 %v663, %v761
  %v763 = vpop.f32.mrf.mxu0
  %v764 = vadd.f32 %v663, %v763
  %765 = vmatprep.mubr.f32.mxu0 0.0
  %766 = vmatmul.mubr.f32.gmra.mxu0 %v681
  %v767 = vpop.f32.mrf.mxu0
  %v768 = vadd.f32 %v668, %v767
  %v769 = vpop.f32.mrf.mxu0
  %v770 = vadd.f32 %v668, %v769
  %771 = vdwg.mxu0
  %v772 = vmax.f32 %v750, 0.0
  %v773 = vmax.f32 %v752, 0.0
  %v774 = vmax.f32 %v756, 0.0
  %v775 = vmax.f32 %v758, 0.0
  %v776 = vmax.f32 %v762, 0.0
  %v777 = vmax.f32 %v764, 0.0
  %v778 = vmax.f32 %v768, 0.0
  %v779 = vmax.f32 %v770, 0.0
  %788 = vrot.lane.b32.xlu0 %v772, 127
  %v789 = vpop.permute.xlu0 %788
  %790 = vrot.lane.b32.xlu0 %v773, 127
  %v791 = vpop.permute.xlu0 %790
  %792 = vrot.lane.b32.xlu0 %v774, 127
  %v793 = vpop.permute.xlu0 %792
  %794 = vrot.lane.b32.xlu0 %v775, 127
  %v795 = vpop.permute.xlu0 %794
  %796 = vrot.lane.b32.xlu0 %v776, 127
  %v797 = vpop.permute.xlu0 %796
  %798 = vrot.lane.b32.xlu0 %v777, 127
  %v799 = vpop.permute.xlu0 %798
  %800 = vrot.lane.b32.xlu0 %v778, 127
  %v801 = vpop.permute.xlu0 %800
  %802 = vrot.lane.b32.xlu0 %v779, 127
  %v803 = vpop.permute.xlu0 %802
  %v804 = vsel %vm122, %v789, %v791
  %v805 = vsel %vm122, %v793, %v795
  %v806 = vsel %vm122, %v797, %v799
  %v807 = vsel %vm122, %v801, %v803
  %v816 = vmax.f32 %v772, %v804
  %v817 = vmax.f32 %v773, %v791
  %v818 = vmax.f32 %v774, %v805
  %v819 = vmax.f32 %v775, %v795
  %v820 = vmax.f32 %v776, %v806
  %v821 = vmax.f32 %v777, %v799
  %v822 = vmax.f32 %v778, %v807
  %v823 = vmax.f32 %v779, %v803
  %824 = vrot.lane.b32.xlu0 %v772, 126
  %v825 = vpop.permute.xlu0 %824
  %826 = vrot.lane.b32.xlu0 %v773, 126
  %v827 = vpop.permute.xlu0 %826
  %828 = vrot.lane.b32.xlu0 %v774, 126
  %v829 = vpop.permute.xlu0 %828
  %830 = vrot.lane.b32.xlu0 %v775, 126
  %v831 = vpop.permute.xlu0 %830
  %832 = vrot.lane.b32.xlu0 %v776, 126
  %v833 = vpop.permute.xlu0 %832
  %834 = vrot.lane.b32.xlu0 %v777, 126
  %v835 = vpop.permute.xlu0 %834
  %836 = vrot.lane.b32.xlu0 %v778, 126
  %v837 = vpop.permute.xlu0 %836
  %838 = vrot.lane.b32.xlu0 %v779, 126
  %v839 = vpop.permute.xlu0 %838
  %v840 = vsel %vm190, %v825, %v827
  %v841 = vsel %vm190, %v829, %v831
  %v842 = vsel %vm190, %v833, %v835
  %v843 = vsel %vm190, %v837, %v839
  %v852 = vmax.f32 %v816, %v840
  %v853 = vmax.f32 %v817, %v827
  %v854 = vmax.f32 %v818, %v841
  %v855 = vmax.f32 %v819, %v831
  %v856 = vmax.f32 %v820, %v842
  %v857 = vmax.f32 %v821, %v835
  %v858 = vmax.f32 %v822, %v843
  %v859 = vmax.f32 %v823, %v839
  %v860 = vld [vmem:[%s6] sm:$0xff]
  %v861 = vld [vmem:[%s6 + $0x8] sm:$0xff]
  %v862 = vld [vmem:[%s6 + $0x10] sm:$0xff]
  %v863 = vld [vmem:[%s6 + $0x18] sm:$0xff]
  %v864 = vld [vmem:[%s6 + $0x20] sm:$0xff]
  %v865 = vld [vmem:[%s6 + $0x28] sm:$0xff]
  %v866 = vld [vmem:[%s6 + $0x30] sm:$0xff]
  %v867 = vld [vmem:[%s6 + $0x38] sm:$0xff]
  %v868 = vld [vmem:[%s6 + $0x40] sm:$0xff]
  %v869 = vld [vmem:[%s6 + $0x48] sm:$0xff]
  %v870 = vld [vmem:[%s6 + $0x50] sm:$0xff]
  %v871 = vld [vmem:[%s6 + $0x58] sm:$0xff]
  %v872 = vld [vmem:[%s6 + $0x60] sm:$0xff]
  %v873 = vld [vmem:[%s6 + $0x68] sm:$0xff]
  %v874 = vld [vmem:[%s6 + $0x70] sm:$0xff]
  %v875 = vld [vmem:[%s6 + $0x78] sm:$0xff]
  %v876 = vld [vmem:[%s6 + $0x80] sm:$0xff]
  %v877 = vld [vmem:[%s6 + $0x88] sm:$0xff]
  %v878 = vld [vmem:[%s6 + $0x90] sm:$0xff]
  %v879 = vld [vmem:[%s6 + $0x98] sm:$0xff]
  %v880 = vld [vmem:[%s6 + $0xa0] sm:$0x3]
  %vm881 = vcmask 277504
  %v883 = vsel %vm881, %v853, 0
  %v886 = vsel %vm881, %v855, 0
  %v889 = vsel %vm881, %v857, 0
  %v892 = vsel %vm881, %v859, 0
  %vm894 = vcmask 1041408
  %v896 = vsel %vm894, %v880, 0
  %898 = vmatprep.subr.mxu0 0.0
  %899 = vmatpush1.msra.mxu0 %v875
  %900 = vmatprep.subr.mxu0 0.0
  %901 = vmatpush1.msra.mxu0 %v874
  %902 = vmatprep.subr.mxu0 0.0
  %903 = vmatpush1.msra.mxu0 %v873
  %904 = vmatprep.subr.mxu0 0.0
  %905 = vmatpush1.msra.mxu0 %v872
  %906 = vmatprep.subr.mxu0 0.0
  %907 = vmatpush1.msra.mxu0 %v871
  %908 = vmatprep.subr.mxu0 0.0
  %909 = vmatpush1.msra.mxu0 %v870
  %910 = vmatprep.subr.mxu0 0.0
  %911 = vmatpush1.msra.mxu0 %v869
  %912 = vmatprep.subr.mxu0 0.0
  %913 = vmatpush1.msra.mxu0 %v868
  %914 = vmatprep.subr.mxu0 0.0
  %915 = vmatpush1.msra.mxu0 %v867
  %916 = vmatprep.subr.mxu0 0.0
  %917 = vmatpush1.msra.mxu0 %v866
  %918 = vmatprep.subr.mxu0 0.0
  %919 = vmatpush1.msra.mxu0 %v865
  %920 = vmatprep.subr.mxu0 0.0
  %921 = vmatpush1.msra.mxu0 %v864
  %922 = vmatprep.subr.mxu0 0.0
  %923 = vmatpush1.msra.mxu0 %v863
  %924 = vmatprep.subr.mxu0 0.0
  %925 = vmatpush1.msra.mxu0 %v862
  %926 = vmatprep.subr.mxu0 0.0
  %927 = vmatpush1.msra.mxu0 %v861
  %928 = vmatprep.subr.mxu0 0.0
  %929 = vmatpush1.msra.mxu0 %v860
  %930 = vmatprep.subr.mxu0 0.0
  %931 = vmatpush2.msra.mxu0 0.0
  %932 = vmatprep.subr.mxu0 0.0
  %933 = vmatpush2.msra.mxu0 0.0
  %934 = vmatprep.subr.mxu0 0.0
  %935 = vmatpush2.msra.mxu0 0.0
  %936 = vmatprep.subr.mxu0 0.0
  %937 = vmatpush2.msra.mxu0 0.0
  %938 = vmatprep.subr.mxu0 0.0
  %939 = vmatpush2.msra.mxu0 0.0
  %940 = vmatprep.subr.mxu0 0.0
  %941 = vmatpush2.msra.mxu0 0.0
  %942 = vmatprep.subr.mxu0 0.0
  %943 = vmatpush2.msra.mxu0 0.0
  %944 = vmatprep.subr.mxu0 0.0
  %945 = vmatpush2.msra.mxu0 0.0
  %946 = vmatprep.subr.mxu0 0.0
  %947 = vmatpush2.msra.mxu0 0.0
  %948 = vmatprep.subr.mxu0 0.0
  %949 = vmatpush2.msra.mxu0 0.0
  %950 = vmatprep.subr.mxu0 0.0
  %951 = vmatpush2.msra.mxu0 0.0
  %952 = vmatprep.subr.mxu0 0.0
  %953 = vmatpush2.msra.mxu0 %v896
  %954 = vmatprep.subr.mxu0 0.0
  %955 = vmatpush2.msra.mxu0 %v879
  %956 = vmatprep.subr.mxu0 0.0
  %957 = vmatpush2.msra.mxu0 %v878
  %958 = vmatprep.subr.mxu0 0.0
  %959 = vmatpush2.msra.mxu0 %v877
  %960 = vmatprep.subr.mxu0 0.0
  %961 = vmatpush2.msra.mxu0 %v876
  %962 = vmatprep.mubr.f32.mxu0 %v883
  %963 = vmatmul.mubr.f32.gmra.mxu0 %v852
  %v964 = vpop.f32.mrf.mxu0
  %v965 = vadd.f32 0.0, %v964
  %v966 = vpop.f32.mrf.mxu0
  %967 = vmatprep.mubr.f32.mxu0 %v886
  %968 = vmatmul.mubr.f32.gmra.mxu0 %v854
  %v969 = vpop.f32.mrf.mxu0
  %v970 = vadd.f32 0.0, %v969
  %v971 = vpop.f32.mrf.mxu0
  %972 = vmatprep.mubr.f32.mxu0 %v889
  %973 = vmatmul.mubr.f32.gmra.mxu0 %v856
  %v974 = vpop.f32.mrf.mxu0
  %v975 = vadd.f32 0.0, %v974
  %v976 = vpop.f32.mrf.mxu0
  %977 = vmatprep.mubr.f32.mxu0 %v892
  %978 = vmatmul.mubr.f32.gmra.mxu0 %v858
  %v979 = vpop.f32.mrf.mxu0
  %v980 = vadd.f32 0.0, %v979
  %v981 = vpop.f32.mrf.mxu0
  %982 = vdwg.mxu0
  %987 = vrot.lane.b32.xlu0 %v965, 127
  %v988 = vpop.permute.xlu0 %987
  %989 = vrot.lane.b32.xlu0 %v970, 127
  %v990 = vpop.permute.xlu0 %989
  %991 = vrot.lane.b32.xlu0 %v975, 127
  %v992 = vpop.permute.xlu0 %991
  %993 = vrot.lane.b32.xlu0 %v980, 127
  %v994 = vpop.permute.xlu0 %993
  %999 = vrot.lane.b32.xlu0 %v965, 126
  %v1000 = vpop.permute.xlu0 %999
  %1001 = vrot.lane.b32.xlu0 %v970, 126
  %v1002 = vpop.permute.xlu0 %1001
  %1003 = vrot.lane.b32.xlu0 %v975, 126
  %v1004 = vpop.permute.xlu0 %1003
  %1005 = vrot.lane.b32.xlu0 %v980, 126
  %v1006 = vpop.permute.xlu0 %1005
  %v1011 = vld [vmem:[%s7] sm:$0xff]
  %v1012 = vld [vmem:[%s7 + $0x8] sm:$0xff]
  %v1013 = vld [vmem:[%s7 + $0x10] sm:$0xff]
  %v1014 = vld [vmem:[%s7 + $0x18] sm:$0xff]
  %v1015 = vld [vmem:[%s7 + $0x20] sm:$0xff]
  %v1016 = vld [vmem:[%s7 + $0x28] sm:$0xff]
  %v1017 = vld [vmem:[%s7 + $0x30] sm:$0xff]
  %v1018 = vld [vmem:[%s7 + $0x38] sm:$0xff]
  %v1019 = vld [vmem:[%s8] sm:$0xff]
  %v1020 = vld [vmem:[%s8 + $0x8] sm:$0xff]
  %v1021 = vld [vmem:[%s8 + $0x10] sm:$0xff]
  %v1022 = vld [vmem:[%s8 + $0x18] sm:$0xff]
  %v1023 = vld [vmem:[%s8 + $0x20] sm:$0xff]
  %v1024 = vld [vmem:[%s8 + $0x28] sm:$0xff]
  %v1025 = vld [vmem:[%s8 + $0x30] sm:$0xff]
  %v1026 = vld [vmem:[%s8 + $0x38] sm:$0xff]
  %1028 = vset.pattern.permute.xlu0 0
  %1029 = vperm.xlu0 %1028, %v1019
  %v1030 = vpop.permute.xlu0 %1029
  %1033 = vset.pattern.permute.xlu0 0
  %1034 = vperm.xlu0 %1033, %v1020
  %v1035 = vpop.permute.xlu0 %1034
  %1038 = vset.pattern.permute.xlu0 0
  %1039 = vperm.xlu0 %1038, %v1021
  %v1040 = vpop.permute.xlu0 %1039
  %1043 = vset.pattern.permute.xlu0 0
  %1044 = vperm.xlu0 %1043, %v1022
  %v1045 = vpop.permute.xlu0 %1044
  %1048 = vset.pattern.permute.xlu0 0
  %1049 = vperm.xlu0 %1048, %v1023
  %v1050 = vpop.permute.xlu0 %1049
  %1053 = vset.pattern.permute.xlu0 0
  %1054 = vperm.xlu0 %1053, %v1024
  %v1055 = vpop.permute.xlu0 %1054
  %1058 = vset.pattern.permute.xlu0 0
  %1059 = vperm.xlu0 %1058, %v1025
  %v1060 = vpop.permute.xlu0 %1059
  %1063 = vset.pattern.permute.xlu0 0
  %1064 = vperm.xlu0 %1063, %v1026
  %v1065 = vpop.permute.xlu0 %1064
  %vm1067 = vcmask 785408
  %v1069 = vsel %vm1067, %v1011, 0
  %v1072 = vsel %vm1067, %v1012, 0
  %v1075 = vsel %vm1067, %v1013, 0
  %v1078 = vsel %vm1067, %v1014, 0
  %v1081 = vsel %vm1067, %v1015, 0
  %v1084 = vsel %vm1067, %v1016, 0
  %v1087 = vsel %vm1067, %v1017, 0
  %v1090 = vsel %vm1067, %v1018, 0
  %1092 = vmatprep.subr.mxu0 0.0
  %1093 = vmatpush1.msra.mxu0 0.0
  %1094 = vmatprep.subr.mxu0 0.0
  %1095 = vmatpush1.msra.mxu0 0.0
  %1096 = vmatprep.subr.mxu0 0.0
  %1097 = vmatpush1.msra.mxu0 0.0
  %1098 = vmatprep.subr.mxu0 0.0
  %1099 = vmatpush1.msra.mxu0 0.0
  %1100 = vmatprep.subr.mxu0 0.0
  %1101 = vmatpush1.msra.mxu0 %v1006
  %1102 = vmatprep.subr.mxu0 0.0
  %1103 = vmatpush1.msra.mxu0 %v1004
  %1104 = vmatprep.subr.mxu0 0.0
  %1105 = vmatpush1.msra.mxu0 %v1002
  %1106 = vmatprep.subr.mxu0 0.0
  %1107 = vmatpush1.msra.mxu0 %v1000
  %1108 = vmatprep.subr.mxu0 0.0
  %1109 = vmatpush1.msra.mxu0 %v994
  %1110 = vmatprep.subr.mxu0 0.0
  %1111 = vmatpush1.msra.mxu0 %v992
  %1112 = vmatprep.subr.mxu0 0.0
  %1113 = vmatpush1.msra.mxu0 %v990
  %1114 = vmatprep.subr.mxu0 0.0
  %1115 = vmatpush1.msra.mxu0 %v988
  %1116 = vmatprep.subr.mxu0 0.0
  %1117 = vmatpush1.msra.mxu0 %v980
  %1118 = vmatprep.subr.mxu0 0.0
  %1119 = vmatpush1.msra.mxu0 %v975
  %1120 = vmatprep.subr.mxu0 0.0
  %1121 = vmatpush1.msra.mxu0 %v970
  %1122 = vmatprep.subr.mxu0 0.0
  %1123 = vmatpush1.msra.mxu0 %v965
  %1124 = vmatprep.subr.mxu0 0.0
  %1125 = vmatpush2.msra.mxu0 0.0
  %1126 = vmatprep.subr.mxu0 0.0
  %1127 = vmatpush2.msra.mxu0 0.0
  %1128 = vmatprep.subr.mxu0 0.0
  %1129 = vmatpush2.msra.mxu0 0.0
  %1130 = vmatprep.subr.mxu0 0.0
  %1131 = vmatpush2.msra.mxu0 0.0
  %1132 = vmatprep.subr.mxu0 0.0
  %1133 = vmatpush2.msra.mxu0 0.0
  %1134 = vmatprep.subr.mxu0 0.0
  %1135 = vmatpush2.msra.mxu0 0.0
  %1136 = vmatprep.subr.mxu0 0.0
  %1137 = vmatpush2.msra.mxu0 0.0
  %1138 = vmatprep.subr.mxu0 0.0
  %1139 = vmatpush2.msra.mxu0 0.0
  %1140 = vmatprep.subr.mxu0 0.0
  %1141 = vmatpush2.msra.mxu0 0.0
  %1142 = vmatprep.subr.mxu0 0.0
  %1143 = vmatpush2.msra.mxu0 0.0
  %1144 = vmatprep.subr.mxu0 0.0
  %1145 = vmatpush2.msra.mxu0 0.0
  %1146 = vmatprep.subr.mxu0 0.0
  %1147 = vmatpush2.msra.mxu0 0.0
  %1148 = vmatprep.subr.mxu0 0.0
  %1149 = vmatpush2.msra.mxu0 0.0
  %1150 = vmatprep.subr.mxu0 0.0
  %1151 = vmatpush2.msra.mxu0 0.0
  %1152 = vmatprep.subr.mxu0 0.0
  %1153 = vmatpush2.msra.mxu0 0.0
  %1154 = vmatprep.subr.mxu0 0.0
  %1155 = vmatpush2.msra.mxu0 0.0
  %1156 = vmatprep.mubr.f32.mxu0 0.0
  %1157 = vmatmul.mubr.f32.gmra.mxu0 %v1069
  %v1158 = vpop.f32.mrf.mxu0
  %v1159 = vadd.f32 %v1030, %v1158
  %v1160 = vpop.f32.mrf.mxu0
  %1161 = vmatprep.mubr.f32.mxu0 0.0
  %1162 = vmatmul.mubr.f32.gmra.mxu0 %v1072
  %v1163 = vpop.f32.mrf.mxu0
  %v1164 = vadd.f32 %v1035, %v1163
  %v1165 = vpop.f32.mrf.mxu0
  %1166 = vmatprep.mubr.f32.mxu0 0.0
  %1167 = vmatmul.mubr.f32.gmra.mxu0 %v1075
  %v1168 = vpop.f32.mrf.mxu0
  %v1169 = vadd.f32 %v1040, %v1168
  %v1170 = vpop.f32.mrf.mxu0
  %1171 = vmatprep.mubr.f32.mxu0 0.0
  %1172 = vmatmul.mubr.f32.gmra.mxu0 %v1078
  %v1173 = vpop.f32.mrf.mxu0
  %v1174 = vadd.f32 %v1045, %v1173
  %v1175 = vpop.f32.mrf.mxu0
  %1176 = vmatprep.mubr.f32.mxu0 0.0
  %1177 = vmatmul.mubr.f32.gmra.mxu0 %v1081
  %v1178 = vpop.f32.mrf.mxu0
  %v1179 = vadd.f32 %v1050, %v1178
  %v1180 = vpop.f32.mrf.mxu0
  %1181 = vmatprep.mubr.f32.mxu0 0.0
  %1182 = vmatmul.mubr.f32.gmra.mxu0 %v1084
  %v1183 = vpop.f32.mrf.mxu0
  %v1184 = vadd.f32 %v1055, %v1183
  %v1185 = vpop.f32.mrf.mxu0
  %1186 = vmatprep.mubr.f32.mxu0 0.0
  %1187 = vmatmul.mubr.f32.gmra.mxu0 %v1087
  %v1188 = vpop.f32.mrf.mxu0
  %v1189 = vadd.f32 %v1060, %v1188
  %v1190 = vpop.f32.mrf.mxu0
  %1191 = vmatprep.mubr.f32.mxu0 0.0
  %1192 = vmatmul.mubr.f32.gmra.mxu0 %v1090
  %v1193 = vpop.f32.mrf.mxu0
  %v1194 = vadd.f32 %v1065, %v1193
  %v1195 = vpop.f32.mrf.mxu0
  %1196 = vdwg.mxu0
  %v1197 = vmax.f32 %v1159, 0.0
  %v1198 = vmax.f32 %v1164, 0.0
  %v1199 = vmax.f32 %v1169, 0.0
  %v1200 = vmax.f32 %v1174, 0.0
  %v1201 = vmax.f32 %v1179, 0.0
  %v1202 = vmax.f32 %v1184, 0.0
  %v1203 = vmax.f32 %v1189, 0.0
  %v1204 = vmax.f32 %v1194, 0.0
  %1213 = vrot.lane.b32.xlu0 %v1197, 127
  %v1214 = vpop.permute.xlu0 %1213
  %1215 = vrot.lane.b32.xlu0 %v1198, 127
  %v1216 = vpop.permute.xlu0 %1215
  %1217 = vrot.lane.b32.xlu0 %v1199, 127
  %v1218 = vpop.permute.xlu0 %1217
  %1219 = vrot.lane.b32.xlu0 %v1200, 127
  %v1220 = vpop.permute.xlu0 %1219
  %1221 = vrot.lane.b32.xlu0 %v1201, 127
  %v1222 = vpop.permute.xlu0 %1221
  %1223 = vrot.lane.b32.xlu0 %v1202, 127
  %v1224 = vpop.permute.xlu0 %1223
  %1225 = vrot.lane.b32.xlu0 %v1203, 127
  %v1226 = vpop.permute.xlu0 %1225
  %1227 = vrot.lane.b32.xlu0 %v1204, 127
  %v1228 = vpop.permute.xlu0 %1227
  %v1237 = vmax.f32 %v1197, %v1214
  %v1238 = vmax.f32 %v1198, %v1216
  %v1239 = vmax.f32 %v1199, %v1218
  %v1240 = vmax.f32 %v1200, %v1220
  %v1241 = vmax.f32 %v1201, %v1222
  %v1242 = vmax.f32 %v1202, %v1224
  %v1243 = vmax.f32 %v1203, %v1226
  %v1244 = vmax.f32 %v1204, %v1228
  %1245 = vrot.lane.b32.xlu0 %v1197, 126
  %v1246 = vpop.permute.xlu0 %1245
  %1247 = vrot.lane.b32.xlu0 %v1198, 126
  %v1248 = vpop.permute.xlu0 %1247
  %1249 = vrot.lane.b32.xlu0 %v1199, 126
  %v1250 = vpop.permute.xlu0 %1249
  %1251 = vrot.lane.b32.xlu0 %v1200, 126
  %v1252 = vpop.permute.xlu0 %1251
  %1253 = vrot.lane.b32.xlu0 %v1201, 126
  %v1254 = vpop.permute.xlu0 %1253
  %1255 = vrot.lane.b32.xlu0 %v1202, 126
  %v1256 = vpop.permute.xlu0 %1255
  %1257 = vrot.lane.b32.xlu0 %v1203, 126
  %v1258 = vpop.permute.xlu0 %1257
  %1259 = vrot.lane.b32.xlu0 %v1204, 126
  %v1260 = vpop.permute.xlu0 %1259
  %v1269 = vmax.f32 %v1237, %v1246
  %v1270 = vmax.f32 %v1238, %v1248
  %v1271 = vmax.f32 %v1239, %v1250
  %v1272 = vmax.f32 %v1240, %v1252
  %v1273 = vmax.f32 %v1241, %v1254
  %v1274 = vmax.f32 %v1242, %v1256
  %v1275 = vmax.f32 %v1243, %v1258
  %v1276 = vmax.f32 %v1244, %v1260
  %v1277 = vld [vmem:[%s9] sm:$0xff]
  %v1278 = vld [vmem:[%s9 + $0x8] sm:$0xff]
  %v1279 = vld [vmem:[%s9 + $0x10] sm:$0xff]
  %v1280 = vld [vmem:[%s9 + $0x18] sm:$0xff]
  %v1281 = vld [vmem:[%s9 + $0x20] sm:$0xff]
  %v1282 = vld [vmem:[%s9 + $0x28] sm:$0xff]
  %v1283 = vld [vmem:[%s9 + $0x30] sm:$0x3]
  %vm1284 = vcmask 408576
  %v1286 = vsel %vm1284, %v1269, 0
  %v1289 = vsel %vm1284, %v1270, 0
  %v1292 = vsel %vm1284, %v1271, 0
  %v1295 = vsel %vm1284, %v1272, 0
  %v1298 = vsel %vm1284, %v1273, 0
  %v1301 = vsel %vm1284, %v1274, 0
  %v1304 = vsel %vm1284, %v1275, 0
  %v1307 = vsel %vm1284, %v1276, 0
  %v1310 = vsel %vm894, %v1283, 0
  %1312 = vmatprep.subr.mxu0 0.0
  %1313 = vmatpush1.msra.mxu0 0.0
  %1314 = vmatprep.subr.mxu0 0.0
  %1315 = vmatpush1.msra.mxu0 0.0
  %1316 = vmatprep.subr.mxu0 0.0
  %1317 = vmatpush1.msra.mxu0 0.0
  %1318 = vmatprep.subr.mxu0 0.0
  %1319 = vmatpush1.msra.mxu0 0.0
  %1320 = vmatprep.subr.mxu0 0.0
  %1321 = vmatpush1.msra.mxu0 0.0
  %1322 = vmatprep.subr.mxu0 0.0
  %1323 = vmatpush1.msra.mxu0 0.0
  %1324 = vmatprep.subr.mxu0 0.0
  %1325 = vmatpush1.msra.mxu0 0.0
  %1326 = vmatprep.subr.mxu0 0.0
  %1327 = vmatpush1.msra.mxu0 0.0
  %1328 = vmatprep.subr.mxu0 0.0
  %1329 = vmatpush1.msra.mxu0 0.0
  %1330 = vmatprep.subr.mxu0 0.0
  %1331 = vmatpush1.msra.mxu0 %v1310
  %1332 = vmatprep.subr.mxu0 0.0
  %1333 = vmatpush1.msra.mxu0 %v1282
  %1334 = vmatprep.subr.mxu0 0.0
  %1335 = vmatpush1.msra.mxu0 %v1281
  %1336 = vmatprep.subr.mxu0 0.0
  %1337 = vmatpush1.msra.mxu0 %v1280
  %1338 = vmatprep.subr.mxu0 0.0
  %1339 = vmatpush1.msra.mxu0 %v1279
  %1340 = vmatprep.subr.mxu0 0.0
  %1341 = vmatpush1.msra.mxu0 %v1278
  %1342 = vmatprep.subr.mxu0 0.0
  %1343 = vmatpush1.msra.mxu0 %v1277
  %1344 = vmatprep.subr.mxu0 0.0
  %1345 = vmatpush2.msra.mxu0 0.0
  %1346 = vmatprep.subr.mxu0 0.0
  %1347 = vmatpush2.msra.mxu0 0.0
  %1348 = vmatprep.subr.mxu0 0.0
  %1349 = vmatpush2.msra.mxu0 0.0
  %1350 = vmatprep.subr.mxu0 0.0
  %1351 = vmatpush2.msra.mxu0 0.0
  %1352 = vmatprep.subr.mxu0 0.0
  %1353 = vmatpush2.msra.mxu0 0.0
  %1354 = vmatprep.subr.mxu0 0.0
  %1355 = vmatpush2.msra.mxu0 0.0
  %1356 = vmatprep.subr.mxu0 0.0
  %1357 = vmatpush2.msra.mxu0 0.0
  %1358 = vmatprep.subr.mxu0 0.0
  %1359 = vmatpush2.msra.mxu0 0.0
  %1360 = vmatprep.subr.mxu0 0.0
  %1361 = vmatpush2.msra.mxu0 0.0
  %1362 = vmatprep.subr.mxu0 0.0
  %1363 = vmatpush2.msra.mxu0 0.0
  %1364 = vmatprep.subr.mxu0 0.0
  %1365 = vmatpush2.msra.mxu0 0.0
  %1366 = vmatprep.subr.mxu0 0.0
  %1367 = vmatpush2.msra.mxu0 0.0
  %1368 = vmatprep.subr.mxu0 0.0
  %1369 = vmatpush2.msra.mxu0 0.0
  %1370 = vmatprep.subr.mxu0 0.0
  %1371 = vmatpush2.msra.mxu0 0.0
  %1372 = vmatprep.subr.mxu0 0.0
  %1373 = vmatpush2.msra.mxu0 0.0
  %1374 = vmatprep.subr.mxu0 0.0
  %1375 = vmatpush2.msra.mxu0 0.0
  %1376 = vmatprep.mubr.f32.mxu0 0.0
  %1377 = vmatmul.mubr.f32.gmra.mxu0 %v1286
  %v1378 = vpop.f32.mrf.mxu0
  %v1379 = vadd.f32 0.0, %v1378
  %v1380 = vpop.f32.mrf.mxu0
  %1381 = vmatprep.mubr.f32.mxu0 0.0
  %1382 = vmatmul.mubr.f32.gmra.mxu0 %v1289
  %v1383 = vpop.f32.mrf.mxu0
  %v1384 = vadd.f32 0.0, %v1383
  %v1385 = vpop.f32.mrf.mxu0
  %1386 = vmatprep.mubr.f32.mxu0 0.0
  %1387 = vmatmul.mubr.f32.gmra.mxu0 %v1292
  %v1388 = vpop.f32.mrf.mxu0
  %v1389 = vadd.f32 0.0, %v1388
  %v1390 = vpop.f32.mrf.mxu0
  %1391 = vmatprep.mubr.f32.mxu0 0.0
  %1392 = vmatmul.mubr.f32.gmra.mxu0 %v1295
  %v1393 = vpop.f32.mrf.mxu0
  %v1394 = vadd.f32 0.0, %v1393
  %v1395 = vpop.f32.mrf.mxu0
  %1396 = vmatprep.mubr.f32.mxu0 0.0
  %1397 = vmatmul.mubr.f32.gmra.mxu0 %v1298
  %v1398 = vpop.f32.mrf.mxu0
  %v1399 = vadd.f32 0.0, %v1398
  %v1400 = vpop.f32.mrf.mxu0
  %1401 = vmatprep.mubr.f32.mxu0 0.0
  %1402 = vmatmul.mubr.f32.gmra.mxu0 %v1301
  %v1403 = vpop.f32.mrf.mxu0
  %v1404 = vadd.f32 0.0, %v1403
  %v1405 = vpop.f32.mrf.mxu0
  %1406 = vmatprep.mubr.f32.mxu0 0.0
  %1407 = vmatmul.mubr.f32.gmra.mxu0 %v1304
  %v1408 = vpop.f32.mrf.mxu0
  %v1409 = vadd.f32 0.0, %v1408
  %v1410 = vpop.f32.mrf.mxu0
  %1411 = vmatprep.mubr.f32.mxu0 0.0
  %1412 = vmatmul.mubr.f32.gmra.mxu0 %v1307
  %v1413 = vpop.f32.mrf.mxu0
  %v1414 = vadd.f32 0.0, %v1413
  %v1415 = vpop.f32.mrf.mxu0
  %1416 = vdwg.mxu0
  %vm1417 = vcmask 138240
  %1418 = vst.msk [vmem:[%s10] sm:$0xff] %vm1417, %v1379
  %1419 = vst.msk [vmem:[%s10 + $0x8] sm:$0xff] %vm1417, %v1384
  %1420 = vst.msk [vmem:[%s10 + $0x10] sm:$0xff] %vm1417, %v1389
  %1421 = vst.msk [vmem:[%s10 + $0x18] sm:$0xff] %vm1417, %v1394
  %1422 = vst.msk [vmem:[%s10 + $0x20] sm:$0xff] %vm1417, %v1399
  %1423 = vst.msk [vmem:[%s10 + $0x28] sm:$0xff] %vm1417, %v1404
  %1424 = vst.msk [vmem:[%s10 + $0x30] sm:$0xff] %vm1417, %v1409
  %1425 = vst.msk [vmem:[%s10 + $0x38] sm:$0xff] %vm1417, %v1414
  %s1426 = scalar_lea.vmem %s0, 1
  %v1427 = vld [vmem:[%s1426] ss:$8 sm:$0xf]
  %v1428 = vld [vmem:[%s1] sm:$0xff]
  %v1429 = vld [vmem:[%s1 + $0x8] sm:$0xff]
  %1431 = vset.pattern.permute.xlu0 0
  %1432 = vperm.xlu0 %1431, %v1428
  %v1433 = vpop.permute.xlu0 %1432
  %1436 = vset.pattern.permute.xlu0 0
  %1437 = vperm.xlu0 %1436, %v1429
  %v1438 = vpop.permute.xlu0 %1437
  %v1441 = vlaneseq
  %v1442 = vshrl.u32 %v1441, 7
  %v1443 = vsub.s32 0, %v1442
  %v1444 = vrot.slane %v1427, %v1443
  %v1445 = vlaneseq
  %v1446 = vshrl.u32 %v1445, 7
  %v1447 = vsub.s32 1, %v1446
  %v1448 = vrot.slane %v1427, %v1447
  %v1449 = vlaneseq
  %v1450 = vshrl.u32 %v1449, 7
  %v1451 = vsub.s32 2, %v1450
  %v1452 = vrot.slane %v1427, %v1451
  %v1453 = vlaneseq
  %v1454 = vshrl.u32 %v1453, 7
  %v1455 = vsub.s32 3, %v1454
  %v1456 = vrot.slane %v1427, %v1455
  %v1461 = vmul.f32 %v1433, %v1444
  %v1462 = vmul.f32 %v1433, %v1448
  %v1463 = vmul.f32 %v1433, %v1452
  %v1464 = vmul.f32 %v1433, %v1456
  %v1465 = vmul.f32 %v1438, %v1444
  %v1466 = vmul.f32 %v1438, %v1448
  %v1467 = vmul.f32 %v1438, %v1452
  %v1468 = vmul.f32 %v1438, %v1456
  %v1469 = vld [vmem:[%s77] sm:$0xff]
  %v1470 = vld [vmem:[%s77 + $0x8] sm:$0xff]
  %1472 = vset.pattern.permute.xlu0 0
  %1473 = vperm.xlu0 %1472, %v1469
  %v1474 = vpop.permute.xlu0 %1473
  %1477 = vset.pattern.permute.xlu0 0
  %1478 = vperm.xlu0 %1477, %v1470
  %v1479 = vpop.permute.xlu0 %1478
  %v1481 = vmul.f32 %v1474, %v1444
  %v1482 = vmul.f32 %v1474, %v1448
  %v1483 = vmul.f32 %v1474, %v1452
  %v1484 = vmul.f32 %v1474, %v1456
  %v1485 = vmul.f32 %v1479, %v1444
  %v1486 = vmul.f32 %v1479, %v1448
  %v1487 = vmul.f32 %v1479, %v1452
  %v1488 = vmul.f32 %v1479, %v1456
  %1497 = vrot.lane.b32.xlu0 %v1481, 127
  %v1498 = vpop.permute.xlu0 %1497
  %1499 = vrot.lane.b32.xlu0 %v1482, 127
  %v1500 = vpop.permute.xlu0 %1499
  %1501 = vrot.lane.b32.xlu0 %v1483, 127
  %v1502 = vpop.permute.xlu0 %1501
  %1503 = vrot.lane.b32.xlu0 %v1484, 127
  %v1504 = vpop.permute.xlu0 %1503
  %1505 = vrot.lane.b32.xlu0 %v1485, 127
  %v1506 = vpop.permute.xlu0 %1505
  %1507 = vrot.lane.b32.xlu0 %v1486, 127
  %v1508 = vpop.permute.xlu0 %1507
  %1509 = vrot.lane.b32.xlu0 %v1487, 127
  %v1510 = vpop.permute.xlu0 %1509
  %1511 = vrot.lane.b32.xlu0 %v1488, 127
  %v1512 = vpop.permute.xlu0 %1511
  %v1513 = vsel %vm122, %v1498, %v1500
  %v1514 = vsel %vm122, %v1500, %v1502
  %v1515 = vsel %vm122, %v1502, %v1504
  %v1516 = vsel %vm122, %v1506, %v1508
  %v1517 = vsel %vm122, %v1508, %v1510
  %v1518 = vsel %vm122, %v1510, %v1512
  %v1527 = vadd.f32 %v1461, %v1513
  %v1528 = vadd.f32 %v1462, %v1514
  %v1529 = vadd.f32 %v1463, %v1515
  %v1530 = vadd.f32 %v1464, %v1504
  %v1531 = vadd.f32 %v1465, %v1516
  %v1532 = vadd.f32 %v1466, %v1517
  %v1533 = vadd.f32 %v1467, %v1518
  %v1534 = vadd.f32 %v1468, %v1512
  %v1535 = vld [vmem:[%s145] sm:$0xff]
  %v1536 = vld [vmem:[%s145 + $0x8] sm:$0xff]
  %1538 = vset.pattern.permute.xlu0 0
  %1539 = vperm.xlu0 %1538, %v1535
  %v1540 = vpop.permute.xlu0 %1539
  %1543 = vset.pattern.permute.xlu0 0
  %1544 = vperm.xlu0 %1543, %v1536
  %v1545 = vpop.permute.xlu0 %1544
  %v1547 = vmul.f32 %v1540, %v1444
  %v1548 = vmul.f32 %v1540, %v1448
  %v1549 = vmul.f32 %v1540, %v1452
  %v1550 = vmul.f32 %v1540, %v1456
  %v1551 = vmul.f32 %v1545, %v1444
  %v1552 = vmul.f32 %v1545, %v1448
  %v1553 = vmul.f32 %v1545, %v1452
  %v1554 = vmul.f32 %v1545, %v1456
  %1563 = vrot.lane.b32.xlu0 %v1547, 126
  %v1564 = vpop.permute.xlu0 %1563
  %1565 = vrot.lane.b32.xlu0 %v1548, 126
  %v1566 = vpop.permute.xlu0 %1565
  %1567 = vrot.lane.b32.xlu0 %v1549, 126
  %v1568 = vpop.permute.xlu0 %1567
  %1569 = vrot.lane.b32.xlu0 %v1550, 126
  %v1570 = vpop.permute.xlu0 %1569
  %1571 = vrot.lane.b32.xlu0 %v1551, 126
  %v1572 = vpop.permute.xlu0 %1571
  %1573 = vrot.lane.b32.xlu0 %v1552, 126
  %v1574 = vpop.permute.xlu0 %1573
  %1575 = vrot.lane.b32.xlu0 %v1553, 126
  %v1576 = vpop.permute.xlu0 %1575
  %1577 = vrot.lane.b32.xlu0 %v1554, 126
  %v1578 = vpop.permute.xlu0 %1577
  %v1579 = vsel %vm190, %v1564, %v1566
  %v1580 = vsel %vm190, %v1566, %v1568
  %v1581 = vsel %vm190, %v1568, %v1570
  %v1582 = vsel %vm190, %v1572, %v1574
  %v1583 = vsel %vm190, %v1574, %v1576
  %v1584 = vsel %vm190, %v1576, %v1578
  %v1593 = vadd.f32 %v1527, %v1579
  %v1594 = vadd.f32 %v1528, %v1580
  %v1595 = vadd.f32 %v1529, %v1581
  %v1596 = vadd.f32 %v1530, %v1570
  %v1597 = vadd.f32 %v1531, %v1582
  %v1598 = vadd.f32 %v1532, %v1583
  %v1599 = vadd.f32 %v1533, %v1584
  %v1600 = vadd.f32 %v1534, %v1578
  %v1601 = vld [vmem:[%s2] sm:$0xff]
  %v1602 = vld [vmem:[%s2 + $0x8] sm:$0xff]
  %1604 = vset.pattern.permute.xlu0 0
  %1605 = vperm.xlu0 %1604, %v1601
  %v1606 = vpop.permute.xlu0 %1605
  %1609 = vset.pattern.permute.xlu0 0
  %1610 = vperm.xlu0 %1609, %v1602
  %v1611 = vpop.permute.xlu0 %1610
  %v1613 = vadd.f32 %v1593, %v1606
  %v1614 = vadd.f32 %v1594, %v1606
  %v1615 = vadd.f32 %v1595, %v1606
  %v1616 = vadd.f32 %v1596, %v1606
  %v1617 = vadd.f32 %v1597, %v1611
  %v1618 = vadd.f32 %v1598, %v1611
  %v1619 = vadd.f32 %v1599, %v1611
  %v1620 = vadd.f32 %v1600, %v1611
  %v1621 = vmax.f32 %v1613, 0.0
  %v1622 = vmax.f32 %v1614, 0.0
  %v1623 = vmax.f32 %v1615, 0.0
  %v1624 = vmax.f32 %v1616, 0.0
  %v1625 = vmax.f32 %v1617, 0.0
  %v1626 = vmax.f32 %v1618, 0.0
  %v1627 = vmax.f32 %v1619, 0.0
  %v1628 = vmax.f32 %v1620, 0.0
  %1637 = vrot.lane.b32.xlu0 %v1621, 127
  %v1638 = vpop.permute.xlu0 %1637
  %1639 = vrot.lane.b32.xlu0 %v1622, 127
  %v1640 = vpop.permute.xlu0 %1639
  %1641 = vrot.lane.b32.xlu0 %v1623, 127
  %v1642 = vpop.permute.xlu0 %1641
  %1643 = vrot.lane.b32.xlu0 %v1624, 127
  %v1644 = vpop.permute.xlu0 %1643
  %1645 = vrot.lane.b32.xlu0 %v1625, 127
  %v1646 = vpop.permute.xlu0 %1645
  %1647 = vrot.lane.b32.xlu0 %v1626, 127
  %v1648 = vpop.permute.xlu0 %1647
  %1649 = vrot.lane.b32.xlu0 %v1627, 127
  %v1650 = vpop.permute.xlu0 %1649
  %1651 = vrot.lane.b32.xlu0 %v1628, 127
  %v1652 = vpop.permute.xlu0 %1651
  %v1653 = vsel %vm122, %v1638, %v1640
  %v1654 = vsel %vm122, %v1640, %v1642
  %v1655 = vsel %vm122, %v1642, %v1644
  %v1656 = vsel %vm122, %v1646, %v1648
  %v1657 = vsel %vm122, %v1648, %v1650
  %v1658 = vsel %vm122, %v1650, %v1652
  %v1667 = vmax.f32 %v1621, %v1653
  %v1668 = vmax.f32 %v1622, %v1654
  %v1669 = vmax.f32 %v1623, %v1655
  %v1670 = vmax.f32 %v1624, %v1644
  %v1671 = vmax.f32 %v1625, %v1656
  %v1672 = vmax.f32 %v1626, %v1657
  %v1673 = vmax.f32 %v1627, %v1658
  %v1674 = vmax.f32 %v1628, %v1652
  %1675 = vrot.lane.b32.xlu0 %v1621, 126
  %v1676 = vpop.permute.xlu0 %1675
  %1677 = vrot.lane.b32.xlu0 %v1622, 126
  %v1678 = vpop.permute.xlu0 %1677
  %1679 = vrot.lane.b32.xlu0 %v1623, 126
  %v1680 = vpop.permute.xlu0 %1679
  %1681 = vrot.lane.b32.xlu0 %v1624, 126
  %v1682 = vpop.permute.xlu0 %1681
  %1683 = vrot.lane.b32.xlu0 %v1625, 126
  %v1684 = vpop.permute.xlu0 %1683
  %1685 = vrot.lane.b32.xlu0 %v1626, 126
  %v1686 = vpop.permute.xlu0 %1685
  %1687 = vrot.lane.b32.xlu0 %v1627, 126
  %v1688 = vpop.permute.xlu0 %1687
  %1689 = vrot.lane.b32.xlu0 %v1628, 126
  %v1690 = vpop.permute.xlu0 %1689
  %v1691 = vsel %vm190, %v1676, %v1678
  %v1692 = vsel %vm190, %v1678, %v1680
  %v1693 = vsel %vm190, %v1680, %v1682
  %v1694 = vsel %vm190, %v1684, %v1686
  %v1695 = vsel %vm190, %v1686, %v1688
  %v1696 = vsel %vm190, %v1688, %v1690
  %v1705 = vmax.f32 %v1667, %v1691
  %v1706 = vmax.f32 %v1668, %v1692
  %v1707 = vmax.f32 %v1669, %v1693
  %v1708 = vmax.f32 %v1670, %v1682
  %v1709 = vmax.f32 %v1671, %v1694
  %v1710 = vmax.f32 %v1672, %v1695
  %v1711 = vmax.f32 %v1673, %v1696
  %v1712 = vmax.f32 %v1674, %v1690
  %v1713 = vld [vmem:[%s3] sm:$0xff]
  %v1714 = vld [vmem:[%s3 + $0x8] sm:$0xff]
  %v1715 = vld [vmem:[%s3 + $0x10] sm:$0xff]
  %v1716 = vld [vmem:[%s3 + $0x18] sm:$0xff]
  %v1717 = vld [vmem:[%s3 + $0x20] sm:$0xff]
  %v1718 = vld [vmem:[%s3 + $0x28] sm:$0xff]
  %v1719 = vld [vmem:[%s3 + $0x30] sm:$0xff]
  %v1720 = vld [vmem:[%s3 + $0x38] sm:$0xff]
  %v1721 = vld [vmem:[%s3 + $0x40] sm:$0xff]
  %v1722 = vld [vmem:[%s3 + $0x48] sm:$0xff]
  %v1723 = vld [vmem:[%s3 + $0x50] sm:$0xff]
  %v1724 = vld [vmem:[%s3 + $0x58] sm:$0xff]
  %v1725 = vld [vmem:[%s3 + $0x60] sm:$0xff]
  %v1726 = vld [vmem:[%s3 + $0x68] sm:$0xff]
  %v1727 = vld [vmem:[%s3 + $0x70] sm:$0xff]
  %v1728 = vld [vmem:[%s3 + $0x78] sm:$0xff]
  %v1729 = vld [vmem:[%s3 + $0x80] sm:$0xff]
  %v1730 = vld [vmem:[%s3 + $0x88] sm:$0xff]
  %v1731 = vld [vmem:[%s3 + $0x90] sm:$0xff]
  %v1732 = vld [vmem:[%s3 + $0x98] sm:$0xff]
  %v1733 = vld [vmem:[%s3 + $0xa0] sm:$0xff]
  %v1734 = vld [vmem:[%s3 + $0xa8] sm:$0xff]
  %v1735 = vld [vmem:[%s3 + $0xb0] sm:$0xff]
  %v1736 = vld [vmem:[%s3 + $0xb8] sm:$0xff]
  %v1737 = vld [vmem:[%s3 + $0xc0] sm:$0xff]
  %v1738 = vld [vmem:[%s3 + $0xc8] sm:$0xff]
  %v1739 = vld [vmem:[%s3 + $0xd0] sm:$0xff]
  %v1740 = vld [vmem:[%s3 + $0xd8] sm:$0xff]
  %v1741 = vld [vmem:[%s3 + $0xe0] sm:$0xff]
  %v1742 = vld [vmem:[%s3 + $0xe8] sm:$0xff]
  %v1743 = vld [vmem:[%s3 + $0xf0] sm:$0xff]
  %v1744 = vld [vmem:[%s3 + $0xf8] sm:$0xff]
  %v1745 = vld [vmem:[%s3 + $0x100] sm:$0xff]
  %v1746 = vld [vmem:[%s3 + $0x108] sm:$0xff]
  %v1747 = vld [vmem:[%s3 + $0x110] sm:$0xff]
  %v1748 = vld [vmem:[%s3 + $0x118] sm:$0xff]
  %v1749 = vld [vmem:[%s3 + $0x120] sm:$0xff]
  %v1750 = vld [vmem:[%s3 + $0x128] sm:$0xff]
  %v1751 = vld [vmem:[%s3 + $0x130] sm:$0xff]
  %v1752 = vld [vmem:[%s3 + $0x138] sm:$0xff]
  %v1753 = vld [vmem:[%s3 + $0x140] sm:$0xff]
  %v1754 = vld [vmem:[%s3 + $0x148] sm:$0xff]
  %v1755 = vld [vmem:[%s3 + $0x150] sm:$0xff]
  %v1756 = vld [vmem:[%s3 + $0x158] sm:$0xff]
  %v1757 = vld [vmem:[%s3 + $0x160] sm:$0xff]
  %v1758 = vld [vmem:[%s3 + $0x168] sm:$0xff]
  %v1759 = vld [vmem:[%s3 + $0x170] sm:$0xff]
  %v1760 = vld [vmem:[%s3 + $0x178] sm:$0xff]
  %v1761 = vld [vmem:[%s3 + $0x180] sm:$0xff]
  %v1762 = vld [vmem:[%s3 + $0x188] sm:$0xff]
  %v1763 = vld [vmem:[%s3 + $0x190] sm:$0xff]
  %v1764 = vld [vmem:[%s3 + $0x198] sm:$0xff]
  %v1765 = vld [vmem:[%s3 + $0x1a0] sm:$0xff]
  %v1766 = vld [vmem:[%s3 + $0x1a8] sm:$0xff]
  %v1767 = vld [vmem:[%s3 + $0x1b0] sm:$0xff]
  %v1768 = vld [vmem:[%s3 + $0x1b8] sm:$0xff]
  %v1769 = vld [vmem:[%s3 + $0x1c0] sm:$0xff]
  %v1770 = vld [vmem:[%s3 + $0x1c8] sm:$0xff]
  %v1771 = vld [vmem:[%s3 + $0x1d0] sm:$0xff]
  %v1772 = vld [vmem:[%s3 + $0x1d8] sm:$0xff]
  %v1773 = vld [vmem:[%s3 + $0x1e0] sm:$0xff]
  %v1774 = vld [vmem:[%s3 + $0x1e8] sm:$0xff]
  %v1775 = vld [vmem:[%s3 + $0x1f0] sm:$0xff]
  %v1776 = vld [vmem:[%s3 + $0x1f8] sm:$0xff]
  %v1777 = vld [vmem:[%s3 + $0x200] sm:$0xff]
  %v1778 = vld [vmem:[%s3 + $0x208] sm:$0xff]
  %v1779 = vld [vmem:[%s3 + $0x210] sm:$0xff]
  %v1780 = vld [vmem:[%s3 + $0x218] sm:$0xff]
  %v1781 = vld [vmem:[%s3 + $0x220] sm:$0xff]
  %v1782 = vld [vmem:[%s3 + $0x228] sm:$0xff]
  %v1783 = vld [vmem:[%s3 + $0x230] sm:$0xff]
  %v1784 = vld [vmem:[%s3 + $0x238] sm:$0xff]
  %v1785 = vld [vmem:[%s3 + $0x240] sm:$0xff]
  %v1786 = vld [vmem:[%s3 + $0x248] sm:$0xff]
  %v1787 = vld [vmem:[%s3 + $0x250] sm:$0xff]
  %v1788 = vld [vmem:[%s3 + $0x258] sm:$0xff]
  %v1789 = vld [vmem:[%s3 + $0x260] sm:$0xff]
  %v1790 = vld [vmem:[%s3 + $0x268] sm:$0xff]
  %v1791 = vld [vmem:[%s3 + $0x270] sm:$0xff]
  %v1792 = vld [vmem:[%s3 + $0x278] sm:$0xff]
  %v1793 = vld [vmem:[%s3 + $0x280] sm:$0xff]
  %v1794 = vld [vmem:[%s3 + $0x288] sm:$0xff]
  %v1795 = vld [vmem:[%s3 + $0x290] sm:$0xff]
  %v1796 = vld [vmem:[%s3 + $0x298] sm:$0xff]
  %v1797 = vld [vmem:[%s3 + $0x2a0] sm:$0xff]
  %v1798 = vld [vmem:[%s3 + $0x2a8] sm:$0xff]
  %v1799 = vld [vmem:[%s3 + $0x2b0] sm:$0xff]
  %v1800 = vld [vmem:[%s3 + $0x2b8] sm:$0xff]
  %v1801 = vld [vmem:[%s3 + $0x2c0] sm:$0xff]
  %v1802 = vld [vmem:[%s3 + $0x2c8] sm:$0xff]
  %v1803 = vld [vmem:[%s3 + $0x2d0] sm:$0xff]
  %v1804 = vld [vmem:[%s3 + $0x2d8] sm:$0xff]
  %v1805 = vld [vmem:[%s3 + $0x2e0] sm:$0xff]
  %v1806 = vld [vmem:[%s3 + $0x2e8] sm:$0xff]
  %v1807 = vld [vmem:[%s3 + $0x2f0] sm:$0xff]
  %v1808 = vld [vmem:[%s3 + $0x2f8] sm:$0xff]
  %v1809 = vld [vmem:[%s3 + $0x300] sm:$0xff]
  %v1810 = vld [vmem:[%s3 + $0x308] sm:$0xff]
  %v1811 = vld [vmem:[%s3 + $0x310] sm:$0xff]
  %v1812 = vld [vmem:[%s3 + $0x318] sm:$0xff]
  %v1813 = vld [vmem:[%s3 + $0x320] sm:$0xff]
  %v1814 = vld [vmem:[%s3 + $0x328] sm:$0xff]
  %v1815 = vld [vmem:[%s3 + $0x330] sm:$0xff]
  %v1816 = vld [vmem:[%s3 + $0x338] sm:$0xff]
  %v1817 = vld [vmem:[%s3 + $0x340] sm:$0xff]
  %v1818 = vld [vmem:[%s3 + $0x348] sm:$0xff]
  %v1819 = vld [vmem:[%s3 + $0x350] sm:$0xff]
  %v1820 = vld [vmem:[%s3 + $0x358] sm:$0xff]
  %v1821 = vld [vmem:[%s3 + $0x360] sm:$0xff]
  %v1822 = vld [vmem:[%s3 + $0x368] sm:$0xff]
  %v1823 = vld [vmem:[%s3 + $0x370] sm:$0xff]
  %v1824 = vld [vmem:[%s3 + $0x378] sm:$0xff]
  %v1825 = vld [vmem:[%s3 + $0x380] sm:$0xff]
  %v1826 = vld [vmem:[%s3 + $0x388] sm:$0xff]
  %v1827 = vld [vmem:[%s3 + $0x390] sm:$0xff]
  %v1828 = vld [vmem:[%s3 + $0x398] sm:$0xff]
  %v1829 = vld [vmem:[%s3 + $0x3a0] sm:$0xff]
  %v1830 = vld [vmem:[%s3 + $0x3a8] sm:$0xff]
  %v1831 = vld [vmem:[%s3 + $0x3b0] sm:$0xff]
  %v1832 = vld [vmem:[%s3 + $0x3b8] sm:$0xff]
  %v1833 = vld [vmem:[%s3 + $0x3c0] sm:$0xff]
  %v1834 = vld [vmem:[%s3 + $0x3c8] sm:$0xff]
  %v1835 = vld [vmem:[%s3 + $0x3d0] sm:$0xff]
  %v1836 = vld [vmem:[%s3 + $0x3d8] sm:$0xff]
  %v1838 = vsel %vm449, %v1708, 0
  %v1841 = vsel %vm449, %v1712, 0
  %1843 = vmatprep.subr.mxu0 %v1744
  %1844 = vmatpush1.msra.mxu0 %v1743
  %1845 = vmatprep.subr.mxu0 %v1742
  %1846 = vmatpush1.msra.mxu0 %v1741
  %1847 = vmatprep.subr.mxu0 %v1740
  %1848 = vmatpush1.msra.mxu0 %v1739
  %1849 = vmatprep.subr.mxu0 %v1738
  %1850 = vmatpush1.msra.mxu0 %v1737
  %1851 = vmatprep.subr.mxu0 %v1736
  %1852 = vmatpush1.msra.mxu0 %v1735
  %1853 = vmatprep.subr.mxu0 %v1734
  %1854 = vmatpush1.msra.mxu0 %v1733
  %1855 = vmatprep.subr.mxu0 %v1732
  %1856 = vmatpush1.msra.mxu0 %v1731
  %1857 = vmatprep.subr.mxu0 %v1730
  %1858 = vmatpush1.msra.mxu0 %v1729
  %1859 = vmatprep.subr.mxu0 %v1728
  %1860 = vmatpush1.msra.mxu0 %v1727
  %1861 = vmatprep.subr.mxu0 %v1726
  %1862 = vmatpush1.msra.mxu0 %v1725
  %1863 = vmatprep.subr.mxu0 %v1724
  %1864 = vmatpush1.msra.mxu0 %v1723
  %1865 = vmatprep.subr.mxu0 %v1722
  %1866 = vmatpush1.msra.mxu0 %v1721
  %1867 = vmatprep.subr.mxu0 %v1720
  %1868 = vmatpush1.msra.mxu0 %v1719
  %1869 = vmatprep.subr.mxu0 %v1718
  %1870 = vmatpush1.msra.mxu0 %v1717
  %1871 = vmatprep.subr.mxu0 %v1716
  %1872 = vmatpush1.msra.mxu0 %v1715
  %1873 = vmatprep.subr.mxu0 %v1714
  %1874 = vmatpush1.msra.mxu0 %v1713
  %1875 = vmatprep.subr.mxu0 %v1776
  %1876 = vmatpush2.msra.mxu0 %v1775
  %1877 = vmatprep.subr.mxu0 %v1774
  %1878 = vmatpush2.msra.mxu0 %v1773
  %1879 = vmatprep.subr.mxu0 %v1772
  %1880 = vmatpush2.msra.mxu0 %v1771
  %1881 = vmatprep.subr.mxu0 %v1770
  %1882 = vmatpush2.msra.mxu0 %v1769
  %1883 = vmatprep.subr.mxu0 %v1768
  %1884 = vmatpush2.msra.mxu0 %v1767
  %1885 = vmatprep.subr.mxu0 %v1766
  %1886 = vmatpush2.msra.mxu0 %v1765
  %1887 = vmatprep.subr.mxu0 %v1764
  %1888 = vmatpush2.msra.mxu0 %v1763
  %1889 = vmatprep.subr.mxu0 %v1762
  %1890 = vmatpush2.msra.mxu0 %v1761
  %1891 = vmatprep.subr.mxu0 %v1760
  %1892 = vmatpush2.msra.mxu0 %v1759
  %1893 = vmatprep.subr.mxu0 %v1758
  %1894 = vmatpush2.msra.mxu0 %v1757
  %1895 = vmatprep.subr.mxu0 %v1756
  %1896 = vmatpush2.msra.mxu0 %v1755
  %1897 = vmatprep.subr.mxu0 %v1754
  %1898 = vmatpush2.msra.mxu0 %v1753
  %1899 = vmatprep.subr.mxu0 %v1752
  %1900 = vmatpush2.msra.mxu0 %v1751
  %1901 = vmatprep.subr.mxu0 %v1750
  %1902 = vmatpush2.msra.mxu0 %v1749
  %1903 = vmatprep.subr.mxu0 %v1748
  %1904 = vmatpush2.msra.mxu0 %v1747
  %1905 = vmatprep.subr.mxu0 %v1746
  %1906 = vmatpush2.msra.mxu0 %v1745
  %1907 = vmatprep.mubr.f32.mxu0 %v1706
  %1908 = vmatmul.mubr.f32.gmra.mxu0 %v1705
  %v1909 = vpop.f32.mrf.mxu0
  %v1910 = vadd.f32 0.0, %v1909
  %v1911 = vpop.f32.mrf.mxu0
  %v1912 = vadd.f32 0.0, %v1911
  %1913 = vmatprep.mubr.f32.mxu0 %v1710
  %1914 = vmatmul.mubr.f32.gmra.mxu0 %v1709
  %v1915 = vpop.f32.mrf.mxu0
  %v1916 = vadd.f32 0.0, %v1915
  %v1917 = vpop.f32.mrf.mxu0
  %v1918 = vadd.f32 0.0, %v1917
  %1919 = vdwg.mxu0
  %1920 = vmatprep.subr.mxu0 %v1808
  %1921 = vmatpush1.msra.mxu0 %v1807
  %1922 = vmatprep.subr.mxu0 %v1806
  %1923 = vmatpush1.msra.mxu0 %v1805
  %1924 = vmatprep.subr.mxu0 %v1804
  %1925 = vmatpush1.msra.mxu0 %v1803
  %1926 = vmatprep.subr.mxu0 %v1802
  %1927 = vmatpush1.msra.mxu0 %v1801
  %1928 = vmatprep.subr.mxu0 %v1800
  %1929 = vmatpush1.msra.mxu0 %v1799
  %1930 = vmatprep.subr.mxu0 %v1798
  %1931 = vmatpush1.msra.mxu0 %v1797
  %1932 = vmatprep.subr.mxu0 %v1796
  %1933 = vmatpush1.msra.mxu0 %v1795
  %1934 = vmatprep.subr.mxu0 %v1794
  %1935 = vmatpush1.msra.mxu0 %v1793
  %1936 = vmatprep.subr.mxu0 %v1792
  %1937 = vmatpush1.msra.mxu0 %v1791
  %1938 = vmatprep.subr.mxu0 %v1790
  %1939 = vmatpush1.msra.mxu0 %v1789
  %1940 = vmatprep.subr.mxu0 %v1788
  %1941 = vmatpush1.msra.mxu0 %v1787
  %1942 = vmatprep.subr.mxu0 %v1786
  %1943 = vmatpush1.msra.mxu0 %v1785
  %1944 = vmatprep.subr.mxu0 %v1784
  %1945 = vmatpush1.msra.mxu0 %v1783
  %1946 = vmatprep.subr.mxu0 %v1782
  %1947 = vmatpush1.msra.mxu0 %v1781
  %1948 = vmatprep.subr.mxu0 %v1780
  %1949 = vmatpush1.msra.mxu0 %v1779
  %1950 = vmatprep.subr.mxu0 %v1778
  %1951 = vmatpush1.msra.mxu0 %v1777
  %1952 = vmatprep.subr.mxu0 0.0
  %1953 = vmatpush2.msra.mxu0 0.0
  %1954 = vmatprep.subr.mxu0 0.0
  %1955 = vmatpush2.msra.mxu0 0.0
  %1956 = vmatprep.subr.mxu0 %v1836
  %1957 = vmatpush2.msra.mxu0 %v1835
  %1958 = vmatprep.subr.mxu0 %v1834
  %1959 = vmatpush2.msra.mxu0 %v1833
  %1960 = vmatprep.subr.mxu0 %v1832
  %1961 = vmatpush2.msra.mxu0 %v1831
  %1962 = vmatprep.subr.mxu0 %v1830
  %1963 = vmatpush2.msra.mxu0 %v1829
  %1964 = vmatprep.subr.mxu0 %v1828
  %1965 = vmatpush2.msra.mxu0 %v1827
  %1966 = vmatprep.subr.mxu0 %v1826
  %1967 = vmatpush2.msra.mxu0 %v1825
  %1968 = vmatprep.subr.mxu0 %v1824
  %1969 = vmatpush2.msra.mxu0 %v1823
  %1970 = vmatprep.subr.mxu0 %v1822
  %1971 = vmatpush2.msra.mxu0 %v1821
  %1972 = vmatprep.subr.mxu0 %v1820
  %1973 = vmatpush2.msra.mxu0 %v1819
  %1974 = vmatprep.subr.mxu0 %v1818
  %1975 = vmatpush2.msra.mxu0 %v1817
  %1976 = vmatprep.subr.mxu0 %v1816
  %1977 = vmatpush2.msra.mxu0 %v1815
  %1978 = vmatprep.subr.mxu0 %v1814
  %1979 = vmatpush2.msra.mxu0 %v1813
  %1980 = vmatprep.subr.mxu0 %v1812
  %1981 = vmatpush2.msra.mxu0 %v1811
  %1982 = vmatprep.subr.mxu0 %v1810
  %1983 = vmatpush2.msra.mxu0 %v1809
  %1984 = vmatprep.mubr.f32.mxu0 %v1838
  %1985 = vmatmul.mubr.f32.gmra.mxu0 %v1707
  %v1986 = vpop.f32.mrf.mxu0
  %v1987 = vadd.f32 %v1910, %v1986
  %v1988 = vpop.f32.mrf.mxu0
  %v1989 = vadd.f32 %v1912, %v1988
  %1990 = vmatprep.mubr.f32.mxu0 %v1841
  %1991 = vmatmul.mubr.f32.gmra.mxu0 %v1711
  %v1992 = vpop.f32.mrf.mxu0
  %v1993 = vadd.f32 %v1916, %v1992
  %v1994 = vpop.f32.mrf.mxu0
  %v1995 = vadd.f32 %v1918, %v1994
  %1996 = vdwg.mxu0
  %2001 = vrot.lane.b32.xlu0 %v1987, 127
  %v2002 = vpop.permute.xlu0 %2001
  %2003 = vrot.lane.b32.xlu0 %v1989, 127
  %v2004 = vpop.permute.xlu0 %2003
  %2005 = vrot.lane.b32.xlu0 %v1993, 127
  %v2006 = vpop.permute.xlu0 %2005
  %2007 = vrot.lane.b32.xlu0 %v1995, 127
  %v2008 = vpop.permute.xlu0 %2007
  %v2009 = vsel %vm122, %v2002, %v2004
  %v2010 = vsel %vm122, %v2006, %v2008
  %2015 = vrot.lane.b32.xlu0 %v1987, 126
  %v2016 = vpop.permute.xlu0 %2015
  %2017 = vrot.lane.b32.xlu0 %v1989, 126
  %v2018 = vpop.permute.xlu0 %2017
  %2019 = vrot.lane.b32.xlu0 %v1993, 126
  %v2020 = vpop.permute.xlu0 %2019
  %2021 = vrot.lane.b32.xlu0 %v1995, 126
  %v2022 = vpop.permute.xlu0 %2021
  %v2023 = vsel %vm190, %v2016, %v2018
  %v2024 = vsel %vm190, %v2020, %v2022
  %v2029 = vld [vmem:[%s4] sm:$0xff]
  %v2030 = vld [vmem:[%s4 + $0x8] sm:$0xff]
  %v2031 = vld [vmem:[%s4 + $0x10] sm:$0xff]
  %v2032 = vld [vmem:[%s4 + $0x18] sm:$0xff]
  %v2033 = vld [vmem:[%s5] sm:$0xff]
  %v2034 = vld [vmem:[%s5 + $0x8] sm:$0xff]
  %v2035 = vld [vmem:[%s5 + $0x10] sm:$0xff]
  %v2036 = vld [vmem:[%s5 + $0x18] sm:$0xff]
  %2038 = vset.pattern.permute.xlu0 0
  %2039 = vperm.xlu0 %2038, %v2033
  %v2040 = vpop.permute.xlu0 %2039
  %2043 = vset.pattern.permute.xlu0 0
  %2044 = vperm.xlu0 %2043, %v2034
  %v2045 = vpop.permute.xlu0 %2044
  %2048 = vset.pattern.permute.xlu0 0
  %2049 = vperm.xlu0 %2048, %v2035
  %v2050 = vpop.permute.xlu0 %2049
  %2053 = vset.pattern.permute.xlu0 0
  %2054 = vperm.xlu0 %2053, %v2036
  %v2055 = vpop.permute.xlu0 %2054
  %v2058 = vsel %vm670, %v2029, 0
  %v2061 = vsel %vm670, %v2030, 0
  %v2064 = vsel %vm670, %v2031, 0
  %v2067 = vsel %vm670, %v2032, 0
  %2069 = vmatprep.subr.mxu0 0.0
  %2070 = vmatpush1.msra.mxu0 0.0
  %2071 = vmatprep.subr.mxu0 0.0
  %2072 = vmatpush1.msra.mxu0 0.0
  %2073 = vmatprep.subr.mxu0 0.0
  %2074 = vmatpush1.msra.mxu0 0.0
  %2075 = vmatprep.subr.mxu0 0.0
  %2076 = vmatpush1.msra.mxu0 0.0
  %2077 = vmatprep.subr.mxu0 0.0
  %2078 = vmatpush1.msra.mxu0 0.0
  %2079 = vmatprep.subr.mxu0 0.0
  %2080 = vmatpush1.msra.mxu0 0.0
  %2081 = vmatprep.subr.mxu0 0.0
  %2082 = vmatpush1.msra.mxu0 0.0
  %2083 = vmatprep.subr.mxu0 0.0
  %2084 = vmatpush1.msra.mxu0 0.0
  %2085 = vmatprep.subr.mxu0 0.0
  %2086 = vmatpush1.msra.mxu0 0.0
  %2087 = vmatprep.subr.mxu0 0.0
  %2088 = vmatpush1.msra.mxu0 0.0
  %2089 = vmatprep.subr.mxu0 %v2022
  %2090 = vmatpush1.msra.mxu0 %v2024
  %2091 = vmatprep.subr.mxu0 %v2018
  %2092 = vmatpush1.msra.mxu0 %v2023
  %2093 = vmatprep.subr.mxu0 %v2008
  %2094 = vmatpush1.msra.mxu0 %v2010
  %2095 = vmatprep.subr.mxu0 %v2004
  %2096 = vmatpush1.msra.mxu0 %v2009
  %2097 = vmatprep.subr.mxu0 %v1995
  %2098 = vmatpush1.msra.mxu0 %v1993
  %2099 = vmatprep.subr.mxu0 %v1989
  %2100 = vmatpush1.msra.mxu0 %v1987
  %2101 = vmatprep.subr.mxu0 0.0
  %2102 = vmatpush2.msra.mxu0 0.0
  %2103 = vmatprep.subr.mxu0 0.0
  %2104 = vmatpush2.msra.mxu0 0.0
  %2105 = vmatprep.subr.mxu0 0.0
  %2106 = vmatpush2.msra.mxu0 0.0
  %2107 = vmatprep.subr.mxu0 0.0
  %2108 = vmatpush2.msra.mxu0 0.0
  %2109 = vmatprep.subr.mxu0 0.0
  %2110 = vmatpush2.msra.mxu0 0.0
  %2111 = vmatprep.subr.mxu0 0.0
  %2112 = vmatpush2.msra.mxu0 0.0
  %2113 = vmatprep.subr.mxu0 0.0
  %2114 = vmatpush2.msra.mxu0 0.0
  %2115 = vmatprep.subr.mxu0 0.0
  %2116 = vmatpush2.msra.mxu0 0.0
  %2117 = vmatprep.subr.mxu0 0.0
  %2118 = vmatpush2.msra.mxu0 0.0
  %2119 = vmatprep.subr.mxu0 0.0
  %2120 = vmatpush2.msra.mxu0 0.0
  %2121 = vmatprep.subr.mxu0 0.0
  %2122 = vmatpush2.msra.mxu0 0.0
  %2123 = vmatprep.subr.mxu0 0.0
  %2124 = vmatpush2.msra.mxu0 0.0
  %2125 = vmatprep.subr.mxu0 0.0
  %2126 = vmatpush2.msra.mxu0 0.0
  %2127 = vmatprep.subr.mxu0 0.0
  %2128 = vmatpush2.msra.mxu0 0.0
  %2129 = vmatprep.subr.mxu0 0.0
  %2130 = vmatpush2.msra.mxu0 0.0
  %2131 = vmatprep.subr.mxu0 0.0
  %2132 = vmatpush2.msra.mxu0 0.0
  %2133 = vmatprep.mubr.f32.mxu0 0.0
  %2134 = vmatmul.mubr.f32.gmra.mxu0 %v2058
  %v2135 = vpop.f32.mrf.mxu0
  %v2136 = vadd.f32 %v2040, %v2135
  %v2137 = vpop.f32.mrf.mxu0
  %v2138 = vadd.f32 %v2040, %v2137
  %2139 = vmatprep.mubr.f32.mxu0 0.0
  %2140 = vmatmul.mubr.f32.gmra.mxu0 %v2061
  %v2141 = vpop.f32.mrf.mxu0
  %v2142 = vadd.f32 %v2045, %v2141
  %v2143 = vpop.f32.mrf.mxu0
  %v2144 = vadd.f32 %v2045, %v2143
  %2145 = vmatprep.mubr.f32.mxu0 0.0
  %2146 = vmatmul.mubr.f32.gmra.mxu0 %v2064
  %v2147 = vpop.f32.mrf.mxu0
  %v2148 = vadd.f32 %v2050, %v2147
  %v2149 = vpop.f32.mrf.mxu0
  %v2150 = vadd.f32 %v2050, %v2149
  %2151 = vmatprep.mubr.f32.mxu0 0.0
  %2152 = vmatmul.mubr.f32.gmra.mxu0 %v2067
  %v2153 = vpop.f32.mrf.mxu0
  %v2154 = vadd.f32 %v2055, %v2153
  %v2155 = vpop.f32.mrf.mxu0
  %v2156 = vadd.f32 %v2055, %v2155
  %2157 = vdwg.mxu0
  %v2158 = vmax.f32 %v2136, 0.0
  %v2159 = vmax.f32 %v2138, 0.0
  %v2160 = vmax.f32 %v2142, 0.0
  %v2161 = vmax.f32 %v2144, 0.0
  %v2162 = vmax.f32 %v2148, 0.0
  %v2163 = vmax.f32 %v2150, 0.0
  %v2164 = vmax.f32 %v2154, 0.0
  %v2165 = vmax.f32 %v2156, 0.0
  %2174 = vrot.lane.b32.xlu0 %v2158, 127
  %v2175 = vpop.permute.xlu0 %2174
  %2176 = vrot.lane.b32.xlu0 %v2159, 127
  %v2177 = vpop.permute.xlu0 %2176
  %2178 = vrot.lane.b32.xlu0 %v2160, 127
  %v2179 = vpop.permute.xlu0 %2178
  %2180 = vrot.lane.b32.xlu0 %v2161, 127
  %v2181 = vpop.permute.xlu0 %2180
  %2182 = vrot.lane.b32.xlu0 %v2162, 127
  %v2183 = vpop.permute.xlu0 %2182
  %2184 = vrot.lane.b32.xlu0 %v2163, 127
  %v2185 = vpop.permute.xlu0 %2184
  %2186 = vrot.lane.b32.xlu0 %v2164, 127
  %v2187 = vpop.permute.xlu0 %2186
  %2188 = vrot.lane.b32.xlu0 %v2165, 127
  %v2189 = vpop.permute.xlu0 %2188
  %v2190 = vsel %vm122, %v2175, %v2177
  %v2191 = vsel %vm122, %v2179, %v2181
  %v2192 = vsel %vm122, %v2183, %v2185
  %v2193 = vsel %vm122, %v2187, %v2189
  %v2202 = vmax.f32 %v2158, %v2190
  %v2203 = vmax.f32 %v2159, %v2177
  %v2204 = vmax.f32 %v2160, %v2191
  %v2205 = vmax.f32 %v2161, %v2181
  %v2206 = vmax.f32 %v2162, %v2192
  %v2207 = vmax.f32 %v2163, %v2185
  %v2208 = vmax.f32 %v2164, %v2193
  %v2209 = vmax.f32 %v2165, %v2189
  %2210 = vrot.lane.b32.xlu0 %v2158, 126
  %v2211 = vpop.permute.xlu0 %2210
  %2212 = vrot.lane.b32.xlu0 %v2159, 126
  %v2213 = vpop.permute.xlu0 %2212
  %2214 = vrot.lane.b32.xlu0 %v2160, 126
  %v2215 = vpop.permute.xlu0 %2214
  %2216 = vrot.lane.b32.xlu0 %v2161, 126
  %v2217 = vpop.permute.xlu0 %2216
  %2218 = vrot.lane.b32.xlu0 %v2162, 126
  %v2219 = vpop.permute.xlu0 %2218
  %2220 = vrot.lane.b32.xlu0 %v2163, 126
  %v2221 = vpop.permute.xlu0 %2220
  %2222 = vrot.lane.b32.xlu0 %v2164, 126
  %v2223 = vpop.permute.xlu0 %2222
  %2224 = vrot.lane.b32.xlu0 %v2165, 126
  %v2225 = vpop.permute.xlu0 %2224
  %v2226 = vsel %vm190, %v2211, %v2213
  %v2227 = vsel %vm190, %v2215, %v2217
  %v2228 = vsel %vm190, %v2219, %v2221
  %v2229 = vsel %vm190, %v2223, %v2225
  %v2238 = vmax.f32 %v2202, %v2226
  %v2239 = vmax.f32 %v2203, %v2213
  %v2240 = vmax.f32 %v2204, %v2227
  %v2241 = vmax.f32 %v2205, %v2217
  %v2242 = vmax.f32 %v2206, %v2228
  %v2243 = vmax.f32 %v2207, %v2221
  %v2244 = vmax.f32 %v2208, %v2229
  %v2245 = vmax.f32 %v2209, %v2225
  %v2246 = vld [vmem:[%s6] sm:$0xff]
  %v2247 = vld [vmem:[%s6 + $0x8] sm:$0xff]
  %v2248 = vld [vmem:[%s6 + $0x10] sm:$0xff]
  %v2249 = vld [vmem:[%s6 + $0x18] sm:$0xff]
  %v2250 = vld [vmem:[%s6 + $0x20] sm:$0xff]
  %v2251 = vld [vmem:[%s6 + $0x28] sm:$0xff]
  %v2252 = vld [vmem:[%s6 + $0x30] sm:$0xff]
  %v2253 = vld [vmem:[%s6 + $0x38] sm:$0xff]
  %v2254 = vld [vmem:[%s6 + $0x40] sm:$0xff]
  %v2255 = vld [vmem:[%s6 + $0x48] sm:$0xff]
  %v2256 = vld [vmem:[%s6 + $0x50] sm:$0xff]
  %v2257 = vld [vmem:[%s6 + $0x58] sm:$0xff]
  %v2258 = vld [vmem:[%s6 + $0x60] sm:$0xff]
  %v2259 = vld [vmem:[%s6 + $0x68] sm:$0xff]
  %v2260 = vld [vmem:[%s6 + $0x70] sm:$0xff]
  %v2261 = vld [vmem:[%s6 + $0x78] sm:$0xff]
  %v2262 = vld [vmem:[%s6 + $0x80] sm:$0xff]
  %v2263 = vld [vmem:[%s6 + $0x88] sm:$0xff]
  %v2264 = vld [vmem:[%s6 + $0x90] sm:$0xff]
  %v2265 = vld [vmem:[%s6 + $0x98] sm:$0xff]
  %v2266 = vld [vmem:[%s6 + $0xa0] sm:$0x3]
  %v2268 = vsel %vm881, %v2239, 0
  %v2271 = vsel %vm881, %v2241, 0
  %v2274 = vsel %vm881, %v2243, 0
  %v2277 = vsel %vm881, %v2245, 0
  %v2280 = vsel %vm894, %v2266, 0
  %2282 = vmatprep.subr.mxu0 0.0
  %2283 = vmatpush1.msra.mxu0 %v2261
  %2284 = vmatprep.subr.mxu0 0.0
  %2285 = vmatpush1.msra.mxu0 %v2260
  %2286 = vmatprep.subr.mxu0 0.0
  %2287 = vmatpush1.msra.mxu0 %v2259
  %2288 = vmatprep.subr.mxu0 0.0
  %2289 = vmatpush1.msra.mxu0 %v2258
  %2290 = vmatprep.subr.mxu0 0.0
  %2291 = vmatpush1.msra.mxu0 %v2257
  %2292 = vmatprep.subr.mxu0 0.0
  %2293 = vmatpush1.msra.mxu0 %v2256
  %2294 = vmatprep.subr.mxu0 0.0
  %2295 = vmatpush1.msra.mxu0 %v2255
  %2296 = vmatprep.subr.mxu0 0.0
  %2297 = vmatpush1.msra.mxu0 %v2254
  %2298 = vmatprep.subr.mxu0 0.0
  %2299 = vmatpush1.msra.mxu0 %v2253
  %2300 = vmatprep.subr.mxu0 0.0
  %2301 = vmatpush1.msra.mxu0 %v2252
  %2302 = vmatprep.subr.mxu0 0.0
  %2303 = vmatpush1.msra.mxu0 %v2251
  %2304 = vmatprep.subr.mxu0 0.0
  %2305 = vmatpush1.msra.mxu0 %v2250
  %2306 = vmatprep.subr.mxu0 0.0
  %2307 = vmatpush1.msra.mxu0 %v2249
  %2308 = vmatprep.subr.mxu0 0.0
  %2309 = vmatpush1.msra.mxu0 %v2248
  %2310 = vmatprep.subr.mxu0 0.0
  %2311 = vmatpush1.msra.mxu0 %v2247
  %2312 = vmatprep.subr.mxu0 0.0
  %2313 = vmatpush1.msra.mxu0 %v2246
  %2314 = vmatprep.subr.mxu0 0.0
  %2315 = vmatpush2.msra.mxu0 0.0
  %2316 = vmatprep.subr.mxu0 0.0
  %2317 = vmatpush2.msra.mxu0 0.0
  %2318 = vmatprep.subr.mxu0 0.0
  %2319 = vmatpush2.msra.mxu0 0.0
  %2320 = vmatprep.subr.mxu0 0.0
  %2321 = vmatpush2.msra.mxu0 0.0
  %2322 = vmatprep.subr.mxu0 0.0
  %2323 = vmatpush2.msra.mxu0 0.0
  %2324 = vmatprep.subr.mxu0 0.0
  %2325 = vmatpush2.msra.mxu0 0.0
  %2326 = vmatprep.subr.mxu0 0.0
  %2327 = vmatpush2.msra.mxu0 0.0
  %2328 = vmatprep.subr.mxu0 0.0
  %2329 = vmatpush2.msra.mxu0 0.0
  %2330 = vmatprep.subr.mxu0 0.0
  %2331 = vmatpush2.msra.mxu0 0.0
  %2332 = vmatprep.subr.mxu0 0.0
  %2333 = vmatpush2.msra.mxu0 0.0
  %2334 = vmatprep.subr.mxu0 0.0
  %2335 = vmatpush2.msra.mxu0 0.0
  %2336 = vmatprep.subr.mxu0 0.0
  %2337 = vmatpush2.msra.mxu0 %v2280
  %2338 = vmatprep.subr.mxu0 0.0
  %2339 = vmatpush2.msra.mxu0 %v2265
  %2340 = vmatprep.subr.mxu0 0.0
  %2341 = vmatpush2.msra.mxu0 %v2264
  %2342 = vmatprep.subr.mxu0 0.0
  %2343 = vmatpush2.msra.mxu0 %v2263
  %2344 = vmatprep.subr.mxu0 0.0
  %2345 = vmatpush2.msra.mxu0 %v2262
  %2346 = vmatprep.mubr.f32.mxu0 %v2268
  %2347 = vmatmul.mubr.f32.gmra.mxu0 %v2238
  %v2348 = vpop.f32.mrf.mxu0
  %v2349 = vadd.f32 0.0, %v2348
  %v2350 = vpop.f32.mrf.mxu0
  %2351 = vmatprep.mubr.f32.mxu0 %v2271
  %2352 = vmatmul.mubr.f32.gmra.mxu0 %v2240
  %v2353 = vpop.f32.mrf.mxu0
  %v2354 = vadd.f32 0.0, %v2353
  %v2355 = vpop.f32.mrf.mxu0
  %2356 = vmatprep.mubr.f32.mxu0 %v2274
  %2357 = vmatmul.mubr.f32.gmra.mxu0 %v2242
  %v2358 = vpop.f32.mrf.mxu0
  %v2359 = vadd.f32 0.0, %v2358
  %v2360 = vpop.f32.mrf.mxu0
  %2361 = vmatprep.mubr.f32.mxu0 %v2277
  %2362 = vmatmul.mubr.f32.gmra.mxu0 %v2244
  %v2363 = vpop.f32.mrf.mxu0
  %v2364 = vadd.f32 0.0, %v2363
  %v2365 = vpop.f32.mrf.mxu0
  %2366 = vdwg.mxu0
  %2371 = vrot.lane.b32.xlu0 %v2349, 127
  %v2372 = vpop.permute.xlu0 %2371
  %2373 = vrot.lane.b32.xlu0 %v2354, 127
  %v2374 = vpop.permute.xlu0 %2373
  %2375 = vrot.lane.b32.xlu0 %v2359, 127
  %v2376 = vpop.permute.xlu0 %2375
  %2377 = vrot.lane.b32.xlu0 %v2364, 127
  %v2378 = vpop.permute.xlu0 %2377
  %2383 = vrot.lane.b32.xlu0 %v2349, 126
  %v2384 = vpop.permute.xlu0 %2383
  %2385 = vrot.lane.b32.xlu0 %v2354, 126
  %v2386 = vpop.permute.xlu0 %2385
  %2387 = vrot.lane.b32.xlu0 %v2359, 126
  %v2388 = vpop.permute.xlu0 %2387
  %2389 = vrot.lane.b32.xlu0 %v2364, 126
  %v2390 = vpop.permute.xlu0 %2389
  %v2395 = vld [vmem:[%s7] sm:$0xff]
  %v2396 = vld [vmem:[%s7 + $0x8] sm:$0xff]
  %v2397 = vld [vmem:[%s7 + $0x10] sm:$0xff]
  %v2398 = vld [vmem:[%s7 + $0x18] sm:$0xff]
  %v2399 = vld [vmem:[%s7 + $0x20] sm:$0xff]
  %v2400 = vld [vmem:[%s7 + $0x28] sm:$0xff]
  %v2401 = vld [vmem:[%s7 + $0x30] sm:$0xff]
  %v2402 = vld [vmem:[%s7 + $0x38] sm:$0xff]
  %v2403 = vld [vmem:[%s8] sm:$0xff]
  %v2404 = vld [vmem:[%s8 + $0x8] sm:$0xff]
  %v2405 = vld [vmem:[%s8 + $0x10] sm:$0xff]
  %v2406 = vld [vmem:[%s8 + $0x18] sm:$0xff]
  %v2407 = vld [vmem:[%s8 + $0x20] sm:$0xff]
  %v2408 = vld [vmem:[%s8 + $0x28] sm:$0xff]
  %v2409 = vld [vmem:[%s8 + $0x30] sm:$0xff]
  %v2410 = vld [vmem:[%s8 + $0x38] sm:$0xff]
  %2412 = vset.pattern.permute.xlu0 0
  %2413 = vperm.xlu0 %2412, %v2403
  %v2414 = vpop.permute.xlu0 %2413
  %2417 = vset.pattern.permute.xlu0 0
  %2418 = vperm.xlu0 %2417, %v2404
  %v2419 = vpop.permute.xlu0 %2418
  %2422 = vset.pattern.permute.xlu0 0
  %2423 = vperm.xlu0 %2422, %v2405
  %v2424 = vpop.permute.xlu0 %2423
  %2427 = vset.pattern.permute.xlu0 0
  %2428 = vperm.xlu0 %2427, %v2406
  %v2429 = vpop.permute.xlu0 %2428
  %2432 = vset.pattern.permute.xlu0 0
  %2433 = vperm.xlu0 %2432, %v2407
  %v2434 = vpop.permute.xlu0 %2433
  %2437 = vset.pattern.permute.xlu0 0
  %2438 = vperm.xlu0 %2437, %v2408
  %v2439 = vpop.permute.xlu0 %2438
  %2442 = vset.pattern.permute.xlu0 0
  %2443 = vperm.xlu0 %2442, %v2409
  %v2444 = vpop.permute.xlu0 %2443
  %2447 = vset.pattern.permute.xlu0 0
  %2448 = vperm.xlu0 %2447, %v2410
  %v2449 = vpop.permute.xlu0 %2448
  %v2452 = vsel %vm1067, %v2395, 0
  %v2455 = vsel %vm1067, %v2396, 0
  %v2458 = vsel %vm1067, %v2397, 0
  %v2461 = vsel %vm1067, %v2398, 0
  %v2464 = vsel %vm1067, %v2399, 0
  %v2467 = vsel %vm1067, %v2400, 0
  %v2470 = vsel %vm1067, %v2401, 0
  %v2473 = vsel %vm1067, %v2402, 0
  %2475 = vmatprep.subr.mxu0 0.0
  %2476 = vmatpush1.msra.mxu0 0.0
  %2477 = vmatprep.subr.mxu0 0.0
  %2478 = vmatpush1.msra.mxu0 0.0
  %2479 = vmatprep.subr.mxu0 0.0
  %2480 = vmatpush1.msra.mxu0 0.0
  %2481 = vmatprep.subr.mxu0 0.0
  %2482 = vmatpush1.msra.mxu0 0.0
  %2483 = vmatprep.subr.mxu0 0.0
  %2484 = vmatpush1.msra.mxu0 %v2390
  %2485 = vmatprep.subr.mxu0 0.0
  %2486 = vmatpush1.msra.mxu0 %v2388
  %2487 = vmatprep.subr.mxu0 0.0
  %2488 = vmatpush1.msra.mxu0 %v2386
  %2489 = vmatprep.subr.mxu0 0.0
  %2490 = vmatpush1.msra.mxu0 %v2384
  %2491 = vmatprep.subr.mxu0 0.0
  %2492 = vmatpush1.msra.mxu0 %v2378
  %2493 = vmatprep.subr.mxu0 0.0
  %2494 = vmatpush1.msra.mxu0 %v2376
  %2495 = vmatprep.subr.mxu0 0.0
  %2496 = vmatpush1.msra.mxu0 %v2374
  %2497 = vmatprep.subr.mxu0 0.0
  %2498 = vmatpush1.msra.mxu0 %v2372
  %2499 = vmatprep.subr.mxu0 0.0
  %2500 = vmatpush1.msra.mxu0 %v2364
  %2501 = vmatprep.subr.mxu0 0.0
  %2502 = vmatpush1.msra.mxu0 %v2359
  %2503 = vmatprep.subr.mxu0 0.0
  %2504 = vmatpush1.msra.mxu0 %v2354
  %2505 = vmatprep.subr.mxu0 0.0
  %2506 = vmatpush1.msra.mxu0 %v2349
  %2507 = vmatprep.subr.mxu0 0.0
  %2508 = vmatpush2.msra.mxu0 0.0
  %2509 = vmatprep.subr.mxu0 0.0
  %2510 = vmatpush2.msra.mxu0 0.0
  %2511 = vmatprep.subr.mxu0 0.0
  %2512 = vmatpush2.msra.mxu0 0.0
  %2513 = vmatprep.subr.mxu0 0.0
  %2514 = vmatpush2.msra.mxu0 0.0
  %2515 = vmatprep.subr.mxu0 0.0
  %2516 = vmatpush2.msra.mxu0 0.0
  %2517 = vmatprep.subr.mxu0 0.0
  %2518 = vmatpush2.msra.mxu0 0.0
  %2519 = vmatprep.subr.mxu0 0.0
  %2520 = vmatpush2.msra.mxu0 0.0
  %2521 = vmatprep.subr.mxu0 0.0
  %2522 = vmatpush2.msra.mxu0 0.0
  %2523 = vmatprep.subr.mxu0 0.0
  %2524 = vmatpush2.msra.mxu0 0.0
  %2525 = vmatprep.subr.mxu0 0.0
  %2526 = vmatpush2.msra.mxu0 0.0
  %2527 = vmatprep.subr.mxu0 0.0
  %2528 = vmatpush2.msra.mxu0 0.0
  %2529 = vmatprep.subr.mxu0 0.0
  %2530 = vmatpush2.msra.mxu0 0.0
  %2531 = vmatprep.subr.mxu0 0.0
  %2532 = vmatpush2.msra.mxu0 0.0
  %2533 = vmatprep.subr.mxu0 0.0
  %2534 = vmatpush2.msra.mxu0 0.0
  %2535 = vmatprep.subr.mxu0 0.0
  %2536 = vmatpush2.msra.mxu0 0.0
  %2537 = vmatprep.subr.mxu0 0.0
  %2538 = vmatpush2.msra.mxu0 0.0
  %2539 = vmatprep.mubr.f32.mxu0 0.0
  %2540 = vmatmul.mubr.f32.gmra.mxu0 %v2452
  %v2541 = vpop.f32.mrf.mxu0
  %v2542 = vadd.f32 %v2414, %v2541
  %v2543 = vpop.f32.mrf.mxu0
  %2544 = vmatprep.mubr.f32.mxu0 0.0
  %2545 = vmatmul.mubr.f32.gmra.mxu0 %v2455
  %v2546 = vpop.f32.mrf.mxu0
  %v2547 = vadd.f32 %v2419, %v2546
  %v2548 = vpop.f32.mrf.mxu0
  %2549 = vmatprep.mubr.f32.mxu0 0.0
  %2550 = vmatmul.mubr.f32.gmra.mxu0 %v2458
  %v2551 = vpop.f32.mrf.mxu0
  %v2552 = vadd.f32 %v2424, %v2551
  %v2553 = vpop.f32.mrf.mxu0
  %2554 = vmatprep.mubr.f32.mxu0 0.0
  %2555 = vmatmul.mubr.f32.gmra.mxu0 %v2461
  %v2556 = vpop.f32.mrf.mxu0
  %v2557 = vadd.f32 %v2429, %v2556
  %v2558 = vpop.f32.mrf.mxu0
  %2559 = vmatprep.mubr.f32.mxu0 0.0
  %2560 = vmatmul.mubr.f32.gmra.mxu0 %v2464
  %v2561 = vpop.f32.mrf.mxu0
  %v2562 = vadd.f32 %v2434, %v2561
  %v2563 = vpop.f32.mrf.mxu0
  %2564 = vmatprep.mubr.f32.mxu0 0.0
  %2565 = vmatmul.mubr.f32.gmra.mxu0 %v2467
  %v2566 = vpop.f32.mrf.mxu0
  %v2567 = vadd.f32 %v2439, %v2566
  %v2568 = vpop.f32.mrf.mxu0
  %2569 = vmatprep.mubr.f32.mxu0 0.0
  %2570 = vmatmul.mubr.f32.gmra.mxu0 %v2470
  %v2571 = vpop.f32.mrf.mxu0
  %v2572 = vadd.f32 %v2444, %v2571
  %v2573 = vpop.f32.mrf.mxu0
  %2574 = vmatprep.mubr.f32.mxu0 0.0
  %2575 = vmatmul.mubr.f32.gmra.mxu0 %v2473
  %v2576 = vpop.f32.mrf.mxu0
  %v2577 = vadd.f32 %v2449, %v2576
  %v2578 = vpop.f32.mrf.mxu0
  %2579 = vdwg.mxu0
  %v2580 = vmax.f32 %v2542, 0.0
  %v2581 = vmax.f32 %v2547, 0.0
  %v2582 = vmax.f32 %v2552, 0.0
  %v2583 = vmax.f32 %v2557, 0.0
  %v2584 = vmax.f32 %v2562, 0.0
  %v2585 = vmax.f32 %v2567, 0.0
  %v2586 = vmax.f32 %v2572, 0.0
  %v2587 = vmax.f32 %v2577, 0.0
  %2596 = vrot.lane.b32.xlu0 %v2580, 127
  %v2597 = vpop.permute.xlu0 %2596
  %2598 = vrot.lane.b32.xlu0 %v2581, 127
  %v2599 = vpop.permute.xlu0 %2598
  %2600 = vrot.lane.b32.xlu0 %v2582, 127
  %v2601 = vpop.permute.xlu0 %2600
  %2602 = vrot.lane.b32.xlu0 %v2583, 127
  %v2603 = vpop.permute.xlu0 %2602
  %2604 = vrot.lane.b32.xlu0 %v2584, 127
  %v2605 = vpop.permute.xlu0 %2604
  %2606 = vrot.lane.b32.xlu0 %v2585, 127
  %v2607 = vpop.permute.xlu0 %2606
  %2608 = vrot.lane.b32.xlu0 %v2586, 127
  %v2609 = vpop.permute.xlu0 %2608
  %2610 = vrot.lane.b32.xlu0 %v2587, 127
  %v2611 = vpop.permute.xlu0 %2610
  %v2620 = vmax.f32 %v2580, %v2597
  %v2621 = vmax.f32 %v2581, %v2599
  %v2622 = vmax.f32 %v2582, %v2601
  %v2623 = vmax.f32 %v2583, %v2603
  %v2624 = vmax.f32 %v2584, %v2605
  %v2625 = vmax.f32 %v2585, %v2607
  %v2626 = vmax.f32 %v2586, %v2609
  %v2627 = vmax.f32 %v2587, %v2611
  %2628 = vrot.lane.b32.xlu0 %v2580, 126
  %v2629 = vpop.permute.xlu0 %2628
  %2630 = vrot.lane.b32.xlu0 %v2581, 126
  %v2631 = vpop.permute.xlu0 %2630
  %2632 = vrot.lane.b32.xlu0 %v2582, 126
  %v2633 = vpop.permute.xlu0 %2632
  %2634 = vrot.lane.b32.xlu0 %v2583, 126
  %v2635 = vpop.permute.xlu0 %2634
  %2636 = vrot.lane.b32.xlu0 %v2584, 126
  %v2637 = vpop.permute.xlu0 %2636
  %2638 = vrot.lane.b32.xlu0 %v2585, 126
  %v2639 = vpop.permute.xlu0 %2638
  %2640 = vrot.lane.b32.xlu0 %v2586, 126
  %v2641 = vpop.permute.xlu0 %2640
  %2642 = vrot.lane.b32.xlu0 %v2587, 126
  %v2643 = vpop.permute.xlu0 %2642
  %v2652 = vmax.f32 %v2620, %v2629
  %v2653 = vmax.f32 %v2621, %v2631
  %v2654 = vmax.f32 %v2622, %v2633
  %v2655 = vmax.f32 %v2623, %v2635
  %v2656 = vmax.f32 %v2624, %v2637
  %v2657 = vmax.f32 %v2625, %v2639
  %v2658 = vmax.f32 %v2626, %v2641
  %v2659 = vmax.f32 %v2627, %v2643
  %v2660 = vld [vmem:[%s9] sm:$0xff]
  %v2661 = vld [vmem:[%s9 + $0x8] sm:$0xff]
  %v2662 = vld [vmem:[%s9 + $0x10] sm:$0xff]
  %v2663 = vld [vmem:[%s9 + $0x18] sm:$0xff]
  %v2664 = vld [vmem:[%s9 + $0x20] sm:$0xff]
  %v2665 = vld [vmem:[%s9 + $0x28] sm:$0xff]
  %v2666 = vld [vmem:[%s9 + $0x30] sm:$0x3]
  %v2668 = vsel %vm1284, %v2652, 0
  %v2671 = vsel %vm1284, %v2653, 0
  %v2674 = vsel %vm1284, %v2654, 0
  %v2677 = vsel %vm1284, %v2655, 0
  %v2680 = vsel %vm1284, %v2656, 0
  %v2683 = vsel %vm1284, %v2657, 0
  %v2686 = vsel %vm1284, %v2658, 0
  %v2689 = vsel %vm1284, %v2659, 0
  %v2692 = vsel %vm894, %v2666, 0
  %2694 = vmatprep.subr.mxu0 0.0
  %2695 = vmatpush1.msra.mxu0 0.0
  %2696 = vmatprep.subr.mxu0 0.0
  %2697 = vmatpush1.msra.mxu0 0.0
  %2698 = vmatprep.subr.mxu0 0.0
  %2699 = vmatpush1.msra.mxu0 0.0
  %2700 = vmatprep.subr.mxu0 0.0
  %2701 = vmatpush1.msra.mxu0 0.0
  %2702 = vmatprep.subr.mxu0 0.0
  %2703 = vmatpush1.msra.mxu0 0.0
  %2704 = vmatprep.subr.mxu0 0.0
  %2705 = vmatpush1.msra.mxu0 0.0
  %2706 = vmatprep.subr.mxu0 0.0
  %2707 = vmatpush1.msra.mxu0 0.0
  %2708 = vmatprep.subr.mxu0 0.0
  %2709 = vmatpush1.msra.mxu0 0.0
  %2710 = vmatprep.subr.mxu0 0.0
  %2711 = vmatpush1.msra.mxu0 0.0
  %2712 = vmatprep.subr.mxu0 0.0
  %2713 = vmatpush1.msra.mxu0 %v2692
  %2714 = vmatprep.subr.mxu0 0.0
  %2715 = vmatpush1.msra.mxu0 %v2665
  %2716 = vmatprep.subr.mxu0 0.0
  %2717 = vmatpush1.msra.mxu0 %v2664
  %2718 = vmatprep.subr.mxu0 0.0
  %2719 = vmatpush1.msra.mxu0 %v2663
  %2720 = vmatprep.subr.mxu0 0.0
  %2721 = vmatpush1.msra.mxu0 %v2662
  %2722 = vmatprep.subr.mxu0 0.0
  %2723 = vmatpush1.msra.mxu0 %v2661
  %2724 = vmatprep.subr.mxu0 0.0
  %2725 = vmatpush1.msra.mxu0 %v2660
  %2726 = vmatprep.subr.mxu0 0.0
  %2727 = vmatpush2.msra.mxu0 0.0
  %2728 = vmatprep.subr.mxu0 0.0
  %2729 = vmatpush2.msra.mxu0 0.0
  %2730 = vmatprep.subr.mxu0 0.0
  %2731 = vmatpush2.msra.mxu0 0.0
  %2732 = vmatprep.subr.mxu0 0.0
  %2733 = vmatpush2.msra.mxu0 0.0
  %2734 = vmatprep.subr.mxu0 0.0
  %2735 = vmatpush2.msra.mxu0 0.0
  %2736 = vmatprep.subr.mxu0 0.0
  %2737 = vmatpush2.msra.mxu0 0.0
  %2738 = vmatprep.subr.mxu0 0.0
  %2739 = vmatpush2.msra.mxu0 0.0
  %2740 = vmatprep.subr.mxu0 0.0
  %2741 = vmatpush2.msra.mxu0 0.0
  %2742 = vmatprep.subr.mxu0 0.0
  %2743 = vmatpush2.msra.mxu0 0.0
  %2744 = vmatprep.subr.mxu0 0.0
  %2745 = vmatpush2.msra.mxu0 0.0
  %2746 = vmatprep.subr.mxu0 0.0
  %2747 = vmatpush2.msra.mxu0 0.0
  %2748 = vmatprep.subr.mxu0 0.0
  %2749 = vmatpush2.msra.mxu0 0.0
  %2750 = vmatprep.subr.mxu0 0.0
  %2751 = vmatpush2.msra.mxu0 0.0
  %2752 = vmatprep.subr.mxu0 0.0
  %2753 = vmatpush2.msra.mxu0 0.0
  %2754 = vmatprep.subr.mxu0 0.0
  %2755 = vmatpush2.msra.mxu0 0.0
  %2756 = vmatprep.subr.mxu0 0.0
  %2757 = vmatpush2.msra.mxu0 0.0
  %2758 = vmatprep.mubr.f32.mxu0 0.0
  %2759 = vmatmul.mubr.f32.gmra.mxu0 %v2668
  %v2760 = vpop.f32.mrf.mxu0
  %v2761 = vadd.f32 0.0, %v2760
  %v2762 = vpop.f32.mrf.mxu0
  %2763 = vmatprep.mubr.f32.mxu0 0.0
  %2764 = vmatmul.mubr.f32.gmra.mxu0 %v2671
  %v2765 = vpop.f32.mrf.mxu0
  %v2766 = vadd.f32 0.0, %v2765
  %v2767 = vpop.f32.mrf.mxu0
  %2768 = vmatprep.mubr.f32.mxu0 0.0
  %2769 = vmatmul.mubr.f32.gmra.mxu0 %v2674
  %v2770 = vpop.f32.mrf.mxu0
  %v2771 = vadd.f32 0.0, %v2770
  %v2772 = vpop.f32.mrf.mxu0
  %2773 = vmatprep.mubr.f32.mxu0 0.0
  %2774 = vmatmul.mubr.f32.gmra.mxu0 %v2677
  %v2775 = vpop.f32.mrf.mxu0
  %v2776 = vadd.f32 0.0, %v2775
  %v2777 = vpop.f32.mrf.mxu0
  %2778 = vmatprep.mubr.f32.mxu0 0.0
  %2779 = vmatmul.mubr.f32.gmra.mxu0 %v2680
  %v2780 = vpop.f32.mrf.mxu0
  %v2781 = vadd.f32 0.0, %v2780
  %v2782 = vpop.f32.mrf.mxu0
  %2783 = vmatprep.mubr.f32.mxu0 0.0
  %2784 = vmatmul.mubr.f32.gmra.mxu0 %v2683
  %v2785 = vpop.f32.mrf.mxu0
  %v2786 = vadd.f32 0.0, %v2785
  %v2787 = vpop.f32.mrf.mxu0
  %2788 = vmatprep.mubr.f32.mxu0 0.0
  %2789 = vmatmul.mubr.f32.gmra.mxu0 %v2686
  %v2790 = vpop.f32.mrf.mxu0
  %v2791 = vadd.f32 0.0, %v2790
  %v2792 = vpop.f32.mrf.mxu0
  %2793 = vmatprep.mubr.f32.mxu0 0.0
  %2794 = vmatmul.mubr.f32.gmra.mxu0 %v2689
  %v2795 = vpop.f32.mrf.mxu0
  %v2796 = vadd.f32 0.0, %v2795
  %v2797 = vpop.f32.mrf.mxu0
  %2798 = vdwg.mxu0
  %s2799 = scalar_lea.vmem %s10, 64
  %2800 = vst.msk [vmem:[%s2799] sm:$0xff] %vm1417, %v2761
  %2801 = vst.msk [vmem:[%s2799 + $0x8] sm:$0xff] %vm1417, %v2766
  %2802 = vst.msk [vmem:[%s2799 + $0x10] sm:$0xff] %vm1417, %v2771
  %2803 = vst.msk [vmem:[%s2799 + $0x18] sm:$0xff] %vm1417, %v2776
  %2804 = vst.msk [vmem:[%s2799 + $0x20] sm:$0xff] %vm1417, %v2781
  %2805 = vst.msk [vmem:[%s2799 + $0x28] sm:$0xff] %vm1417, %v2786
  %2806 = vst.msk [vmem:[%s2799 + $0x30] sm:$0xff] %vm1417, %v2791
  %2807 = vst.msk [vmem:[%s2799 + $0x38] sm:$0xff] %vm1417, %v2796
  %s2808 = scalar_lea.vmem %s0, 2
  %v2809 = vld [vmem:[%s2808] ss:$8 sm:$0xf]
  %v2810 = vld [vmem:[%s1] sm:$0xff]
  %v2811 = vld [vmem:[%s1 + $0x8] sm:$0xff]
  %2813 = vset.pattern.permute.xlu0 0
  %2814 = vperm.xlu0 %2813, %v2810
  %v2815 = vpop.permute.xlu0 %2814
  %2818 = vset.pattern.permute.xlu0 0
  %2819 = vperm.xlu0 %2818, %v2811
  %v2820 = vpop.permute.xlu0 %2819
  %v2823 = vlaneseq
  %v2824 = vshrl.u32 %v2823, 7
  %v2825 = vsub.s32 0, %v2824
  %v2826 = vrot.slane %v2809, %v2825
  %v2827 = vlaneseq
  %v2828 = vshrl.u32 %v2827, 7
  %v2829 = vsub.s32 1, %v2828
  %v2830 = vrot.slane %v2809, %v2829
  %v2831 = vlaneseq
  %v2832 = vshrl.u32 %v2831, 7
  %v2833 = vsub.s32 2, %v2832
  %v2834 = vrot.slane %v2809, %v2833
  %v2835 = vlaneseq
  %v2836 = vshrl.u32 %v2835, 7
  %v2837 = vsub.s32 3, %v2836
  %v2838 = vrot.slane %v2809, %v2837
  %v2843 = vmul.f32 %v2815, %v2826
  %v2844 = vmul.f32 %v2815, %v2830
  %v2845 = vmul.f32 %v2815, %v2834
  %v2846 = vmul.f32 %v2815, %v2838
  %v2847 = vmul.f32 %v2820, %v2826
  %v2848 = vmul.f32 %v2820, %v2830
  %v2849 = vmul.f32 %v2820, %v2834
  %v2850 = vmul.f32 %v2820, %v2838
  %v2851 = vld [vmem:[%s77] sm:$0xff]
  %v2852 = vld [vmem:[%s77 + $0x8] sm:$0xff]
  %2854 = vset.pattern.permute.xlu0 0
  %2855 = vperm.xlu0 %2854, %v2851
  %v2856 = vpop.permute.xlu0 %2855
  %2859 = vset.pattern.permute.xlu0 0
  %2860 = vperm.xlu0 %2859, %v2852
  %v2861 = vpop.permute.xlu0 %2860
  %v2863 = vmul.f32 %v2856, %v2826
  %v2864 = vmul.f32 %v2856, %v2830
  %v2865 = vmul.f32 %v2856, %v2834
  %v2866 = vmul.f32 %v2856, %v2838
  %v2867 = vmul.f32 %v2861, %v2826
  %v2868 = vmul.f32 %v2861, %v2830
  %v2869 = vmul.f32 %v2861, %v2834
  %v2870 = vmul.f32 %v2861, %v2838
  %2879 = vrot.lane.b32.xlu0 %v2863, 127
  %v2880 = vpop.permute.xlu0 %2879
  %2881 = vrot.lane.b32.xlu0 %v2864, 127
  %v2882 = vpop.permute.xlu0 %2881
  %2883 = vrot.lane.b32.xlu0 %v2865, 127
  %v2884 = vpop.permute.xlu0 %2883
  %2885 = vrot.lane.b32.xlu0 %v2866, 127
  %v2886 = vpop.permute.xlu0 %2885
  %2887 = vrot.lane.b32.xlu0 %v2867, 127
  %v2888 = vpop.permute.xlu0 %2887
  %2889 = vrot.lane.b32.xlu0 %v2868, 127
  %v2890 = vpop.permute.xlu0 %2889
  %2891 = vrot.lane.b32.xlu0 %v2869, 127
  %v2892 = vpop.permute.xlu0 %2891
  %2893 = vrot.lane.b32.xlu0 %v2870, 127
  %v2894 = vpop.permute.xlu0 %2893
  %v2895 = vsel %vm122, %v2880, %v2882
  %v2896 = vsel %vm122, %v2882, %v2884
  %v2897 = vsel %vm122, %v2884, %v2886
  %v2898 = vsel %vm122, %v2888, %v2890
  %v2899 = vsel %vm122, %v2890, %v2892
  %v2900 = vsel %vm122, %v2892, %v2894
  %v2909 = vadd.f32 %v2843, %v2895
  %v2910 = vadd.f32 %v2844, %v2896
  %v2911 = vadd.f32 %v2845, %v2897
  %v2912 = vadd.f32 %v2846, %v2886
  %v2913 = vadd.f32 %v2847, %v2898
  %v2914 = vadd.f32 %v2848, %v2899
  %v2915 = vadd.f32 %v2849, %v2900
  %v2916 = vadd.f32 %v2850, %v2894
  %v2917 = vld [vmem:[%s145] sm:$0xff]
  %v2918 = vld [vmem:[%s145 + $0x8] sm:$0xff]
  %2920 = vset.pattern.permute.xlu0 0
  %2921 = vperm.xlu0 %2920, %v2917
  %v2922 = vpop.permute.xlu0 %2921
  %2925 = vset.pattern.permute.xlu0 0
  %2926 = vperm.xlu0 %2925, %v2918
  %v2927 = vpop.permute.xlu0 %2926
  %v2929 = vmul.f32 %v2922, %v2826
  %v2930 = vmul.f32 %v2922, %v2830
  %v2931 = vmul.f32 %v2922, %v2834
  %v2932 = vmul.f32 %v2922, %v2838
  %v2933 = vmul.f32 %v2927, %v2826
  %v2934 = vmul.f32 %v2927, %v2830
  %v2935 = vmul.f32 %v2927, %v2834
  %v2936 = vmul.f32 %v2927, %v2838
  %2945 = vrot.lane.b32.xlu0 %v2929, 126
  %v2946 = vpop.permute.xlu0 %2945
  %2947 = vrot.lane.b32.xlu0 %v2930, 126
  %v2948 = vpop.permute.xlu0 %2947
  %2949 = vrot.lane.b32.xlu0 %v2931, 126
  %v2950 = vpop.permute.xlu0 %2949
  %2951 = vrot.lane.b32.xlu0 %v2932, 126
  %v2952 = vpop.permute.xlu0 %2951
  %2953 = vrot.lane.b32.xlu0 %v2933, 126
  %v2954 = vpop.permute.xlu0 %2953
  %2955 = vrot.lane.b32.xlu0 %v2934, 126
  %v2956 = vpop.permute.xlu0 %2955
  %2957 = vrot.lane.b32.xlu0 %v2935, 126
  %v2958 = vpop.permute.xlu0 %2957
  %2959 = vrot.lane.b32.xlu0 %v2936, 126
  %v2960 = vpop.permute.xlu0 %2959
  %v2961 = vsel %vm190, %v2946, %v2948
  %v2962 = vsel %vm190, %v2948, %v2950
  %v2963 = vsel %vm190, %v2950, %v2952
  %v2964 = vsel %vm190, %v2954, %v2956
  %v2965 = vsel %vm190, %v2956, %v2958
  %v2966 = vsel %vm190, %v2958, %v2960
  %v2975 = vadd.f32 %v2909, %v2961
  %v2976 = vadd.f32 %v2910, %v2962
  %v2977 = vadd.f32 %v2911, %v2963
  %v2978 = vadd.f32 %v2912, %v2952
  %v2979 = vadd.f32 %v2913, %v2964
  %v2980 = vadd.f32 %v2914, %v2965
  %v2981 = vadd.f32 %v2915, %v2966
  %v2982 = vadd.f32 %v2916, %v2960
  %v2983 = vld [vmem:[%s2] sm:$0xff]
  %v2984 = vld [vmem:[%s2 + $0x8] sm:$0xff]
  %2986 = vset.pattern.permute.xlu0 0
  %2987 = vperm.xlu0 %2986, %v2983
  %v2988 = vpop.permute.xlu0 %2987
  %2991 = vset.pattern.permute.xlu0 0
  %2992 = vperm.xlu0 %2991, %v2984
  %v2993 = vpop.permute.xlu0 %2992
  %v2995 = vadd.f32 %v2975, %v2988
  %v2996 = vadd.f32 %v2976, %v2988
  %v2997 = vadd.f32 %v2977, %v2988
  %v2998 = vadd.f32 %v2978, %v2988
  %v2999 = vadd.f32 %v2979, %v2993
  %v3000 = vadd.f32 %v2980, %v2993
  %v3001 = vadd.f32 %v2981, %v2993
  %v3002 = vadd.f32 %v2982, %v2993
  %v3003 = vmax.f32 %v2995, 0.0
  %v3004 = vmax.f32 %v2996, 0.0
  %v3005 = vmax.f32 %v2997, 0.0
  %v3006 = vmax.f32 %v2998, 0.0
  %v3007 = vmax.f32 %v2999, 0.0
  %v3008 = vmax.f32 %v3000, 0.0
  %v3009 = vmax.f32 %v3001, 0.0
  %v3010 = vmax.f32 %v3002, 0.0
  %3019 = vrot.lane.b32.xlu0 %v3003, 127
  %v3020 = vpop.permute.xlu0 %3019
  %3021 = vrot.lane.b32.xlu0 %v3004, 127
  %v3022 = vpop.permute.xlu0 %3021
  %3023 = vrot.lane.b32.xlu0 %v3005, 127
  %v3024 = vpop.permute.xlu0 %3023
  %3025 = vrot.lane.b32.xlu0 %v3006, 127
  %v3026 = vpop.permute.xlu0 %3025
  %3027 = vrot.lane.b32.xlu0 %v3007, 127
  %v3028 = vpop.permute.xlu0 %3027
  %3029 = vrot.lane.b32.xlu0 %v3008, 127
  %v3030 = vpop.permute.xlu0 %3029
  %3031 = vrot.lane.b32.xlu0 %v3009, 127
  %v3032 = vpop.permute.xlu0 %3031
  %3033 = vrot.lane.b32.xlu0 %v3010, 127
  %v3034 = vpop.permute.xlu0 %3033
  %v3035 = vsel %vm122, %v3020, %v3022
  %v3036 = vsel %vm122, %v3022, %v3024
  %v3037 = vsel %vm122, %v3024, %v3026
  %v3038 = vsel %vm122, %v3028, %v3030
  %v3039 = vsel %vm122, %v3030, %v3032
  %v3040 = vsel %vm122, %v3032, %v3034
  %v3049 = vmax.f32 %v3003, %v3035
  %v3050 = vmax.f32 %v3004, %v3036
  %v3051 = vmax.f32 %v3005, %v3037
  %v3052 = vmax.f32 %v3006, %v3026
  %v3053 = vmax.f32 %v3007, %v3038
  %v3054 = vmax.f32 %v3008, %v3039
  %v3055 = vmax.f32 %v3009, %v3040
  %v3056 = vmax.f32 %v3010, %v3034
  %3057 = vrot.lane.b32.xlu0 %v3003, 126
  %v3058 = vpop.permute.xlu0 %3057
  %3059 = vrot.lane.b32.xlu0 %v3004, 126
  %v3060 = vpop.permute.xlu0 %3059
  %3061 = vrot.lane.b32.xlu0 %v3005, 126
  %v3062 = vpop.permute.xlu0 %3061
  %3063 = vrot.lane.b32.xlu0 %v3006, 126
  %v3064 = vpop.permute.xlu0 %3063
  %3065 = vrot.lane.b32.xlu0 %v3007, 126
  %v3066 = vpop.permute.xlu0 %3065
  %3067 = vrot.lane.b32.xlu0 %v3008, 126
  %v3068 = vpop.permute.xlu0 %3067
  %3069 = vrot.lane.b32.xlu0 %v3009, 126
  %v3070 = vpop.permute.xlu0 %3069
  %3071 = vrot.lane.b32.xlu0 %v3010, 126
  %v3072 = vpop.permute.xlu0 %3071
  %v3073 = vsel %vm190, %v3058, %v3060
  %v3074 = vsel %vm190, %v3060, %v3062
  %v3075 = vsel %vm190, %v3062, %v3064
  %v3076 = vsel %vm190, %v3066, %v3068
  %v3077 = vsel %vm190, %v3068, %v3070
  %v3078 = vsel %vm190, %v3070, %v3072
  %v3087 = vmax.f32 %v3049, %v3073
  %v3088 = vmax.f32 %v3050, %v3074
  %v3089 = vmax.f32 %v3051, %v3075
  %v3090 = vmax.f32 %v3052, %v3064
  %v3091 = vmax.f32 %v3053, %v3076
  %v3092 = vmax.f32 %v3054, %v3077
  %v3093 = vmax.f32 %v3055, %v3078
  %v3094 = vmax.f32 %v3056, %v3072
  %v3095 = vld [vmem:[%s3] sm:$0xff]
  %v3096 = vld [vmem:[%s3 + $0x8] sm:$0xff]
  %v3097 = vld [vmem:[%s3 + $0x10] sm:$0xff]
  %v3098 = vld [vmem:[%s3 + $0x18] sm:$0xff]
  %v3099 = vld [vmem:[%s3 + $0x20] sm:$0xff]
  %v3100 = vld [vmem:[%s3 + $0x28] sm:$0xff]
  %v3101 = vld [vmem:[%s3 + $0x30] sm:$0xff]
  %v3102 = vld [vmem:[%s3 + $0x38] sm:$0xff]
  %v3103 = vld [vmem:[%s3 + $0x40] sm:$0xff]
  %v3104 = vld [vmem:[%s3 + $0x48] sm:$0xff]
  %v3105 = vld [vmem:[%s3 + $0x50] sm:$0xff]
  %v3106 = vld [vmem:[%s3 + $0x58] sm:$0xff]
  %v3107 = vld [vmem:[%s3 + $0x60] sm:$0xff]
  %v3108 = vld [vmem:[%s3 + $0x68] sm:$0xff]
  %v3109 = vld [vmem:[%s3 + $0x70] sm:$0xff]
  %v3110 = vld [vmem:[%s3 + $0x78] sm:$0xff]
  %v3111 = vld [vmem:[%s3 + $0x80] sm:$0xff]
  %v3112 = vld [vmem:[%s3 + $0x88] sm:$0xff]
  %v3113 = vld [vmem:[%s3 + $0x90] sm:$0xff]
  %v3114 = vld [vmem:[%s3 + $0x98] sm:$0xff]
  %v3115 = vld [vmem:[%s3 + $0xa0] sm:$0xff]
  %v3116 = vld [vmem:[%s3 + $0xa8] sm:$0xff]
  %v3117 = vld [vmem:[%s3 + $0xb0] sm:$0xff]
  %v3118 = vld [vmem:[%s3 + $0xb8] sm:$0xff]
  %v3119 = vld [vmem:[%s3 + $0xc0] sm:$0xff]
  %v3120 = vld [vmem:[%s3 + $0xc8] sm:$0xff]
  %v3121 = vld [vmem:[%s3 + $0xd0] sm:$0xff]
  %v3122 = vld [vmem:[%s3 + $0xd8] sm:$0xff]
  %v3123 = vld [vmem:[%s3 + $0xe0] sm:$0xff]
  %v3124 = vld [vmem:[%s3 + $0xe8] sm:$0xff]
  %v3125 = vld [vmem:[%s3 + $0xf0] sm:$0xff]
  %v3126 = vld [vmem:[%s3 + $0xf8] sm:$0xff]
  %v3127 = vld [vmem:[%s3 + $0x100] sm:$0xff]
  %v3128 = vld [vmem:[%s3 + $0x108] sm:$0xff]
  %v3129 = vld [vmem:[%s3 + $0x110] sm:$0xff]
  %v3130 = vld [vmem:[%s3 + $0x118] sm:$0xff]
  %v3131 = vld [vmem:[%s3 + $0x120] sm:$0xff]
  %v3132 = vld [vmem:[%s3 + $0x128] sm:$0xff]
  %v3133 = vld [vmem:[%s3 + $0x130] sm:$0xff]
  %v3134 = vld [vmem:[%s3 + $0x138] sm:$0xff]
  %v3135 = vld [vmem:[%s3 + $0x140] sm:$0xff]
  %v3136 = vld [vmem:[%s3 + $0x148] sm:$0xff]
  %v3137 = vld [vmem:[%s3 + $0x150] sm:$0xff]
  %v3138 = vld [vmem:[%s3 + $0x158] sm:$0xff]
  %v3139 = vld [vmem:[%s3 + $0x160] sm:$0xff]
  %v3140 = vld [vmem:[%s3 + $0x168] sm:$0xff]
  %v3141 = vld [vmem:[%s3 + $0x170] sm:$0xff]
  %v3142 = vld [vmem:[%s3 + $0x178] sm:$0xff]
  %v3143 = vld [vmem:[%s3 + $0x180] sm:$0xff]
  %v3144 = vld [vmem:[%s3 + $0x188] sm:$0xff]
  %v3145 = vld [vmem:[%s3 + $0x190] sm:$0xff]
  %v3146 = vld [vmem:[%s3 + $0x198] sm:$0xff]
  %v3147 = vld [vmem:[%s3 + $0x1a0] sm:$0xff]
  %v3148 = vld [vmem:[%s3 + $0x1a8] sm:$0xff]
  %v3149 = vld [vmem:[%s3 + $0x1b0] sm:$0xff]
  %v3150 = vld [vmem:[%s3 + $0x1b8] sm:$0xff]
  %v3151 = vld [vmem:[%s3 + $0x1c0] sm:$0xff]
  %v3152 = vld [vmem:[%s3 + $0x1c8] sm:$0xff]
  %v3153 = vld [vmem:[%s3 + $0x1d0] sm:$0xff]
  %v3154 = vld [vmem:[%s3 + $0x1d8] sm:$0xff]
  %v3155 = vld [vmem:[%s3 + $0x1e0] sm:$0xff]
  %v3156 = vld [vmem:[%s3 + $0x1e8] sm:$0xff]
  %v3157 = vld [vmem:[%s3 + $0x1f0] sm:$0xff]
  %v3158 = vld [vmem:[%s3 + $0x1f8] sm:$0xff]
  %v3159 = vld [vmem:[%s3 + $0x200] sm:$0xff]
  %v3160 = vld [vmem:[%s3 + $0x208] sm:$0xff]
  %v3161 = vld [vmem:[%s3 + $0x210] sm:$0xff]
  %v3162 = vld [vmem:[%s3 + $0x218] sm:$0xff]
  %v3163 = vld [vmem:[%s3 + $0x220] sm:$0xff]
  %v3164 = vld [vmem:[%s3 + $0x228] sm:$0xff]
  %v3165 = vld [vmem:[%s3 + $0x230] sm:$0xff]
  %v3166 = vld [vmem:[%s3 + $0x238] sm:$0xff]
  %v3167 = vld [vmem:[%s3 + $0x240] sm:$0xff]
  %v3168 = vld [vmem:[%s3 + $0x248] sm:$0xff]
  %v3169 = vld [vmem:[%s3 + $0x250] sm:$0xff]
  %v3170 = vld [vmem:[%s3 + $0x258] sm:$0xff]
  %v3171 = vld [vmem:[%s3 + $0x260] sm:$0xff]
  %v3172 = vld [vmem:[%s3 + $0x268] sm:$0xff]
  %v3173 = vld [vmem:[%s3 + $0x270] sm:$0xff]
  %v3174 = vld [vmem:[%s3 + $0x278] sm:$0xff]
  %v3175 = vld [vmem:[%s3 + $0x280] sm:$0xff]
  %v3176 = vld [vmem:[%s3 + $0x288] sm:$0xff]
  %v3177 = vld [vmem:[%s3 + $0x290] sm:$0xff]
  %v3178 = vld [vmem:[%s3 + $0x298] sm:$0xff]
  %v3179 = vld [vmem:[%s3 + $0x2a0] sm:$0xff]
  %v3180 = vld [vmem:[%s3 + $0x2a8] sm:$0xff]
  %v3181 = vld [vmem:[%s3 + $0x2b0] sm:$0xff]
  %v3182 = vld [vmem:[%s3 + $0x2b8] sm:$0xff]
  %v3183 = vld [vmem:[%s3 + $0x2c0] sm:$0xff]
  %v3184 = vld [vmem:[%s3 + $0x2c8] sm:$0xff]
  %v3185 = vld [vmem:[%s3 + $0x2d0] sm:$0xff]
  %v3186 = vld [vmem:[%s3 + $0x2d8] sm:$0xff]
  %v3187 = vld [vmem:[%s3 + $0x2e0] sm:$0xff]
  %v3188 = vld [vmem:[%s3 + $0x2e8] sm:$0xff]
  %v3189 = vld [vmem:[%s3 + $0x2f0] sm:$0xff]
  %v3190 = vld [vmem:[%s3 + $0x2f8] sm:$0xff]
  %v3191 = vld [vmem:[%s3 + $0x300] sm:$0xff]
  %v3192 = vld [vmem:[%s3 + $0x308] sm:$0xff]
  %v3193 = vld [vmem:[%s3 + $0x310] sm:$0xff]
  %v3194 = vld [vmem:[%s3 + $0x318] sm:$0xff]
  %v3195 = vld [vmem:[%s3 + $0x320] sm:$0xff]
  %v3196 = vld [vmem:[%s3 + $0x328] sm:$0xff]
  %v3197 = vld [vmem:[%s3 + $0x330] sm:$0xff]
  %v3198 = vld [vmem:[%s3 + $0x338] sm:$0xff]
  %v3199 = vld [vmem:[%s3 + $0x340] sm:$0xff]
  %v3200 = vld [vmem:[%s3 + $0x348] sm:$0xff]
  %v3201 = vld [vmem:[%s3 + $0x350] sm:$0xff]
  %v3202 = vld [vmem:[%s3 + $0x358] sm:$0xff]
  %v3203 = vld [vmem:[%s3 + $0x360] sm:$0xff]
  %v3204 = vld [vmem:[%s3 + $0x368] sm:$0xff]
  %v3205 = vld [vmem:[%s3 + $0x370] sm:$0xff]
  %v3206 = vld [vmem:[%s3 + $0x378] sm:$0xff]
  %v3207 = vld [vmem:[%s3 + $0x380] sm:$0xff]
  %v3208 = vld [vmem:[%s3 + $0x388] sm:$0xff]
  %v3209 = vld [vmem:[%s3 + $0x390] sm:$0xff]
  %v3210 = vld [vmem:[%s3 + $0x398] sm:$0xff]
  %v3211 = vld [vmem:[%s3 + $0x3a0] sm:$0xff]
  %v3212 = vld [vmem:[%s3 + $0x3a8] sm:$0xff]
  %v3213 = vld [vmem:[%s3 + $0x3b0] sm:$0xff]
  %v3214 = vld [vmem:[%s3 + $0x3b8] sm:$0xff]
  %v3215 = vld [vmem:[%s3 + $0x3c0] sm:$0xff]
  %v3216 = vld [vmem:[%s3 + $0x3c8] sm:$0xff]
  %v3217 = vld [vmem:[%s3 + $0x3d0] sm:$0xff]
  %v3218 = vld [vmem:[%s3 + $0x3d8] sm:$0xff]
  %v3220 = vsel %vm449, %v3090, 0
  %v3223 = vsel %vm449, %v3094, 0
  %3225 = vmatprep.subr.mxu0 %v3126
  %3226 = vmatpush1.msra.mxu0 %v3125
  %3227 = vmatprep.subr.mxu0 %v3124
  %3228 = vmatpush1.msra.mxu0 %v3123
  %3229 = vmatprep.subr.mxu0 %v3122
  %3230 = vmatpush1.msra.mxu0 %v3121
  %3231 = vmatprep.subr.mxu0 %v3120
  %3232 = vmatpush1.msra.mxu0 %v3119
  %3233 = vmatprep.subr.mxu0 %v3118
  %3234 = vmatpush1.msra.mxu0 %v3117
  %3235 = vmatprep.subr.mxu0 %v3116
  %3236 = vmatpush1.msra.mxu0 %v3115
  %3237 = vmatprep.subr.mxu0 %v3114
  %3238 = vmatpush1.msra.mxu0 %v3113
  %3239 = vmatprep.subr.mxu0 %v3112
  %3240 = vmatpush1.msra.mxu0 %v3111
  %3241 = vmatprep.subr.mxu0 %v3110
  %3242 = vmatpush1.msra.mxu0 %v3109
  %3243 = vmatprep.subr.mxu0 %v3108
  %3244 = vmatpush1.msra.mxu0 %v3107
  %3245 = vmatprep.subr.mxu0 %v3106
  %3246 = vmatpush1.msra.mxu0 %v3105
  %3247 = vmatprep.subr.mxu0 %v3104
  %3248 = vmatpush1.msra.mxu0 %v3103
  %3249 = vmatprep.subr.mxu0 %v3102
  %3250 = vmatpush1.msra.mxu0 %v3101
  %3251 = vmatprep.subr.mxu0 %v3100
  %3252 = vmatpush1.msra.mxu0 %v3099
  %3253 = vmatprep.subr.mxu0 %v3098
  %3254 = vmatpush1.msra.mxu0 %v3097
  %3255 = vmatprep.subr.mxu0 %v3096
  %3256 = vmatpush1.msra.mxu0 %v3095
  %3257 = vmatprep.subr.mxu0 %v3158
  %3258 = vmatpush2.msra.mxu0 %v3157
  %3259 = vmatprep.subr.mxu0 %v3156
  %3260 = vmatpush2.msra.mxu0 %v3155
  %3261 = vmatprep.subr.mxu0 %v3154
  %3262 = vmatpush2.msra.mxu0 %v3153
  %3263 = vmatprep.subr.mxu0 %v3152
  %3264 = vmatpush2.msra.mxu0 %v3151
  %3265 = vmatprep.subr.mxu0 %v3150
  %3266 = vmatpush2.msra.mxu0 %v3149
  %3267 = vmatprep.subr.mxu0 %v3148
  %3268 = vmatpush2.msra.mxu0 %v3147
  %3269 = vmatprep.subr.mxu0 %v3146
  %3270 = vmatpush2.msra.mxu0 %v3145
  %3271 = vmatprep.subr.mxu0 %v3144
  %3272 = vmatpush2.msra.mxu0 %v3143
  %3273 = vmatprep.subr.mxu0 %v3142
  %3274 = vmatpush2.msra.mxu0 %v3141
  %3275 = vmatprep.subr.mxu0 %v3140
  %3276 = vmatpush2.msra.mxu0 %v3139
  %3277 = vmatprep.subr.mxu0 %v3138
  %3278 = vmatpush2.msra.mxu0 %v3137
  %3279 = vmatprep.subr.mxu0 %v3136
  %3280 = vmatpush2.msra.mxu0 %v3135
  %3281 = vmatprep.subr.mxu0 %v3134
  %3282 = vmatpush2.msra.mxu0 %v3133
  %3283 = vmatprep.subr.mxu0 %v3132
  %3284 = vmatpush2.msra.mxu0 %v3131
  %3285 = vmatprep.subr.mxu0 %v3130
  %3286 = vmatpush2.msra.mxu0 %v3129
  %3287 = vmatprep.subr.mxu0 %v3128
  %3288 = vmatpush2.msra.mxu0 %v3127
  %3289 = vmatprep.mubr.f32.mxu0 %v3088
  %3290 = vmatmul.mubr.f32.gmra.mxu0 %v3087
  %v3291 = vpop.f32.mrf.mxu0
  %v3292 = vadd.f32 0.0, %v3291
  %v3293 = vpop.f32.mrf.mxu0
  %v3294 = vadd.f32 0.0, %v3293
  %3295 = vmatprep.mubr.f32.mxu0 %v3092
  %3296 = vmatmul.mubr.f32.gmra.mxu0 %v3091
  %v3297 = vpop.f32.mrf.mxu0
  %v3298 = vadd.f32 0.0, %v3297
  %v3299 = vpop.f32.mrf.mxu0
  %v3300 = vadd.f32 0.0, %v3299
  %3301 = vdwg.mxu0
  %3302 = vmatprep.subr.mxu0 %v3190
  %3303 = vmatpush1.msra.mxu0 %v3189
  %3304 = vmatprep.subr.mxu0 %v3188
  %3305 = vmatpush1.msra.mxu0 %v3187
  %3306 = vmatprep.subr.mxu0 %v3186
  %3307 = vmatpush1.msra.mxu0 %v3185
  %3308 = vmatprep.subr.mxu0 %v3184
  %3309 = vmatpush1.msra.mxu0 %v3183
  %3310 = vmatprep.subr.mxu0 %v3182
  %3311 = vmatpush1.msra.mxu0 %v3181
  %3312 = vmatprep.subr.mxu0 %v3180
  %3313 = vmatpush1.msra.mxu0 %v3179
  %3314 = vmatprep.subr.mxu0 %v3178
  %3315 = vmatpush1.msra.mxu0 %v3177
  %3316 = vmatprep.subr.mxu0 %v3176
  %3317 = vmatpush1.msra.mxu0 %v3175
  %3318 = vmatprep.subr.mxu0 %v3174
  %3319 = vmatpush1.msra.mxu0 %v3173
  %3320 = vmatprep.subr.mxu0 %v3172
  %3321 = vmatpush1.msra.mxu0 %v3171
  %3322 = vmatprep.subr.mxu0 %v3170
  %3323 = vmatpush1.msra.mxu0 %v3169
  %3324 = vmatprep.subr.mxu0 %v3168
  %3325 = vmatpush1.msra.mxu0 %v3167
  %3326 = vmatprep.subr.mxu0 %v3166
  %3327 = vmatpush1.msra.mxu0 %v3165
  %3328 = vmatprep.subr.mxu0 %v3164
  %3329 = vmatpush1.msra.mxu0 %v3163
  %3330 = vmatprep.subr.mxu0 %v3162
  %3331 = vmatpush1.msra.mxu0 %v3161
  %3332 = vmatprep.subr.mxu0 %v3160
  %3333 = vmatpush1.msra.mxu0 %v3159
  %3334 = vmatprep.subr.mxu0 0.0
  %3335 = vmatpush2.msra.mxu0 0.0
  %3336 = vmatprep.subr.mxu0 0.0
  %3337 = vmatpush2.msra.mxu0 0.0
  %3338 = vmatprep.subr.mxu0 %v3218
  %3339 = vmatpush2.msra.mxu0 %v3217
  %3340 = vmatprep.subr.mxu0 %v3216
  %3341 = vmatpush2.msra.mxu0 %v3215
  %3342 = vmatprep.subr.mxu0 %v3214
  %3343 = vmatpush2.msra.mxu0 %v3213
  %3344 = vmatprep.subr.mxu0 %v3212
  %3345 = vmatpush2.msra.mxu0 %v3211
  %3346 = vmatprep.subr.mxu0 %v3210
  %3347 = vmatpush2.msra.mxu0 %v3209
  %3348 = vmatprep.subr.mxu0 %v3208
  %3349 = vmatpush2.msra.mxu0 %v3207
  %3350 = vmatprep.subr.mxu0 %v3206
  %3351 = vmatpush2.msra.mxu0 %v3205
  %3352 = vmatprep.subr.mxu0 %v3204
  %3353 = vmatpush2.msra.mxu0 %v3203
  %3354 = vmatprep.subr.mxu0 %v3202
  %3355 = vmatpush2.msra.mxu0 %v3201
  %3356 = vmatprep.subr.mxu0 %v3200
  %3357 = vmatpush2.msra.mxu0 %v3199
  %3358 = vmatprep.subr.mxu0 %v3198
  %3359 = vmatpush2.msra.mxu0 %v3197
  %3360 = vmatprep.subr.mxu0 %v3196
  %3361 = vmatpush2.msra.mxu0 %v3195
  %3362 = vmatprep.subr.mxu0 %v3194
  %3363 = vmatpush2.msra.mxu0 %v3193
  %3364 = vmatprep.subr.mxu0 %v3192
  %3365 = vmatpush2.msra.mxu0 %v3191
  %3366 = vmatprep.mubr.f32.mxu0 %v3220
  %3367 = vmatmul.mubr.f32.gmra.mxu0 %v3089
  %v3368 = vpop.f32.mrf.mxu0
  %v3369 = vadd.f32 %v3292, %v3368
  %v3370 = vpop.f32.mrf.mxu0
  %v3371 = vadd.f32 %v3294, %v3370
  %3372 = vmatprep.mubr.f32.mxu0 %v3223
  %3373 = vmatmul.mubr.f32.gmra.mxu0 %v3093
  %v3374 = vpop.f32.mrf.mxu0
  %v3375 = vadd.f32 %v3298, %v3374
  %v3376 = vpop.f32.mrf.mxu0
  %v3377 = vadd.f32 %v3300, %v3376
  %3378 = vdwg.mxu0
  %3383 = vrot.lane.b32.xlu0 %v3369, 127
  %v3384 = vpop.permute.xlu0 %3383
  %3385 = vrot.lane.b32.xlu0 %v3371, 127
  %v3386 = vpop.permute.xlu0 %3385
  %3387 = vrot.lane.b32.xlu0 %v3375, 127
  %v3388 = vpop.permute.xlu0 %3387
  %3389 = vrot.lane.b32.xlu0 %v3377, 127
  %v3390 = vpop.permute.xlu0 %3389
  %v3391 = vsel %vm122, %v3384, %v3386
  %v3392 = vsel %vm122, %v3388, %v3390
  %3397 = vrot.lane.b32.xlu0 %v3369, 126
  %v3398 = vpop.permute.xlu0 %3397
  %3399 = vrot.lane.b32.xlu0 %v3371, 126
  %v3400 = vpop.permute.xlu0 %3399
  %3401 = vrot.lane.b32.xlu0 %v3375, 126
  %v3402 = vpop.permute.xlu0 %3401
  %3403 = vrot.lane.b32.xlu0 %v3377, 126
  %v3404 = vpop.permute.xlu0 %3403
  %v3405 = vsel %vm190, %v3398, %v3400
  %v3406 = vsel %vm190, %v3402, %v3404
  %v3411 = vld [vmem:[%s4] sm:$0xff]
  %v3412 = vld [vmem:[%s4 + $0x8] sm:$0xff]
  %v3413 = vld [vmem:[%s4 + $0x10] sm:$0xff]
  %v3414 = vld [vmem:[%s4 + $0x18] sm:$0xff]
  %v3415 = vld [vmem:[%s5] sm:$0xff]
  %v3416 = vld [vmem:[%s5 + $0x8] sm:$0xff]
  %v3417 = vld [vmem:[%s5 + $0x10] sm:$0xff]
  %v3418 = vld [vmem:[%s5 + $0x18] sm:$0xff]
  %3420 = vset.pattern.permute.xlu0 0
  %3421 = vperm.xlu0 %3420, %v3415
  %v3422 = vpop.permute.xlu0 %3421
  %3425 = vset.pattern.permute.xlu0 0
  %3426 = vperm.xlu0 %3425, %v3416
  %v3427 = vpop.permute.xlu0 %3426
  %3430 = vset.pattern.permute.xlu0 0
  %3431 = vperm.xlu0 %3430, %v3417
  %v3432 = vpop.permute.xlu0 %3431
  %3435 = vset.pattern.permute.xlu0 0
  %3436 = vperm.xlu0 %3435, %v3418
  %v3437 = vpop.permute.xlu0 %3436
  %v3440 = vsel %vm670, %v3411, 0
  %v3443 = vsel %vm670, %v3412, 0
  %v3446 = vsel %vm670, %v3413, 0
  %v3449 = vsel %vm670, %v3414, 0
  %3451 = vmatprep.subr.mxu0 0.0
  %3452 = vmatpush1.msra.mxu0 0.0
  %3453 = vmatprep.subr.mxu0 0.0
  %3454 = vmatpush1.msra.mxu0 0.0
  %3455 = vmatprep.subr.mxu0 0.0
  %3456 = vmatpush1.msra.mxu0 0.0
  %3457 = vmatprep.subr.mxu0 0.0
  %3458 = vmatpush1.msra.mxu0 0.0
  %3459 = vmatprep.subr.mxu0 0.0
  %3460 = vmatpush1.msra.mxu0 0.0
  %3461 = vmatprep.subr.mxu0 0.0
  %3462 = vmatpush1.msra.mxu0 0.0
  %3463 = vmatprep.subr.mxu0 0.0
  %3464 = vmatpush1.msra.mxu0 0.0
  %3465 = vmatprep.subr.mxu0 0.0
  %3466 = vmatpush1.msra.mxu0 0.0
  %3467 = vmatprep.subr.mxu0 0.0
  %3468 = vmatpush1.msra.mxu0 0.0
  %3469 = vmatprep.subr.mxu0 0.0
  %3470 = vmatpush1.msra.mxu0 0.0
  %3471 = vmatprep.subr.mxu0 %v3404
  %3472 = vmatpush1.msra.mxu0 %v3406
  %3473 = vmatprep.subr.mxu0 %v3400
  %3474 = vmatpush1.msra.mxu0 %v3405
  %3475 = vmatprep.subr.mxu0 %v3390
  %3476 = vmatpush1.msra.mxu0 %v3392
  %3477 = vmatprep.subr.mxu0 %v3386
  %3478 = vmatpush1.msra.mxu0 %v3391
  %3479 = vmatprep.subr.mxu0 %v3377
  %3480 = vmatpush1.msra.mxu0 %v3375
  %3481 = vmatprep.subr.mxu0 %v3371
  %3482 = vmatpush1.msra.mxu0 %v3369
  %3483 = vmatprep.subr.mxu0 0.0
  %3484 = vmatpush2.msra.mxu0 0.0
  %3485 = vmatprep.subr.mxu0 0.0
  %3486 = vmatpush2.msra.mxu0 0.0
  %3487 = vmatprep.subr.mxu0 0.0
  %3488 = vmatpush2.msra.mxu0 0.0
  %3489 = vmatprep.subr.mxu0 0.0
  %3490 = vmatpush2.msra.mxu0 0.0
  %3491 = vmatprep.subr.mxu0 0.0
  %3492 = vmatpush2.msra.mxu0 0.0
  %3493 = vmatprep.subr.mxu0 0.0
  %3494 = vmatpush2.msra.mxu0 0.0
  %3495 = vmatprep.subr.mxu0 0.0
  %3496 = vmatpush2.msra.mxu0 0.0
  %3497 = vmatprep.subr.mxu0 0.0
  %3498 = vmatpush2.msra.mxu0 0.0
  %3499 = vmatprep.subr.mxu0 0.0
  %3500 = vmatpush2.msra.mxu0 0.0
  %3501 = vmatprep.subr.mxu0 0.0
  %3502 = vmatpush2.msra.mxu0 0.0
  %3503 = vmatprep.subr.mxu0 0.0
  %3504 = vmatpush2.msra.mxu0 0.0
  %3505 = vmatprep.subr.mxu0 0.0
  %3506 = vmatpush2.msra.mxu0 0.0
  %3507 = vmatprep.subr.mxu0 0.0
  %3508 = vmatpush2.msra.mxu0 0.0
  %3509 = vmatprep.subr.mxu0 0.0
  %3510 = vmatpush2.msra.mxu0 0.0
  %3511 = vmatprep.subr.mxu0 0.0
  %3512 = vmatpush2.msra.mxu0 0.0
  %3513 = vmatprep.subr.mxu0 0.0
  %3514 = vmatpush2.msra.mxu0 0.0
  %3515 = vmatprep.mubr.f32.mxu0 0.0
  %3516 = vmatmul.mubr.f32.gmra.mxu0 %v3440
  %v3517 = vpop.f32.mrf.mxu0
  %v3518 = vadd.f32 %v3422, %v3517
  %v3519 = vpop.f32.mrf.mxu0
  %v3520 = vadd.f32 %v3422, %v3519
  %3521 = vmatprep.mubr.f32.mxu0 0.0
  %3522 = vmatmul.mubr.f32.gmra.mxu0 %v3443
  %v3523 = vpop.f32.mrf.mxu0
  %v3524 = vadd.f32 %v3427, %v3523
  %v3525 = vpop.f32.mrf.mxu0
  %v3526 = vadd.f32 %v3427, %v3525
  %3527 = vmatprep.mubr.f32.mxu0 0.0
  %3528 = vmatmul.mubr.f32.gmra.mxu0 %v3446
  %v3529 = vpop.f32.mrf.mxu0
  %v3530 = vadd.f32 %v3432, %v3529
  %v3531 = vpop.f32.mrf.mxu0
  %v3532 = vadd.f32 %v3432, %v3531
  %3533 = vmatprep.mubr.f32.mxu0 0.0
  %3534 = vmatmul.mubr.f32.gmra.mxu0 %v3449
  %v3535 = vpop.f32.mrf.mxu0
  %v3536 = vadd.f32 %v3437, %v3535
  %v3537 = vpop.f32.mrf.mxu0
  %v3538 = vadd.f32 %v3437, %v3537
  %3539 = vdwg.mxu0
  %v3540 = vmax.f32 %v3518, 0.0
  %v3541 = vmax.f32 %v3520, 0.0
  %v3542 = vmax.f32 %v3524, 0.0
  %v3543 = vmax.f32 %v3526, 0.0
  %v3544 = vmax.f32 %v3530, 0.0
  %v3545 = vmax.f32 %v3532, 0.0
  %v3546 = vmax.f32 %v3536, 0.0
  %v3547 = vmax.f32 %v3538, 0.0
  %3556 = vrot.lane.b32.xlu0 %v3540, 127
  %v3557 = vpop.permute.xlu0 %3556
  %3558 = vrot.lane.b32.xlu0 %v3541, 127
  %v3559 = vpop.permute.xlu0 %3558
  %3560 = vrot.lane.b32.xlu0 %v3542, 127
  %v3561 = vpop.permute.xlu0 %3560
  %3562 = vrot.lane.b32.xlu0 %v3543, 127
  %v3563 = vpop.permute.xlu0 %3562
  %3564 = vrot.lane.b32.xlu0 %v3544, 127
  %v3565 = vpop.permute.xlu0 %3564
  %3566 = vrot.lane.b32.xlu0 %v3545, 127
  %v3567 = vpop.permute.xlu0 %3566
  %3568 = vrot.lane.b32.xlu0 %v3546, 127
  %v3569 = vpop.permute.xlu0 %3568
  %3570 = vrot.lane.b32.xlu0 %v3547, 127
  %v3571 = vpop.permute.xlu0 %3570
  %v3572 = vsel %vm122, %v3557, %v3559
  %v3573 = vsel %vm122, %v3561, %v3563
  %v3574 = vsel %vm122, %v3565, %v3567
  %v3575 = vsel %vm122, %v3569, %v3571
  %v3584 = vmax.f32 %v3540, %v3572
  %v3585 = vmax.f32 %v3541, %v3559
  %v3586 = vmax.f32 %v3542, %v3573
  %v3587 = vmax.f32 %v3543, %v3563
  %v3588 = vmax.f32 %v3544, %v3574
  %v3589 = vmax.f32 %v3545, %v3567
  %v3590 = vmax.f32 %v3546, %v3575
  %v3591 = vmax.f32 %v3547, %v3571
  %3592 = vrot.lane.b32.xlu0 %v3540, 126
  %v3593 = vpop.permute.xlu0 %3592
  %3594 = vrot.lane.b32.xlu0 %v3541, 126
  %v3595 = vpop.permute.xlu0 %3594
  %3596 = vrot.lane.b32.xlu0 %v3542, 126
  %v3597 = vpop.permute.xlu0 %3596
  %3598 = vrot.lane.b32.xlu0 %v3543, 126
  %v3599 = vpop.permute.xlu0 %3598
  %3600 = vrot.lane.b32.xlu0 %v3544, 126
  %v3601 = vpop.permute.xlu0 %3600
  %3602 = vrot.lane.b32.xlu0 %v3545, 126
  %v3603 = vpop.permute.xlu0 %3602
  %3604 = vrot.lane.b32.xlu0 %v3546, 126
  %v3605 = vpop.permute.xlu0 %3604
  %3606 = vrot.lane.b32.xlu0 %v3547, 126
  %v3607 = vpop.permute.xlu0 %3606
  %v3608 = vsel %vm190, %v3593, %v3595
  %v3609 = vsel %vm190, %v3597, %v3599
  %v3610 = vsel %vm190, %v3601, %v3603
  %v3611 = vsel %vm190, %v3605, %v3607
  %v3620 = vmax.f32 %v3584, %v3608
  %v3621 = vmax.f32 %v3585, %v3595
  %v3622 = vmax.f32 %v3586, %v3609
  %v3623 = vmax.f32 %v3587, %v3599
  %v3624 = vmax.f32 %v3588, %v3610
  %v3625 = vmax.f32 %v3589, %v3603
  %v3626 = vmax.f32 %v3590, %v3611
  %v3627 = vmax.f32 %v3591, %v3607
  %v3628 = vld [vmem:[%s6] sm:$0xff]
  %v3629 = vld [vmem:[%s6 + $0x8] sm:$0xff]
  %v3630 = vld [vmem:[%s6 + $0x10] sm:$0xff]
  %v3631 = vld [vmem:[%s6 + $0x18] sm:$0xff]
  %v3632 = vld [vmem:[%s6 + $0x20] sm:$0xff]
  %v3633 = vld [vmem:[%s6 + $0x28] sm:$0xff]
  %v3634 = vld [vmem:[%s6 + $0x30] sm:$0xff]
  %v3635 = vld [vmem:[%s6 + $0x38] sm:$0xff]
  %v3636 = vld [vmem:[%s6 + $0x40] sm:$0xff]
  %v3637 = vld [vmem:[%s6 + $0x48] sm:$0xff]
  %v3638 = vld [vmem:[%s6 + $0x50] sm:$0xff]
  %v3639 = vld [vmem:[%s6 + $0x58] sm:$0xff]
  %v3640 = vld [vmem:[%s6 + $0x60] sm:$0xff]
  %v3641 = vld [vmem:[%s6 + $0x68] sm:$0xff]
  %v3642 = vld [vmem:[%s6 + $0x70] sm:$0xff]
  %v3643 = vld [vmem:[%s6 + $0x78] sm:$0xff]
  %v3644 = vld [vmem:[%s6 + $0x80] sm:$0xff]
  %v3645 = vld [vmem:[%s6 + $0x88] sm:$0xff]
  %v3646 = vld [vmem:[%s6 + $0x90] sm:$0xff]
  %v3647 = vld [vmem:[%s6 + $0x98] sm:$0xff]
  %v3648 = vld [vmem:[%s6 + $0xa0] sm:$0x3]
  %v3650 = vsel %vm881, %v3621, 0
  %v3653 = vsel %vm881, %v3623, 0
  %v3656 = vsel %vm881, %v3625, 0
  %v3659 = vsel %vm881, %v3627, 0
  %v3662 = vsel %vm894, %v3648, 0
  %3664 = vmatprep.subr.mxu0 0.0
  %3665 = vmatpush1.msra.mxu0 %v3643
  %3666 = vmatprep.subr.mxu0 0.0
  %3667 = vmatpush1.msra.mxu0 %v3642
  %3668 = vmatprep.subr.mxu0 0.0
  %3669 = vmatpush1.msra.mxu0 %v3641
  %3670 = vmatprep.subr.mxu0 0.0
  %3671 = vmatpush1.msra.mxu0 %v3640
  %3672 = vmatprep.subr.mxu0 0.0
  %3673 = vmatpush1.msra.mxu0 %v3639
  %3674 = vmatprep.subr.mxu0 0.0
  %3675 = vmatpush1.msra.mxu0 %v3638
  %3676 = vmatprep.subr.mxu0 0.0
  %3677 = vmatpush1.msra.mxu0 %v3637
  %3678 = vmatprep.subr.mxu0 0.0
  %3679 = vmatpush1.msra.mxu0 %v3636
  %3680 = vmatprep.subr.mxu0 0.0
  %3681 = vmatpush1.msra.mxu0 %v3635
  %3682 = vmatprep.subr.mxu0 0.0
  %3683 = vmatpush1.msra.mxu0 %v3634
  %3684 = vmatprep.subr.mxu0 0.0
  %3685 = vmatpush1.msra.mxu0 %v3633
  %3686 = vmatprep.subr.mxu0 0.0
  %3687 = vmatpush1.msra.mxu0 %v3632
  %3688 = vmatprep.subr.mxu0 0.0
  %3689 = vmatpush1.msra.mxu0 %v3631
  %3690 = vmatprep.subr.mxu0 0.0
  %3691 = vmatpush1.msra.mxu0 %v3630
  %3692 = vmatprep.subr.mxu0 0.0
  %3693 = vmatpush1.msra.mxu0 %v3629
  %3694 = vmatprep.subr.mxu0 0.0
  %3695 = vmatpush1.msra.mxu0 %v3628
  %3696 = vmatprep.subr.mxu0 0.0
  %3697 = vmatpush2.msra.mxu0 0.0
  %3698 = vmatprep.subr.mxu0 0.0
  %3699 = vmatpush2.msra.mxu0 0.0
  %3700 = vmatprep.subr.mxu0 0.0
  %3701 = vmatpush2.msra.mxu0 0.0
  %3702 = vmatprep.subr.mxu0 0.0
  %3703 = vmatpush2.msra.mxu0 0.0
  %3704 = vmatprep.subr.mxu0 0.0
  %3705 = vmatpush2.msra.mxu0 0.0
  %3706 = vmatprep.subr.mxu0 0.0
  %3707 = vmatpush2.msra.mxu0 0.0
  %3708 = vmatprep.subr.mxu0 0.0
  %3709 = vmatpush2.msra.mxu0 0.0
  %3710 = vmatprep.subr.mxu0 0.0
  %3711 = vmatpush2.msra.mxu0 0.0
  %3712 = vmatprep.subr.mxu0 0.0
  %3713 = vmatpush2.msra.mxu0 0.0
  %3714 = vmatprep.subr.mxu0 0.0
  %3715 = vmatpush2.msra.mxu0 0.0
  %3716 = vmatprep.subr.mxu0 0.0
  %3717 = vmatpush2.msra.mxu0 0.0
  %3718 = vmatprep.subr.mxu0 0.0
  %3719 = vmatpush2.msra.mxu0 %v3662
  %3720 = vmatprep.subr.mxu0 0.0
  %3721 = vmatpush2.msra.mxu0 %v3647
  %3722 = vmatprep.subr.mxu0 0.0
  %3723 = vmatpush2.msra.mxu0 %v3646
  %3724 = vmatprep.subr.mxu0 0.0
  %3725 = vmatpush2.msra.mxu0 %v3645
  %3726 = vmatprep.subr.mxu0 0.0
  %3727 = vmatpush2.msra.mxu0 %v3644
  %3728 = vmatprep.mubr.f32.mxu0 %v3650
  %3729 = vmatmul.mubr.f32.gmra.mxu0 %v3620
  %v3730 = vpop.f32.mrf.mxu0
  %v3731 = vadd.f32 0.0, %v3730
  %v3732 = vpop.f32.mrf.mxu0
  %3733 = vmatprep.mubr.f32.mxu0 %v3653
  %3734 = vmatmul.mubr.f32.gmra.mxu0 %v3622
  %v3735 = vpop.f32.mrf.mxu0
  %v3736 = vadd.f32 0.0, %v3735
  %v3737 = vpop.f32.mrf.mxu0
  %3738 = vmatprep.mubr.f32.mxu0 %v3656
  %3739 = vmatmul.mubr.f32.gmra.mxu0 %v3624
  %v3740 = vpop.f32.mrf.mxu0
  %v3741 = vadd.f32 0.0, %v3740
  %v3742 = vpop.f32.mrf.mxu0
  %3743 = vmatprep.mubr.f32.mxu0 %v3659
  %3744 = vmatmul.mubr.f32.gmra.mxu0 %v3626
  %v3745 = vpop.f32.mrf.mxu0
  %v3746 = vadd.f32 0.0, %v3745
  %v3747 = vpop.f32.mrf.mxu0
  %3748 = vdwg.mxu0
  %3753 = vrot.lane.b32.xlu0 %v3731, 127
  %v3754 = vpop.permute.xlu0 %3753
  %3755 = vrot.lane.b32.xlu0 %v3736, 127
  %v3756 = vpop.permute.xlu0 %3755
  %3757 = vrot.lane.b32.xlu0 %v3741, 127
  %v3758 = vpop.permute.xlu0 %3757
  %3759 = vrot.lane.b32.xlu0 %v3746, 127
  %v3760 = vpop.permute.xlu0 %3759
  %3765 = vrot.lane.b32.xlu0 %v3731, 126
  %v3766 = vpop.permute.xlu0 %3765
  %3767 = vrot.lane.b32.xlu0 %v3736, 126
  %v3768 = vpop.permute.xlu0 %3767
  %3769 = vrot.lane.b32.xlu0 %v3741, 126
  %v3770 = vpop.permute.xlu0 %3769
  %3771 = vrot.lane.b32.xlu0 %v3746, 126
  %v3772 = vpop.permute.xlu0 %3771
  %v3777 = vld [vmem:[%s7] sm:$0xff]
  %v3778 = vld [vmem:[%s7 + $0x8] sm:$0xff]
  %v3779 = vld [vmem:[%s7 + $0x10] sm:$0xff]
  %v3780 = vld [vmem:[%s7 + $0x18] sm:$0xff]
  %v3781 = vld [vmem:[%s7 + $0x20] sm:$0xff]
  %v3782 = vld [vmem:[%s7 + $0x28] sm:$0xff]
  %v3783 = vld [vmem:[%s7 + $0x30] sm:$0xff]
  %v3784 = vld [vmem:[%s7 + $0x38] sm:$0xff]
  %v3785 = vld [vmem:[%s8] sm:$0xff]
  %v3786 = vld [vmem:[%s8 + $0x8] sm:$0xff]
  %v3787 = vld [vmem:[%s8 + $0x10] sm:$0xff]
  %v3788 = vld [vmem:[%s8 + $0x18] sm:$0xff]
  %v3789 = vld [vmem:[%s8 + $0x20] sm:$0xff]
  %v3790 = vld [vmem:[%s8 + $0x28] sm:$0xff]
  %v3791 = vld [vmem:[%s8 + $0x30] sm:$0xff]
  %v3792 = vld [vmem:[%s8 + $0x38] sm:$0xff]
  %3794 = vset.pattern.permute.xlu0 0
  %3795 = vperm.xlu0 %3794, %v3785
  %v3796 = vpop.permute.xlu0 %3795
  %3799 = vset.pattern.permute.xlu0 0
  %3800 = vperm.xlu0 %3799, %v3786
  %v3801 = vpop.permute.xlu0 %3800
  %3804 = vset.pattern.permute.xlu0 0
  %3805 = vperm.xlu0 %3804, %v3787
  %v3806 = vpop.permute.xlu0 %3805
  %3809 = vset.pattern.permute.xlu0 0
  %3810 = vperm.xlu0 %3809, %v3788
  %v3811 = vpop.permute.xlu0 %3810
  %3814 = vset.pattern.permute.xlu0 0
  %3815 = vperm.xlu0 %3814, %v3789
  %v3816 = vpop.permute.xlu0 %3815
  %3819 = vset.pattern.permute.xlu0 0
  %3820 = vperm.xlu0 %3819, %v3790
  %v3821 = vpop.permute.xlu0 %3820
  %3824 = vset.pattern.permute.xlu0 0
  %3825 = vperm.xlu0 %3824, %v3791
  %v3826 = vpop.permute.xlu0 %3825
  %3829 = vset.pattern.permute.xlu0 0
  %3830 = vperm.xlu0 %3829, %v3792
  %v3831 = vpop.permute.xlu0 %3830
  %v3834 = vsel %vm1067, %v3777, 0
  %v3837 = vsel %vm1067, %v3778, 0
  %v3840 = vsel %vm1067, %v3779, 0
  %v3843 = vsel %vm1067, %v3780, 0
  %v3846 = vsel %vm1067, %v3781, 0
  %v3849 = vsel %vm1067, %v3782, 0
  %v3852 = vsel %vm1067, %v3783, 0
  %v3855 = vsel %vm1067, %v3784, 0
  %3857 = vmatprep.subr.mxu0 0.0
  %3858 = vmatpush1.msra.mxu0 0.0
  %3859 = vmatprep.subr.mxu0 0.0
  %3860 = vmatpush1.msra.mxu0 0.0
  %3861 = vmatprep.subr.mxu0 0.0
  %3862 = vmatpush1.msra.mxu0 0.0
  %3863 = vmatprep.subr.mxu0 0.0
  %3864 = vmatpush1.msra.mxu0 0.0
  %3865 = vmatprep.subr.mxu0 0.0
  %3866 = vmatpush1.msra.mxu0 %v3772
  %3867 = vmatprep.subr.mxu0 0.0
  %3868 = vmatpush1.msra.mxu0 %v3770
  %3869 = vmatprep.subr.mxu0 0.0
  %3870 = vmatpush1.msra.mxu0 %v3768
  %3871 = vmatprep.subr.mxu0 0.0
  %3872 = vmatpush1.msra.mxu0 %v3766
  %3873 = vmatprep.subr.mxu0 0.0
  %3874 = vmatpush1.msra.mxu0 %v3760
  %3875 = vmatprep.subr.mxu0 0.0
  %3876 = vmatpush1.msra.mxu0 %v3758
  %3877 = vmatprep.subr.mxu0 0.0
  %3878 = vmatpush1.msra.mxu0 %v3756
  %3879 = vmatprep.subr.mxu0 0.0
  %3880 = vmatpush1.msra.mxu0 %v3754
  %3881 = vmatprep.subr.mxu0 0.0
  %3882 = vmatpush1.msra.mxu0 %v3746
  %3883 = vmatprep.subr.mxu0 0.0
  %3884 = vmatpush1.msra.mxu0 %v3741
  %3885 = vmatprep.subr.mxu0 0.0
  %3886 = vmatpush1.msra.mxu0 %v3736
  %3887 = vmatprep.subr.mxu0 0.0
  %3888 = vmatpush1.msra.mxu0 %v3731
  %3889 = vmatprep.subr.mxu0 0.0
  %3890 = vmatpush2.msra.mxu0 0.0
  %3891 = vmatprep.subr.mxu0 0.0
  %3892 = vmatpush2.msra.mxu0 0.0
  %3893 = vmatprep.subr.mxu0 0.0
  %3894 = vmatpush2.msra.mxu0 0.0
  %3895 = vmatprep.subr.mxu0 0.0
  %3896 = vmatpush2.msra.mxu0 0.0
  %3897 = vmatprep.subr.mxu0 0.0
  %3898 = vmatpush2.msra.mxu0 0.0
  %3899 = vmatprep.subr.mxu0 0.0
  %3900 = vmatpush2.msra.mxu0 0.0
  %3901 = vmatprep.subr.mxu0 0.0
  %3902 = vmatpush2.msra.mxu0 0.0
  %3903 = vmatprep.subr.mxu0 0.0
  %3904 = vmatpush2.msra.mxu0 0.0
  %3905 = vmatprep.subr.mxu0 0.0
  %3906 = vmatpush2.msra.mxu0 0.0
  %3907 = vmatprep.subr.mxu0 0.0
  %3908 = vmatpush2.msra.mxu0 0.0
  %3909 = vmatprep.subr.mxu0 0.0
  %3910 = vmatpush2.msra.mxu0 0.0
  %3911 = vmatprep.subr.mxu0 0.0
  %3912 = vmatpush2.msra.mxu0 0.0
  %3913 = vmatprep.subr.mxu0 0.0
  %3914 = vmatpush2.msra.mxu0 0.0
  %3915 = vmatprep.subr.mxu0 0.0
  %3916 = vmatpush2.msra.mxu0 0.0
  %3917 = vmatprep.subr.mxu0 0.0
  %3918 = vmatpush2.msra.mxu0 0.0
  %3919 = vmatprep.subr.mxu0 0.0
  %3920 = vmatpush2.msra.mxu0 0.0
  %3921 = vmatprep.mubr.f32.mxu0 0.0
  %3922 = vmatmul.mubr.f32.gmra.mxu0 %v3834
  %v3923 = vpop.f32.mrf.mxu0
  %v3924 = vadd.f32 %v3796, %v3923
  %v3925 = vpop.f32.mrf.mxu0
  %3926 = vmatprep.mubr.f32.mxu0 0.0
  %3927 = vmatmul.mubr.f32.gmra.mxu0 %v3837
  %v3928 = vpop.f32.mrf.mxu0
  %v3929 = vadd.f32 %v3801, %v3928
  %v3930 = vpop.f32.mrf.mxu0
  %3931 = vmatprep.mubr.f32.mxu0 0.0
  %3932 = vmatmul.mubr.f32.gmra.mxu0 %v3840
  %v3933 = vpop.f32.mrf.mxu0
  %v3934 = vadd.f32 %v3806, %v3933
  %v3935 = vpop.f32.mrf.mxu0
  %3936 = vmatprep.mubr.f32.mxu0 0.0
  %3937 = vmatmul.mubr.f32.gmra.mxu0 %v3843
  %v3938 = vpop.f32.mrf.mxu0
  %v3939 = vadd.f32 %v3811, %v3938
  %v3940 = vpop.f32.mrf.mxu0
  %3941 = vmatprep.mubr.f32.mxu0 0.0
  %3942 = vmatmul.mubr.f32.gmra.mxu0 %v3846
  %v3943 = vpop.f32.mrf.mxu0
  %v3944 = vadd.f32 %v3816, %v3943
  %v3945 = vpop.f32.mrf.mxu0
  %3946 = vmatprep.mubr.f32.mxu0 0.0
  %3947 = vmatmul.mubr.f32.gmra.mxu0 %v3849
  %v3948 = vpop.f32.mrf.mxu0
  %v3949 = vadd.f32 %v3821, %v3948
  %v3950 = vpop.f32.mrf.mxu0
  %3951 = vmatprep.mubr.f32.mxu0 0.0
  %3952 = vmatmul.mubr.f32.gmra.mxu0 %v3852
  %v3953 = vpop.f32.mrf.mxu0
  %v3954 = vadd.f32 %v3826, %v3953
  %v3955 = vpop.f32.mrf.mxu0
  %3956 = vmatprep.mubr.f32.mxu0 0.0
  %3957 = vmatmul.mubr.f32.gmra.mxu0 %v3855
  %v3958 = vpop.f32.mrf.mxu0
  %v3959 = vadd.f32 %v3831, %v3958
  %v3960 = vpop.f32.mrf.mxu0
  %3961 = vdwg.mxu0
  %v3962 = vmax.f32 %v3924, 0.0
  %v3963 = vmax.f32 %v3929, 0.0
  %v3964 = vmax.f32 %v3934, 0.0
  %v3965 = vmax.f32 %v3939, 0.0
  %v3966 = vmax.f32 %v3944, 0.0
  %v3967 = vmax.f32 %v3949, 0.0
  %v3968 = vmax.f32 %v3954, 0.0
  %v3969 = vmax.f32 %v3959, 0.0
  %3978 = vrot.lane.b32.xlu0 %v3962, 127
  %v3979 = vpop.permute.xlu0 %3978
  %3980 = vrot.lane.b32.xlu0 %v3963, 127
  %v3981 = vpop.permute.xlu0 %3980
  %3982 = vrot.lane.b32.xlu0 %v3964, 127
  %v3983 = vpop.permute.xlu0 %3982
  %3984 = vrot.lane.b32.xlu0 %v3965, 127
  %v3985 = vpop.permute.xlu0 %3984
  %3986 = vrot.lane.b32.xlu0 %v3966, 127
  %v3987 = vpop.permute.xlu0 %3986
  %3988 = vrot.lane.b32.xlu0 %v3967, 127
  %v3989 = vpop.permute.xlu0 %3988
  %3990 = vrot.lane.b32.xlu0 %v3968, 127
  %v3991 = vpop.permute.xlu0 %3990
  %3992 = vrot.lane.b32.xlu0 %v3969, 127
  %v3993 = vpop.permute.xlu0 %3992
  %v4002 = vmax.f32 %v3962, %v3979
  %v4003 = vmax.f32 %v3963, %v3981
  %v4004 = vmax.f32 %v3964, %v3983
  %v4005 = vmax.f32 %v3965, %v3985
  %v4006 = vmax.f32 %v3966, %v3987
  %v4007 = vmax.f32 %v3967, %v3989
  %v4008 = vmax.f32 %v3968, %v3991
  %v4009 = vmax.f32 %v3969, %v3993
  %4010 = vrot.lane.b32.xlu0 %v3962, 126
  %v4011 = vpop.permute.xlu0 %4010
  %4012 = vrot.lane.b32.xlu0 %v3963, 126
  %v4013 = vpop.permute.xlu0 %4012
  %4014 = vrot.lane.b32.xlu0 %v3964, 126
  %v4015 = vpop.permute.xlu0 %4014
  %4016 = vrot.lane.b32.xlu0 %v3965, 126
  %v4017 = vpop.permute.xlu0 %4016
  %4018 = vrot.lane.b32.xlu0 %v3966, 126
  %v4019 = vpop.permute.xlu0 %4018
  %4020 = vrot.lane.b32.xlu0 %v3967, 126
  %v4021 = vpop.permute.xlu0 %4020
  %4022 = vrot.lane.b32.xlu0 %v3968, 126
  %v4023 = vpop.permute.xlu0 %4022
  %4024 = vrot.lane.b32.xlu0 %v3969, 126
  %v4025 = vpop.permute.xlu0 %4024
  %v4034 = vmax.f32 %v4002, %v4011
  %v4035 = vmax.f32 %v4003, %v4013
  %v4036 = vmax.f32 %v4004, %v4015
  %v4037 = vmax.f32 %v4005, %v4017
  %v4038 = vmax.f32 %v4006, %v4019
  %v4039 = vmax.f32 %v4007, %v4021
  %v4040 = vmax.f32 %v4008, %v4023
  %v4041 = vmax.f32 %v4009, %v4025
  %v4042 = vld [vmem:[%s9] sm:$0xff]
  %v4043 = vld [vmem:[%s9 + $0x8] sm:$0xff]
  %v4044 = vld [vmem:[%s9 + $0x10] sm:$0xff]
  %v4045 = vld [vmem:[%s9 + $0x18] sm:$0xff]
  %v4046 = vld [vmem:[%s9 + $0x20] sm:$0xff]
  %v4047 = vld [vmem:[%s9 + $0x28] sm:$0xff]
  %v4048 = vld [vmem:[%s9 + $0x30] sm:$0x3]
  %v4050 = vsel %vm1284, %v4034, 0
  %v4053 = vsel %vm1284, %v4035, 0
  %v4056 = vsel %vm1284, %v4036, 0
  %v4059 = vsel %vm1284, %v4037, 0
  %v4062 = vsel %vm1284, %v4038, 0
  %v4065 = vsel %vm1284, %v4039, 0
  %v4068 = vsel %vm1284, %v4040, 0
  %v4071 = vsel %vm1284, %v4041, 0
  %v4074 = vsel %vm894, %v4048, 0
  %4076 = vmatprep.subr.mxu0 0.0
  %4077 = vmatpush1.msra.mxu0 0.0
  %4078 = vmatprep.subr.mxu0 0.0
  %4079 = vmatpush1.msra.mxu0 0.0
  %4080 = vmatprep.subr.mxu0 0.0
  %4081 = vmatpush1.msra.mxu0 0.0
  %4082 = vmatprep.subr.mxu0 0.0
  %4083 = vmatpush1.msra.mxu0 0.0
  %4084 = vmatprep.subr.mxu0 0.0
  %4085 = vmatpush1.msra.mxu0 0.0
  %4086 = vmatprep.subr.mxu0 0.0
  %4087 = vmatpush1.msra.mxu0 0.0
  %4088 = vmatprep.subr.mxu0 0.0
  %4089 = vmatpush1.msra.mxu0 0.0
  %4090 = vmatprep.subr.mxu0 0.0
  %4091 = vmatpush1.msra.mxu0 0.0
  %4092 = vmatprep.subr.mxu0 0.0
  %4093 = vmatpush1.msra.mxu0 0.0
  %4094 = vmatprep.subr.mxu0 0.0
  %4095 = vmatpush1.msra.mxu0 %v4074
  %4096 = vmatprep.subr.mxu0 0.0
  %4097 = vmatpush1.msra.mxu0 %v4047
  %4098 = vmatprep.subr.mxu0 0.0
  %4099 = vmatpush1.msra.mxu0 %v4046
  %4100 = vmatprep.subr.mxu0 0.0
  %4101 = vmatpush1.msra.mxu0 %v4045
  %4102 = vmatprep.subr.mxu0 0.0
  %4103 = vmatpush1.msra.mxu0 %v4044
  %4104 = vmatprep.subr.mxu0 0.0
  %4105 = vmatpush1.msra.mxu0 %v4043
  %4106 = vmatprep.subr.mxu0 0.0
  %4107 = vmatpush1.msra.mxu0 %v4042
  %4108 = vmatprep.subr.mxu0 0.0
  %4109 = vmatpush2.msra.mxu0 0.0
  %4110 = vmatprep.subr.mxu0 0.0
  %4111 = vmatpush2.msra.mxu0 0.0
  %4112 = vmatprep.subr.mxu0 0.0
  %4113 = vmatpush2.msra.mxu0 0.0
  %4114 = vmatprep.subr.mxu0 0.0
  %4115 = vmatpush2.msra.mxu0 0.0
  %4116 = vmatprep.subr.mxu0 0.0
  %4117 = vmatpush2.msra.mxu0 0.0
  %4118 = vmatprep.subr.mxu0 0.0
  %4119 = vmatpush2.msra.mxu0 0.0
  %4120 = vmatprep.subr.mxu0 0.0
  %4121 = vmatpush2.msra.mxu0 0.0
  %4122 = vmatprep.subr.mxu0 0.0
  %4123 = vmatpush2.msra.mxu0 0.0
  %4124 = vmatprep.subr.mxu0 0.0
  %4125 = vmatpush2.msra.mxu0 0.0
  %4126 = vmatprep.subr.mxu0 0.0
  %4127 = vmatpush2.msra.mxu0 0.0
  %4128 = vmatprep.subr.mxu0 0.0
  %4129 = vmatpush2.msra.mxu0 0.0
  %4130 = vmatprep.subr.mxu0 0.0
  %4131 = vmatpush2.msra.mxu0 0.0
  %4132 = vmatprep.subr.mxu0 0.0
  %4133 = vmatpush2.msra.mxu0 0.0
  %4134 = vmatprep.subr.mxu0 0.0
  %4135 = vmatpush2.msra.mxu0 0.0
  %4136 = vmatprep.subr.mxu0 0.0
  %4137 = vmatpush2.msra.mxu0 0.0
  %4138 = vmatprep.subr.mxu0 0.0
  %4139 = vmatpush2.msra.mxu0 0.0
  %4140 = vmatprep.mubr.f32.mxu0 0.0
  %4141 = vmatmul.mubr.f32.gmra.mxu0 %v4050
  %v4142 = vpop.f32.mrf.mxu0
  %v4143 = vadd.f32 0.0, %v4142
  %v4144 = vpop.f32.mrf.mxu0
  %4145 = vmatprep.mubr.f32.mxu0 0.0
  %4146 = vmatmul.mubr.f32.gmra.mxu0 %v4053
  %v4147 = vpop.f32.mrf.mxu0
  %v4148 = vadd.f32 0.0, %v4147
  %v4149 = vpop.f32.mrf.mxu0
  %4150 = vmatprep.mubr.f32.mxu0 0.0
  %4151 = vmatmul.mubr.f32.gmra.mxu0 %v4056
  %v4152 = vpop.f32.mrf.mxu0
  %v4153 = vadd.f32 0.0, %v4152
  %v4154 = vpop.f32.mrf.mxu0
  %4155 = vmatprep.mubr.f32.mxu0 0.0
  %4156 = vmatmul.mubr.f32.gmra.mxu0 %v4059
  %v4157 = vpop.f32.mrf.mxu0
  %v4158 = vadd.f32 0.0, %v4157
  %v4159 = vpop.f32.mrf.mxu0
  %4160 = vmatprep.mubr.f32.mxu0 0.0
  %4161 = vmatmul.mubr.f32.gmra.mxu0 %v4062
  %v4162 = vpop.f32.mrf.mxu0
  %v4163 = vadd.f32 0.0, %v4162
  %v4164 = vpop.f32.mrf.mxu0
  %4165 = vmatprep.mubr.f32.mxu0 0.0
  %4166 = vmatmul.mubr.f32.gmra.mxu0 %v4065
  %v4167 = vpop.f32.mrf.mxu0
  %v4168 = vadd.f32 0.0, %v4167
  %v4169 = vpop.f32.mrf.mxu0
  %4170 = vmatprep.mubr.f32.mxu0 0.0
  %4171 = vmatmul.mubr.f32.gmra.mxu0 %v4068
  %v4172 = vpop.f32.mrf.mxu0
  %v4173 = vadd.f32 0.0, %v4172
  %v4174 = vpop.f32.mrf.mxu0
  %4175 = vmatprep.mubr.f32.mxu0 0.0
  %4176 = vmatmul.mubr.f32.gmra.mxu0 %v4071
  %v4177 = vpop.f32.mrf.mxu0
  %v4178 = vadd.f32 0.0, %v4177
  %v4179 = vpop.f32.mrf.mxu0
  %4180 = vdwg.mxu0
  %s4181 = scalar_lea.vmem %s10, 128
  %4182 = vst.msk [vmem:[%s4181] sm:$0xff] %vm1417, %v4143
  %4183 = vst.msk [vmem:[%s4181 + $0x8] sm:$0xff] %vm1417, %v4148
  %4184 = vst.msk [vmem:[%s4181 + $0x10] sm:$0xff] %vm1417, %v4153
  %4185 = vst.msk [vmem:[%s4181 + $0x18] sm:$0xff] %vm1417, %v4158
  %4186 = vst.msk [vmem:[%s4181 + $0x20] sm:$0xff] %vm1417, %v4163
  %4187 = vst.msk [vmem:[%s4181 + $0x28] sm:$0xff] %vm1417, %v4168
  %4188 = vst.msk [vmem:[%s4181 + $0x30] sm:$0xff] %vm1417, %v4173
  %4189 = vst.msk [vmem:[%s4181 + $0x38] sm:$0xff] %vm1417, %v4178
  %s4190 = scalar_lea.vmem %s0, 3
  %v4191 = vld [vmem:[%s4190] ss:$8 sm:$0xf]
  %v4192 = vld [vmem:[%s1] sm:$0xff]
  %v4193 = vld [vmem:[%s1 + $0x8] sm:$0xff]
  %4195 = vset.pattern.permute.xlu0 0
  %4196 = vperm.xlu0 %4195, %v4192
  %v4197 = vpop.permute.xlu0 %4196
  %4200 = vset.pattern.permute.xlu0 0
  %4201 = vperm.xlu0 %4200, %v4193
  %v4202 = vpop.permute.xlu0 %4201
  %v4205 = vlaneseq
  %v4206 = vshrl.u32 %v4205, 7
  %v4207 = vsub.s32 0, %v4206
  %v4208 = vrot.slane %v4191, %v4207
  %v4209 = vlaneseq
  %v4210 = vshrl.u32 %v4209, 7
  %v4211 = vsub.s32 1, %v4210
  %v4212 = vrot.slane %v4191, %v4211
  %v4213 = vlaneseq
  %v4214 = vshrl.u32 %v4213, 7
  %v4215 = vsub.s32 2, %v4214
  %v4216 = vrot.slane %v4191, %v4215
  %v4217 = vlaneseq
  %v4218 = vshrl.u32 %v4217, 7
  %v4219 = vsub.s32 3, %v4218
  %v4220 = vrot.slane %v4191, %v4219
  %v4225 = vmul.f32 %v4197, %v4208
  %v4226 = vmul.f32 %v4197, %v4212
  %v4227 = vmul.f32 %v4197, %v4216
  %v4228 = vmul.f32 %v4197, %v4220
  %v4229 = vmul.f32 %v4202, %v4208
  %v4230 = vmul.f32 %v4202, %v4212
  %v4231 = vmul.f32 %v4202, %v4216
  %v4232 = vmul.f32 %v4202, %v4220
  %v4233 = vld [vmem:[%s77] sm:$0xff]
  %v4234 = vld [vmem:[%s77 + $0x8] sm:$0xff]
  %4236 = vset.pattern.permute.xlu0 0
  %4237 = vperm.xlu0 %4236, %v4233
  %v4238 = vpop.permute.xlu0 %4237
  %4241 = vset.pattern.permute.xlu0 0
  %4242 = vperm.xlu0 %4241, %v4234
  %v4243 = vpop.permute.xlu0 %4242
  %v4245 = vmul.f32 %v4238, %v4208
  %v4246 = vmul.f32 %v4238, %v4212
  %v4247 = vmul.f32 %v4238, %v4216
  %v4248 = vmul.f32 %v4238, %v4220
  %v4249 = vmul.f32 %v4243, %v4208
  %v4250 = vmul.f32 %v4243, %v4212
  %v4251 = vmul.f32 %v4243, %v4216
  %v4252 = vmul.f32 %v4243, %v4220
  %4261 = vrot.lane.b32.xlu0 %v4245, 127
  %v4262 = vpop.permute.xlu0 %4261
  %4263 = vrot.lane.b32.xlu0 %v4246, 127
  %v4264 = vpop.permute.xlu0 %4263
  %4265 = vrot.lane.b32.xlu0 %v4247, 127
  %v4266 = vpop.permute.xlu0 %4265
  %4267 = vrot.lane.b32.xlu0 %v4248, 127
  %v4268 = vpop.permute.xlu0 %4267
  %4269 = vrot.lane.b32.xlu0 %v4249, 127
  %v4270 = vpop.permute.xlu0 %4269
  %4271 = vrot.lane.b32.xlu0 %v4250, 127
  %v4272 = vpop.permute.xlu0 %4271
  %4273 = vrot.lane.b32.xlu0 %v4251, 127
  %v4274 = vpop.permute.xlu0 %4273
  %4275 = vrot.lane.b32.xlu0 %v4252, 127
  %v4276 = vpop.permute.xlu0 %4275
  %v4277 = vsel %vm122, %v4262, %v4264
  %v4278 = vsel %vm122, %v4264, %v4266
  %v4279 = vsel %vm122, %v4266, %v4268
  %v4280 = vsel %vm122, %v4270, %v4272
  %v4281 = vsel %vm122, %v4272, %v4274
  %v4282 = vsel %vm122, %v4274, %v4276
  %v4291 = vadd.f32 %v4225, %v4277
  %v4292 = vadd.f32 %v4226, %v4278
  %v4293 = vadd.f32 %v4227, %v4279
  %v4294 = vadd.f32 %v4228, %v4268
  %v4295 = vadd.f32 %v4229, %v4280
  %v4296 = vadd.f32 %v4230, %v4281
  %v4297 = vadd.f32 %v4231, %v4282
  %v4298 = vadd.f32 %v4232, %v4276
  %v4299 = vld [vmem:[%s145] sm:$0xff]
  %v4300 = vld [vmem:[%s145 + $0x8] sm:$0xff]
  %4302 = vset.pattern.permute.xlu0 0
  %4303 = vperm.xlu0 %4302, %v4299
  %v4304 = vpop.permute.xlu0 %4303
  %4307 = vset.pattern.permute.xlu0 0
  %4308 = vperm.xlu0 %4307, %v4300
  %v4309 = vpop.permute.xlu0 %4308
  %v4311 = vmul.f32 %v4304, %v4208
  %v4312 = vmul.f32 %v4304, %v4212
  %v4313 = vmul.f32 %v4304, %v4216
  %v4314 = vmul.f32 %v4304, %v4220
  %v4315 = vmul.f32 %v4309, %v4208
  %v4316 = vmul.f32 %v4309, %v4212
  %v4317 = vmul.f32 %v4309, %v4216
  %v4318 = vmul.f32 %v4309, %v4220
  %4327 = vrot.lane.b32.xlu0 %v4311, 126
  %v4328 = vpop.permute.xlu0 %4327
  %4329 = vrot.lane.b32.xlu0 %v4312, 126
  %v4330 = vpop.permute.xlu0 %4329
  %4331 = vrot.lane.b32.xlu0 %v4313, 126
  %v4332 = vpop.permute.xlu0 %4331
  %4333 = vrot.lane.b32.xlu0 %v4314, 126
  %v4334 = vpop.permute.xlu0 %4333
  %4335 = vrot.lane.b32.xlu0 %v4315, 126
  %v4336 = vpop.permute.xlu0 %4335
  %4337 = vrot.lane.b32.xlu0 %v4316, 126
  %v4338 = vpop.permute.xlu0 %4337
  %4339 = vrot.lane.b32.xlu0 %v4317, 126
  %v4340 = vpop.permute.xlu0 %4339
  %4341 = vrot.lane.b32.xlu0 %v4318, 126
  %v4342 = vpop.permute.xlu0 %4341
  %v4343 = vsel %vm190, %v4328, %v4330
  %v4344 = vsel %vm190, %v4330, %v4332
  %v4345 = vsel %vm190, %v4332, %v4334
  %v4346 = vsel %vm190, %v4336, %v4338
  %v4347 = vsel %vm190, %v4338, %v4340
  %v4348 = vsel %vm190, %v4340, %v4342
  %v4357 = vadd.f32 %v4291, %v4343
  %v4358 = vadd.f32 %v4292, %v4344
  %v4359 = vadd.f32 %v4293, %v4345
  %v4360 = vadd.f32 %v4294, %v4334
  %v4361 = vadd.f32 %v4295, %v4346
  %v4362 = vadd.f32 %v4296, %v4347
  %v4363 = vadd.f32 %v4297, %v4348
  %v4364 = vadd.f32 %v4298, %v4342
  %v4365 = vld [vmem:[%s2] sm:$0xff]
  %v4366 = vld [vmem:[%s2 + $0x8] sm:$0xff]
  %4368 = vset.pattern.permute.xlu0 0
  %4369 = vperm.xlu0 %4368, %v4365
  %v4370 = vpop.permute.xlu0 %4369
  %4373 = vset.pattern.permute.xlu0 0
  %4374 = vperm.xlu0 %4373, %v4366
  %v4375 = vpop.permute.xlu0 %4374
  %v4377 = vadd.f32 %v4357, %v4370
  %v4378 = vadd.f32 %v4358, %v4370
  %v4379 = vadd.f32 %v4359, %v4370
  %v4380 = vadd.f32 %v4360, %v4370
  %v4381 = vadd.f32 %v4361, %v4375
  %v4382 = vadd.f32 %v4362, %v4375
  %v4383 = vadd.f32 %v4363, %v4375
  %v4384 = vadd.f32 %v4364, %v4375
  %v4385 = vmax.f32 %v4377, 0.0
  %v4386 = vmax.f32 %v4378, 0.0
  %v4387 = vmax.f32 %v4379, 0.0
  %v4388 = vmax.f32 %v4380, 0.0
  %v4389 = vmax.f32 %v4381, 0.0
  %v4390 = vmax.f32 %v4382, 0.0
  %v4391 = vmax.f32 %v4383, 0.0
  %v4392 = vmax.f32 %v4384, 0.0
  %4401 = vrot.lane.b32.xlu0 %v4385, 127
  %v4402 = vpop.permute.xlu0 %4401
  %4403 = vrot.lane.b32.xlu0 %v4386, 127
  %v4404 = vpop.permute.xlu0 %4403
  %4405 = vrot.lane.b32.xlu0 %v4387, 127
  %v4406 = vpop.permute.xlu0 %4405
  %4407 = vrot.lane.b32.xlu0 %v4388, 127
  %v4408 = vpop.permute.xlu0 %4407
  %4409 = vrot.lane.b32.xlu0 %v4389, 127
  %v4410 = vpop.permute.xlu0 %4409
  %4411 = vrot.lane.b32.xlu0 %v4390, 127
  %v4412 = vpop.permute.xlu0 %4411
  %4413 = vrot.lane.b32.xlu0 %v4391, 127
  %v4414 = vpop.permute.xlu0 %4413
  %4415 = vrot.lane.b32.xlu0 %v4392, 127
  %v4416 = vpop.permute.xlu0 %4415
  %v4417 = vsel %vm122, %v4402, %v4404
  %v4418 = vsel %vm122, %v4404, %v4406
  %v4419 = vsel %vm122, %v4406, %v4408
  %v4420 = vsel %vm122, %v4410, %v4412
  %v4421 = vsel %vm122, %v4412, %v4414
  %v4422 = vsel %vm122, %v4414, %v4416
  %v4431 = vmax.f32 %v4385, %v4417
  %v4432 = vmax.f32 %v4386, %v4418
  %v4433 = vmax.f32 %v4387, %v4419
  %v4434 = vmax.f32 %v4388, %v4408
  %v4435 = vmax.f32 %v4389, %v4420
  %v4436 = vmax.f32 %v4390, %v4421
  %v4437 = vmax.f32 %v4391, %v4422
  %v4438 = vmax.f32 %v4392, %v4416
  %4439 = vrot.lane.b32.xlu0 %v4385, 126
  %v4440 = vpop.permute.xlu0 %4439
  %4441 = vrot.lane.b32.xlu0 %v4386, 126
  %v4442 = vpop.permute.xlu0 %4441
  %4443 = vrot.lane.b32.xlu0 %v4387, 126
  %v4444 = vpop.permute.xlu0 %4443
  %4445 = vrot.lane.b32.xlu0 %v4388, 126
  %v4446 = vpop.permute.xlu0 %4445
  %4447 = vrot.lane.b32.xlu0 %v4389, 126
  %v4448 = vpop.permute.xlu0 %4447
  %4449 = vrot.lane.b32.xlu0 %v4390, 126
  %v4450 = vpop.permute.xlu0 %4449
  %4451 = vrot.lane.b32.xlu0 %v4391, 126
  %v4452 = vpop.permute.xlu0 %4451
  %4453 = vrot.lane.b32.xlu0 %v4392, 126
  %v4454 = vpop.permute.xlu0 %4453
  %v4455 = vsel %vm190, %v4440, %v4442
  %v4456 = vsel %vm190, %v4442, %v4444
  %v4457 = vsel %vm190, %v4444, %v4446
  %v4458 = vsel %vm190, %v4448, %v4450
  %v4459 = vsel %vm190, %v4450, %v4452
  %v4460 = vsel %vm190, %v4452, %v4454
  %v4469 = vmax.f32 %v4431, %v4455
  %v4470 = vmax.f32 %v4432, %v4456
  %v4471 = vmax.f32 %v4433, %v4457
  %v4472 = vmax.f32 %v4434, %v4446
  %v4473 = vmax.f32 %v4435, %v4458
  %v4474 = vmax.f32 %v4436, %v4459
  %v4475 = vmax.f32 %v4437, %v4460
  %v4476 = vmax.f32 %v4438, %v4454
  %v4477 = vld [vmem:[%s3] sm:$0xff]
  %v4478 = vld [vmem:[%s3 + $0x8] sm:$0xff]
  %v4479 = vld [vmem:[%s3 + $0x10] sm:$0xff]
  %v4480 = vld [vmem:[%s3 + $0x18] sm:$0xff]
  %v4481 = vld [vmem:[%s3 + $0x20] sm:$0xff]
  %v4482 = vld [vmem:[%s3 + $0x28] sm:$0xff]
  %v4483 = vld [vmem:[%s3 + $0x30] sm:$0xff]
  %v4484 = vld [vmem:[%s3 + $0x38] sm:$0xff]
  %v4485 = vld [vmem:[%s3 + $0x40] sm:$0xff]
  %v4486 = vld [vmem:[%s3 + $0x48] sm:$0xff]
  %v4487 = vld [vmem:[%s3 + $0x50] sm:$0xff]
  %v4488 = vld [vmem:[%s3 + $0x58] sm:$0xff]
  %v4489 = vld [vmem:[%s3 + $0x60] sm:$0xff]
  %v4490 = vld [vmem:[%s3 + $0x68] sm:$0xff]
  %v4491 = vld [vmem:[%s3 + $0x70] sm:$0xff]
  %v4492 = vld [vmem:[%s3 + $0x78] sm:$0xff]
  %v4493 = vld [vmem:[%s3 + $0x80] sm:$0xff]
  %v4494 = vld [vmem:[%s3 + $0x88] sm:$0xff]
  %v4495 = vld [vmem:[%s3 + $0x90] sm:$0xff]
  %v4496 = vld [vmem:[%s3 + $0x98] sm:$0xff]
  %v4497 = vld [vmem:[%s3 + $0xa0] sm:$0xff]
  %v4498 = vld [vmem:[%s3 + $0xa8] sm:$0xff]
  %v4499 = vld [vmem:[%s3 + $0xb0] sm:$0xff]
  %v4500 = vld [vmem:[%s3 + $0xb8] sm:$0xff]
  %v4501 = vld [vmem:[%s3 + $0xc0] sm:$0xff]
  %v4502 = vld [vmem:[%s3 + $0xc8] sm:$0xff]
  %v4503 = vld [vmem:[%s3 + $0xd0] sm:$0xff]
  %v4504 = vld [vmem:[%s3 + $0xd8] sm:$0xff]
  %v4505 = vld [vmem:[%s3 + $0xe0] sm:$0xff]
  %v4506 = vld [vmem:[%s3 + $0xe8] sm:$0xff]
  %v4507 = vld [vmem:[%s3 + $0xf0] sm:$0xff]
  %v4508 = vld [vmem:[%s3 + $0xf8] sm:$0xff]
  %v4509 = vld [vmem:[%s3 + $0x100] sm:$0xff]
  %v4510 = vld [vmem:[%s3 + $0x108] sm:$0xff]
  %v4511 = vld [vmem:[%s3 + $0x110] sm:$0xff]
  %v4512 = vld [vmem:[%s3 + $0x118] sm:$0xff]
  %v4513 = vld [vmem:[%s3 + $0x120] sm:$0xff]
  %v4514 = vld [vmem:[%s3 + $0x128] sm:$0xff]
  %v4515 = vld [vmem:[%s3 + $0x130] sm:$0xff]
  %v4516 = vld [vmem:[%s3 + $0x138] sm:$0xff]
  %v4517 = vld [vmem:[%s3 + $0x140] sm:$0xff]
  %v4518 = vld [vmem:[%s3 + $0x148] sm:$0xff]
  %v4519 = vld [vmem:[%s3 + $0x150] sm:$0xff]
  %v4520 = vld [vmem:[%s3 + $0x158] sm:$0xff]
  %v4521 = vld [vmem:[%s3 + $0x160] sm:$0xff]
  %v4522 = vld [vmem:[%s3 + $0x168] sm:$0xff]
  %v4523 = vld [vmem:[%s3 + $0x170] sm:$0xff]
  %v4524 = vld [vmem:[%s3 + $0x178] sm:$0xff]
  %v4525 = vld [vmem:[%s3 + $0x180] sm:$0xff]
  %v4526 = vld [vmem:[%s3 + $0x188] sm:$0xff]
  %v4527 = vld [vmem:[%s3 + $0x190] sm:$0xff]
  %v4528 = vld [vmem:[%s3 + $0x198] sm:$0xff]
  %v4529 = vld [vmem:[%s3 + $0x1a0] sm:$0xff]
  %v4530 = vld [vmem:[%s3 + $0x1a8] sm:$0xff]
  %v4531 = vld [vmem:[%s3 + $0x1b0] sm:$0xff]
  %v4532 = vld [vmem:[%s3 + $0x1b8] sm:$0xff]
  %v4533 = vld [vmem:[%s3 + $0x1c0] sm:$0xff]
  %v4534 = vld [vmem:[%s3 + $0x1c8] sm:$0xff]
  %v4535 = vld [vmem:[%s3 + $0x1d0] sm:$0xff]
  %v4536 = vld [vmem:[%s3 + $0x1d8] sm:$0xff]
  %v4537 = vld [vmem:[%s3 + $0x1e0] sm:$0xff]
  %v4538 = vld [vmem:[%s3 + $0x1e8] sm:$0xff]
  %v4539 = vld [vmem:[%s3 + $0x1f0] sm:$0xff]
  %v4540 = vld [vmem:[%s3 + $0x1f8] sm:$0xff]
  %v4541 = vld [vmem:[%s3 + $0x200] sm:$0xff]
  %v4542 = vld [vmem:[%s3 + $0x208] sm:$0xff]
  %v4543 = vld [vmem:[%s3 + $0x210] sm:$0xff]
  %v4544 = vld [vmem:[%s3 + $0x218] sm:$0xff]
  %v4545 = vld [vmem:[%s3 + $0x220] sm:$0xff]
  %v4546 = vld [vmem:[%s3 + $0x228] sm:$0xff]
  %v4547 = vld [vmem:[%s3 + $0x230] sm:$0xff]
  %v4548 = vld [vmem:[%s3 + $0x238] sm:$0xff]
  %v4549 = vld [vmem:[%s3 + $0x240] sm:$0xff]
  %v4550 = vld [vmem:[%s3 + $0x248] sm:$0xff]
  %v4551 = vld [vmem:[%s3 + $0x250] sm:$0xff]
  %v4552 = vld [vmem:[%s3 + $0x258] sm:$0xff]
  %v4553 = vld [vmem:[%s3 + $0x260] sm:$0xff]
  %v4554 = vld [vmem:[%s3 + $0x268] sm:$0xff]
  %v4555 = vld [vmem:[%s3 + $0x270] sm:$0xff]
  %v4556 = vld [vmem:[%s3 + $0x278] sm:$0xff]
  %v4557 = vld [vmem:[%s3 + $0x280] sm:$0xff]
  %v4558 = vld [vmem:[%s3 + $0x288] sm:$0xff]
  %v4559 = vld [vmem:[%s3 + $0x290] sm:$0xff]
  %v4560 = vld [vmem:[%s3 + $0x298] sm:$0xff]
  %v4561 = vld [vmem:[%s3 + $0x2a0] sm:$0xff]
  %v4562 = vld [vmem:[%s3 + $0x2a8] sm:$0xff]
  %v4563 = vld [vmem:[%s3 + $0x2b0] sm:$0xff]
  %v4564 = vld [vmem:[%s3 + $0x2b8] sm:$0xff]
  %v4565 = vld [vmem:[%s3 + $0x2c0] sm:$0xff]
  %v4566 = vld [vmem:[%s3 + $0x2c8] sm:$0xff]
  %v4567 = vld [vmem:[%s3 + $0x2d0] sm:$0xff]
  %v4568 = vld [vmem:[%s3 + $0x2d8] sm:$0xff]
  %v4569 = vld [vmem:[%s3 + $0x2e0] sm:$0xff]
  %v4570 = vld [vmem:[%s3 + $0x2e8] sm:$0xff]
  %v4571 = vld [vmem:[%s3 + $0x2f0] sm:$0xff]
  %v4572 = vld [vmem:[%s3 + $0x2f8] sm:$0xff]
  %v4573 = vld [vmem:[%s3 + $0x300] sm:$0xff]
  %v4574 = vld [vmem:[%s3 + $0x308] sm:$0xff]
  %v4575 = vld [vmem:[%s3 + $0x310] sm:$0xff]
  %v4576 = vld [vmem:[%s3 + $0x318] sm:$0xff]
  %v4577 = vld [vmem:[%s3 + $0x320] sm:$0xff]
  %v4578 = vld [vmem:[%s3 + $0x328] sm:$0xff]
  %v4579 = vld [vmem:[%s3 + $0x330] sm:$0xff]
  %v4580 = vld [vmem:[%s3 + $0x338] sm:$0xff]
  %v4581 = vld [vmem:[%s3 + $0x340] sm:$0xff]
  %v4582 = vld [vmem:[%s3 + $0x348] sm:$0xff]
  %v4583 = vld [vmem:[%s3 + $0x350] sm:$0xff]
  %v4584 = vld [vmem:[%s3 + $0x358] sm:$0xff]
  %v4585 = vld [vmem:[%s3 + $0x360] sm:$0xff]
  %v4586 = vld [vmem:[%s3 + $0x368] sm:$0xff]
  %v4587 = vld [vmem:[%s3 + $0x370] sm:$0xff]
  %v4588 = vld [vmem:[%s3 + $0x378] sm:$0xff]
  %v4589 = vld [vmem:[%s3 + $0x380] sm:$0xff]
  %v4590 = vld [vmem:[%s3 + $0x388] sm:$0xff]
  %v4591 = vld [vmem:[%s3 + $0x390] sm:$0xff]
  %v4592 = vld [vmem:[%s3 + $0x398] sm:$0xff]
  %v4593 = vld [vmem:[%s3 + $0x3a0] sm:$0xff]
  %v4594 = vld [vmem:[%s3 + $0x3a8] sm:$0xff]
  %v4595 = vld [vmem:[%s3 + $0x3b0] sm:$0xff]
  %v4596 = vld [vmem:[%s3 + $0x3b8] sm:$0xff]
  %v4597 = vld [vmem:[%s3 + $0x3c0] sm:$0xff]
  %v4598 = vld [vmem:[%s3 + $0x3c8] sm:$0xff]
  %v4599 = vld [vmem:[%s3 + $0x3d0] sm:$0xff]
  %v4600 = vld [vmem:[%s3 + $0x3d8] sm:$0xff]
  %v4602 = vsel %vm449, %v4472, 0
  %v4605 = vsel %vm449, %v4476, 0
  %4607 = vmatprep.subr.mxu0 %v4508
  %4608 = vmatpush1.msra.mxu0 %v4507
  %4609 = vmatprep.subr.mxu0 %v4506
  %4610 = vmatpush1.msra.mxu0 %v4505
  %4611 = vmatprep.subr.mxu0 %v4504
  %4612 = vmatpush1.msra.mxu0 %v4503
  %4613 = vmatprep.subr.mxu0 %v4502
  %4614 = vmatpush1.msra.mxu0 %v4501
  %4615 = vmatprep.subr.mxu0 %v4500
  %4616 = vmatpush1.msra.mxu0 %v4499
  %4617 = vmatprep.subr.mxu0 %v4498
  %4618 = vmatpush1.msra.mxu0 %v4497
  %4619 = vmatprep.subr.mxu0 %v4496
  %4620 = vmatpush1.msra.mxu0 %v4495
  %4621 = vmatprep.subr.mxu0 %v4494
  %4622 = vmatpush1.msra.mxu0 %v4493
  %4623 = vmatprep.subr.mxu0 %v4492
  %4624 = vmatpush1.msra.mxu0 %v4491
  %4625 = vmatprep.subr.mxu0 %v4490
  %4626 = vmatpush1.msra.mxu0 %v4489
  %4627 = vmatprep.subr.mxu0 %v4488
  %4628 = vmatpush1.msra.mxu0 %v4487
  %4629 = vmatprep.subr.mxu0 %v4486
  %4630 = vmatpush1.msra.mxu0 %v4485
  %4631 = vmatprep.subr.mxu0 %v4484
  %4632 = vmatpush1.msra.mxu0 %v4483
  %4633 = vmatprep.subr.mxu0 %v4482
  %4634 = vmatpush1.msra.mxu0 %v4481
  %4635 = vmatprep.subr.mxu0 %v4480
  %4636 = vmatpush1.msra.mxu0 %v4479
  %4637 = vmatprep.subr.mxu0 %v4478
  %4638 = vmatpush1.msra.mxu0 %v4477
  %4639 = vmatprep.subr.mxu0 %v4540
  %4640 = vmatpush2.msra.mxu0 %v4539
  %4641 = vmatprep.subr.mxu0 %v4538
  %4642 = vmatpush2.msra.mxu0 %v4537
  %4643 = vmatprep.subr.mxu0 %v4536
  %4644 = vmatpush2.msra.mxu0 %v4535
  %4645 = vmatprep.subr.mxu0 %v4534
  %4646 = vmatpush2.msra.mxu0 %v4533
  %4647 = vmatprep.subr.mxu0 %v4532
  %4648 = vmatpush2.msra.mxu0 %v4531
  %4649 = vmatprep.subr.mxu0 %v4530
  %4650 = vmatpush2.msra.mxu0 %v4529
  %4651 = vmatprep.subr.mxu0 %v4528
  %4652 = vmatpush2.msra.mxu0 %v4527
  %4653 = vmatprep.subr.mxu0 %v4526
  %4654 = vmatpush2.msra.mxu0 %v4525
  %4655 = vmatprep.subr.mxu0 %v4524
  %4656 = vmatpush2.msra.mxu0 %v4523
  %4657 = vmatprep.subr.mxu0 %v4522
  %4658 = vmatpush2.msra.mxu0 %v4521
  %4659 = vmatprep.subr.mxu0 %v4520
  %4660 = vmatpush2.msra.mxu0 %v4519
  %4661 = vmatprep.subr.mxu0 %v4518
  %4662 = vmatpush2.msra.mxu0 %v4517
  %4663 = vmatprep.subr.mxu0 %v4516
  %4664 = vmatpush2.msra.mxu0 %v4515
  %4665 = vmatprep.subr.mxu0 %v4514
  %4666 = vmatpush2.msra.mxu0 %v4513
  %4667 = vmatprep.subr.mxu0 %v4512
  %4668 = vmatpush2.msra.mxu0 %v4511
  %4669 = vmatprep.subr.mxu0 %v4510
  %4670 = vmatpush2.msra.mxu0 %v4509
  %4671 = vmatprep.mubr.f32.mxu0 %v4470
  %4672 = vmatmul.mubr.f32.gmra.mxu0 %v4469
  %v4673 = vpop.f32.mrf.mxu0
  %v4674 = vadd.f32 0.0, %v4673
  %v4675 = vpop.f32.mrf.mxu0
  %v4676 = vadd.f32 0.0, %v4675
  %4677 = vmatprep.mubr.f32.mxu0 %v4474
  %4678 = vmatmul.mubr.f32.gmra.mxu0 %v4473
  %v4679 = vpop.f32.mrf.mxu0
  %v4680 = vadd.f32 0.0, %v4679
  %v4681 = vpop.f32.mrf.mxu0
  %v4682 = vadd.f32 0.0, %v4681
  %4683 = vdwg.mxu0
  %4684 = vmatprep.subr.mxu0 %v4572
  %4685 = vmatpush1.msra.mxu0 %v4571
  %4686 = vmatprep.subr.mxu0 %v4570
  %4687 = vmatpush1.msra.mxu0 %v4569
  %4688 = vmatprep.subr.mxu0 %v4568
  %4689 = vmatpush1.msra.mxu0 %v4567
  %4690 = vmatprep.subr.mxu0 %v4566
  %4691 = vmatpush1.msra.mxu0 %v4565
  %4692 = vmatprep.subr.mxu0 %v4564
  %4693 = vmatpush1.msra.mxu0 %v4563
  %4694 = vmatprep.subr.mxu0 %v4562
  %4695 = vmatpush1.msra.mxu0 %v4561
  %4696 = vmatprep.subr.mxu0 %v4560
  %4697 = vmatpush1.msra.mxu0 %v4559
  %4698 = vmatprep.subr.mxu0 %v4558
  %4699 = vmatpush1.msra.mxu0 %v4557
  %4700 = vmatprep.subr.mxu0 %v4556
  %4701 = vmatpush1.msra.mxu0 %v4555
  %4702 = vmatprep.subr.mxu0 %v4554
  %4703 = vmatpush1.msra.mxu0 %v4553
  %4704 = vmatprep.subr.mxu0 %v4552
  %4705 = vmatpush1.msra.mxu0 %v4551
  %4706 = vmatprep.subr.mxu0 %v4550
  %4707 = vmatpush1.msra.mxu0 %v4549
  %4708 = vmatprep.subr.mxu0 %v4548
  %4709 = vmatpush1.msra.mxu0 %v4547
  %4710 = vmatprep.subr.mxu0 %v4546
  %4711 = vmatpush1.msra.mxu0 %v4545
  %4712 = vmatprep.subr.mxu0 %v4544
  %4713 = vmatpush1.msra.mxu0 %v4543
  %4714 = vmatprep.subr.mxu0 %v4542
  %4715 = vmatpush1.msra.mxu0 %v4541
  %4716 = vmatprep.subr.mxu0 0.0
  %4717 = vmatpush2.msra.mxu0 0.0
  %4718 = vmatprep.subr.mxu0 0.0
  %4719 = vmatpush2.msra.mxu0 0.0
  %4720 = vmatprep.subr.mxu0 %v4600
  %4721 = vmatpush2.msra.mxu0 %v4599
  %4722 = vmatprep.subr.mxu0 %v4598
  %4723 = vmatpush2.msra.mxu0 %v4597
  %4724 = vmatprep.subr.mxu0 %v4596
  %4725 = vmatpush2.msra.mxu0 %v4595
  %4726 = vmatprep.subr.mxu0 %v4594
  %4727 = vmatpush2.msra.mxu0 %v4593
  %4728 = vmatprep.subr.mxu0 %v4592
  %4729 = vmatpush2.msra.mxu0 %v4591
  %4730 = vmatprep.subr.mxu0 %v4590
  %4731 = vmatpush2.msra.mxu0 %v4589
  %4732 = vmatprep.subr.mxu0 %v4588
  %4733 = vmatpush2.msra.mxu0 %v4587
  %4734 = vmatprep.subr.mxu0 %v4586
  %4735 = vmatpush2.msra.mxu0 %v4585
  %4736 = vmatprep.subr.mxu0 %v4584
  %4737 = vmatpush2.msra.mxu0 %v4583
  %4738 = vmatprep.subr.mxu0 %v4582
  %4739 = vmatpush2.msra.mxu0 %v4581
  %4740 = vmatprep.subr.mxu0 %v4580
  %4741 = vmatpush2.msra.mxu0 %v4579
  %4742 = vmatprep.subr.mxu0 %v4578
  %4743 = vmatpush2.msra.mxu0 %v4577
  %4744 = vmatprep.subr.mxu0 %v4576
  %4745 = vmatpush2.msra.mxu0 %v4575
  %4746 = vmatprep.subr.mxu0 %v4574
  %4747 = vmatpush2.msra.mxu0 %v4573
  %4748 = vmatprep.mubr.f32.mxu0 %v4602
  %4749 = vmatmul.mubr.f32.gmra.mxu0 %v4471
  %v4750 = vpop.f32.mrf.mxu0
  %v4751 = vadd.f32 %v4674, %v4750
  %v4752 = vpop.f32.mrf.mxu0
  %v4753 = vadd.f32 %v4676, %v4752
  %4754 = vmatprep.mubr.f32.mxu0 %v4605
  %4755 = vmatmul.mubr.f32.gmra.mxu0 %v4475
  %v4756 = vpop.f32.mrf.mxu0
  %v4757 = vadd.f32 %v4680, %v4756
  %v4758 = vpop.f32.mrf.mxu0
  %v4759 = vadd.f32 %v4682, %v4758
  %4760 = vdwg.mxu0
  %4765 = vrot.lane.b32.xlu0 %v4751, 127
  %v4766 = vpop.permute.xlu0 %4765
  %4767 = vrot.lane.b32.xlu0 %v4753, 127
  %v4768 = vpop.permute.xlu0 %4767
  %4769 = vrot.lane.b32.xlu0 %v4757, 127
  %v4770 = vpop.permute.xlu0 %4769
  %4771 = vrot.lane.b32.xlu0 %v4759, 127
  %v4772 = vpop.permute.xlu0 %4771
  %v4773 = vsel %vm122, %v4766, %v4768
  %v4774 = vsel %vm122, %v4770, %v4772
  %4779 = vrot.lane.b32.xlu0 %v4751, 126
  %v4780 = vpop.permute.xlu0 %4779
  %4781 = vrot.lane.b32.xlu0 %v4753, 126
  %v4782 = vpop.permute.xlu0 %4781
  %4783 = vrot.lane.b32.xlu0 %v4757, 126
  %v4784 = vpop.permute.xlu0 %4783
  %4785 = vrot.lane.b32.xlu0 %v4759, 126
  %v4786 = vpop.permute.xlu0 %4785
  %v4787 = vsel %vm190, %v4780, %v4782
  %v4788 = vsel %vm190, %v4784, %v4786
  %v4793 = vld [vmem:[%s4] sm:$0xff]
  %v4794 = vld [vmem:[%s4 + $0x8] sm:$0xff]
  %v4795 = vld [vmem:[%s4 + $0x10] sm:$0xff]
  %v4796 = vld [vmem:[%s4 + $0x18] sm:$0xff]
  %v4797 = vld [vmem:[%s5] sm:$0xff]
  %v4798 = vld [vmem:[%s5 + $0x8] sm:$0xff]
  %v4799 = vld [vmem:[%s5 + $0x10] sm:$0xff]
  %v4800 = vld [vmem:[%s5 + $0x18] sm:$0xff]
  %4802 = vset.pattern.permute.xlu0 0
  %4803 = vperm.xlu0 %4802, %v4797
  %v4804 = vpop.permute.xlu0 %4803
  %4807 = vset.pattern.permute.xlu0 0
  %4808 = vperm.xlu0 %4807, %v4798
  %v4809 = vpop.permute.xlu0 %4808
  %4812 = vset.pattern.permute.xlu0 0
  %4813 = vperm.xlu0 %4812, %v4799
  %v4814 = vpop.permute.xlu0 %4813
  %4817 = vset.pattern.permute.xlu0 0
  %4818 = vperm.xlu0 %4817, %v4800
  %v4819 = vpop.permute.xlu0 %4818
  %v4822 = vsel %vm670, %v4793, 0
  %v4825 = vsel %vm670, %v4794, 0
  %v4828 = vsel %vm670, %v4795, 0
  %v4831 = vsel %vm670, %v4796, 0
  %4833 = vmatprep.subr.mxu0 0.0
  %4834 = vmatpush1.msra.mxu0 0.0
  %4835 = vmatprep.subr.mxu0 0.0
  %4836 = vmatpush1.msra.mxu0 0.0
  %4837 = vmatprep.subr.mxu0 0.0
  %4838 = vmatpush1.msra.mxu0 0.0
  %4839 = vmatprep.subr.mxu0 0.0
  %4840 = vmatpush1.msra.mxu0 0.0
  %4841 = vmatprep.subr.mxu0 0.0
  %4842 = vmatpush1.msra.mxu0 0.0
  %4843 = vmatprep.subr.mxu0 0.0
  %4844 = vmatpush1.msra.mxu0 0.0
  %4845 = vmatprep.subr.mxu0 0.0
  %4846 = vmatpush1.msra.mxu0 0.0
  %4847 = vmatprep.subr.mxu0 0.0
  %4848 = vmatpush1.msra.mxu0 0.0
  %4849 = vmatprep.subr.mxu0 0.0
  %4850 = vmatpush1.msra.mxu0 0.0
  %4851 = vmatprep.subr.mxu0 0.0
  %4852 = vmatpush1.msra.mxu0 0.0
  %4853 = vmatprep.subr.mxu0 %v4786
  %4854 = vmatpush1.msra.mxu0 %v4788
  %4855 = vmatprep.subr.mxu0 %v4782
  %4856 = vmatpush1.msra.mxu0 %v4787
  %4857 = vmatprep.subr.mxu0 %v4772
  %4858 = vmatpush1.msra.mxu0 %v4774
  %4859 = vmatprep.subr.mxu0 %v4768
  %4860 = vmatpush1.msra.mxu0 %v4773
  %4861 = vmatprep.subr.mxu0 %v4759
  %4862 = vmatpush1.msra.mxu0 %v4757
  %4863 = vmatprep.subr.mxu0 %v4753
  %4864 = vmatpush1.msra.mxu0 %v4751
  %4865 = vmatprep.subr.mxu0 0.0
  %4866 = vmatpush2.msra.mxu0 0.0
  %4867 = vmatprep.subr.mxu0 0.0
  %4868 = vmatpush2.msra.mxu0 0.0
  %4869 = vmatprep.subr.mxu0 0.0
  %4870 = vmatpush2.msra.mxu0 0.0
  %4871 = vmatprep.subr.mxu0 0.0
  %4872 = vmatpush2.msra.mxu0 0.0
  %4873 = vmatprep.subr.mxu0 0.0
  %4874 = vmatpush2.msra.mxu0 0.0
  %4875 = vmatprep.subr.mxu0 0.0
  %4876 = vmatpush2.msra.mxu0 0.0
  %4877 = vmatprep.subr.mxu0 0.0
  %4878 = vmatpush2.msra.mxu0 0.0
  %4879 = vmatprep.subr.mxu0 0.0
  %4880 = vmatpush2.msra.mxu0 0.0
  %4881 = vmatprep.subr.mxu0 0.0
  %4882 = vmatpush2.msra.mxu0 0.0
  %4883 = vmatprep.subr.mxu0 0.0
  %4884 = vmatpush2.msra.mxu0 0.0
  %4885 = vmatprep.subr.mxu0 0.0
  %4886 = vmatpush2.msra.mxu0 0.0
  %4887 = vmatprep.subr.mxu0 0.0
  %4888 = vmatpush2.msra.mxu0 0.0
  %4889 = vmatprep.subr.mxu0 0.0
  %4890 = vmatpush2.msra.mxu0 0.0
  %4891 = vmatprep.subr.mxu0 0.0
  %4892 = vmatpush2.msra.mxu0 0.0
  %4893 = vmatprep.subr.mxu0 0.0
  %4894 = vmatpush2.msra.mxu0 0.0
  %4895 = vmatprep.subr.mxu0 0.0
  %4896 = vmatpush2.msra.mxu0 0.0
  %4897 = vmatprep.mubr.f32.mxu0 0.0
  %4898 = vmatmul.mubr.f32.gmra.mxu0 %v4822
  %v4899 = vpop.f32.mrf.mxu0
  %v4900 = vadd.f32 %v4804, %v4899
  %v4901 = vpop.f32.mrf.mxu0
  %v4902 = vadd.f32 %v4804, %v4901
  %4903 = vmatprep.mubr.f32.mxu0 0.0
  %4904 = vmatmul.mubr.f32.gmra.mxu0 %v4825
  %v4905 = vpop.f32.mrf.mxu0
  %v4906 = vadd.f32 %v4809, %v4905
  %v4907 = vpop.f32.mrf.mxu0
  %v4908 = vadd.f32 %v4809, %v4907
  %4909 = vmatprep.mubr.f32.mxu0 0.0
  %4910 = vmatmul.mubr.f32.gmra.mxu0 %v4828
  %v4911 = vpop.f32.mrf.mxu0
  %v4912 = vadd.f32 %v4814, %v4911
  %v4913 = vpop.f32.mrf.mxu0
  %v4914 = vadd.f32 %v4814, %v4913
  %4915 = vmatprep.mubr.f32.mxu0 0.0
  %4916 = vmatmul.mubr.f32.gmra.mxu0 %v4831
  %v4917 = vpop.f32.mrf.mxu0
  %v4918 = vadd.f32 %v4819, %v4917
  %v4919 = vpop.f32.mrf.mxu0
  %v4920 = vadd.f32 %v4819, %v4919
  %4921 = vdwg.mxu0
  %v4922 = vmax.f32 %v4900, 0.0
  %v4923 = vmax.f32 %v4902, 0.0
  %v4924 = vmax.f32 %v4906, 0.0
  %v4925 = vmax.f32 %v4908, 0.0
  %v4926 = vmax.f32 %v4912, 0.0
  %v4927 = vmax.f32 %v4914, 0.0
  %v4928 = vmax.f32 %v4918, 0.0
  %v4929 = vmax.f32 %v4920, 0.0
  %4938 = vrot.lane.b32.xlu0 %v4922, 127
  %v4939 = vpop.permute.xlu0 %4938
  %4940 = vrot.lane.b32.xlu0 %v4923, 127
  %v4941 = vpop.permute.xlu0 %4940
  %4942 = vrot.lane.b32.xlu0 %v4924, 127
  %v4943 = vpop.permute.xlu0 %4942
  %4944 = vrot.lane.b32.xlu0 %v4925, 127
  %v4945 = vpop.permute.xlu0 %4944
  %4946 = vrot.lane.b32.xlu0 %v4926, 127
  %v4947 = vpop.permute.xlu0 %4946
  %4948 = vrot.lane.b32.xlu0 %v4927, 127
  %v4949 = vpop.permute.xlu0 %4948
  %4950 = vrot.lane.b32.xlu0 %v4928, 127
  %v4951 = vpop.permute.xlu0 %4950
  %4952 = vrot.lane.b32.xlu0 %v4929, 127
  %v4953 = vpop.permute.xlu0 %4952
  %v4954 = vsel %vm122, %v4939, %v4941
  %v4955 = vsel %vm122, %v4943, %v4945
  %v4956 = vsel %vm122, %v4947, %v4949
  %v4957 = vsel %vm122, %v4951, %v4953
  %v4966 = vmax.f32 %v4922, %v4954
  %v4967 = vmax.f32 %v4923, %v4941
  %v4968 = vmax.f32 %v4924, %v4955
  %v4969 = vmax.f32 %v4925, %v4945
  %v4970 = vmax.f32 %v4926, %v4956
  %v4971 = vmax.f32 %v4927, %v4949
  %v4972 = vmax.f32 %v4928, %v4957
  %v4973 = vmax.f32 %v4929, %v4953
  %4974 = vrot.lane.b32.xlu0 %v4922, 126
  %v4975 = vpop.permute.xlu0 %4974
  %4976 = vrot.lane.b32.xlu0 %v4923, 126
  %v4977 = vpop.permute.xlu0 %4976
  %4978 = vrot.lane.b32.xlu0 %v4924, 126
  %v4979 = vpop.permute.xlu0 %4978
  %4980 = vrot.lane.b32.xlu0 %v4925, 126
  %v4981 = vpop.permute.xlu0 %4980
  %4982 = vrot.lane.b32.xlu0 %v4926, 126
  %v4983 = vpop.permute.xlu0 %4982
  %4984 = vrot.lane.b32.xlu0 %v4927, 126
  %v4985 = vpop.permute.xlu0 %4984
  %4986 = vrot.lane.b32.xlu0 %v4928, 126
  %v4987 = vpop.permute.xlu0 %4986
  %4988 = vrot.lane.b32.xlu0 %v4929, 126
  %v4989 = vpop.permute.xlu0 %4988
  %v4990 = vsel %vm190, %v4975, %v4977
  %v4991 = vsel %vm190, %v4979, %v4981
  %v4992 = vsel %vm190, %v4983, %v4985
  %v4993 = vsel %vm190, %v4987, %v4989
  %v5002 = vmax.f32 %v4966, %v4990
  %v5003 = vmax.f32 %v4967, %v4977
  %v5004 = vmax.f32 %v4968, %v4991
  %v5005 = vmax.f32 %v4969, %v4981
  %v5006 = vmax.f32 %v4970, %v4992
  %v5007 = vmax.f32 %v4971, %v4985
  %v5008 = vmax.f32 %v4972, %v4993
  %v5009 = vmax.f32 %v4973, %v4989
  %v5010 = vld [vmem:[%s6] sm:$0xff]
  %v5011 = vld [vmem:[%s6 + $0x8] sm:$0xff]
  %v5012 = vld [vmem:[%s6 + $0x10] sm:$0xff]
  %v5013 = vld [vmem:[%s6 + $0x18] sm:$0xff]
  %v5014 = vld [vmem:[%s6 + $0x20] sm:$0xff]
  %v5015 = vld [vmem:[%s6 + $0x28] sm:$0xff]
  %v5016 = vld [vmem:[%s6 + $0x30] sm:$0xff]
  %v5017 = vld [vmem:[%s6 + $0x38] sm:$0xff]
  %v5018 = vld [vmem:[%s6 + $0x40] sm:$0xff]
  %v5019 = vld [vmem:[%s6 + $0x48] sm:$0xff]
  %v5020 = vld [vmem:[%s6 + $0x50] sm:$0xff]
  %v5021 = vld [vmem:[%s6 + $0x58] sm:$0xff]
  %v5022 = vld [vmem:[%s6 + $0x60] sm:$0xff]
  %v5023 = vld [vmem:[%s6 + $0x68] sm:$0xff]
  %v5024 = vld [vmem:[%s6 + $0x70] sm:$0xff]
  %v5025 = vld [vmem:[%s6 + $0x78] sm:$0xff]
  %v5026 = vld [vmem:[%s6 + $0x80] sm:$0xff]
  %v5027 = vld [vmem:[%s6 + $0x88] sm:$0xff]
  %v5028 = vld [vmem:[%s6 + $0x90] sm:$0xff]
  %v5029 = vld [vmem:[%s6 + $0x98] sm:$0xff]
  %v5030 = vld [vmem:[%s6 + $0xa0] sm:$0x3]
  %v5032 = vsel %vm881, %v5003, 0
  %v5035 = vsel %vm881, %v5005, 0
  %v5038 = vsel %vm881, %v5007, 0
  %v5041 = vsel %vm881, %v5009, 0
  %v5044 = vsel %vm894, %v5030, 0
  %5046 = vmatprep.subr.mxu0 0.0
  %5047 = vmatpush1.msra.mxu0 %v5025
  %5048 = vmatprep.subr.mxu0 0.0
  %5049 = vmatpush1.msra.mxu0 %v5024
  %5050 = vmatprep.subr.mxu0 0.0
  %5051 = vmatpush1.msra.mxu0 %v5023
  %5052 = vmatprep.subr.mxu0 0.0
  %5053 = vmatpush1.msra.mxu0 %v5022
  %5054 = vmatprep.subr.mxu0 0.0
  %5055 = vmatpush1.msra.mxu0 %v5021
  %5056 = vmatprep.subr.mxu0 0.0
  %5057 = vmatpush1.msra.mxu0 %v5020
  %5058 = vmatprep.subr.mxu0 0.0
  %5059 = vmatpush1.msra.mxu0 %v5019
  %5060 = vmatprep.subr.mxu0 0.0
  %5061 = vmatpush1.msra.mxu0 %v5018
  %5062 = vmatprep.subr.mxu0 0.0
  %5063 = vmatpush1.msra.mxu0 %v5017
  %5064 = vmatprep.subr.mxu0 0.0
  %5065 = vmatpush1.msra.mxu0 %v5016
  %5066 = vmatprep.subr.mxu0 0.0
  %5067 = vmatpush1.msra.mxu0 %v5015
  %5068 = vmatprep.subr.mxu0 0.0
  %5069 = vmatpush1.msra.mxu0 %v5014
  %5070 = vmatprep.subr.mxu0 0.0
  %5071 = vmatpush1.msra.mxu0 %v5013
  %5072 = vmatprep.subr.mxu0 0.0
  %5073 = vmatpush1.msra.mxu0 %v5012
  %5074 = vmatprep.subr.mxu0 0.0
  %5075 = vmatpush1.msra.mxu0 %v5011
  %5076 = vmatprep.subr.mxu0 0.0
  %5077 = vmatpush1.msra.mxu0 %v5010
  %5078 = vmatprep.subr.mxu0 0.0
  %5079 = vmatpush2.msra.mxu0 0.0
  %5080 = vmatprep.subr.mxu0 0.0
  %5081 = vmatpush2.msra.mxu0 0.0
  %5082 = vmatprep.subr.mxu0 0.0
  %5083 = vmatpush2.msra.mxu0 0.0
  %5084 = vmatprep.subr.mxu0 0.0
  %5085 = vmatpush2.msra.mxu0 0.0
  %5086 = vmatprep.subr.mxu0 0.0
  %5087 = vmatpush2.msra.mxu0 0.0
  %5088 = vmatprep.subr.mxu0 0.0
  %5089 = vmatpush2.msra.mxu0 0.0
  %5090 = vmatprep.subr.mxu0 0.0
  %5091 = vmatpush2.msra.mxu0 0.0
  %5092 = vmatprep.subr.mxu0 0.0
  %5093 = vmatpush2.msra.mxu0 0.0
  %5094 = vmatprep.subr.mxu0 0.0
  %5095 = vmatpush2.msra.mxu0 0.0
  %5096 = vmatprep.subr.mxu0 0.0
  %5097 = vmatpush2.msra.mxu0 0.0
  %5098 = vmatprep.subr.mxu0 0.0
  %5099 = vmatpush2.msra.mxu0 0.0
  %5100 = vmatprep.subr.mxu0 0.0
  %5101 = vmatpush2.msra.mxu0 %v5044
  %5102 = vmatprep.subr.mxu0 0.0
  %5103 = vmatpush2.msra.mxu0 %v5029
  %5104 = vmatprep.subr.mxu0 0.0
  %5105 = vmatpush2.msra.mxu0 %v5028
  %5106 = vmatprep.subr.mxu0 0.0
  %5107 = vmatpush2.msra.mxu0 %v5027
  %5108 = vmatprep.subr.mxu0 0.0
  %5109 = vmatpush2.msra.mxu0 %v5026
  %5110 = vmatprep.mubr.f32.mxu0 %v5032
  %5111 = vmatmul.mubr.f32.gmra.mxu0 %v5002
  %v5112 = vpop.f32.mrf.mxu0
  %v5113 = vadd.f32 0.0, %v5112
  %v5114 = vpop.f32.mrf.mxu0
  %5115 = vmatprep.mubr.f32.mxu0 %v5035
  %5116 = vmatmul.mubr.f32.gmra.mxu0 %v5004
  %v5117 = vpop.f32.mrf.mxu0
  %v5118 = vadd.f32 0.0, %v5117
  %v5119 = vpop.f32.mrf.mxu0
  %5120 = vmatprep.mubr.f32.mxu0 %v5038
  %5121 = vmatmul.mubr.f32.gmra.mxu0 %v5006
  %v5122 = vpop.f32.mrf.mxu0
  %v5123 = vadd.f32 0.0, %v5122
  %v5124 = vpop.f32.mrf.mxu0
  %5125 = vmatprep.mubr.f32.mxu0 %v5041
  %5126 = vmatmul.mubr.f32.gmra.mxu0 %v5008
  %v5127 = vpop.f32.mrf.mxu0
  %v5128 = vadd.f32 0.0, %v5127
  %v5129 = vpop.f32.mrf.mxu0
  %5130 = vdwg.mxu0
  %5135 = vrot.lane.b32.xlu0 %v5113, 127
  %v5136 = vpop.permute.xlu0 %5135
  %5137 = vrot.lane.b32.xlu0 %v5118, 127
  %v5138 = vpop.permute.xlu0 %5137
  %5139 = vrot.lane.b32.xlu0 %v5123, 127
  %v5140 = vpop.permute.xlu0 %5139
  %5141 = vrot.lane.b32.xlu0 %v5128, 127
  %v5142 = vpop.permute.xlu0 %5141
  %5147 = vrot.lane.b32.xlu0 %v5113, 126
  %v5148 = vpop.permute.xlu0 %5147
  %5149 = vrot.lane.b32.xlu0 %v5118, 126
  %v5150 = vpop.permute.xlu0 %5149
  %5151 = vrot.lane.b32.xlu0 %v5123, 126
  %v5152 = vpop.permute.xlu0 %5151
  %5153 = vrot.lane.b32.xlu0 %v5128, 126
  %v5154 = vpop.permute.xlu0 %5153
  %v5159 = vld [vmem:[%s7] sm:$0xff]
  %v5160 = vld [vmem:[%s7 + $0x8] sm:$0xff]
  %v5161 = vld [vmem:[%s7 + $0x10] sm:$0xff]
  %v5162 = vld [vmem:[%s7 + $0x18] sm:$0xff]
  %v5163 = vld [vmem:[%s7 + $0x20] sm:$0xff]
  %v5164 = vld [vmem:[%s7 + $0x28] sm:$0xff]
  %v5165 = vld [vmem:[%s7 + $0x30] sm:$0xff]
  %v5166 = vld [vmem:[%s7 + $0x38] sm:$0xff]
  %v5167 = vld [vmem:[%s8] sm:$0xff]
  %v5168 = vld [vmem:[%s8 + $0x8] sm:$0xff]
  %v5169 = vld [vmem:[%s8 + $0x10] sm:$0xff]
  %v5170 = vld [vmem:[%s8 + $0x18] sm:$0xff]
  %v5171 = vld [vmem:[%s8 + $0x20] sm:$0xff]
  %v5172 = vld [vmem:[%s8 + $0x28] sm:$0xff]
  %v5173 = vld [vmem:[%s8 + $0x30] sm:$0xff]
  %v5174 = vld [vmem:[%s8 + $0x38] sm:$0xff]
  %5176 = vset.pattern.permute.xlu0 0
  %5177 = vperm.xlu0 %5176, %v5167
  %v5178 = vpop.permute.xlu0 %5177
  %5181 = vset.pattern.permute.xlu0 0
  %5182 = vperm.xlu0 %5181, %v5168
  %v5183 = vpop.permute.xlu0 %5182
  %5186 = vset.pattern.permute.xlu0 0
  %5187 = vperm.xlu0 %5186, %v5169
  %v5188 = vpop.permute.xlu0 %5187
  %5191 = vset.pattern.permute.xlu0 0
  %5192 = vperm.xlu0 %5191, %v5170
  %v5193 = vpop.permute.xlu0 %5192
  %5196 = vset.pattern.permute.xlu0 0
  %5197 = vperm.xlu0 %5196, %v5171
  %v5198 = vpop.permute.xlu0 %5197
  %5201 = vset.pattern.permute.xlu0 0
  %5202 = vperm.xlu0 %5201, %v5172
  %v5203 = vpop.permute.xlu0 %5202
  %5206 = vset.pattern.permute.xlu0 0
  %5207 = vperm.xlu0 %5206, %v5173
  %v5208 = vpop.permute.xlu0 %5207
  %5211 = vset.pattern.permute.xlu0 0
  %5212 = vperm.xlu0 %5211, %v5174
  %v5213 = vpop.permute.xlu0 %5212
  %v5216 = vsel %vm1067, %v5159, 0
  %v5219 = vsel %vm1067, %v5160, 0
  %v5222 = vsel %vm1067, %v5161, 0
  %v5225 = vsel %vm1067, %v5162, 0
  %v5228 = vsel %vm1067, %v5163, 0
  %v5231 = vsel %vm1067, %v5164, 0
  %v5234 = vsel %vm1067, %v5165, 0
  %v5237 = vsel %vm1067, %v5166, 0
  %5239 = vmatprep.subr.mxu0 0.0
  %5240 = vmatpush1.msra.mxu0 0.0
  %5241 = vmatprep.subr.mxu0 0.0
  %5242 = vmatpush1.msra.mxu0 0.0
  %5243 = vmatprep.subr.mxu0 0.0
  %5244 = vmatpush1.msra.mxu0 0.0
  %5245 = vmatprep.subr.mxu0 0.0
  %5246 = vmatpush1.msra.mxu0 0.0
  %5247 = vmatprep.subr.mxu0 0.0
  %5248 = vmatpush1.msra.mxu0 %v5154
  %5249 = vmatprep.subr.mxu0 0.0
  %5250 = vmatpush1.msra.mxu0 %v5152
  %5251 = vmatprep.subr.mxu0 0.0
  %5252 = vmatpush1.msra.mxu0 %v5150
  %5253 = vmatprep.subr.mxu0 0.0
  %5254 = vmatpush1.msra.mxu0 %v5148
  %5255 = vmatprep.subr.mxu0 0.0
  %5256 = vmatpush1.msra.mxu0 %v5142
  %5257 = vmatprep.subr.mxu0 0.0
  %5258 = vmatpush1.msra.mxu0 %v5140
  %5259 = vmatprep.subr.mxu0 0.0
  %5260 = vmatpush1.msra.mxu0 %v5138
  %5261 = vmatprep.subr.mxu0 0.0
  %5262 = vmatpush1.msra.mxu0 %v5136
  %5263 = vmatprep.subr.mxu0 0.0
  %5264 = vmatpush1.msra.mxu0 %v5128
  %5265 = vmatprep.subr.mxu0 0.0
  %5266 = vmatpush1.msra.mxu0 %v5123
  %5267 = vmatprep.subr.mxu0 0.0
  %5268 = vmatpush1.msra.mxu0 %v5118
  %5269 = vmatprep.subr.mxu0 0.0
  %5270 = vmatpush1.msra.mxu0 %v5113
  %5271 = vmatprep.subr.mxu0 0.0
  %5272 = vmatpush2.msra.mxu0 0.0
  %5273 = vmatprep.subr.mxu0 0.0
  %5274 = vmatpush2.msra.mxu0 0.0
  %5275 = vmatprep.subr.mxu0 0.0
  %5276 = vmatpush2.msra.mxu0 0.0
  %5277 = vmatprep.subr.mxu0 0.0
  %5278 = vmatpush2.msra.mxu0 0.0
  %5279 = vmatprep.subr.mxu0 0.0
  %5280 = vmatpush2.msra.mxu0 0.0
  %5281 = vmatprep.subr.mxu0 0.0
  %5282 = vmatpush2.msra.mxu0 0.0
  %5283 = vmatprep.subr.mxu0 0.0
  %5284 = vmatpush2.msra.mxu0 0.0
  %5285 = vmatprep.subr.mxu0 0.0
  %5286 = vmatpush2.msra.mxu0 0.0
  %5287 = vmatprep.subr.mxu0 0.0
  %5288 = vmatpush2.msra.mxu0 0.0
  %5289 = vmatprep.subr.mxu0 0.0
  %5290 = vmatpush2.msra.mxu0 0.0
  %5291 = vmatprep.subr.mxu0 0.0
  %5292 = vmatpush2.msra.mxu0 0.0
  %5293 = vmatprep.subr.mxu0 0.0
  %5294 = vmatpush2.msra.mxu0 0.0
  %5295 = vmatprep.subr.mxu0 0.0
  %5296 = vmatpush2.msra.mxu0 0.0
  %5297 = vmatprep.subr.mxu0 0.0
  %5298 = vmatpush2.msra.mxu0 0.0
  %5299 = vmatprep.subr.mxu0 0.0
  %5300 = vmatpush2.msra.mxu0 0.0
  %5301 = vmatprep.subr.mxu0 0.0
  %5302 = vmatpush2.msra.mxu0 0.0
  %5303 = vmatprep.mubr.f32.mxu0 0.0
  %5304 = vmatmul.mubr.f32.gmra.mxu0 %v5216
  %v5305 = vpop.f32.mrf.mxu0
  %v5306 = vadd.f32 %v5178, %v5305
  %v5307 = vpop.f32.mrf.mxu0
  %5308 = vmatprep.mubr.f32.mxu0 0.0
  %5309 = vmatmul.mubr.f32.gmra.mxu0 %v5219
  %v5310 = vpop.f32.mrf.mxu0
  %v5311 = vadd.f32 %v5183, %v5310
  %v5312 = vpop.f32.mrf.mxu0
  %5313 = vmatprep.mubr.f32.mxu0 0.0
  %5314 = vmatmul.mubr.f32.gmra.mxu0 %v5222
  %v5315 = vpop.f32.mrf.mxu0
  %v5316 = vadd.f32 %v5188, %v5315
  %v5317 = vpop.f32.mrf.mxu0
  %5318 = vmatprep.mubr.f32.mxu0 0.0
  %5319 = vmatmul.mubr.f32.gmra.mxu0 %v5225
  %v5320 = vpop.f32.mrf.mxu0
  %v5321 = vadd.f32 %v5193, %v5320
  %v5322 = vpop.f32.mrf.mxu0
  %5323 = vmatprep.mubr.f32.mxu0 0.0
  %5324 = vmatmul.mubr.f32.gmra.mxu0 %v5228
  %v5325 = vpop.f32.mrf.mxu0
  %v5326 = vadd.f32 %v5198, %v5325
  %v5327 = vpop.f32.mrf.mxu0
  %5328 = vmatprep.mubr.f32.mxu0 0.0
  %5329 = vmatmul.mubr.f32.gmra.mxu0 %v5231
  %v5330 = vpop.f32.mrf.mxu0
  %v5331 = vadd.f32 %v5203, %v5330
  %v5332 = vpop.f32.mrf.mxu0
  %5333 = vmatprep.mubr.f32.mxu0 0.0
  %5334 = vmatmul.mubr.f32.gmra.mxu0 %v5234
  %v5335 = vpop.f32.mrf.mxu0
  %v5336 = vadd.f32 %v5208, %v5335
  %v5337 = vpop.f32.mrf.mxu0
  %5338 = vmatprep.mubr.f32.mxu0 0.0
  %5339 = vmatmul.mubr.f32.gmra.mxu0 %v5237
  %v5340 = vpop.f32.mrf.mxu0
  %v5341 = vadd.f32 %v5213, %v5340
  %v5342 = vpop.f32.mrf.mxu0
  %5343 = vdwg.mxu0
  %v5344 = vmax.f32 %v5306, 0.0
  %v5345 = vmax.f32 %v5311, 0.0
  %v5346 = vmax.f32 %v5316, 0.0
  %v5347 = vmax.f32 %v5321, 0.0
  %v5348 = vmax.f32 %v5326, 0.0
  %v5349 = vmax.f32 %v5331, 0.0
  %v5350 = vmax.f32 %v5336, 0.0
  %v5351 = vmax.f32 %v5341, 0.0
  %5360 = vrot.lane.b32.xlu0 %v5344, 127
  %v5361 = vpop.permute.xlu0 %5360
  %5362 = vrot.lane.b32.xlu0 %v5345, 127
  %v5363 = vpop.permute.xlu0 %5362
  %5364 = vrot.lane.b32.xlu0 %v5346, 127
  %v5365 = vpop.permute.xlu0 %5364
  %5366 = vrot.lane.b32.xlu0 %v5347, 127
  %v5367 = vpop.permute.xlu0 %5366
  %5368 = vrot.lane.b32.xlu0 %v5348, 127
  %v5369 = vpop.permute.xlu0 %5368
  %5370 = vrot.lane.b32.xlu0 %v5349, 127
  %v5371 = vpop.permute.xlu0 %5370
  %5372 = vrot.lane.b32.xlu0 %v5350, 127
  %v5373 = vpop.permute.xlu0 %5372
  %5374 = vrot.lane.b32.xlu0 %v5351, 127
  %v5375 = vpop.permute.xlu0 %5374
  %v5384 = vmax.f32 %v5344, %v5361
  %v5385 = vmax.f32 %v5345, %v5363
  %v5386 = vmax.f32 %v5346, %v5365
  %v5387 = vmax.f32 %v5347, %v5367
  %v5388 = vmax.f32 %v5348, %v5369
  %v5389 = vmax.f32 %v5349, %v5371
  %v5390 = vmax.f32 %v5350, %v5373
  %v5391 = vmax.f32 %v5351, %v5375
  %5392 = vrot.lane.b32.xlu0 %v5344, 126
  %v5393 = vpop.permute.xlu0 %5392
  %5394 = vrot.lane.b32.xlu0 %v5345, 126
  %v5395 = vpop.permute.xlu0 %5394
  %5396 = vrot.lane.b32.xlu0 %v5346, 126
  %v5397 = vpop.permute.xlu0 %5396
  %5398 = vrot.lane.b32.xlu0 %v5347, 126
  %v5399 = vpop.permute.xlu0 %5398
  %5400 = vrot.lane.b32.xlu0 %v5348, 126
  %v5401 = vpop.permute.xlu0 %5400
  %5402 = vrot.lane.b32.xlu0 %v5349, 126
  %v5403 = vpop.permute.xlu0 %5402
  %5404 = vrot.lane.b32.xlu0 %v5350, 126
  %v5405 = vpop.permute.xlu0 %5404
  %5406 = vrot.lane.b32.xlu0 %v5351, 126
  %v5407 = vpop.permute.xlu0 %5406
  %v5416 = vmax.f32 %v5384, %v5393
  %v5417 = vmax.f32 %v5385, %v5395
  %v5418 = vmax.f32 %v5386, %v5397
  %v5419 = vmax.f32 %v5387, %v5399
  %v5420 = vmax.f32 %v5388, %v5401
  %v5421 = vmax.f32 %v5389, %v5403
  %v5422 = vmax.f32 %v5390, %v5405
  %v5423 = vmax.f32 %v5391, %v5407
  %v5424 = vld [vmem:[%s9] sm:$0xff]
  %v5425 = vld [vmem:[%s9 + $0x8] sm:$0xff]
  %v5426 = vld [vmem:[%s9 + $0x10] sm:$0xff]
  %v5427 = vld [vmem:[%s9 + $0x18] sm:$0xff]
  %v5428 = vld [vmem:[%s9 + $0x20] sm:$0xff]
  %v5429 = vld [vmem:[%s9 + $0x28] sm:$0xff]
  %v5430 = vld [vmem:[%s9 + $0x30] sm:$0x3]
  %v5432 = vsel %vm1284, %v5416, 0
  %v5435 = vsel %vm1284, %v5417, 0
  %v5438 = vsel %vm1284, %v5418, 0
  %v5441 = vsel %vm1284, %v5419, 0
  %v5444 = vsel %vm1284, %v5420, 0
  %v5447 = vsel %vm1284, %v5421, 0
  %v5450 = vsel %vm1284, %v5422, 0
  %v5453 = vsel %vm1284, %v5423, 0
  %v5456 = vsel %vm894, %v5430, 0
  %5458 = vmatprep.subr.mxu0 0.0
  %5459 = vmatpush1.msra.mxu0 0.0
  %5460 = vmatprep.subr.mxu0 0.0
  %5461 = vmatpush1.msra.mxu0 0.0
  %5462 = vmatprep.subr.mxu0 0.0
  %5463 = vmatpush1.msra.mxu0 0.0
  %5464 = vmatprep.subr.mxu0 0.0
  %5465 = vmatpush1.msra.mxu0 0.0
  %5466 = vmatprep.subr.mxu0 0.0
  %5467 = vmatpush1.msra.mxu0 0.0
  %5468 = vmatprep.subr.mxu0 0.0
  %5469 = vmatpush1.msra.mxu0 0.0
  %5470 = vmatprep.subr.mxu0 0.0
  %5471 = vmatpush1.msra.mxu0 0.0
  %5472 = vmatprep.subr.mxu0 0.0
  %5473 = vmatpush1.msra.mxu0 0.0
  %5474 = vmatprep.subr.mxu0 0.0
  %5475 = vmatpush1.msra.mxu0 0.0
  %5476 = vmatprep.subr.mxu0 0.0
  %5477 = vmatpush1.msra.mxu0 %v5456
  %5478 = vmatprep.subr.mxu0 0.0
  %5479 = vmatpush1.msra.mxu0 %v5429
  %5480 = vmatprep.subr.mxu0 0.0
  %5481 = vmatpush1.msra.mxu0 %v5428
  %5482 = vmatprep.subr.mxu0 0.0
  %5483 = vmatpush1.msra.mxu0 %v5427
  %5484 = vmatprep.subr.mxu0 0.0
  %5485 = vmatpush1.msra.mxu0 %v5426
  %5486 = vmatprep.subr.mxu0 0.0
  %5487 = vmatpush1.msra.mxu0 %v5425
  %5488 = vmatprep.subr.mxu0 0.0
  %5489 = vmatpush1.msra.mxu0 %v5424
  %5490 = vmatprep.subr.mxu0 0.0
  %5491 = vmatpush2.msra.mxu0 0.0
  %5492 = vmatprep.subr.mxu0 0.0
  %5493 = vmatpush2.msra.mxu0 0.0
  %5494 = vmatprep.subr.mxu0 0.0
  %5495 = vmatpush2.msra.mxu0 0.0
  %5496 = vmatprep.subr.mxu0 0.0
  %5497 = vmatpush2.msra.mxu0 0.0
  %5498 = vmatprep.subr.mxu0 0.0
  %5499 = vmatpush2.msra.mxu0 0.0
  %5500 = vmatprep.subr.mxu0 0.0
  %5501 = vmatpush2.msra.mxu0 0.0
  %5502 = vmatprep.subr.mxu0 0.0
  %5503 = vmatpush2.msra.mxu0 0.0
  %5504 = vmatprep.subr.mxu0 0.0
  %5505 = vmatpush2.msra.mxu0 0.0
  %5506 = vmatprep.subr.mxu0 0.0
  %5507 = vmatpush2.msra.mxu0 0.0
  %5508 = vmatprep.subr.mxu0 0.0
  %5509 = vmatpush2.msra.mxu0 0.0
  %5510 = vmatprep.subr.mxu0 0.0
  %5511 = vmatpush2.msra.mxu0 0.0
  %5512 = vmatprep.subr.mxu0 0.0
  %5513 = vmatpush2.msra.mxu0 0.0
  %5514 = vmatprep.subr.mxu0 0.0
  %5515 = vmatpush2.msra.mxu0 0.0
  %5516 = vmatprep.subr.mxu0 0.0
  %5517 = vmatpush2.msra.mxu0 0.0
  %5518 = vmatprep.subr.mxu0 0.0
  %5519 = vmatpush2.msra.mxu0 0.0
  %5520 = vmatprep.subr.mxu0 0.0
  %5521 = vmatpush2.msra.mxu0 0.0
  %5522 = vmatprep.mubr.f32.mxu0 0.0
  %5523 = vmatmul.mubr.f32.gmra.mxu0 %v5432
  %v5524 = vpop.f32.mrf.mxu0
  %v5525 = vadd.f32 0.0, %v5524
  %v5526 = vpop.f32.mrf.mxu0
  %5527 = vmatprep.mubr.f32.mxu0 0.0
  %5528 = vmatmul.mubr.f32.gmra.mxu0 %v5435
  %v5529 = vpop.f32.mrf.mxu0
  %v5530 = vadd.f32 0.0, %v5529
  %v5531 = vpop.f32.mrf.mxu0
  %5532 = vmatprep.mubr.f32.mxu0 0.0
  %5533 = vmatmul.mubr.f32.gmra.mxu0 %v5438
  %v5534 = vpop.f32.mrf.mxu0
  %v5535 = vadd.f32 0.0, %v5534
  %v5536 = vpop.f32.mrf.mxu0
  %5537 = vmatprep.mubr.f32.mxu0 0.0
  %5538 = vmatmul.mubr.f32.gmra.mxu0 %v5441
  %v5539 = vpop.f32.mrf.mxu0
  %v5540 = vadd.f32 0.0, %v5539
  %v5541 = vpop.f32.mrf.mxu0
  %5542 = vmatprep.mubr.f32.mxu0 0.0
  %5543 = vmatmul.mubr.f32.gmra.mxu0 %v5444
  %v5544 = vpop.f32.mrf.mxu0
  %v5545 = vadd.f32 0.0, %v5544
  %v5546 = vpop.f32.mrf.mxu0
  %5547 = vmatprep.mubr.f32.mxu0 0.0
  %5548 = vmatmul.mubr.f32.gmra.mxu0 %v5447
  %v5549 = vpop.f32.mrf.mxu0
  %v5550 = vadd.f32 0.0, %v5549
  %v5551 = vpop.f32.mrf.mxu0
  %5552 = vmatprep.mubr.f32.mxu0 0.0
  %5553 = vmatmul.mubr.f32.gmra.mxu0 %v5450
  %v5554 = vpop.f32.mrf.mxu0
  %v5555 = vadd.f32 0.0, %v5554
  %v5556 = vpop.f32.mrf.mxu0
  %5557 = vmatprep.mubr.f32.mxu0 0.0
  %5558 = vmatmul.mubr.f32.gmra.mxu0 %v5453
  %v5559 = vpop.f32.mrf.mxu0
  %v5560 = vadd.f32 0.0, %v5559
  %v5561 = vpop.f32.mrf.mxu0
  %5562 = vdwg.mxu0
  %s5563 = scalar_lea.vmem %s10, 192
  %5564 = vst.msk [vmem:[%s5563] sm:$0xff] %vm1417, %v5525
  %5565 = vst.msk [vmem:[%s5563 + $0x8] sm:$0xff] %vm1417, %v5530
  %5566 = vst.msk [vmem:[%s5563 + $0x10] sm:$0xff] %vm1417, %v5535
  %5567 = vst.msk [vmem:[%s5563 + $0x18] sm:$0xff] %vm1417, %v5540
  %5568 = vst.msk [vmem:[%s5563 + $0x20] sm:$0xff] %vm1417, %v5545
  %5569 = vst.msk [vmem:[%s5563 + $0x28] sm:$0xff] %vm1417, %v5550
  %5570 = vst.msk [vmem:[%s5563 + $0x30] sm:$0xff] %vm1417, %v5555
  %5571 = vst.msk [vmem:[%s5563 + $0x38] sm:$0xff] %vm1417, %v5560
  %s5572 = scalar_lea.vmem %s0, 4
  %v5573 = vld [vmem:[%s5572] ss:$8 sm:$0xf]
  %v5574 = vld [vmem:[%s1] sm:$0xff]
  %v5575 = vld [vmem:[%s1 + $0x8] sm:$0xff]
  %5577 = vset.pattern.permute.xlu0 0
  %5578 = vperm.xlu0 %5577, %v5574
  %v5579 = vpop.permute.xlu0 %5578
  %5582 = vset.pattern.permute.xlu0 0
  %5583 = vperm.xlu0 %5582, %v5575
  %v5584 = vpop.permute.xlu0 %5583
  %v5587 = vlaneseq
  %v5588 = vshrl.u32 %v5587, 7
  %v5589 = vsub.s32 0, %v5588
  %v5590 = vrot.slane %v5573, %v5589
  %v5591 = vlaneseq
  %v5592 = vshrl.u32 %v5591, 7
  %v5593 = vsub.s32 1, %v5592
  %v5594 = vrot.slane %v5573, %v5593
  %v5595 = vlaneseq
  %v5596 = vshrl.u32 %v5595, 7
  %v5597 = vsub.s32 2, %v5596
  %v5598 = vrot.slane %v5573, %v5597
  %v5599 = vlaneseq
  %v5600 = vshrl.u32 %v5599, 7
  %v5601 = vsub.s32 3, %v5600
  %v5602 = vrot.slane %v5573, %v5601
  %v5607 = vmul.f32 %v5579, %v5590
  %v5608 = vmul.f32 %v5579, %v5594
  %v5609 = vmul.f32 %v5579, %v5598
  %v5610 = vmul.f32 %v5579, %v5602
  %v5611 = vmul.f32 %v5584, %v5590
  %v5612 = vmul.f32 %v5584, %v5594
  %v5613 = vmul.f32 %v5584, %v5598
  %v5614 = vmul.f32 %v5584, %v5602
  %v5615 = vld [vmem:[%s77] sm:$0xff]
  %v5616 = vld [vmem:[%s77 + $0x8] sm:$0xff]
  %5618 = vset.pattern.permute.xlu0 0
  %5619 = vperm.xlu0 %5618, %v5615
  %v5620 = vpop.permute.xlu0 %5619
  %5623 = vset.pattern.permute.xlu0 0
  %5624 = vperm.xlu0 %5623, %v5616
  %v5625 = vpop.permute.xlu0 %5624
  %v5627 = vmul.f32 %v5620, %v5590
  %v5628 = vmul.f32 %v5620, %v5594
  %v5629 = vmul.f32 %v5620, %v5598
  %v5630 = vmul.f32 %v5620, %v5602
  %v5631 = vmul.f32 %v5625, %v5590
  %v5632 = vmul.f32 %v5625, %v5594
  %v5633 = vmul.f32 %v5625, %v5598
  %v5634 = vmul.f32 %v5625, %v5602
  %5643 = vrot.lane.b32.xlu0 %v5627, 127
  %v5644 = vpop.permute.xlu0 %5643
  %5645 = vrot.lane.b32.xlu0 %v5628, 127
  %v5646 = vpop.permute.xlu0 %5645
  %5647 = vrot.lane.b32.xlu0 %v5629, 127
  %v5648 = vpop.permute.xlu0 %5647
  %5649 = vrot.lane.b32.xlu0 %v5630, 127
  %v5650 = vpop.permute.xlu0 %5649
  %5651 = vrot.lane.b32.xlu0 %v5631, 127
  %v5652 = vpop.permute.xlu0 %5651
  %5653 = vrot.lane.b32.xlu0 %v5632, 127
  %v5654 = vpop.permute.xlu0 %5653
  %5655 = vrot.lane.b32.xlu0 %v5633, 127
  %v5656 = vpop.permute.xlu0 %5655
  %5657 = vrot.lane.b32.xlu0 %v5634, 127
  %v5658 = vpop.permute.xlu0 %5657
  %v5659 = vsel %vm122, %v5644, %v5646
  %v5660 = vsel %vm122, %v5646, %v5648
  %v5661 = vsel %vm122, %v5648, %v5650
  %v5662 = vsel %vm122, %v5652, %v5654
  %v5663 = vsel %vm122, %v5654, %v5656
  %v5664 = vsel %vm122, %v5656, %v5658
  %v5673 = vadd.f32 %v5607, %v5659
  %v5674 = vadd.f32 %v5608, %v5660
  %v5675 = vadd.f32 %v5609, %v5661
  %v5676 = vadd.f32 %v5610, %v5650
  %v5677 = vadd.f32 %v5611, %v5662
  %v5678 = vadd.f32 %v5612, %v5663
  %v5679 = vadd.f32 %v5613, %v5664
  %v5680 = vadd.f32 %v5614, %v5658
  %v5681 = vld [vmem:[%s145] sm:$0xff]
  %v5682 = vld [vmem:[%s145 + $0x8] sm:$0xff]
  %5684 = vset.pattern.permute.xlu0 0
  %5685 = vperm.xlu0 %5684, %v5681
  %v5686 = vpop.permute.xlu0 %5685
  %5689 = vset.pattern.permute.xlu0 0
  %5690 = vperm.xlu0 %5689, %v5682
  %v5691 = vpop.permute.xlu0 %5690
  %v5693 = vmul.f32 %v5686, %v5590
  %v5694 = vmul.f32 %v5686, %v5594
  %v5695 = vmul.f32 %v5686, %v5598
  %v5696 = vmul.f32 %v5686, %v5602
  %v5697 = vmul.f32 %v5691, %v5590
  %v5698 = vmul.f32 %v5691, %v5594
  %v5699 = vmul.f32 %v5691, %v5598
  %v5700 = vmul.f32 %v5691, %v5602
  %5709 = vrot.lane.b32.xlu0 %v5693, 126
  %v5710 = vpop.permute.xlu0 %5709
  %5711 = vrot.lane.b32.xlu0 %v5694, 126
  %v5712 = vpop.permute.xlu0 %5711
  %5713 = vrot.lane.b32.xlu0 %v5695, 126
  %v5714 = vpop.permute.xlu0 %5713
  %5715 = vrot.lane.b32.xlu0 %v5696, 126
  %v5716 = vpop.permute.xlu0 %5715
  %5717 = vrot.lane.b32.xlu0 %v5697, 126
  %v5718 = vpop.permute.xlu0 %5717
  %5719 = vrot.lane.b32.xlu0 %v5698, 126
  %v5720 = vpop.permute.xlu0 %5719
  %5721 = vrot.lane.b32.xlu0 %v5699, 126
  %v5722 = vpop.permute.xlu0 %5721
  %5723 = vrot.lane.b32.xlu0 %v5700, 126
  %v5724 = vpop.permute.xlu0 %5723
  %v5725 = vsel %vm190, %v5710, %v5712
  %v5726 = vsel %vm190, %v5712, %v5714
  %v5727 = vsel %vm190, %v5714, %v5716
  %v5728 = vsel %vm190, %v5718, %v5720
  %v5729 = vsel %vm190, %v5720, %v5722
  %v5730 = vsel %vm190, %v5722, %v5724
  %v5739 = vadd.f32 %v5673, %v5725
  %v5740 = vadd.f32 %v5674, %v5726
  %v5741 = vadd.f32 %v5675, %v5727
  %v5742 = vadd.f32 %v5676, %v5716
  %v5743 = vadd.f32 %v5677, %v5728
  %v5744 = vadd.f32 %v5678, %v5729
  %v5745 = vadd.f32 %v5679, %v5730
  %v5746 = vadd.f32 %v5680, %v5724
  %v5747 = vld [vmem:[%s2] sm:$0xff]
  %v5748 = vld [vmem:[%s2 + $0x8] sm:$0xff]
  %5750 = vset.pattern.permute.xlu0 0
  %5751 = vperm.xlu0 %5750, %v5747
  %v5752 = vpop.permute.xlu0 %5751
  %5755 = vset.pattern.permute.xlu0 0
  %5756 = vperm.xlu0 %5755, %v5748
  %v5757 = vpop.permute.xlu0 %5756
  %v5759 = vadd.f32 %v5739, %v5752
  %v5760 = vadd.f32 %v5740, %v5752
  %v5761 = vadd.f32 %v5741, %v5752
  %v5762 = vadd.f32 %v5742, %v5752
  %v5763 = vadd.f32 %v5743, %v5757
  %v5764 = vadd.f32 %v5744, %v5757
  %v5765 = vadd.f32 %v5745, %v5757
  %v5766 = vadd.f32 %v5746, %v5757
  %v5767 = vmax.f32 %v5759, 0.0
  %v5768 = vmax.f32 %v5760, 0.0
  %v5769 = vmax.f32 %v5761, 0.0
  %v5770 = vmax.f32 %v5762, 0.0
  %v5771 = vmax.f32 %v5763, 0.0
  %v5772 = vmax.f32 %v5764, 0.0
  %v5773 = vmax.f32 %v5765, 0.0
  %v5774 = vmax.f32 %v5766, 0.0
  %5783 = vrot.lane.b32.xlu0 %v5767, 127
  %v5784 = vpop.permute.xlu0 %5783
  %5785 = vrot.lane.b32.xlu0 %v5768, 127
  %v5786 = vpop.permute.xlu0 %5785
  %5787 = vrot.lane.b32.xlu0 %v5769, 127
  %v5788 = vpop.permute.xlu0 %5787
  %5789 = vrot.lane.b32.xlu0 %v5770, 127
  %v5790 = vpop.permute.xlu0 %5789
  %5791 = vrot.lane.b32.xlu0 %v5771, 127
  %v5792 = vpop.permute.xlu0 %5791
  %5793 = vrot.lane.b32.xlu0 %v5772, 127
  %v5794 = vpop.permute.xlu0 %5793
  %5795 = vrot.lane.b32.xlu0 %v5773, 127
  %v5796 = vpop.permute.xlu0 %5795
  %5797 = vrot.lane.b32.xlu0 %v5774, 127
  %v5798 = vpop.permute.xlu0 %5797
  %v5799 = vsel %vm122, %v5784, %v5786
  %v5800 = vsel %vm122, %v5786, %v5788
  %v5801 = vsel %vm122, %v5788, %v5790
  %v5802 = vsel %vm122, %v5792, %v5794
  %v5803 = vsel %vm122, %v5794, %v5796
  %v5804 = vsel %vm122, %v5796, %v5798
  %v5813 = vmax.f32 %v5767, %v5799
  %v5814 = vmax.f32 %v5768, %v5800
  %v5815 = vmax.f32 %v5769, %v5801
  %v5816 = vmax.f32 %v5770, %v5790
  %v5817 = vmax.f32 %v5771, %v5802
  %v5818 = vmax.f32 %v5772, %v5803
  %v5819 = vmax.f32 %v5773, %v5804
  %v5820 = vmax.f32 %v5774, %v5798
  %5821 = vrot.lane.b32.xlu0 %v5767, 126
  %v5822 = vpop.permute.xlu0 %5821
  %5823 = vrot.lane.b32.xlu0 %v5768, 126
  %v5824 = vpop.permute.xlu0 %5823
  %5825 = vrot.lane.b32.xlu0 %v5769, 126
  %v5826 = vpop.permute.xlu0 %5825
  %5827 = vrot.lane.b32.xlu0 %v5770, 126
  %v5828 = vpop.permute.xlu0 %5827
  %5829 = vrot.lane.b32.xlu0 %v5771, 126
  %v5830 = vpop.permute.xlu0 %5829
  %5831 = vrot.lane.b32.xlu0 %v5772, 126
  %v5832 = vpop.permute.xlu0 %5831
  %5833 = vrot.lane.b32.xlu0 %v5773, 126
  %v5834 = vpop.permute.xlu0 %5833
  %5835 = vrot.lane.b32.xlu0 %v5774, 126
  %v5836 = vpop.permute.xlu0 %5835
  %v5837 = vsel %vm190, %v5822, %v5824
  %v5838 = vsel %vm190, %v5824, %v5826
  %v5839 = vsel %vm190, %v5826, %v5828
  %v5840 = vsel %vm190, %v5830, %v5832
  %v5841 = vsel %vm190, %v5832, %v5834
  %v5842 = vsel %vm190, %v5834, %v5836
  %v5851 = vmax.f32 %v5813, %v5837
  %v5852 = vmax.f32 %v5814, %v5838
  %v5853 = vmax.f32 %v5815, %v5839
  %v5854 = vmax.f32 %v5816, %v5828
  %v5855 = vmax.f32 %v5817, %v5840
  %v5856 = vmax.f32 %v5818, %v5841
  %v5857 = vmax.f32 %v5819, %v5842
  %v5858 = vmax.f32 %v5820, %v5836
  %v5859 = vld [vmem:[%s3] sm:$0xff]
  %v5860 = vld [vmem:[%s3 + $0x8] sm:$0xff]
  %v5861 = vld [vmem:[%s3 + $0x10] sm:$0xff]
  %v5862 = vld [vmem:[%s3 + $0x18] sm:$0xff]
  %v5863 = vld [vmem:[%s3 + $0x20] sm:$0xff]
  %v5864 = vld [vmem:[%s3 + $0x28] sm:$0xff]
  %v5865 = vld [vmem:[%s3 + $0x30] sm:$0xff]
  %v5866 = vld [vmem:[%s3 + $0x38] sm:$0xff]
  %v5867 = vld [vmem:[%s3 + $0x40] sm:$0xff]
  %v5868 = vld [vmem:[%s3 + $0x48] sm:$0xff]
  %v5869 = vld [vmem:[%s3 + $0x50] sm:$0xff]
  %v5870 = vld [vmem:[%s3 + $0x58] sm:$0xff]
  %v5871 = vld [vmem:[%s3 + $0x60] sm:$0xff]
  %v5872 = vld [vmem:[%s3 + $0x68] sm:$0xff]
  %v5873 = vld [vmem:[%s3 + $0x70] sm:$0xff]
  %v5874 = vld [vmem:[%s3 + $0x78] sm:$0xff]
  %v5875 = vld [vmem:[%s3 + $0x80] sm:$0xff]
  %v5876 = vld [vmem:[%s3 + $0x88] sm:$0xff]
  %v5877 = vld [vmem:[%s3 + $0x90] sm:$0xff]
  %v5878 = vld [vmem:[%s3 + $0x98] sm:$0xff]
  %v5879 = vld [vmem:[%s3 + $0xa0] sm:$0xff]
  %v5880 = vld [vmem:[%s3 + $0xa8] sm:$0xff]
  %v5881 = vld [vmem:[%s3 + $0xb0] sm:$0xff]
  %v5882 = vld [vmem:[%s3 + $0xb8] sm:$0xff]
  %v5883 = vld [vmem:[%s3 + $0xc0] sm:$0xff]
  %v5884 = vld [vmem:[%s3 + $0xc8] sm:$0xff]
  %v5885 = vld [vmem:[%s3 + $0xd0] sm:$0xff]
  %v5886 = vld [vmem:[%s3 + $0xd8] sm:$0xff]
  %v5887 = vld [vmem:[%s3 + $0xe0] sm:$0xff]
  %v5888 = vld [vmem:[%s3 + $0xe8] sm:$0xff]
  %v5889 = vld [vmem:[%s3 + $0xf0] sm:$0xff]
  %v5890 = vld [vmem:[%s3 + $0xf8] sm:$0xff]
  %v5891 = vld [vmem:[%s3 + $0x100] sm:$0xff]
  %v5892 = vld [vmem:[%s3 + $0x108] sm:$0xff]
  %v5893 = vld [vmem:[%s3 + $0x110] sm:$0xff]
  %v5894 = vld [vmem:[%s3 + $0x118] sm:$0xff]
  %v5895 = vld [vmem:[%s3 + $0x120] sm:$0xff]
  %v5896 = vld [vmem:[%s3 + $0x128] sm:$0xff]
  %v5897 = vld [vmem:[%s3 + $0x130] sm:$0xff]
  %v5898 = vld [vmem:[%s3 + $0x138] sm:$0xff]
  %v5899 = vld [vmem:[%s3 + $0x140] sm:$0xff]
  %v5900 = vld [vmem:[%s3 + $0x148] sm:$0xff]
  %v5901 = vld [vmem:[%s3 + $0x150] sm:$0xff]
  %v5902 = vld [vmem:[%s3 + $0x158] sm:$0xff]
  %v5903 = vld [vmem:[%s3 + $0x160] sm:$0xff]
  %v5904 = vld [vmem:[%s3 + $0x168] sm:$0xff]
  %v5905 = vld [vmem:[%s3 + $0x170] sm:$0xff]
  %v5906 = vld [vmem:[%s3 + $0x178] sm:$0xff]
  %v5907 = vld [vmem:[%s3 + $0x180] sm:$0xff]
  %v5908 = vld [vmem:[%s3 + $0x188] sm:$0xff]
  %v5909 = vld [vmem:[%s3 + $0x190] sm:$0xff]
  %v5910 = vld [vmem:[%s3 + $0x198] sm:$0xff]
  %v5911 = vld [vmem:[%s3 + $0x1a0] sm:$0xff]
  %v5912 = vld [vmem:[%s3 + $0x1a8] sm:$0xff]
  %v5913 = vld [vmem:[%s3 + $0x1b0] sm:$0xff]
  %v5914 = vld [vmem:[%s3 + $0x1b8] sm:$0xff]
  %v5915 = vld [vmem:[%s3 + $0x1c0] sm:$0xff]
  %v5916 = vld [vmem:[%s3 + $0x1c8] sm:$0xff]
  %v5917 = vld [vmem:[%s3 + $0x1d0] sm:$0xff]
  %v5918 = vld [vmem:[%s3 + $0x1d8] sm:$0xff]
  %v5919 = vld [vmem:[%s3 + $0x1e0] sm:$0xff]
  %v5920 = vld [vmem:[%s3 + $0x1e8] sm:$0xff]
  %v5921 = vld [vmem:[%s3 + $0x1f0] sm:$0xff]
  %v5922 = vld [vmem:[%s3 + $0x1f8] sm:$0xff]
  %v5923 = vld [vmem:[%s3 + $0x200] sm:$0xff]
  %v5924 = vld [vmem:[%s3 + $0x208] sm:$0xff]
  %v5925 = vld [vmem:[%s3 + $0x210] sm:$0xff]
  %v5926 = vld [vmem:[%s3 + $0x218] sm:$0xff]
  %v5927 = vld [vmem:[%s3 + $0x220] sm:$0xff]
  %v5928 = vld [vmem:[%s3 + $0x228] sm:$0xff]
  %v5929 = vld [vmem:[%s3 + $0x230] sm:$0xff]
  %v5930 = vld [vmem:[%s3 + $0x238] sm:$0xff]
  %v5931 = vld [vmem:[%s3 + $0x240] sm:$0xff]
  %v5932 = vld [vmem:[%s3 + $0x248] sm:$0xff]
  %v5933 = vld [vmem:[%s3 + $0x250] sm:$0xff]
  %v5934 = vld [vmem:[%s3 + $0x258] sm:$0xff]
  %v5935 = vld [vmem:[%s3 + $0x260] sm:$0xff]
  %v5936 = vld [vmem:[%s3 + $0x268] sm:$0xff]
  %v5937 = vld [vmem:[%s3 + $0x270] sm:$0xff]
  %v5938 = vld [vmem:[%s3 + $0x278] sm:$0xff]
  %v5939 = vld [vmem:[%s3 + $0x280] sm:$0xff]
  %v5940 = vld [vmem:[%s3 + $0x288] sm:$0xff]
  %v5941 = vld [vmem:[%s3 + $0x290] sm:$0xff]
  %v5942 = vld [vmem:[%s3 + $0x298] sm:$0xff]
  %v5943 = vld [vmem:[%s3 + $0x2a0] sm:$0xff]
  %v5944 = vld [vmem:[%s3 + $0x2a8] sm:$0xff]
  %v5945 = vld [vmem:[%s3 + $0x2b0] sm:$0xff]
  %v5946 = vld [vmem:[%s3 + $0x2b8] sm:$0xff]
  %v5947 = vld [vmem:[%s3 + $0x2c0] sm:$0xff]
  %v5948 = vld [vmem:[%s3 + $0x2c8] sm:$0xff]
  %v5949 = vld [vmem:[%s3 + $0x2d0] sm:$0xff]
  %v5950 = vld [vmem:[%s3 + $0x2d8] sm:$0xff]
  %v5951 = vld [vmem:[%s3 + $0x2e0] sm:$0xff]
  %v5952 = vld [vmem:[%s3 + $0x2e8] sm:$0xff]
  %v5953 = vld [vmem:[%s3 + $0x2f0] sm:$0xff]
  %v5954 = vld [vmem:[%s3 + $0x2f8] sm:$0xff]
  %v5955 = vld [vmem:[%s3 + $0x300] sm:$0xff]
  %v5956 = vld [vmem:[%s3 + $0x308] sm:$0xff]
  %v5957 = vld [vmem:[%s3 + $0x310] sm:$0xff]
  %v5958 = vld [vmem:[%s3 + $0x318] sm:$0xff]
  %v5959 = vld [vmem:[%s3 + $0x320] sm:$0xff]
  %v5960 = vld [vmem:[%s3 + $0x328] sm:$0xff]
  %v5961 = vld [vmem:[%s3 + $0x330] sm:$0xff]
  %v5962 = vld [vmem:[%s3 + $0x338] sm:$0xff]
  %v5963 = vld [vmem:[%s3 + $0x340] sm:$0xff]
  %v5964 = vld [vmem:[%s3 + $0x348] sm:$0xff]
  %v5965 = vld [vmem:[%s3 + $0x350] sm:$0xff]
  %v5966 = vld [vmem:[%s3 + $0x358] sm:$0xff]
  %v5967 = vld [vmem:[%s3 + $0x360] sm:$0xff]
  %v5968 = vld [vmem:[%s3 + $0x368] sm:$0xff]
  %v5969 = vld [vmem:[%s3 + $0x370] sm:$0xff]
  %v5970 = vld [vmem:[%s3 + $0x378] sm:$0xff]
  %v5971 = vld [vmem:[%s3 + $0x380] sm:$0xff]
  %v5972 = vld [vmem:[%s3 + $0x388] sm:$0xff]
  %v5973 = vld [vmem:[%s3 + $0x390] sm:$0xff]
  %v5974 = vld [vmem:[%s3 + $0x398] sm:$0xff]
  %v5975 = vld [vmem:[%s3 + $0x3a0] sm:$0xff]
  %v5976 = vld [vmem:[%s3 + $0x3a8] sm:$0xff]
  %v5977 = vld [vmem:[%s3 + $0x3b0] sm:$0xff]
  %v5978 = vld [vmem:[%s3 + $0x3b8] sm:$0xff]
  %v5979 = vld [vmem:[%s3 + $0x3c0] sm:$0xff]
  %v5980 = vld [vmem:[%s3 + $0x3c8] sm:$0xff]
  %v5981 = vld [vmem:[%s3 + $0x3d0] sm:$0xff]
  %v5982 = vld [vmem:[%s3 + $0x3d8] sm:$0xff]
  %v5984 = vsel %vm449, %v5854, 0
  %v5987 = vsel %vm449, %v5858, 0
  %5989 = vmatprep.subr.mxu0 %v5890
  %5990 = vmatpush1.msra.mxu0 %v5889
  %5991 = vmatprep.subr.mxu0 %v5888
  %5992 = vmatpush1.msra.mxu0 %v5887
  %5993 = vmatprep.subr.mxu0 %v5886
  %5994 = vmatpush1.msra.mxu0 %v5885
  %5995 = vmatprep.subr.mxu0 %v5884
  %5996 = vmatpush1.msra.mxu0 %v5883
  %5997 = vmatprep.subr.mxu0 %v5882
  %5998 = vmatpush1.msra.mxu0 %v5881
  %5999 = vmatprep.subr.mxu0 %v5880
  %6000 = vmatpush1.msra.mxu0 %v5879
  %6001 = vmatprep.subr.mxu0 %v5878
  %6002 = vmatpush1.msra.mxu0 %v5877
  %6003 = vmatprep.subr.mxu0 %v5876
  %6004 = vmatpush1.msra.mxu0 %v5875
  %6005 = vmatprep.subr.mxu0 %v5874
  %6006 = vmatpush1.msra.mxu0 %v5873
  %6007 = vmatprep.subr.mxu0 %v5872
  %6008 = vmatpush1.msra.mxu0 %v5871
  %6009 = vmatprep.subr.mxu0 %v5870
  %6010 = vmatpush1.msra.mxu0 %v5869
  %6011 = vmatprep.subr.mxu0 %v5868
  %6012 = vmatpush1.msra.mxu0 %v5867
  %6013 = vmatprep.subr.mxu0 %v5866
  %6014 = vmatpush1.msra.mxu0 %v5865
  %6015 = vmatprep.subr.mxu0 %v5864
  %6016 = vmatpush1.msra.mxu0 %v5863
  %6017 = vmatprep.subr.mxu0 %v5862
  %6018 = vmatpush1.msra.mxu0 %v5861
  %6019 = vmatprep.subr.mxu0 %v5860
  %6020 = vmatpush1.msra.mxu0 %v5859
  %6021 = vmatprep.subr.mxu0 %v5922
  %6022 = vmatpush2.msra.mxu0 %v5921
  %6023 = vmatprep.subr.mxu0 %v5920
  %6024 = vmatpush2.msra.mxu0 %v5919
  %6025 = vmatprep.subr.mxu0 %v5918
  %6026 = vmatpush2.msra.mxu0 %v5917
  %6027 = vmatprep.subr.mxu0 %v5916
  %6028 = vmatpush2.msra.mxu0 %v5915
  %6029 = vmatprep.subr.mxu0 %v5914
  %6030 = vmatpush2.msra.mxu0 %v5913
  %6031 = vmatprep.subr.mxu0 %v5912
  %6032 = vmatpush2.msra.mxu0 %v5911
  %6033 = vmatprep.subr.mxu0 %v5910
  %6034 = vmatpush2.msra.mxu0 %v5909
  %6035 = vmatprep.subr.mxu0 %v5908
  %6036 = vmatpush2.msra.mxu0 %v5907
  %6037 = vmatprep.subr.mxu0 %v5906
  %6038 = vmatpush2.msra.mxu0 %v5905
  %6039 = vmatprep.subr.mxu0 %v5904
  %6040 = vmatpush2.msra.mxu0 %v5903
  %6041 = vmatprep.subr.mxu0 %v5902
  %6042 = vmatpush2.msra.mxu0 %v5901
  %6043 = vmatprep.subr.mxu0 %v5900
  %6044 = vmatpush2.msra.mxu0 %v5899
  %6045 = vmatprep.subr.mxu0 %v5898
  %6046 = vmatpush2.msra.mxu0 %v5897
  %6047 = vmatprep.subr.mxu0 %v5896
  %6048 = vmatpush2.msra.mxu0 %v5895
  %6049 = vmatprep.subr.mxu0 %v5894
  %6050 = vmatpush2.msra.mxu0 %v5893
  %6051 = vmatprep.subr.mxu0 %v5892
  %6052 = vmatpush2.msra.mxu0 %v5891
  %6053 = vmatprep.mubr.f32.mxu0 %v5852
  %6054 = vmatmul.mubr.f32.gmra.mxu0 %v5851
  %v6055 = vpop.f32.mrf.mxu0
  %v6056 = vadd.f32 0.0, %v6055
  %v6057 = vpop.f32.mrf.mxu0
  %v6058 = vadd.f32 0.0, %v6057
  %6059 = vmatprep.mubr.f32.mxu0 %v5856
  %6060 = vmatmul.mubr.f32.gmra.mxu0 %v5855
  %v6061 = vpop.f32.mrf.mxu0
  %v6062 = vadd.f32 0.0, %v6061
  %v6063 = vpop.f32.mrf.mxu0
  %v6064 = vadd.f32 0.0, %v6063
  %6065 = vdwg.mxu0
  %6066 = vmatprep.subr.mxu0 %v5954
  %6067 = vmatpush1.msra.mxu0 %v5953
  %6068 = vmatprep.subr.mxu0 %v5952
  %6069 = vmatpush1.msra.mxu0 %v5951
  %6070 = vmatprep.subr.mxu0 %v5950
  %6071 = vmatpush1.msra.mxu0 %v5949
  %6072 = vmatprep.subr.mxu0 %v5948
  %6073 = vmatpush1.msra.mxu0 %v5947
  %6074 = vmatprep.subr.mxu0 %v5946
  %6075 = vmatpush1.msra.mxu0 %v5945
  %6076 = vmatprep.subr.mxu0 %v5944
  %6077 = vmatpush1.msra.mxu0 %v5943
  %6078 = vmatprep.subr.mxu0 %v5942
  %6079 = vmatpush1.msra.mxu0 %v5941
  %6080 = vmatprep.subr.mxu0 %v5940
  %6081 = vmatpush1.msra.mxu0 %v5939
  %6082 = vmatprep.subr.mxu0 %v5938
  %6083 = vmatpush1.msra.mxu0 %v5937
  %6084 = vmatprep.subr.mxu0 %v5936
  %6085 = vmatpush1.msra.mxu0 %v5935
  %6086 = vmatprep.subr.mxu0 %v5934
  %6087 = vmatpush1.msra.mxu0 %v5933
  %6088 = vmatprep.subr.mxu0 %v5932
  %6089 = vmatpush1.msra.mxu0 %v5931
  %6090 = vmatprep.subr.mxu0 %v5930
  %6091 = vmatpush1.msra.mxu0 %v5929
  %6092 = vmatprep.subr.mxu0 %v5928
  %6093 = vmatpush1.msra.mxu0 %v5927
  %6094 = vmatprep.subr.mxu0 %v5926
  %6095 = vmatpush1.msra.mxu0 %v5925
  %6096 = vmatprep.subr.mxu0 %v5924
  %6097 = vmatpush1.msra.mxu0 %v5923
  %6098 = vmatprep.subr.mxu0 0.0
  %6099 = vmatpush2.msra.mxu0 0.0
  %6100 = vmatprep.subr.mxu0 0.0
  %6101 = vmatpush2.msra.mxu0 0.0
  %6102 = vmatprep.subr.mxu0 %v5982
  %6103 = vmatpush2.msra.mxu0 %v5981
  %6104 = vmatprep.subr.mxu0 %v5980
  %6105 = vmatpush2.msra.mxu0 %v5979
  %6106 = vmatprep.subr.mxu0 %v5978
  %6107 = vmatpush2.msra.mxu0 %v5977
  %6108 = vmatprep.subr.mxu0 %v5976
  %6109 = vmatpush2.msra.mxu0 %v5975
  %6110 = vmatprep.subr.mxu0 %v5974
  %6111 = vmatpush2.msra.mxu0 %v5973
  %6112 = vmatprep.subr.mxu0 %v5972
  %6113 = vmatpush2.msra.mxu0 %v5971
  %6114 = vmatprep.subr.mxu0 %v5970
  %6115 = vmatpush2.msra.mxu0 %v5969
  %6116 = vmatprep.subr.mxu0 %v5968
  %6117 = vmatpush2.msra.mxu0 %v5967
  %6118 = vmatprep.subr.mxu0 %v5966
  %6119 = vmatpush2.msra.mxu0 %v5965
  %6120 = vmatprep.subr.mxu0 %v5964
  %6121 = vmatpush2.msra.mxu0 %v5963
  %6122 = vmatprep.subr.mxu0 %v5962
  %6123 = vmatpush2.msra.mxu0 %v5961
  %6124 = vmatprep.subr.mxu0 %v5960
  %6125 = vmatpush2.msra.mxu0 %v5959
  %6126 = vmatprep.subr.mxu0 %v5958
  %6127 = vmatpush2.msra.mxu0 %v5957
  %6128 = vmatprep.subr.mxu0 %v5956
  %6129 = vmatpush2.msra.mxu0 %v5955
  %6130 = vmatprep.mubr.f32.mxu0 %v5984
  %6131 = vmatmul.mubr.f32.gmra.mxu0 %v5853
  %v6132 = vpop.f32.mrf.mxu0
  %v6133 = vadd.f32 %v6056, %v6132
  %v6134 = vpop.f32.mrf.mxu0
  %v6135 = vadd.f32 %v6058, %v6134
  %6136 = vmatprep.mubr.f32.mxu0 %v5987
  %6137 = vmatmul.mubr.f32.gmra.mxu0 %v5857
  %v6138 = vpop.f32.mrf.mxu0
  %v6139 = vadd.f32 %v6062, %v6138
  %v6140 = vpop.f32.mrf.mxu0
  %v6141 = vadd.f32 %v6064, %v6140
  %6142 = vdwg.mxu0
  %6147 = vrot.lane.b32.xlu0 %v6133, 127
  %v6148 = vpop.permute.xlu0 %6147
  %6149 = vrot.lane.b32.xlu0 %v6135, 127
  %v6150 = vpop.permute.xlu0 %6149
  %6151 = vrot.lane.b32.xlu0 %v6139, 127
  %v6152 = vpop.permute.xlu0 %6151
  %6153 = vrot.lane.b32.xlu0 %v6141, 127
  %v6154 = vpop.permute.xlu0 %6153
  %v6155 = vsel %vm122, %v6148, %v6150
  %v6156 = vsel %vm122, %v6152, %v6154
  %6161 = vrot.lane.b32.xlu0 %v6133, 126
  %v6162 = vpop.permute.xlu0 %6161
  %6163 = vrot.lane.b32.xlu0 %v6135, 126
  %v6164 = vpop.permute.xlu0 %6163
  %6165 = vrot.lane.b32.xlu0 %v6139, 126
  %v6166 = vpop.permute.xlu0 %6165
  %6167 = vrot.lane.b32.xlu0 %v6141, 126
  %v6168 = vpop.permute.xlu0 %6167
  %v6169 = vsel %vm190, %v6162, %v6164
  %v6170 = vsel %vm190, %v6166, %v6168
  %v6175 = vld [vmem:[%s4] sm:$0xff]
  %v6176 = vld [vmem:[%s4 + $0x8] sm:$0xff]
  %v6177 = vld [vmem:[%s4 + $0x10] sm:$0xff]
  %v6178 = vld [vmem:[%s4 + $0x18] sm:$0xff]
  %v6179 = vld [vmem:[%s5] sm:$0xff]
  %v6180 = vld [vmem:[%s5 + $0x8] sm:$0xff]
  %v6181 = vld [vmem:[%s5 + $0x10] sm:$0xff]
  %v6182 = vld [vmem:[%s5 + $0x18] sm:$0xff]
  %6184 = vset.pattern.permute.xlu0 0
  %6185 = vperm.xlu0 %6184, %v6179
  %v6186 = vpop.permute.xlu0 %6185
  %6189 = vset.pattern.permute.xlu0 0
  %6190 = vperm.xlu0 %6189, %v6180
  %v6191 = vpop.permute.xlu0 %6190
  %6194 = vset.pattern.permute.xlu0 0
  %6195 = vperm.xlu0 %6194, %v6181
  %v6196 = vpop.permute.xlu0 %6195
  %6199 = vset.pattern.permute.xlu0 0
  %6200 = vperm.xlu0 %6199, %v6182
  %v6201 = vpop.permute.xlu0 %6200
  %v6204 = vsel %vm670, %v6175, 0
  %v6207 = vsel %vm670, %v6176, 0
  %v6210 = vsel %vm670, %v6177, 0
  %v6213 = vsel %vm670, %v6178, 0
  %6215 = vmatprep.subr.mxu0 0.0
  %6216 = vmatpush1.msra.mxu0 0.0
  %6217 = vmatprep.subr.mxu0 0.0
  %6218 = vmatpush1.msra.mxu0 0.0
  %6219 = vmatprep.subr.mxu0 0.0
  %6220 = vmatpush1.msra.mxu0 0.0
  %6221 = vmatprep.subr.mxu0 0.0
  %6222 = vmatpush1.msra.mxu0 0.0
  %6223 = vmatprep.subr.mxu0 0.0
  %6224 = vmatpush1.msra.mxu0 0.0
  %6225 = vmatprep.subr.mxu0 0.0
  %6226 = vmatpush1.msra.mxu0 0.0
  %6227 = vmatprep.subr.mxu0 0.0
  %6228 = vmatpush1.msra.mxu0 0.0
  %6229 = vmatprep.subr.mxu0 0.0
  %6230 = vmatpush1.msra.mxu0 0.0
  %6231 = vmatprep.subr.mxu0 0.0
  %6232 = vmatpush1.msra.mxu0 0.0
  %6233 = vmatprep.subr.mxu0 0.0
  %6234 = vmatpush1.msra.mxu0 0.0
  %6235 = vmatprep.subr.mxu0 %v6168
  %6236 = vmatpush1.msra.mxu0 %v6170
  %6237 = vmatprep.subr.mxu0 %v6164
  %6238 = vmatpush1.msra.mxu0 %v6169
  %6239 = vmatprep.subr.mxu0 %v6154
  %6240 = vmatpush1.msra.mxu0 %v6156
  %6241 = vmatprep.subr.mxu0 %v6150
  %6242 = vmatpush1.msra.mxu0 %v6155
  %6243 = vmatprep.subr.mxu0 %v6141
  %6244 = vmatpush1.msra.mxu0 %v6139
  %6245 = vmatprep.subr.mxu0 %v6135
  %6246 = vmatpush1.msra.mxu0 %v6133
  %6247 = vmatprep.subr.mxu0 0.0
  %6248 = vmatpush2.msra.mxu0 0.0
  %6249 = vmatprep.subr.mxu0 0.0
  %6250 = vmatpush2.msra.mxu0 0.0
  %6251 = vmatprep.subr.mxu0 0.0
  %6252 = vmatpush2.msra.mxu0 0.0
  %6253 = vmatprep.subr.mxu0 0.0
  %6254 = vmatpush2.msra.mxu0 0.0
  %6255 = vmatprep.subr.mxu0 0.0
  %6256 = vmatpush2.msra.mxu0 0.0
  %6257 = vmatprep.subr.mxu0 0.0
  %6258 = vmatpush2.msra.mxu0 0.0
  %6259 = vmatprep.subr.mxu0 0.0
  %6260 = vmatpush2.msra.mxu0 0.0
  %6261 = vmatprep.subr.mxu0 0.0
  %6262 = vmatpush2.msra.mxu0 0.0
  %6263 = vmatprep.subr.mxu0 0.0
  %6264 = vmatpush2.msra.mxu0 0.0
  %6265 = vmatprep.subr.mxu0 0.0
  %6266 = vmatpush2.msra.mxu0 0.0
  %6267 = vmatprep.subr.mxu0 0.0
  %6268 = vmatpush2.msra.mxu0 0.0
  %6269 = vmatprep.subr.mxu0 0.0
  %6270 = vmatpush2.msra.mxu0 0.0
  %6271 = vmatprep.subr.mxu0 0.0
  %6272 = vmatpush2.msra.mxu0 0.0
  %6273 = vmatprep.subr.mxu0 0.0
  %6274 = vmatpush2.msra.mxu0 0.0
  %6275 = vmatprep.subr.mxu0 0.0
  %6276 = vmatpush2.msra.mxu0 0.0
  %6277 = vmatprep.subr.mxu0 0.0
  %6278 = vmatpush2.msra.mxu0 0.0
  %6279 = vmatprep.mubr.f32.mxu0 0.0
  %6280 = vmatmul.mubr.f32.gmra.mxu0 %v6204
  %v6281 = vpop.f32.mrf.mxu0
  %v6282 = vadd.f32 %v6186, %v6281
  %v6283 = vpop.f32.mrf.mxu0
  %v6284 = vadd.f32 %v6186, %v6283
  %6285 = vmatprep.mubr.f32.mxu0 0.0
  %6286 = vmatmul.mubr.f32.gmra.mxu0 %v6207
  %v6287 = vpop.f32.mrf.mxu0
  %v6288 = vadd.f32 %v6191, %v6287
  %v6289 = vpop.f32.mrf.mxu0
  %v6290 = vadd.f32 %v6191, %v6289
  %6291 = vmatprep.mubr.f32.mxu0 0.0
  %6292 = vmatmul.mubr.f32.gmra.mxu0 %v6210
  %v6293 = vpop.f32.mrf.mxu0
  %v6294 = vadd.f32 %v6196, %v6293
  %v6295 = vpop.f32.mrf.mxu0
  %v6296 = vadd.f32 %v6196, %v6295
  %6297 = vmatprep.mubr.f32.mxu0 0.0
  %6298 = vmatmul.mubr.f32.gmra.mxu0 %v6213
  %v6299 = vpop.f32.mrf.mxu0
  %v6300 = vadd.f32 %v6201, %v6299
  %v6301 = vpop.f32.mrf.mxu0
  %v6302 = vadd.f32 %v6201, %v6301
  %6303 = vdwg.mxu0
  %v6304 = vmax.f32 %v6282, 0.0
  %v6305 = vmax.f32 %v6284, 0.0
  %v6306 = vmax.f32 %v6288, 0.0
  %v6307 = vmax.f32 %v6290, 0.0
  %v6308 = vmax.f32 %v6294, 0.0
  %v6309 = vmax.f32 %v6296, 0.0
  %v6310 = vmax.f32 %v6300, 0.0
  %v6311 = vmax.f32 %v6302, 0.0
  %6320 = vrot.lane.b32.xlu0 %v6304, 127
  %v6321 = vpop.permute.xlu0 %6320
  %6322 = vrot.lane.b32.xlu0 %v6305, 127
  %v6323 = vpop.permute.xlu0 %6322
  %6324 = vrot.lane.b32.xlu0 %v6306, 127
  %v6325 = vpop.permute.xlu0 %6324
  %6326 = vrot.lane.b32.xlu0 %v6307, 127
  %v6327 = vpop.permute.xlu0 %6326
  %6328 = vrot.lane.b32.xlu0 %v6308, 127
  %v6329 = vpop.permute.xlu0 %6328
  %6330 = vrot.lane.b32.xlu0 %v6309, 127
  %v6331 = vpop.permute.xlu0 %6330
  %6332 = vrot.lane.b32.xlu0 %v6310, 127
  %v6333 = vpop.permute.xlu0 %6332
  %6334 = vrot.lane.b32.xlu0 %v6311, 127
  %v6335 = vpop.permute.xlu0 %6334
  %v6336 = vsel %vm122, %v6321, %v6323
  %v6337 = vsel %vm122, %v6325, %v6327
  %v6338 = vsel %vm122, %v6329, %v6331
  %v6339 = vsel %vm122, %v6333, %v6335
  %v6348 = vmax.f32 %v6304, %v6336
  %v6349 = vmax.f32 %v6305, %v6323
  %v6350 = vmax.f32 %v6306, %v6337
  %v6351 = vmax.f32 %v6307, %v6327
  %v6352 = vmax.f32 %v6308, %v6338
  %v6353 = vmax.f32 %v6309, %v6331
  %v6354 = vmax.f32 %v6310, %v6339
  %v6355 = vmax.f32 %v6311, %v6335
  %6356 = vrot.lane.b32.xlu0 %v6304, 126
  %v6357 = vpop.permute.xlu0 %6356
  %6358 = vrot.lane.b32.xlu0 %v6305, 126
  %v6359 = vpop.permute.xlu0 %6358
  %6360 = vrot.lane.b32.xlu0 %v6306, 126
  %v6361 = vpop.permute.xlu0 %6360
  %6362 = vrot.lane.b32.xlu0 %v6307, 126
  %v6363 = vpop.permute.xlu0 %6362
  %6364 = vrot.lane.b32.xlu0 %v6308, 126
  %v6365 = vpop.permute.xlu0 %6364
  %6366 = vrot.lane.b32.xlu0 %v6309, 126
  %v6367 = vpop.permute.xlu0 %6366
  %6368 = vrot.lane.b32.xlu0 %v6310, 126
  %v6369 = vpop.permute.xlu0 %6368
  %6370 = vrot.lane.b32.xlu0 %v6311, 126
  %v6371 = vpop.permute.xlu0 %6370
  %v6372 = vsel %vm190, %v6357, %v6359
  %v6373 = vsel %vm190, %v6361, %v6363
  %v6374 = vsel %vm190, %v6365, %v6367
  %v6375 = vsel %vm190, %v6369, %v6371
  %v6384 = vmax.f32 %v6348, %v6372
  %v6385 = vmax.f32 %v6349, %v6359
  %v6386 = vmax.f32 %v6350, %v6373
  %v6387 = vmax.f32 %v6351, %v6363
  %v6388 = vmax.f32 %v6352, %v6374
  %v6389 = vmax.f32 %v6353, %v6367
  %v6390 = vmax.f32 %v6354, %v6375
  %v6391 = vmax.f32 %v6355, %v6371
  %v6392 = vld [vmem:[%s6] sm:$0xff]
  %v6393 = vld [vmem:[%s6 + $0x8] sm:$0xff]
  %v6394 = vld [vmem:[%s6 + $0x10] sm:$0xff]
  %v6395 = vld [vmem:[%s6 + $0x18] sm:$0xff]
  %v6396 = vld [vmem:[%s6 + $0x20] sm:$0xff]
  %v6397 = vld [vmem:[%s6 + $0x28] sm:$0xff]
  %v6398 = vld [vmem:[%s6 + $0x30] sm:$0xff]
  %v6399 = vld [vmem:[%s6 + $0x38] sm:$0xff]
  %v6400 = vld [vmem:[%s6 + $0x40] sm:$0xff]
  %v6401 = vld [vmem:[%s6 + $0x48] sm:$0xff]
  %v6402 = vld [vmem:[%s6 + $0x50] sm:$0xff]
  %v6403 = vld [vmem:[%s6 + $0x58] sm:$0xff]
  %v6404 = vld [vmem:[%s6 + $0x60] sm:$0xff]
  %v6405 = vld [vmem:[%s6 + $0x68] sm:$0xff]
  %v6406 = vld [vmem:[%s6 + $0x70] sm:$0xff]
  %v6407 = vld [vmem:[%s6 + $0x78] sm:$0xff]
  %v6408 = vld [vmem:[%s6 + $0x80] sm:$0xff]
  %v6409 = vld [vmem:[%s6 + $0x88] sm:$0xff]
  %v6410 = vld [vmem:[%s6 + $0x90] sm:$0xff]
  %v6411 = vld [vmem:[%s6 + $0x98] sm:$0xff]
  %v6412 = vld [vmem:[%s6 + $0xa0] sm:$0x3]
  %v6414 = vsel %vm881, %v6385, 0
  %v6417 = vsel %vm881, %v6387, 0
  %v6420 = vsel %vm881, %v6389, 0
  %v6423 = vsel %vm881, %v6391, 0
  %v6426 = vsel %vm894, %v6412, 0
  %6428 = vmatprep.subr.mxu0 0.0
  %6429 = vmatpush1.msra.mxu0 %v6407
  %6430 = vmatprep.subr.mxu0 0.0
  %6431 = vmatpush1.msra.mxu0 %v6406
  %6432 = vmatprep.subr.mxu0 0.0
  %6433 = vmatpush1.msra.mxu0 %v6405
  %6434 = vmatprep.subr.mxu0 0.0
  %6435 = vmatpush1.msra.mxu0 %v6404
  %6436 = vmatprep.subr.mxu0 0.0
  %6437 = vmatpush1.msra.mxu0 %v6403
  %6438 = vmatprep.subr.mxu0 0.0
  %6439 = vmatpush1.msra.mxu0 %v6402
  %6440 = vmatprep.subr.mxu0 0.0
  %6441 = vmatpush1.msra.mxu0 %v6401
  %6442 = vmatprep.subr.mxu0 0.0
  %6443 = vmatpush1.msra.mxu0 %v6400
  %6444 = vmatprep.subr.mxu0 0.0
  %6445 = vmatpush1.msra.mxu0 %v6399
  %6446 = vmatprep.subr.mxu0 0.0
  %6447 = vmatpush1.msra.mxu0 %v6398
  %6448 = vmatprep.subr.mxu0 0.0
  %6449 = vmatpush1.msra.mxu0 %v6397
  %6450 = vmatprep.subr.mxu0 0.0
  %6451 = vmatpush1.msra.mxu0 %v6396
  %6452 = vmatprep.subr.mxu0 0.0
  %6453 = vmatpush1.msra.mxu0 %v6395
  %6454 = vmatprep.subr.mxu0 0.0
  %6455 = vmatpush1.msra.mxu0 %v6394
  %6456 = vmatprep.subr.mxu0 0.0
  %6457 = vmatpush1.msra.mxu0 %v6393
  %6458 = vmatprep.subr.mxu0 0.0
  %6459 = vmatpush1.msra.mxu0 %v6392
  %6460 = vmatprep.subr.mxu0 0.0
  %6461 = vmatpush2.msra.mxu0 0.0
  %6462 = vmatprep.subr.mxu0 0.0
  %6463 = vmatpush2.msra.mxu0 0.0
  %6464 = vmatprep.subr.mxu0 0.0
  %6465 = vmatpush2.msra.mxu0 0.0
  %6466 = vmatprep.subr.mxu0 0.0
  %6467 = vmatpush2.msra.mxu0 0.0
  %6468 = vmatprep.subr.mxu0 0.0
  %6469 = vmatpush2.msra.mxu0 0.0
  %6470 = vmatprep.subr.mxu0 0.0
  %6471 = vmatpush2.msra.mxu0 0.0
  %6472 = vmatprep.subr.mxu0 0.0
  %6473 = vmatpush2.msra.mxu0 0.0
  %6474 = vmatprep.subr.mxu0 0.0
  %6475 = vmatpush2.msra.mxu0 0.0
  %6476 = vmatprep.subr.mxu0 0.0
  %6477 = vmatpush2.msra.mxu0 0.0
  %6478 = vmatprep.subr.mxu0 0.0
  %6479 = vmatpush2.msra.mxu0 0.0
  %6480 = vmatprep.subr.mxu0 0.0
  %6481 = vmatpush2.msra.mxu0 0.0
  %6482 = vmatprep.subr.mxu0 0.0
  %6483 = vmatpush2.msra.mxu0 %v6426
  %6484 = vmatprep.subr.mxu0 0.0
  %6485 = vmatpush2.msra.mxu0 %v6411
  %6486 = vmatprep.subr.mxu0 0.0
  %6487 = vmatpush2.msra.mxu0 %v6410
  %6488 = vmatprep.subr.mxu0 0.0
  %6489 = vmatpush2.msra.mxu0 %v6409
  %6490 = vmatprep.subr.mxu0 0.0
  %6491 = vmatpush2.msra.mxu0 %v6408
  %6492 = vmatprep.mubr.f32.mxu0 %v6414
  %6493 = vmatmul.mubr.f32.gmra.mxu0 %v6384
  %v6494 = vpop.f32.mrf.mxu0
  %v6495 = vadd.f32 0.0, %v6494
  %v6496 = vpop.f32.mrf.mxu0
  %6497 = vmatprep.mubr.f32.mxu0 %v6417
  %6498 = vmatmul.mubr.f32.gmra.mxu0 %v6386
  %v6499 = vpop.f32.mrf.mxu0
  %v6500 = vadd.f32 0.0, %v6499
  %v6501 = vpop.f32.mrf.mxu0
  %6502 = vmatprep.mubr.f32.mxu0 %v6420
  %6503 = vmatmul.mubr.f32.gmra.mxu0 %v6388
  %v6504 = vpop.f32.mrf.mxu0
  %v6505 = vadd.f32 0.0, %v6504
  %v6506 = vpop.f32.mrf.mxu0
  %6507 = vmatprep.mubr.f32.mxu0 %v6423
  %6508 = vmatmul.mubr.f32.gmra.mxu0 %v6390
  %v6509 = vpop.f32.mrf.mxu0
  %v6510 = vadd.f32 0.0, %v6509
  %v6511 = vpop.f32.mrf.mxu0
  %6512 = vdwg.mxu0
  %6517 = vrot.lane.b32.xlu0 %v6495, 127
  %v6518 = vpop.permute.xlu0 %6517
  %6519 = vrot.lane.b32.xlu0 %v6500, 127
  %v6520 = vpop.permute.xlu0 %6519
  %6521 = vrot.lane.b32.xlu0 %v6505, 127
  %v6522 = vpop.permute.xlu0 %6521
  %6523 = vrot.lane.b32.xlu0 %v6510, 127
  %v6524 = vpop.permute.xlu0 %6523
  %6529 = vrot.lane.b32.xlu0 %v6495, 126
  %v6530 = vpop.permute.xlu0 %6529
  %6531 = vrot.lane.b32.xlu0 %v6500, 126
  %v6532 = vpop.permute.xlu0 %6531
  %6533 = vrot.lane.b32.xlu0 %v6505, 126
  %v6534 = vpop.permute.xlu0 %6533
  %6535 = vrot.lane.b32.xlu0 %v6510, 126
  %v6536 = vpop.permute.xlu0 %6535
  %v6541 = vld [vmem:[%s7] sm:$0xff]
  %v6542 = vld [vmem:[%s7 + $0x8] sm:$0xff]
  %v6543 = vld [vmem:[%s7 + $0x10] sm:$0xff]
  %v6544 = vld [vmem:[%s7 + $0x18] sm:$0xff]
  %v6545 = vld [vmem:[%s7 + $0x20] sm:$0xff]
  %v6546 = vld [vmem:[%s7 + $0x28] sm:$0xff]
  %v6547 = vld [vmem:[%s7 + $0x30] sm:$0xff]
  %v6548 = vld [vmem:[%s7 + $0x38] sm:$0xff]
  %v6549 = vld [vmem:[%s8] sm:$0xff]
  %v6550 = vld [vmem:[%s8 + $0x8] sm:$0xff]
  %v6551 = vld [vmem:[%s8 + $0x10] sm:$0xff]
  %v6552 = vld [vmem:[%s8 + $0x18] sm:$0xff]
  %v6553 = vld [vmem:[%s8 + $0x20] sm:$0xff]
  %v6554 = vld [vmem:[%s8 + $0x28] sm:$0xff]
  %v6555 = vld [vmem:[%s8 + $0x30] sm:$0xff]
  %v6556 = vld [vmem:[%s8 + $0x38] sm:$0xff]
  %6558 = vset.pattern.permute.xlu0 0
  %6559 = vperm.xlu0 %6558, %v6549
  %v6560 = vpop.permute.xlu0 %6559
  %6563 = vset.pattern.permute.xlu0 0
  %6564 = vperm.xlu0 %6563, %v6550
  %v6565 = vpop.permute.xlu0 %6564
  %6568 = vset.pattern.permute.xlu0 0
  %6569 = vperm.xlu0 %6568, %v6551
  %v6570 = vpop.permute.xlu0 %6569
  %6573 = vset.pattern.permute.xlu0 0
  %6574 = vperm.xlu0 %6573, %v6552
  %v6575 = vpop.permute.xlu0 %6574
  %6578 = vset.pattern.permute.xlu0 0
  %6579 = vperm.xlu0 %6578, %v6553
  %v6580 = vpop.permute.xlu0 %6579
  %6583 = vset.pattern.permute.xlu0 0
  %6584 = vperm.xlu0 %6583, %v6554
  %v6585 = vpop.permute.xlu0 %6584
  %6588 = vset.pattern.permute.xlu0 0
  %6589 = vperm.xlu0 %6588, %v6555
  %v6590 = vpop.permute.xlu0 %6589
  %6593 = vset.pattern.permute.xlu0 0
  %6594 = vperm.xlu0 %6593, %v6556
  %v6595 = vpop.permute.xlu0 %6594
  %v6598 = vsel %vm1067, %v6541, 0
  %v6601 = vsel %vm1067, %v6542, 0
  %v6604 = vsel %vm1067, %v6543, 0
  %v6607 = vsel %vm1067, %v6544, 0
  %v6610 = vsel %vm1067, %v6545, 0
  %v6613 = vsel %vm1067, %v6546, 0
  %v6616 = vsel %vm1067, %v6547, 0
  %v6619 = vsel %vm1067, %v6548, 0
  %6621 = vmatprep.subr.mxu0 0.0
  %6622 = vmatpush1.msra.mxu0 0.0
  %6623 = vmatprep.subr.mxu0 0.0
  %6624 = vmatpush1.msra.mxu0 0.0
  %6625 = vmatprep.subr.mxu0 0.0
  %6626 = vmatpush1.msra.mxu0 0.0
  %6627 = vmatprep.subr.mxu0 0.0
  %6628 = vmatpush1.msra.mxu0 0.0
  %6629 = vmatprep.subr.mxu0 0.0
  %6630 = vmatpush1.msra.mxu0 %v6536
  %6631 = vmatprep.subr.mxu0 0.0
  %6632 = vmatpush1.msra.mxu0 %v6534
  %6633 = vmatprep.subr.mxu0 0.0
  %6634 = vmatpush1.msra.mxu0 %v6532
  %6635 = vmatprep.subr.mxu0 0.0
  %6636 = vmatpush1.msra.mxu0 %v6530
  %6637 = vmatprep.subr.mxu0 0.0
  %6638 = vmatpush1.msra.mxu0 %v6524
  %6639 = vmatprep.subr.mxu0 0.0
  %6640 = vmatpush1.msra.mxu0 %v6522
  %6641 = vmatprep.subr.mxu0 0.0
  %6642 = vmatpush1.msra.mxu0 %v6520
  %6643 = vmatprep.subr.mxu0 0.0
  %6644 = vmatpush1.msra.mxu0 %v6518
  %6645 = vmatprep.subr.mxu0 0.0
  %6646 = vmatpush1.msra.mxu0 %v6510
  %6647 = vmatprep.subr.mxu0 0.0
  %6648 = vmatpush1.msra.mxu0 %v6505
  %6649 = vmatprep.subr.mxu0 0.0
  %6650 = vmatpush1.msra.mxu0 %v6500
  %6651 = vmatprep.subr.mxu0 0.0
  %6652 = vmatpush1.msra.mxu0 %v6495
  %6653 = vmatprep.subr.mxu0 0.0
  %6654 = vmatpush2.msra.mxu0 0.0
  %6655 = vmatprep.subr.mxu0 0.0
  %6656 = vmatpush2.msra.mxu0 0.0
  %6657 = vmatprep.subr.mxu0 0.0
  %6658 = vmatpush2.msra.mxu0 0.0
  %6659 = vmatprep.subr.mxu0 0.0
  %6660 = vmatpush2.msra.mxu0 0.0
  %6661 = vmatprep.subr.mxu0 0.0
  %6662 = vmatpush2.msra.mxu0 0.0
  %6663 = vmatprep.subr.mxu0 0.0
  %6664 = vmatpush2.msra.mxu0 0.0
  %6665 = vmatprep.subr.mxu0 0.0
  %6666 = vmatpush2.msra.mxu0 0.0
  %6667 = vmatprep.subr.mxu0 0.0
  %6668 = vmatpush2.msra.mxu0 0.0
  %6669 = vmatprep.subr.mxu0 0.0
  %6670 = vmatpush2.msra.mxu0 0.0
  %6671 = vmatprep.subr.mxu0 0.0
  %6672 = vmatpush2.msra.mxu0 0.0
  %6673 = vmatprep.subr.mxu0 0.0
  %6674 = vmatpush2.msra.mxu0 0.0
  %6675 = vmatprep.subr.mxu0 0.0
  %6676 = vmatpush2.msra.mxu0 0.0
  %6677 = vmatprep.subr.mxu0 0.0
  %6678 = vmatpush2.msra.mxu0 0.0
  %6679 = vmatprep.subr.mxu0 0.0
  %6680 = vmatpush2.msra.mxu0 0.0
  %6681 = vmatprep.subr.mxu0 0.0
  %6682 = vmatpush2.msra.mxu0 0.0
  %6683 = vmatprep.subr.mxu0 0.0
  %6684 = vmatpush2.msra.mxu0 0.0
  %6685 = vmatprep.mubr.f32.mxu0 0.0
  %6686 = vmatmul.mubr.f32.gmra.mxu0 %v6598
  %v6687 = vpop.f32.mrf.mxu0
  %v6688 = vadd.f32 %v6560, %v6687
  %v6689 = vpop.f32.mrf.mxu0
  %6690 = vmatprep.mubr.f32.mxu0 0.0
  %6691 = vmatmul.mubr.f32.gmra.mxu0 %v6601
  %v6692 = vpop.f32.mrf.mxu0
  %v6693 = vadd.f32 %v6565, %v6692
  %v6694 = vpop.f32.mrf.mxu0
  %6695 = vmatprep.mubr.f32.mxu0 0.0
  %6696 = vmatmul.mubr.f32.gmra.mxu0 %v6604
  %v6697 = vpop.f32.mrf.mxu0
  %v6698 = vadd.f32 %v6570, %v6697
  %v6699 = vpop.f32.mrf.mxu0
  %6700 = vmatprep.mubr.f32.mxu0 0.0
  %6701 = vmatmul.mubr.f32.gmra.mxu0 %v6607
  %v6702 = vpop.f32.mrf.mxu0
  %v6703 = vadd.f32 %v6575, %v6702
  %v6704 = vpop.f32.mrf.mxu0
  %6705 = vmatprep.mubr.f32.mxu0 0.0
  %6706 = vmatmul.mubr.f32.gmra.mxu0 %v6610
  %v6707 = vpop.f32.mrf.mxu0
  %v6708 = vadd.f32 %v6580, %v6707
  %v6709 = vpop.f32.mrf.mxu0
  %6710 = vmatprep.mubr.f32.mxu0 0.0
  %6711 = vmatmul.mubr.f32.gmra.mxu0 %v6613
  %v6712 = vpop.f32.mrf.mxu0
  %v6713 = vadd.f32 %v6585, %v6712
  %v6714 = vpop.f32.mrf.mxu0
  %6715 = vmatprep.mubr.f32.mxu0 0.0
  %6716 = vmatmul.mubr.f32.gmra.mxu0 %v6616
  %v6717 = vpop.f32.mrf.mxu0
  %v6718 = vadd.f32 %v6590, %v6717
  %v6719 = vpop.f32.mrf.mxu0
  %6720 = vmatprep.mubr.f32.mxu0 0.0
  %6721 = vmatmul.mubr.f32.gmra.mxu0 %v6619
  %v6722 = vpop.f32.mrf.mxu0
  %v6723 = vadd.f32 %v6595, %v6722
  %v6724 = vpop.f32.mrf.mxu0
  %6725 = vdwg.mxu0
  %v6726 = vmax.f32 %v6688, 0.0
  %v6727 = vmax.f32 %v6693, 0.0
  %v6728 = vmax.f32 %v6698, 0.0
  %v6729 = vmax.f32 %v6703, 0.0
  %v6730 = vmax.f32 %v6708, 0.0
  %v6731 = vmax.f32 %v6713, 0.0
  %v6732 = vmax.f32 %v6718, 0.0
  %v6733 = vmax.f32 %v6723, 0.0
  %6742 = vrot.lane.b32.xlu0 %v6726, 127
  %v6743 = vpop.permute.xlu0 %6742
  %6744 = vrot.lane.b32.xlu0 %v6727, 127
  %v6745 = vpop.permute.xlu0 %6744
  %6746 = vrot.lane.b32.xlu0 %v6728, 127
  %v6747 = vpop.permute.xlu0 %6746
  %6748 = vrot.lane.b32.xlu0 %v6729, 127
  %v6749 = vpop.permute.xlu0 %6748
  %6750 = vrot.lane.b32.xlu0 %v6730, 127
  %v6751 = vpop.permute.xlu0 %6750
  %6752 = vrot.lane.b32.xlu0 %v6731, 127
  %v6753 = vpop.permute.xlu0 %6752
  %6754 = vrot.lane.b32.xlu0 %v6732, 127
  %v6755 = vpop.permute.xlu0 %6754
  %6756 = vrot.lane.b32.xlu0 %v6733, 127
  %v6757 = vpop.permute.xlu0 %6756
  %v6766 = vmax.f32 %v6726, %v6743
  %v6767 = vmax.f32 %v6727, %v6745
  %v6768 = vmax.f32 %v6728, %v6747
  %v6769 = vmax.f32 %v6729, %v6749
  %v6770 = vmax.f32 %v6730, %v6751
  %v6771 = vmax.f32 %v6731, %v6753
  %v6772 = vmax.f32 %v6732, %v6755
  %v6773 = vmax.f32 %v6733, %v6757
  %6774 = vrot.lane.b32.xlu0 %v6726, 126
  %v6775 = vpop.permute.xlu0 %6774
  %6776 = vrot.lane.b32.xlu0 %v6727, 126
  %v6777 = vpop.permute.xlu0 %6776
  %6778 = vrot.lane.b32.xlu0 %v6728, 126
  %v6779 = vpop.permute.xlu0 %6778
  %6780 = vrot.lane.b32.xlu0 %v6729, 126
  %v6781 = vpop.permute.xlu0 %6780
  %6782 = vrot.lane.b32.xlu0 %v6730, 126
  %v6783 = vpop.permute.xlu0 %6782
  %6784 = vrot.lane.b32.xlu0 %v6731, 126
  %v6785 = vpop.permute.xlu0 %6784
  %6786 = vrot.lane.b32.xlu0 %v6732, 126
  %v6787 = vpop.permute.xlu0 %6786
  %6788 = vrot.lane.b32.xlu0 %v6733, 126
  %v6789 = vpop.permute.xlu0 %6788
  %v6798 = vmax.f32 %v6766, %v6775
  %v6799 = vmax.f32 %v6767, %v6777
  %v6800 = vmax.f32 %v6768, %v6779
  %v6801 = vmax.f32 %v6769, %v6781
  %v6802 = vmax.f32 %v6770, %v6783
  %v6803 = vmax.f32 %v6771, %v6785
  %v6804 = vmax.f32 %v6772, %v6787
  %v6805 = vmax.f32 %v6773, %v6789
  %v6806 = vld [vmem:[%s9] sm:$0xff]
  %v6807 = vld [vmem:[%s9 + $0x8] sm:$0xff]
  %v6808 = vld [vmem:[%s9 + $0x10] sm:$0xff]
  %v6809 = vld [vmem:[%s9 + $0x18] sm:$0xff]
  %v6810 = vld [vmem:[%s9 + $0x20] sm:$0xff]
  %v6811 = vld [vmem:[%s9 + $0x28] sm:$0xff]
  %v6812 = vld [vmem:[%s9 + $0x30] sm:$0x3]
  %v6814 = vsel %vm1284, %v6798, 0
  %v6817 = vsel %vm1284, %v6799, 0
  %v6820 = vsel %vm1284, %v6800, 0
  %v6823 = vsel %vm1284, %v6801, 0
  %v6826 = vsel %vm1284, %v6802, 0
  %v6829 = vsel %vm1284, %v6803, 0
  %v6832 = vsel %vm1284, %v6804, 0
  %v6835 = vsel %vm1284, %v6805, 0
  %v6838 = vsel %vm894, %v6812, 0
  %6840 = vmatprep.subr.mxu0 0.0
  %6841 = vmatpush1.msra.mxu0 0.0
  %6842 = vmatprep.subr.mxu0 0.0
  %6843 = vmatpush1.msra.mxu0 0.0
  %6844 = vmatprep.subr.mxu0 0.0
  %6845 = vmatpush1.msra.mxu0 0.0
  %6846 = vmatprep.subr.mxu0 0.0
  %6847 = vmatpush1.msra.mxu0 0.0
  %6848 = vmatprep.subr.mxu0 0.0
  %6849 = vmatpush1.msra.mxu0 0.0
  %6850 = vmatprep.subr.mxu0 0.0
  %6851 = vmatpush1.msra.mxu0 0.0
  %6852 = vmatprep.subr.mxu0 0.0
  %6853 = vmatpush1.msra.mxu0 0.0
  %6854 = vmatprep.subr.mxu0 0.0
  %6855 = vmatpush1.msra.mxu0 0.0
  %6856 = vmatprep.subr.mxu0 0.0
  %6857 = vmatpush1.msra.mxu0 0.0
  %6858 = vmatprep.subr.mxu0 0.0
  %6859 = vmatpush1.msra.mxu0 %v6838
  %6860 = vmatprep.subr.mxu0 0.0
  %6861 = vmatpush1.msra.mxu0 %v6811
  %6862 = vmatprep.subr.mxu0 0.0
  %6863 = vmatpush1.msra.mxu0 %v6810
  %6864 = vmatprep.subr.mxu0 0.0
  %6865 = vmatpush1.msra.mxu0 %v6809
  %6866 = vmatprep.subr.mxu0 0.0
  %6867 = vmatpush1.msra.mxu0 %v6808
  %6868 = vmatprep.subr.mxu0 0.0
  %6869 = vmatpush1.msra.mxu0 %v6807
  %6870 = vmatprep.subr.mxu0 0.0
  %6871 = vmatpush1.msra.mxu0 %v6806
  %6872 = vmatprep.subr.mxu0 0.0
  %6873 = vmatpush2.msra.mxu0 0.0
  %6874 = vmatprep.subr.mxu0 0.0
  %6875 = vmatpush2.msra.mxu0 0.0
  %6876 = vmatprep.subr.mxu0 0.0
  %6877 = vmatpush2.msra.mxu0 0.0
  %6878 = vmatprep.subr.mxu0 0.0
  %6879 = vmatpush2.msra.mxu0 0.0
  %6880 = vmatprep.subr.mxu0 0.0
  %6881 = vmatpush2.msra.mxu0 0.0
  %6882 = vmatprep.subr.mxu0 0.0
  %6883 = vmatpush2.msra.mxu0 0.0
  %6884 = vmatprep.subr.mxu0 0.0
  %6885 = vmatpush2.msra.mxu0 0.0
  %6886 = vmatprep.subr.mxu0 0.0
  %6887 = vmatpush2.msra.mxu0 0.0
  %6888 = vmatprep.subr.mxu0 0.0
  %6889 = vmatpush2.msra.mxu0 0.0
  %6890 = vmatprep.subr.mxu0 0.0
  %6891 = vmatpush2.msra.mxu0 0.0
  %6892 = vmatprep.subr.mxu0 0.0
  %6893 = vmatpush2.msra.mxu0 0.0
  %6894 = vmatprep.subr.mxu0 0.0
  %6895 = vmatpush2.msra.mxu0 0.0
  %6896 = vmatprep.subr.mxu0 0.0
  %6897 = vmatpush2.msra.mxu0 0.0
  %6898 = vmatprep.subr.mxu0 0.0
  %6899 = vmatpush2.msra.mxu0 0.0
  %6900 = vmatprep.subr.mxu0 0.0
  %6901 = vmatpush2.msra.mxu0 0.0
  %6902 = vmatprep.subr.mxu0 0.0
  %6903 = vmatpush2.msra.mxu0 0.0
  %6904 = vmatprep.mubr.f32.mxu0 0.0
  %6905 = vmatmul.mubr.f32.gmra.mxu0 %v6814
  %v6906 = vpop.f32.mrf.mxu0
  %v6907 = vadd.f32 0.0, %v6906
  %v6908 = vpop.f32.mrf.mxu0
  %6909 = vmatprep.mubr.f32.mxu0 0.0
  %6910 = vmatmul.mubr.f32.gmra.mxu0 %v6817
  %v6911 = vpop.f32.mrf.mxu0
  %v6912 = vadd.f32 0.0, %v6911
  %v6913 = vpop.f32.mrf.mxu0
  %6914 = vmatprep.mubr.f32.mxu0 0.0
  %6915 = vmatmul.mubr.f32.gmra.mxu0 %v6820
  %v6916 = vpop.f32.mrf.mxu0
  %v6917 = vadd.f32 0.0, %v6916
  %v6918 = vpop.f32.mrf.mxu0
  %6919 = vmatprep.mubr.f32.mxu0 0.0
  %6920 = vmatmul.mubr.f32.gmra.mxu0 %v6823
  %v6921 = vpop.f32.mrf.mxu0
  %v6922 = vadd.f32 0.0, %v6921
  %v6923 = vpop.f32.mrf.mxu0
  %6924 = vmatprep.mubr.f32.mxu0 0.0
  %6925 = vmatmul.mubr.f32.gmra.mxu0 %v6826
  %v6926 = vpop.f32.mrf.mxu0
  %v6927 = vadd.f32 0.0, %v6926
  %v6928 = vpop.f32.mrf.mxu0
  %6929 = vmatprep.mubr.f32.mxu0 0.0
  %6930 = vmatmul.mubr.f32.gmra.mxu0 %v6829
  %v6931 = vpop.f32.mrf.mxu0
  %v6932 = vadd.f32 0.0, %v6931
  %v6933 = vpop.f32.mrf.mxu0
  %6934 = vmatprep.mubr.f32.mxu0 0.0
  %6935 = vmatmul.mubr.f32.gmra.mxu0 %v6832
  %v6936 = vpop.f32.mrf.mxu0
  %v6937 = vadd.f32 0.0, %v6936
  %v6938 = vpop.f32.mrf.mxu0
  %6939 = vmatprep.mubr.f32.mxu0 0.0
  %6940 = vmatmul.mubr.f32.gmra.mxu0 %v6835
  %v6941 = vpop.f32.mrf.mxu0
  %v6942 = vadd.f32 0.0, %v6941
  %v6943 = vpop.f32.mrf.mxu0
  %6944 = vdwg.mxu0
  %s6945 = scalar_lea.vmem %s10, 256
  %6946 = vst.msk [vmem:[%s6945] sm:$0xff] %vm1417, %v6907
  %6947 = vst.msk [vmem:[%s6945 + $0x8] sm:$0xff] %vm1417, %v6912
  %6948 = vst.msk [vmem:[%s6945 + $0x10] sm:$0xff] %vm1417, %v6917
  %6949 = vst.msk [vmem:[%s6945 + $0x18] sm:$0xff] %vm1417, %v6922
  %6950 = vst.msk [vmem:[%s6945 + $0x20] sm:$0xff] %vm1417, %v6927
  %6951 = vst.msk [vmem:[%s6945 + $0x28] sm:$0xff] %vm1417, %v6932
  %6952 = vst.msk [vmem:[%s6945 + $0x30] sm:$0xff] %vm1417, %v6937
  %6953 = vst.msk [vmem:[%s6945 + $0x38] sm:$0xff] %vm1417, %v6942
  %s6954 = scalar_lea.vmem %s0, 5
  %v6955 = vld [vmem:[%s6954] ss:$8 sm:$0xf]
  %v6956 = vld [vmem:[%s1] sm:$0xff]
  %v6957 = vld [vmem:[%s1 + $0x8] sm:$0xff]
  %6959 = vset.pattern.permute.xlu0 0
  %6960 = vperm.xlu0 %6959, %v6956
  %v6961 = vpop.permute.xlu0 %6960
  %6964 = vset.pattern.permute.xlu0 0
  %6965 = vperm.xlu0 %6964, %v6957
  %v6966 = vpop.permute.xlu0 %6965
  %v6969 = vlaneseq
  %v6970 = vshrl.u32 %v6969, 7
  %v6971 = vsub.s32 0, %v6970
  %v6972 = vrot.slane %v6955, %v6971
  %v6973 = vlaneseq
  %v6974 = vshrl.u32 %v6973, 7
  %v6975 = vsub.s32 1, %v6974
  %v6976 = vrot.slane %v6955, %v6975
  %v6977 = vlaneseq
  %v6978 = vshrl.u32 %v6977, 7
  %v6979 = vsub.s32 2, %v6978
  %v6980 = vrot.slane %v6955, %v6979
  %v6981 = vlaneseq
  %v6982 = vshrl.u32 %v6981, 7
  %v6983 = vsub.s32 3, %v6982
  %v6984 = vrot.slane %v6955, %v6983
  %v6989 = vmul.f32 %v6961, %v6972
  %v6990 = vmul.f32 %v6961, %v6976
  %v6991 = vmul.f32 %v6961, %v6980
  %v6992 = vmul.f32 %v6961, %v6984
  %v6993 = vmul.f32 %v6966, %v6972
  %v6994 = vmul.f32 %v6966, %v6976
  %v6995 = vmul.f32 %v6966, %v6980
  %v6996 = vmul.f32 %v6966, %v6984
  %v6997 = vld [vmem:[%s77] sm:$0xff]
  %v6998 = vld [vmem:[%s77 + $0x8] sm:$0xff]
  %7000 = vset.pattern.permute.xlu0 0
  %7001 = vperm.xlu0 %7000, %v6997
  %v7002 = vpop.permute.xlu0 %7001
  %7005 = vset.pattern.permute.xlu0 0
  %7006 = vperm.xlu0 %7005, %v6998
  %v7007 = vpop.permute.xlu0 %7006
  %v7009 = vmul.f32 %v7002, %v6972
  %v7010 = vmul.f32 %v7002, %v6976
  %v7011 = vmul.f32 %v7002, %v6980
  %v7012 = vmul.f32 %v7002, %v6984
  %v7013 = vmul.f32 %v7007, %v6972
  %v7014 = vmul.f32 %v7007, %v6976
  %v7015 = vmul.f32 %v7007, %v6980
  %v7016 = vmul.f32 %v7007, %v6984
  %7025 = vrot.lane.b32.xlu0 %v7009, 127
  %v7026 = vpop.permute.xlu0 %7025
  %7027 = vrot.lane.b32.xlu0 %v7010, 127
  %v7028 = vpop.permute.xlu0 %7027
  %7029 = vrot.lane.b32.xlu0 %v7011, 127
  %v7030 = vpop.permute.xlu0 %7029
  %7031 = vrot.lane.b32.xlu0 %v7012, 127
  %v7032 = vpop.permute.xlu0 %7031
  %7033 = vrot.lane.b32.xlu0 %v7013, 127
  %v7034 = vpop.permute.xlu0 %7033
  %7035 = vrot.lane.b32.xlu0 %v7014, 127
  %v7036 = vpop.permute.xlu0 %7035
  %7037 = vrot.lane.b32.xlu0 %v7015, 127
  %v7038 = vpop.permute.xlu0 %7037
  %7039 = vrot.lane.b32.xlu0 %v7016, 127
  %v7040 = vpop.permute.xlu0 %7039
  %v7041 = vsel %vm122, %v7026, %v7028
  %v7042 = vsel %vm122, %v7028, %v7030
  %v7043 = vsel %vm122, %v7030, %v7032
  %v7044 = vsel %vm122, %v7034, %v7036
  %v7045 = vsel %vm122, %v7036, %v7038
  %v7046 = vsel %vm122, %v7038, %v7040
  %v7055 = vadd.f32 %v6989, %v7041
  %v7056 = vadd.f32 %v6990, %v7042
  %v7057 = vadd.f32 %v6991, %v7043
  %v7058 = vadd.f32 %v6992, %v7032
  %v7059 = vadd.f32 %v6993, %v7044
  %v7060 = vadd.f32 %v6994, %v7045
  %v7061 = vadd.f32 %v6995, %v7046
  %v7062 = vadd.f32 %v6996, %v7040
  %v7063 = vld [vmem:[%s145] sm:$0xff]
  %v7064 = vld [vmem:[%s145 + $0x8] sm:$0xff]
  %7066 = vset.pattern.permute.xlu0 0
  %7067 = vperm.xlu0 %7066, %v7063
  %v7068 = vpop.permute.xlu0 %7067
  %7071 = vset.pattern.permute.xlu0 0
  %7072 = vperm.xlu0 %7071, %v7064
  %v7073 = vpop.permute.xlu0 %7072
  %v7075 = vmul.f32 %v7068, %v6972
  %v7076 = vmul.f32 %v7068, %v6976
  %v7077 = vmul.f32 %v7068, %v6980
  %v7078 = vmul.f32 %v7068, %v6984
  %v7079 = vmul.f32 %v7073, %v6972
  %v7080 = vmul.f32 %v7073, %v6976
  %v7081 = vmul.f32 %v7073, %v6980
  %v7082 = vmul.f32 %v7073, %v6984
  %7091 = vrot.lane.b32.xlu0 %v7075, 126
  %v7092 = vpop.permute.xlu0 %7091
  %7093 = vrot.lane.b32.xlu0 %v7076, 126
  %v7094 = vpop.permute.xlu0 %7093
  %7095 = vrot.lane.b32.xlu0 %v7077, 126
  %v7096 = vpop.permute.xlu0 %7095
  %7097 = vrot.lane.b32.xlu0 %v7078, 126
  %v7098 = vpop.permute.xlu0 %7097
  %7099 = vrot.lane.b32.xlu0 %v7079, 126
  %v7100 = vpop.permute.xlu0 %7099
  %7101 = vrot.lane.b32.xlu0 %v7080, 126
  %v7102 = vpop.permute.xlu0 %7101
  %7103 = vrot.lane.b32.xlu0 %v7081, 126
  %v7104 = vpop.permute.xlu0 %7103
  %7105 = vrot.lane.b32.xlu0 %v7082, 126
  %v7106 = vpop.permute.xlu0 %7105
  %v7107 = vsel %vm190, %v7092, %v7094
  %v7108 = vsel %vm190, %v7094, %v7096
  %v7109 = vsel %vm190, %v7096, %v7098
  %v7110 = vsel %vm190, %v7100, %v7102
  %v7111 = vsel %vm190, %v7102, %v7104
  %v7112 = vsel %vm190, %v7104, %v7106
  %v7121 = vadd.f32 %v7055, %v7107
  %v7122 = vadd.f32 %v7056, %v7108
  %v7123 = vadd.f32 %v7057, %v7109
  %v7124 = vadd.f32 %v7058, %v7098
  %v7125 = vadd.f32 %v7059, %v7110
  %v7126 = vadd.f32 %v7060, %v7111
  %v7127 = vadd.f32 %v7061, %v7112
  %v7128 = vadd.f32 %v7062, %v7106
  %v7129 = vld [vmem:[%s2] sm:$0xff]
  %v7130 = vld [vmem:[%s2 + $0x8] sm:$0xff]
  %7132 = vset.pattern.permute.xlu0 0
  %7133 = vperm.xlu0 %7132, %v7129
  %v7134 = vpop.permute.xlu0 %7133
  %7137 = vset.pattern.permute.xlu0 0
  %7138 = vperm.xlu0 %7137, %v7130
  %v7139 = vpop.permute.xlu0 %7138
  %v7141 = vadd.f32 %v7121, %v7134
  %v7142 = vadd.f32 %v7122, %v7134
  %v7143 = vadd.f32 %v7123, %v7134
  %v7144 = vadd.f32 %v7124, %v7134
  %v7145 = vadd.f32 %v7125, %v7139
  %v7146 = vadd.f32 %v7126, %v7139
  %v7147 = vadd.f32 %v7127, %v7139
  %v7148 = vadd.f32 %v7128, %v7139
  %v7149 = vmax.f32 %v7141, 0.0
  %v7150 = vmax.f32 %v7142, 0.0
  %v7151 = vmax.f32 %v7143, 0.0
  %v7152 = vmax.f32 %v7144, 0.0
  %v7153 = vmax.f32 %v7145, 0.0
  %v7154 = vmax.f32 %v7146, 0.0
  %v7155 = vmax.f32 %v7147, 0.0
  %v7156 = vmax.f32 %v7148, 0.0
  %7165 = vrot.lane.b32.xlu0 %v7149, 127
  %v7166 = vpop.permute.xlu0 %7165
  %7167 = vrot.lane.b32.xlu0 %v7150, 127
  %v7168 = vpop.permute.xlu0 %7167
  %7169 = vrot.lane.b32.xlu0 %v7151, 127
  %v7170 = vpop.permute.xlu0 %7169
  %7171 = vrot.lane.b32.xlu0 %v7152, 127
  %v7172 = vpop.permute.xlu0 %7171
  %7173 = vrot.lane.b32.xlu0 %v7153, 127
  %v7174 = vpop.permute.xlu0 %7173
  %7175 = vrot.lane.b32.xlu0 %v7154, 127
  %v7176 = vpop.permute.xlu0 %7175
  %7177 = vrot.lane.b32.xlu0 %v7155, 127
  %v7178 = vpop.permute.xlu0 %7177
  %7179 = vrot.lane.b32.xlu0 %v7156, 127
  %v7180 = vpop.permute.xlu0 %7179
  %v7181 = vsel %vm122, %v7166, %v7168
  %v7182 = vsel %vm122, %v7168, %v7170
  %v7183 = vsel %vm122, %v7170, %v7172
  %v7184 = vsel %vm122, %v7174, %v7176
  %v7185 = vsel %vm122, %v7176, %v7178
  %v7186 = vsel %vm122, %v7178, %v7180
  %v7195 = vmax.f32 %v7149, %v7181
  %v7196 = vmax.f32 %v7150, %v7182
  %v7197 = vmax.f32 %v7151, %v7183
  %v7198 = vmax.f32 %v7152, %v7172
  %v7199 = vmax.f32 %v7153, %v7184
  %v7200 = vmax.f32 %v7154, %v7185
  %v7201 = vmax.f32 %v7155, %v7186
  %v7202 = vmax.f32 %v7156, %v7180
  %7203 = vrot.lane.b32.xlu0 %v7149, 126
  %v7204 = vpop.permute.xlu0 %7203
  %7205 = vrot.lane.b32.xlu0 %v7150, 126
  %v7206 = vpop.permute.xlu0 %7205
  %7207 = vrot.lane.b32.xlu0 %v7151, 126
  %v7208 = vpop.permute.xlu0 %7207
  %7209 = vrot.lane.b32.xlu0 %v7152, 126
  %v7210 = vpop.permute.xlu0 %7209
  %7211 = vrot.lane.b32.xlu0 %v7153, 126
  %v7212 = vpop.permute.xlu0 %7211
  %7213 = vrot.lane.b32.xlu0 %v7154, 126
  %v7214 = vpop.permute.xlu0 %7213
  %7215 = vrot.lane.b32.xlu0 %v7155, 126
  %v7216 = vpop.permute.xlu0 %7215
  %7217 = vrot.lane.b32.xlu0 %v7156, 126
  %v7218 = vpop.permute.xlu0 %7217
  %v7219 = vsel %vm190, %v7204, %v7206
  %v7220 = vsel %vm190, %v7206, %v7208
  %v7221 = vsel %vm190, %v7208, %v7210
  %v7222 = vsel %vm190, %v7212, %v7214
  %v7223 = vsel %vm190, %v7214, %v7216
  %v7224 = vsel %vm190, %v7216, %v7218
  %v7233 = vmax.f32 %v7195, %v7219
  %v7234 = vmax.f32 %v7196, %v7220
  %v7235 = vmax.f32 %v7197, %v7221
  %v7236 = vmax.f32 %v7198, %v7210
  %v7237 = vmax.f32 %v7199, %v7222
  %v7238 = vmax.f32 %v7200, %v7223
  %v7239 = vmax.f32 %v7201, %v7224
  %v7240 = vmax.f32 %v7202, %v7218
  %v7241 = vld [vmem:[%s3] sm:$0xff]
  %v7242 = vld [vmem:[%s3 + $0x8] sm:$0xff]
  %v7243 = vld [vmem:[%s3 + $0x10] sm:$0xff]
  %v7244 = vld [vmem:[%s3 + $0x18] sm:$0xff]
  %v7245 = vld [vmem:[%s3 + $0x20] sm:$0xff]
  %v7246 = vld [vmem:[%s3 + $0x28] sm:$0xff]
  %v7247 = vld [vmem:[%s3 + $0x30] sm:$0xff]
  %v7248 = vld [vmem:[%s3 + $0x38] sm:$0xff]
  %v7249 = vld [vmem:[%s3 + $0x40] sm:$0xff]
  %v7250 = vld [vmem:[%s3 + $0x48] sm:$0xff]
  %v7251 = vld [vmem:[%s3 + $0x50] sm:$0xff]
  %v7252 = vld [vmem:[%s3 + $0x58] sm:$0xff]
  %v7253 = vld [vmem:[%s3 + $0x60] sm:$0xff]
  %v7254 = vld [vmem:[%s3 + $0x68] sm:$0xff]
  %v7255 = vld [vmem:[%s3 + $0x70] sm:$0xff]
  %v7256 = vld [vmem:[%s3 + $0x78] sm:$0xff]
  %v7257 = vld [vmem:[%s3 + $0x80] sm:$0xff]
  %v7258 = vld [vmem:[%s3 + $0x88] sm:$0xff]
  %v7259 = vld [vmem:[%s3 + $0x90] sm:$0xff]
  %v7260 = vld [vmem:[%s3 + $0x98] sm:$0xff]
  %v7261 = vld [vmem:[%s3 + $0xa0] sm:$0xff]
  %v7262 = vld [vmem:[%s3 + $0xa8] sm:$0xff]
  %v7263 = vld [vmem:[%s3 + $0xb0] sm:$0xff]
  %v7264 = vld [vmem:[%s3 + $0xb8] sm:$0xff]
  %v7265 = vld [vmem:[%s3 + $0xc0] sm:$0xff]
  %v7266 = vld [vmem:[%s3 + $0xc8] sm:$0xff]
  %v7267 = vld [vmem:[%s3 + $0xd0] sm:$0xff]
  %v7268 = vld [vmem:[%s3 + $0xd8] sm:$0xff]
  %v7269 = vld [vmem:[%s3 + $0xe0] sm:$0xff]
  %v7270 = vld [vmem:[%s3 + $0xe8] sm:$0xff]
  %v7271 = vld [vmem:[%s3 + $0xf0] sm:$0xff]
  %v7272 = vld [vmem:[%s3 + $0xf8] sm:$0xff]
  %v7273 = vld [vmem:[%s3 + $0x100] sm:$0xff]
  %v7274 = vld [vmem:[%s3 + $0x108] sm:$0xff]
  %v7275 = vld [vmem:[%s3 + $0x110] sm:$0xff]
  %v7276 = vld [vmem:[%s3 + $0x118] sm:$0xff]
  %v7277 = vld [vmem:[%s3 + $0x120] sm:$0xff]
  %v7278 = vld [vmem:[%s3 + $0x128] sm:$0xff]
  %v7279 = vld [vmem:[%s3 + $0x130] sm:$0xff]
  %v7280 = vld [vmem:[%s3 + $0x138] sm:$0xff]
  %v7281 = vld [vmem:[%s3 + $0x140] sm:$0xff]
  %v7282 = vld [vmem:[%s3 + $0x148] sm:$0xff]
  %v7283 = vld [vmem:[%s3 + $0x150] sm:$0xff]
  %v7284 = vld [vmem:[%s3 + $0x158] sm:$0xff]
  %v7285 = vld [vmem:[%s3 + $0x160] sm:$0xff]
  %v7286 = vld [vmem:[%s3 + $0x168] sm:$0xff]
  %v7287 = vld [vmem:[%s3 + $0x170] sm:$0xff]
  %v7288 = vld [vmem:[%s3 + $0x178] sm:$0xff]
  %v7289 = vld [vmem:[%s3 + $0x180] sm:$0xff]
  %v7290 = vld [vmem:[%s3 + $0x188] sm:$0xff]
  %v7291 = vld [vmem:[%s3 + $0x190] sm:$0xff]
  %v7292 = vld [vmem:[%s3 + $0x198] sm:$0xff]
  %v7293 = vld [vmem:[%s3 + $0x1a0] sm:$0xff]
  %v7294 = vld [vmem:[%s3 + $0x1a8] sm:$0xff]
  %v7295 = vld [vmem:[%s3 + $0x1b0] sm:$0xff]
  %v7296 = vld [vmem:[%s3 + $0x1b8] sm:$0xff]
  %v7297 = vld [vmem:[%s3 + $0x1c0] sm:$0xff]
  %v7298 = vld [vmem:[%s3 + $0x1c8] sm:$0xff]
  %v7299 = vld [vmem:[%s3 + $0x1d0] sm:$0xff]
  %v7300 = vld [vmem:[%s3 + $0x1d8] sm:$0xff]
  %v7301 = vld [vmem:[%s3 + $0x1e0] sm:$0xff]
  %v7302 = vld [vmem:[%s3 + $0x1e8] sm:$0xff]
  %v7303 = vld [vmem:[%s3 + $0x1f0] sm:$0xff]
  %v7304 = vld [vmem:[%s3 + $0x1f8] sm:$0xff]
  %v7305 = vld [vmem:[%s3 + $0x200] sm:$0xff]
  %v7306 = vld [vmem:[%s3 + $0x208] sm:$0xff]
  %v7307 = vld [vmem:[%s3 + $0x210] sm:$0xff]
  %v7308 = vld [vmem:[%s3 + $0x218] sm:$0xff]
  %v7309 = vld [vmem:[%s3 + $0x220] sm:$0xff]
  %v7310 = vld [vmem:[%s3 + $0x228] sm:$0xff]
  %v7311 = vld [vmem:[%s3 + $0x230] sm:$0xff]
  %v7312 = vld [vmem:[%s3 + $0x238] sm:$0xff]
  %v7313 = vld [vmem:[%s3 + $0x240] sm:$0xff]
  %v7314 = vld [vmem:[%s3 + $0x248] sm:$0xff]
  %v7315 = vld [vmem:[%s3 + $0x250] sm:$0xff]
  %v7316 = vld [vmem:[%s3 + $0x258] sm:$0xff]
  %v7317 = vld [vmem:[%s3 + $0x260] sm:$0xff]
  %v7318 = vld [vmem:[%s3 + $0x268] sm:$0xff]
  %v7319 = vld [vmem:[%s3 + $0x270] sm:$0xff]
  %v7320 = vld [vmem:[%s3 + $0x278] sm:$0xff]
  %v7321 = vld [vmem:[%s3 + $0x280] sm:$0xff]
  %v7322 = vld [vmem:[%s3 + $0x288] sm:$0xff]
  %v7323 = vld [vmem:[%s3 + $0x290] sm:$0xff]
  %v7324 = vld [vmem:[%s3 + $0x298] sm:$0xff]
  %v7325 = vld [vmem:[%s3 + $0x2a0] sm:$0xff]
  %v7326 = vld [vmem:[%s3 + $0x2a8] sm:$0xff]
  %v7327 = vld [vmem:[%s3 + $0x2b0] sm:$0xff]
  %v7328 = vld [vmem:[%s3 + $0x2b8] sm:$0xff]
  %v7329 = vld [vmem:[%s3 + $0x2c0] sm:$0xff]
  %v7330 = vld [vmem:[%s3 + $0x2c8] sm:$0xff]
  %v7331 = vld [vmem:[%s3 + $0x2d0] sm:$0xff]
  %v7332 = vld [vmem:[%s3 + $0x2d8] sm:$0xff]
  %v7333 = vld [vmem:[%s3 + $0x2e0] sm:$0xff]
  %v7334 = vld [vmem:[%s3 + $0x2e8] sm:$0xff]
  %v7335 = vld [vmem:[%s3 + $0x2f0] sm:$0xff]
  %v7336 = vld [vmem:[%s3 + $0x2f8] sm:$0xff]
  %v7337 = vld [vmem:[%s3 + $0x300] sm:$0xff]
  %v7338 = vld [vmem:[%s3 + $0x308] sm:$0xff]
  %v7339 = vld [vmem:[%s3 + $0x310] sm:$0xff]
  %v7340 = vld [vmem:[%s3 + $0x318] sm:$0xff]
  %v7341 = vld [vmem:[%s3 + $0x320] sm:$0xff]
  %v7342 = vld [vmem:[%s3 + $0x328] sm:$0xff]
  %v7343 = vld [vmem:[%s3 + $0x330] sm:$0xff]
  %v7344 = vld [vmem:[%s3 + $0x338] sm:$0xff]
  %v7345 = vld [vmem:[%s3 + $0x340] sm:$0xff]
  %v7346 = vld [vmem:[%s3 + $0x348] sm:$0xff]
  %v7347 = vld [vmem:[%s3 + $0x350] sm:$0xff]
  %v7348 = vld [vmem:[%s3 + $0x358] sm:$0xff]
  %v7349 = vld [vmem:[%s3 + $0x360] sm:$0xff]
  %v7350 = vld [vmem:[%s3 + $0x368] sm:$0xff]
  %v7351 = vld [vmem:[%s3 + $0x370] sm:$0xff]
  %v7352 = vld [vmem:[%s3 + $0x378] sm:$0xff]
  %v7353 = vld [vmem:[%s3 + $0x380] sm:$0xff]
  %v7354 = vld [vmem:[%s3 + $0x388] sm:$0xff]
  %v7355 = vld [vmem:[%s3 + $0x390] sm:$0xff]
  %v7356 = vld [vmem:[%s3 + $0x398] sm:$0xff]
  %v7357 = vld [vmem:[%s3 + $0x3a0] sm:$0xff]
  %v7358 = vld [vmem:[%s3 + $0x3a8] sm:$0xff]
  %v7359 = vld [vmem:[%s3 + $0x3b0] sm:$0xff]
  %v7360 = vld [vmem:[%s3 + $0x3b8] sm:$0xff]
  %v7361 = vld [vmem:[%s3 + $0x3c0] sm:$0xff]
  %v7362 = vld [vmem:[%s3 + $0x3c8] sm:$0xff]
  %v7363 = vld [vmem:[%s3 + $0x3d0] sm:$0xff]
  %v7364 = vld [vmem:[%s3 + $0x3d8] sm:$0xff]
  %v7366 = vsel %vm449, %v7236, 0
  %v7369 = vsel %vm449, %v7240, 0
  %7371 = vmatprep.subr.mxu0 %v7272
  %7372 = vmatpush1.msra.mxu0 %v7271
  %7373 = vmatprep.subr.mxu0 %v7270
  %7374 = vmatpush1.msra.mxu0 %v7269
  %7375 = vmatprep.subr.mxu0 %v7268
  %7376 = vmatpush1.msra.mxu0 %v7267
  %7377 = vmatprep.subr.mxu0 %v7266
  %7378 = vmatpush1.msra.mxu0 %v7265
  %7379 = vmatprep.subr.mxu0 %v7264
  %7380 = vmatpush1.msra.mxu0 %v7263
  %7381 = vmatprep.subr.mxu0 %v7262
  %7382 = vmatpush1.msra.mxu0 %v7261
  %7383 = vmatprep.subr.mxu0 %v7260
  %7384 = vmatpush1.msra.mxu0 %v7259
  %7385 = vmatprep.subr.mxu0 %v7258
  %7386 = vmatpush1.msra.mxu0 %v7257
  %7387 = vmatprep.subr.mxu0 %v7256
  %7388 = vmatpush1.msra.mxu0 %v7255
  %7389 = vmatprep.subr.mxu0 %v7254
  %7390 = vmatpush1.msra.mxu0 %v7253
  %7391 = vmatprep.subr.mxu0 %v7252
  %7392 = vmatpush1.msra.mxu0 %v7251
  %7393 = vmatprep.subr.mxu0 %v7250
  %7394 = vmatpush1.msra.mxu0 %v7249
  %7395 = vmatprep.subr.mxu0 %v7248
  %7396 = vmatpush1.msra.mxu0 %v7247
  %7397 = vmatprep.subr.mxu0 %v7246
  %7398 = vmatpush1.msra.mxu0 %v7245
  %7399 = vmatprep.subr.mxu0 %v7244
  %7400 = vmatpush1.msra.mxu0 %v7243
  %7401 = vmatprep.subr.mxu0 %v7242
  %7402 = vmatpush1.msra.mxu0 %v7241
  %7403 = vmatprep.subr.mxu0 %v7304
  %7404 = vmatpush2.msra.mxu0 %v7303
  %7405 = vmatprep.subr.mxu0 %v7302
  %7406 = vmatpush2.msra.mxu0 %v7301
  %7407 = vmatprep.subr.mxu0 %v7300
  %7408 = vmatpush2.msra.mxu0 %v7299
  %7409 = vmatprep.subr.mxu0 %v7298
  %7410 = vmatpush2.msra.mxu0 %v7297
  %7411 = vmatprep.subr.mxu0 %v7296
  %7412 = vmatpush2.msra.mxu0 %v7295
  %7413 = vmatprep.subr.mxu0 %v7294
  %7414 = vmatpush2.msra.mxu0 %v7293
  %7415 = vmatprep.subr.mxu0 %v7292
  %7416 = vmatpush2.msra.mxu0 %v7291
  %7417 = vmatprep.subr.mxu0 %v7290
  %7418 = vmatpush2.msra.mxu0 %v7289
  %7419 = vmatprep.subr.mxu0 %v7288
  %7420 = vmatpush2.msra.mxu0 %v7287
  %7421 = vmatprep.subr.mxu0 %v7286
  %7422 = vmatpush2.msra.mxu0 %v7285
  %7423 = vmatprep.subr.mxu0 %v7284
  %7424 = vmatpush2.msra.mxu0 %v7283
  %7425 = vmatprep.subr.mxu0 %v7282
  %7426 = vmatpush2.msra.mxu0 %v7281
  %7427 = vmatprep.subr.mxu0 %v7280
  %7428 = vmatpush2.msra.mxu0 %v7279
  %7429 = vmatprep.subr.mxu0 %v7278
  %7430 = vmatpush2.msra.mxu0 %v7277
  %7431 = vmatprep.subr.mxu0 %v7276
  %7432 = vmatpush2.msra.mxu0 %v7275
  %7433 = vmatprep.subr.mxu0 %v7274
  %7434 = vmatpush2.msra.mxu0 %v7273
  %7435 = vmatprep.mubr.f32.mxu0 %v7234
  %7436 = vmatmul.mubr.f32.gmra.mxu0 %v7233
  %v7437 = vpop.f32.mrf.mxu0
  %v7438 = vadd.f32 0.0, %v7437
  %v7439 = vpop.f32.mrf.mxu0
  %v7440 = vadd.f32 0.0, %v7439
  %7441 = vmatprep.mubr.f32.mxu0 %v7238
  %7442 = vmatmul.mubr.f32.gmra.mxu0 %v7237
  %v7443 = vpop.f32.mrf.mxu0
  %v7444 = vadd.f32 0.0, %v7443
  %v7445 = vpop.f32.mrf.mxu0
  %v7446 = vadd.f32 0.0, %v7445
  %7447 = vdwg.mxu0
  %7448 = vmatprep.subr.mxu0 %v7336
  %7449 = vmatpush1.msra.mxu0 %v7335
  %7450 = vmatprep.subr.mxu0 %v7334
  %7451 = vmatpush1.msra.mxu0 %v7333
  %7452 = vmatprep.subr.mxu0 %v7332
  %7453 = vmatpush1.msra.mxu0 %v7331
  %7454 = vmatprep.subr.mxu0 %v7330
  %7455 = vmatpush1.msra.mxu0 %v7329
  %7456 = vmatprep.subr.mxu0 %v7328
  %7457 = vmatpush1.msra.mxu0 %v7327
  %7458 = vmatprep.subr.mxu0 %v7326
  %7459 = vmatpush1.msra.mxu0 %v7325
  %7460 = vmatprep.subr.mxu0 %v7324
  %7461 = vmatpush1.msra.mxu0 %v7323
  %7462 = vmatprep.subr.mxu0 %v7322
  %7463 = vmatpush1.msra.mxu0 %v7321
  %7464 = vmatprep.subr.mxu0 %v7320
  %7465 = vmatpush1.msra.mxu0 %v7319
  %7466 = vmatprep.subr.mxu0 %v7318
  %7467 = vmatpush1.msra.mxu0 %v7317
  %7468 = vmatprep.subr.mxu0 %v7316
  %7469 = vmatpush1.msra.mxu0 %v7315
  %7470 = vmatprep.subr.mxu0 %v7314
  %7471 = vmatpush1.msra.mxu0 %v7313
  %7472 = vmatprep.subr.mxu0 %v7312
  %7473 = vmatpush1.msra.mxu0 %v7311
  %7474 = vmatprep.subr.mxu0 %v7310
  %7475 = vmatpush1.msra.mxu0 %v7309
  %7476 = vmatprep.subr.mxu0 %v7308
  %7477 = vmatpush1.msra.mxu0 %v7307
  %7478 = vmatprep.subr.mxu0 %v7306
  %7479 = vmatpush1.msra.mxu0 %v7305
  %7480 = vmatprep.subr.mxu0 0.0
  %7481 = vmatpush2.msra.mxu0 0.0
  %7482 = vmatprep.subr.mxu0 0.0
  %7483 = vmatpush2.msra.mxu0 0.0
  %7484 = vmatprep.subr.mxu0 %v7364
  %7485 = vmatpush2.msra.mxu0 %v7363
  %7486 = vmatprep.subr.mxu0 %v7362
  %7487 = vmatpush2.msra.mxu0 %v7361
  %7488 = vmatprep.subr.mxu0 %v7360
  %7489 = vmatpush2.msra.mxu0 %v7359
  %7490 = vmatprep.subr.mxu0 %v7358
  %7491 = vmatpush2.msra.mxu0 %v7357
  %7492 = vmatprep.subr.mxu0 %v7356
  %7493 = vmatpush2.msra.mxu0 %v7355
  %7494 = vmatprep.subr.mxu0 %v7354
  %7495 = vmatpush2.msra.mxu0 %v7353
  %7496 = vmatprep.subr.mxu0 %v7352
  %7497 = vmatpush2.msra.mxu0 %v7351
  %7498 = vmatprep.subr.mxu0 %v7350
  %7499 = vmatpush2.msra.mxu0 %v7349
  %7500 = vmatprep.subr.mxu0 %v7348
  %7501 = vmatpush2.msra.mxu0 %v7347
  %7502 = vmatprep.subr.mxu0 %v7346
  %7503 = vmatpush2.msra.mxu0 %v7345
  %7504 = vmatprep.subr.mxu0 %v7344
  %7505 = vmatpush2.msra.mxu0 %v7343
  %7506 = vmatprep.subr.mxu0 %v7342
  %7507 = vmatpush2.msra.mxu0 %v7341
  %7508 = vmatprep.subr.mxu0 %v7340
  %7509 = vmatpush2.msra.mxu0 %v7339
  %7510 = vmatprep.subr.mxu0 %v7338
  %7511 = vmatpush2.msra.mxu0 %v7337
  %7512 = vmatprep.mubr.f32.mxu0 %v7366
  %7513 = vmatmul.mubr.f32.gmra.mxu0 %v7235
  %v7514 = vpop.f32.mrf.mxu0
  %v7515 = vadd.f32 %v7438, %v7514
  %v7516 = vpop.f32.mrf.mxu0
  %v7517 = vadd.f32 %v7440, %v7516
  %7518 = vmatprep.mubr.f32.mxu0 %v7369
  %7519 = vmatmul.mubr.f32.gmra.mxu0 %v7239
  %v7520 = vpop.f32.mrf.mxu0
  %v7521 = vadd.f32 %v7444, %v7520
  %v7522 = vpop.f32.mrf.mxu0
  %v7523 = vadd.f32 %v7446, %v7522
  %7524 = vdwg.mxu0
  %7529 = vrot.lane.b32.xlu0 %v7515, 127
  %v7530 = vpop.permute.xlu0 %7529
  %7531 = vrot.lane.b32.xlu0 %v7517, 127
  %v7532 = vpop.permute.xlu0 %7531
  %7533 = vrot.lane.b32.xlu0 %v7521, 127
  %v7534 = vpop.permute.xlu0 %7533
  %7535 = vrot.lane.b32.xlu0 %v7523, 127
  %v7536 = vpop.permute.xlu0 %7535
  %v7537 = vsel %vm122, %v7530, %v7532
  %v7538 = vsel %vm122, %v7534, %v7536
  %7543 = vrot.lane.b32.xlu0 %v7515, 126
  %v7544 = vpop.permute.xlu0 %7543
  %7545 = vrot.lane.b32.xlu0 %v7517, 126
  %v7546 = vpop.permute.xlu0 %7545
  %7547 = vrot.lane.b32.xlu0 %v7521, 126
  %v7548 = vpop.permute.xlu0 %7547
  %7549 = vrot.lane.b32.xlu0 %v7523, 126
  %v7550 = vpop.permute.xlu0 %7549
  %v7551 = vsel %vm190, %v7544, %v7546
  %v7552 = vsel %vm190, %v7548, %v7550
  %v7557 = vld [vmem:[%s4] sm:$0xff]
  %v7558 = vld [vmem:[%s4 + $0x8] sm:$0xff]
  %v7559 = vld [vmem:[%s4 + $0x10] sm:$0xff]
  %v7560 = vld [vmem:[%s4 + $0x18] sm:$0xff]
  %v7561 = vld [vmem:[%s5] sm:$0xff]
  %v7562 = vld [vmem:[%s5 + $0x8] sm:$0xff]
  %v7563 = vld [vmem:[%s5 + $0x10] sm:$0xff]
  %v7564 = vld [vmem:[%s5 + $0x18] sm:$0xff]
  %7566 = vset.pattern.permute.xlu0 0
  %7567 = vperm.xlu0 %7566, %v7561
  %v7568 = vpop.permute.xlu0 %7567
  %7571 = vset.pattern.permute.xlu0 0
  %7572 = vperm.xlu0 %7571, %v7562
  %v7573 = vpop.permute.xlu0 %7572
  %7576 = vset.pattern.permute.xlu0 0
  %7577 = vperm.xlu0 %7576, %v7563
  %v7578 = vpop.permute.xlu0 %7577
  %7581 = vset.pattern.permute.xlu0 0
  %7582 = vperm.xlu0 %7581, %v7564
  %v7583 = vpop.permute.xlu0 %7582
  %v7586 = vsel %vm670, %v7557, 0
  %v7589 = vsel %vm670, %v7558, 0
  %v7592 = vsel %vm670, %v7559, 0
  %v7595 = vsel %vm670, %v7560, 0
  %7597 = vmatprep.subr.mxu0 0.0
  %7598 = vmatpush1.msra.mxu0 0.0
  %7599 = vmatprep.subr.mxu0 0.0
  %7600 = vmatpush1.msra.mxu0 0.0
  %7601 = vmatprep.subr.mxu0 0.0
  %7602 = vmatpush1.msra.mxu0 0.0
  %7603 = vmatprep.subr.mxu0 0.0
  %7604 = vmatpush1.msra.mxu0 0.0
  %7605 = vmatprep.subr.mxu0 0.0
  %7606 = vmatpush1.msra.mxu0 0.0
  %7607 = vmatprep.subr.mxu0 0.0
  %7608 = vmatpush1.msra.mxu0 0.0
  %7609 = vmatprep.subr.mxu0 0.0
  %7610 = vmatpush1.msra.mxu0 0.0
  %7611 = vmatprep.subr.mxu0 0.0
  %7612 = vmatpush1.msra.mxu0 0.0
  %7613 = vmatprep.subr.mxu0 0.0
  %7614 = vmatpush1.msra.mxu0 0.0
  %7615 = vmatprep.subr.mxu0 0.0
  %7616 = vmatpush1.msra.mxu0 0.0
  %7617 = vmatprep.subr.mxu0 %v7550
  %7618 = vmatpush1.msra.mxu0 %v7552
  %7619 = vmatprep.subr.mxu0 %v7546
  %7620 = vmatpush1.msra.mxu0 %v7551
  %7621 = vmatprep.subr.mxu0 %v7536
  %7622 = vmatpush1.msra.mxu0 %v7538
  %7623 = vmatprep.subr.mxu0 %v7532
  %7624 = vmatpush1.msra.mxu0 %v7537
  %7625 = vmatprep.subr.mxu0 %v7523
  %7626 = vmatpush1.msra.mxu0 %v7521
  %7627 = vmatprep.subr.mxu0 %v7517
  %7628 = vmatpush1.msra.mxu0 %v7515
  %7629 = vmatprep.subr.mxu0 0.0
  %7630 = vmatpush2.msra.mxu0 0.0
  %7631 = vmatprep.subr.mxu0 0.0
  %7632 = vmatpush2.msra.mxu0 0.0
  %7633 = vmatprep.subr.mxu0 0.0
  %7634 = vmatpush2.msra.mxu0 0.0
  %7635 = vmatprep.subr.mxu0 0.0
  %7636 = vmatpush2.msra.mxu0 0.0
  %7637 = vmatprep.subr.mxu0 0.0
  %7638 = vmatpush2.msra.mxu0 0.0
  %7639 = vmatprep.subr.mxu0 0.0
  %7640 = vmatpush2.msra.mxu0 0.0
  %7641 = vmatprep.subr.mxu0 0.0
  %7642 = vmatpush2.msra.mxu0 0.0
  %7643 = vmatprep.subr.mxu0 0.0
  %7644 = vmatpush2.msra.mxu0 0.0
  %7645 = vmatprep.subr.mxu0 0.0
  %7646 = vmatpush2.msra.mxu0 0.0
  %7647 = vmatprep.subr.mxu0 0.0
  %7648 = vmatpush2.msra.mxu0 0.0
  %7649 = vmatprep.subr.mxu0 0.0
  %7650 = vmatpush2.msra.mxu0 0.0
  %7651 = vmatprep.subr.mxu0 0.0
  %7652 = vmatpush2.msra.mxu0 0.0
  %7653 = vmatprep.subr.mxu0 0.0
  %7654 = vmatpush2.msra.mxu0 0.0
  %7655 = vmatprep.subr.mxu0 0.0
  %7656 = vmatpush2.msra.mxu0 0.0
  %7657 = vmatprep.subr.mxu0 0.0
  %7658 = vmatpush2.msra.mxu0 0.0
  %7659 = vmatprep.subr.mxu0 0.0
  %7660 = vmatpush2.msra.mxu0 0.0
  %7661 = vmatprep.mubr.f32.mxu0 0.0
  %7662 = vmatmul.mubr.f32.gmra.mxu0 %v7586
  %v7663 = vpop.f32.mrf.mxu0
  %v7664 = vadd.f32 %v7568, %v7663
  %v7665 = vpop.f32.mrf.mxu0
  %v7666 = vadd.f32 %v7568, %v7665
  %7667 = vmatprep.mubr.f32.mxu0 0.0
  %7668 = vmatmul.mubr.f32.gmra.mxu0 %v7589
  %v7669 = vpop.f32.mrf.mxu0
  %v7670 = vadd.f32 %v7573, %v7669
  %v7671 = vpop.f32.mrf.mxu0
  %v7672 = vadd.f32 %v7573, %v7671
  %7673 = vmatprep.mubr.f32.mxu0 0.0
  %7674 = vmatmul.mubr.f32.gmra.mxu0 %v7592
  %v7675 = vpop.f32.mrf.mxu0
  %v7676 = vadd.f32 %v7578, %v7675
  %v7677 = vpop.f32.mrf.mxu0
  %v7678 = vadd.f32 %v7578, %v7677
  %7679 = vmatprep.mubr.f32.mxu0 0.0
  %7680 = vmatmul.mubr.f32.gmra.mxu0 %v7595
  %v7681 = vpop.f32.mrf.mxu0
  %v7682 = vadd.f32 %v7583, %v7681
  %v7683 = vpop.f32.mrf.mxu0
  %v7684 = vadd.f32 %v7583, %v7683
  %7685 = vdwg.mxu0
  %v7686 = vmax.f32 %v7664, 0.0
  %v7687 = vmax.f32 %v7666, 0.0
  %v7688 = vmax.f32 %v7670, 0.0
  %v7689 = vmax.f32 %v7672, 0.0
  %v7690 = vmax.f32 %v7676, 0.0
  %v7691 = vmax.f32 %v7678, 0.0
  %v7692 = vmax.f32 %v7682, 0.0
  %v7693 = vmax.f32 %v7684, 0.0
  %7702 = vrot.lane.b32.xlu0 %v7686, 127
  %v7703 = vpop.permute.xlu0 %7702
  %7704 = vrot.lane.b32.xlu0 %v7687, 127
  %v7705 = vpop.permute.xlu0 %7704
  %7706 = vrot.lane.b32.xlu0 %v7688, 127
  %v7707 = vpop.permute.xlu0 %7706
  %7708 = vrot.lane.b32.xlu0 %v7689, 127
  %v7709 = vpop.permute.xlu0 %7708
  %7710 = vrot.lane.b32.xlu0 %v7690, 127
  %v7711 = vpop.permute.xlu0 %7710
  %7712 = vrot.lane.b32.xlu0 %v7691, 127
  %v7713 = vpop.permute.xlu0 %7712
  %7714 = vrot.lane.b32.xlu0 %v7692, 127
  %v7715 = vpop.permute.xlu0 %7714
  %7716 = vrot.lane.b32.xlu0 %v7693, 127
  %v7717 = vpop.permute.xlu0 %7716
  %v7718 = vsel %vm122, %v7703, %v7705
  %v7719 = vsel %vm122, %v7707, %v7709
  %v7720 = vsel %vm122, %v7711, %v7713
  %v7721 = vsel %vm122, %v7715, %v7717
  %v7730 = vmax.f32 %v7686, %v7718
  %v7731 = vmax.f32 %v7687, %v7705
  %v7732 = vmax.f32 %v7688, %v7719
  %v7733 = vmax.f32 %v7689, %v7709
  %v7734 = vmax.f32 %v7690, %v7720
  %v7735 = vmax.f32 %v7691, %v7713
  %v7736 = vmax.f32 %v7692, %v7721
  %v7737 = vmax.f32 %v7693, %v7717
  %7738 = vrot.lane.b32.xlu0 %v7686, 126
  %v7739 = vpop.permute.xlu0 %7738
  %7740 = vrot.lane.b32.xlu0 %v7687, 126
  %v7741 = vpop.permute.xlu0 %7740
  %7742 = vrot.lane.b32.xlu0 %v7688, 126
  %v7743 = vpop.permute.xlu0 %7742
  %7744 = vrot.lane.b32.xlu0 %v7689, 126
  %v7745 = vpop.permute.xlu0 %7744
  %7746 = vrot.lane.b32.xlu0 %v7690, 126
  %v7747 = vpop.permute.xlu0 %7746
  %7748 = vrot.lane.b32.xlu0 %v7691, 126
  %v7749 = vpop.permute.xlu0 %7748
  %7750 = vrot.lane.b32.xlu0 %v7692, 126
  %v7751 = vpop.permute.xlu0 %7750
  %7752 = vrot.lane.b32.xlu0 %v7693, 126
  %v7753 = vpop.permute.xlu0 %7752
  %v7754 = vsel %vm190, %v7739, %v7741
  %v7755 = vsel %vm190, %v7743, %v7745
  %v7756 = vsel %vm190, %v7747, %v7749
  %v7757 = vsel %vm190, %v7751, %v7753
  %v7766 = vmax.f32 %v7730, %v7754
  %v7767 = vmax.f32 %v7731, %v7741
  %v7768 = vmax.f32 %v7732, %v7755
  %v7769 = vmax.f32 %v7733, %v7745
  %v7770 = vmax.f32 %v7734, %v7756
  %v7771 = vmax.f32 %v7735, %v7749
  %v7772 = vmax.f32 %v7736, %v7757
  %v7773 = vmax.f32 %v7737, %v7753
  %v7774 = vld [vmem:[%s6] sm:$0xff]
  %v7775 = vld [vmem:[%s6 + $0x8] sm:$0xff]
  %v7776 = vld [vmem:[%s6 + $0x10] sm:$0xff]
  %v7777 = vld [vmem:[%s6 + $0x18] sm:$0xff]
  %v7778 = vld [vmem:[%s6 + $0x20] sm:$0xff]
  %v7779 = vld [vmem:[%s6 + $0x28] sm:$0xff]
  %v7780 = vld [vmem:[%s6 + $0x30] sm:$0xff]
  %v7781 = vld [vmem:[%s6 + $0x38] sm:$0xff]
  %v7782 = vld [vmem:[%s6 + $0x40] sm:$0xff]
  %v7783 = vld [vmem:[%s6 + $0x48] sm:$0xff]
  %v7784 = vld [vmem:[%s6 + $0x50] sm:$0xff]
  %v7785 = vld [vmem:[%s6 + $0x58] sm:$0xff]
  %v7786 = vld [vmem:[%s6 + $0x60] sm:$0xff]
  %v7787 = vld [vmem:[%s6 + $0x68] sm:$0xff]
  %v7788 = vld [vmem:[%s6 + $0x70] sm:$0xff]
  %v7789 = vld [vmem:[%s6 + $0x78] sm:$0xff]
  %v7790 = vld [vmem:[%s6 + $0x80] sm:$0xff]
  %v7791 = vld [vmem:[%s6 + $0x88] sm:$0xff]
  %v7792 = vld [vmem:[%s6 + $0x90] sm:$0xff]
  %v7793 = vld [vmem:[%s6 + $0x98] sm:$0xff]
  %v7794 = vld [vmem:[%s6 + $0xa0] sm:$0x3]
  %v7796 = vsel %vm881, %v7767, 0
  %v7799 = vsel %vm881, %v7769, 0
  %v7802 = vsel %vm881, %v7771, 0
  %v7805 = vsel %vm881, %v7773, 0
  %v7808 = vsel %vm894, %v7794, 0
  %7810 = vmatprep.subr.mxu0 0.0
  %7811 = vmatpush1.msra.mxu0 %v7789
  %7812 = vmatprep.subr.mxu0 0.0
  %7813 = vmatpush1.msra.mxu0 %v7788
  %7814 = vmatprep.subr.mxu0 0.0
  %7815 = vmatpush1.msra.mxu0 %v7787
  %7816 = vmatprep.subr.mxu0 0.0
  %7817 = vmatpush1.msra.mxu0 %v7786
  %7818 = vmatprep.subr.mxu0 0.0
  %7819 = vmatpush1.msra.mxu0 %v7785
  %7820 = vmatprep.subr.mxu0 0.0
  %7821 = vmatpush1.msra.mxu0 %v7784
  %7822 = vmatprep.subr.mxu0 0.0
  %7823 = vmatpush1.msra.mxu0 %v7783
  %7824 = vmatprep.subr.mxu0 0.0
  %7825 = vmatpush1.msra.mxu0 %v7782
  %7826 = vmatprep.subr.mxu0 0.0
  %7827 = vmatpush1.msra.mxu0 %v7781
  %7828 = vmatprep.subr.mxu0 0.0
  %7829 = vmatpush1.msra.mxu0 %v7780
  %7830 = vmatprep.subr.mxu0 0.0
  %7831 = vmatpush1.msra.mxu0 %v7779
  %7832 = vmatprep.subr.mxu0 0.0
  %7833 = vmatpush1.msra.mxu0 %v7778
  %7834 = vmatprep.subr.mxu0 0.0
  %7835 = vmatpush1.msra.mxu0 %v7777
  %7836 = vmatprep.subr.mxu0 0.0
  %7837 = vmatpush1.msra.mxu0 %v7776
  %7838 = vmatprep.subr.mxu0 0.0
  %7839 = vmatpush1.msra.mxu0 %v7775
  %7840 = vmatprep.subr.mxu0 0.0
  %7841 = vmatpush1.msra.mxu0 %v7774
  %7842 = vmatprep.subr.mxu0 0.0
  %7843 = vmatpush2.msra.mxu0 0.0
  %7844 = vmatprep.subr.mxu0 0.0
  %7845 = vmatpush2.msra.mxu0 0.0
  %7846 = vmatprep.subr.mxu0 0.0
  %7847 = vmatpush2.msra.mxu0 0.0
  %7848 = vmatprep.subr.mxu0 0.0
  %7849 = vmatpush2.msra.mxu0 0.0
  %7850 = vmatprep.subr.mxu0 0.0
  %7851 = vmatpush2.msra.mxu0 0.0
  %7852 = vmatprep.subr.mxu0 0.0
  %7853 = vmatpush2.msra.mxu0 0.0
  %7854 = vmatprep.subr.mxu0 0.0
  %7855 = vmatpush2.msra.mxu0 0.0
  %7856 = vmatprep.subr.mxu0 0.0
  %7857 = vmatpush2.msra.mxu0 0.0
  %7858 = vmatprep.subr.mxu0 0.0
  %7859 = vmatpush2.msra.mxu0 0.0
  %7860 = vmatprep.subr.mxu0 0.0
  %7861 = vmatpush2.msra.mxu0 0.0
  %7862 = vmatprep.subr.mxu0 0.0
  %7863 = vmatpush2.msra.mxu0 0.0
  %7864 = vmatprep.subr.mxu0 0.0
  %7865 = vmatpush2.msra.mxu0 %v7808
  %7866 = vmatprep.subr.mxu0 0.0
  %7867 = vmatpush2.msra.mxu0 %v7793
  %7868 = vmatprep.subr.mxu0 0.0
  %7869 = vmatpush2.msra.mxu0 %v7792
  %7870 = vmatprep.subr.mxu0 0.0
  %7871 = vmatpush2.msra.mxu0 %v7791
  %7872 = vmatprep.subr.mxu0 0.0
  %7873 = vmatpush2.msra.mxu0 %v7790
  %7874 = vmatprep.mubr.f32.mxu0 %v7796
  %7875 = vmatmul.mubr.f32.gmra.mxu0 %v7766
  %v7876 = vpop.f32.mrf.mxu0
  %v7877 = vadd.f32 0.0, %v7876
  %v7878 = vpop.f32.mrf.mxu0
  %7879 = vmatprep.mubr.f32.mxu0 %v7799
  %7880 = vmatmul.mubr.f32.gmra.mxu0 %v7768
  %v7881 = vpop.f32.mrf.mxu0
  %v7882 = vadd.f32 0.0, %v7881
  %v7883 = vpop.f32.mrf.mxu0
  %7884 = vmatprep.mubr.f32.mxu0 %v7802
  %7885 = vmatmul.mubr.f32.gmra.mxu0 %v7770
  %v7886 = vpop.f32.mrf.mxu0
  %v7887 = vadd.f32 0.0, %v7886
  %v7888 = vpop.f32.mrf.mxu0
  %7889 = vmatprep.mubr.f32.mxu0 %v7805
  %7890 = vmatmul.mubr.f32.gmra.mxu0 %v7772
  %v7891 = vpop.f32.mrf.mxu0
  %v7892 = vadd.f32 0.0, %v7891
  %v7893 = vpop.f32.mrf.mxu0
  %7894 = vdwg.mxu0
  %7899 = vrot.lane.b32.xlu0 %v7877, 127
  %v7900 = vpop.permute.xlu0 %7899
  %7901 = vrot.lane.b32.xlu0 %v7882, 127
  %v7902 = vpop.permute.xlu0 %7901
  %7903 = vrot.lane.b32.xlu0 %v7887, 127
  %v7904 = vpop.permute.xlu0 %7903
  %7905 = vrot.lane.b32.xlu0 %v7892, 127
  %v7906 = vpop.permute.xlu0 %7905
  %7911 = vrot.lane.b32.xlu0 %v7877, 126
  %v7912 = vpop.permute.xlu0 %7911
  %7913 = vrot.lane.b32.xlu0 %v7882, 126
  %v7914 = vpop.permute.xlu0 %7913
  %7915 = vrot.lane.b32.xlu0 %v7887, 126
  %v7916 = vpop.permute.xlu0 %7915
  %7917 = vrot.lane.b32.xlu0 %v7892, 126
  %v7918 = vpop.permute.xlu0 %7917
  %v7923 = vld [vmem:[%s7] sm:$0xff]
  %v7924 = vld [vmem:[%s7 + $0x8] sm:$0xff]
  %v7925 = vld [vmem:[%s7 + $0x10] sm:$0xff]
  %v7926 = vld [vmem:[%s7 + $0x18] sm:$0xff]
  %v7927 = vld [vmem:[%s7 + $0x20] sm:$0xff]
  %v7928 = vld [vmem:[%s7 + $0x28] sm:$0xff]
  %v7929 = vld [vmem:[%s7 + $0x30] sm:$0xff]
  %v7930 = vld [vmem:[%s7 + $0x38] sm:$0xff]
  %v7931 = vld [vmem:[%s8] sm:$0xff]
  %v7932 = vld [vmem:[%s8 + $0x8] sm:$0xff]
  %v7933 = vld [vmem:[%s8 + $0x10] sm:$0xff]
  %v7934 = vld [vmem:[%s8 + $0x18] sm:$0xff]
  %v7935 = vld [vmem:[%s8 + $0x20] sm:$0xff]
  %v7936 = vld [vmem:[%s8 + $0x28] sm:$0xff]
  %v7937 = vld [vmem:[%s8 + $0x30] sm:$0xff]
  %v7938 = vld [vmem:[%s8 + $0x38] sm:$0xff]
  %7940 = vset.pattern.permute.xlu0 0
  %7941 = vperm.xlu0 %7940, %v7931
  %v7942 = vpop.permute.xlu0 %7941
  %7945 = vset.pattern.permute.xlu0 0
  %7946 = vperm.xlu0 %7945, %v7932
  %v7947 = vpop.permute.xlu0 %7946
  %7950 = vset.pattern.permute.xlu0 0
  %7951 = vperm.xlu0 %7950, %v7933
  %v7952 = vpop.permute.xlu0 %7951
  %7955 = vset.pattern.permute.xlu0 0
  %7956 = vperm.xlu0 %7955, %v7934
  %v7957 = vpop.permute.xlu0 %7956
  %7960 = vset.pattern.permute.xlu0 0
  %7961 = vperm.xlu0 %7960, %v7935
  %v7962 = vpop.permute.xlu0 %7961
  %7965 = vset.pattern.permute.xlu0 0
  %7966 = vperm.xlu0 %7965, %v7936
  %v7967 = vpop.permute.xlu0 %7966
  %7970 = vset.pattern.permute.xlu0 0
  %7971 = vperm.xlu0 %7970, %v7937
  %v7972 = vpop.permute.xlu0 %7971
  %7975 = vset.pattern.permute.xlu0 0
  %7976 = vperm.xlu0 %7975, %v7938
  %v7977 = vpop.permute.xlu0 %7976
  %v7980 = vsel %vm1067, %v7923, 0
  %v7983 = vsel %vm1067, %v7924, 0
  %v7986 = vsel %vm1067, %v7925, 0
  %v7989 = vsel %vm1067, %v7926, 0
  %v7992 = vsel %vm1067, %v7927, 0
  %v7995 = vsel %vm1067, %v7928, 0
  %v7998 = vsel %vm1067, %v7929, 0
  %v8001 = vsel %vm1067, %v7930, 0
  %8003 = vmatprep.subr.mxu0 0.0
  %8004 = vmatpush1.msra.mxu0 0.0
  %8005 = vmatprep.subr.mxu0 0.0
  %8006 = vmatpush1.msra.mxu0 0.0
  %8007 = vmatprep.subr.mxu0 0.0
  %8008 = vmatpush1.msra.mxu0 0.0
  %8009 = vmatprep.subr.mxu0 0.0
  %8010 = vmatpush1.msra.mxu0 0.0
  %8011 = vmatprep.subr.mxu0 0.0
  %8012 = vmatpush1.msra.mxu0 %v7918
  %8013 = vmatprep.subr.mxu0 0.0
  %8014 = vmatpush1.msra.mxu0 %v7916
  %8015 = vmatprep.subr.mxu0 0.0
  %8016 = vmatpush1.msra.mxu0 %v7914
  %8017 = vmatprep.subr.mxu0 0.0
  %8018 = vmatpush1.msra.mxu0 %v7912
  %8019 = vmatprep.subr.mxu0 0.0
  %8020 = vmatpush1.msra.mxu0 %v7906
  %8021 = vmatprep.subr.mxu0 0.0
  %8022 = vmatpush1.msra.mxu0 %v7904
  %8023 = vmatprep.subr.mxu0 0.0
  %8024 = vmatpush1.msra.mxu0 %v7902
  %8025 = vmatprep.subr.mxu0 0.0
  %8026 = vmatpush1.msra.mxu0 %v7900
  %8027 = vmatprep.subr.mxu0 0.0
  %8028 = vmatpush1.msra.mxu0 %v7892
  %8029 = vmatprep.subr.mxu0 0.0
  %8030 = vmatpush1.msra.mxu0 %v7887
  %8031 = vmatprep.subr.mxu0 0.0
  %8032 = vmatpush1.msra.mxu0 %v7882
  %8033 = vmatprep.subr.mxu0 0.0
  %8034 = vmatpush1.msra.mxu0 %v7877
  %8035 = vmatprep.subr.mxu0 0.0
  %8036 = vmatpush2.msra.mxu0 0.0
  %8037 = vmatprep.subr.mxu0 0.0
  %8038 = vmatpush2.msra.mxu0 0.0
  %8039 = vmatprep.subr.mxu0 0.0
  %8040 = vmatpush2.msra.mxu0 0.0
  %8041 = vmatprep.subr.mxu0 0.0
  %8042 = vmatpush2.msra.mxu0 0.0
  %8043 = vmatprep.subr.mxu0 0.0
  %8044 = vmatpush2.msra.mxu0 0.0
  %8045 = vmatprep.subr.mxu0 0.0
  %8046 = vmatpush2.msra.mxu0 0.0
  %8047 = vmatprep.subr.mxu0 0.0
  %8048 = vmatpush2.msra.mxu0 0.0
  %8049 = vmatprep.subr.mxu0 0.0
  %8050 = vmatpush2.msra.mxu0 0.0
  %8051 = vmatprep.subr.mxu0 0.0
  %8052 = vmatpush2.msra.mxu0 0.0
  %8053 = vmatprep.subr.mxu0 0.0
  %8054 = vmatpush2.msra.mxu0 0.0
  %8055 = vmatprep.subr.mxu0 0.0
  %8056 = vmatpush2.msra.mxu0 0.0
  %8057 = vmatprep.subr.mxu0 0.0
  %8058 = vmatpush2.msra.mxu0 0.0
  %8059 = vmatprep.subr.mxu0 0.0
  %8060 = vmatpush2.msra.mxu0 0.0
  %8061 = vmatprep.subr.mxu0 0.0
  %8062 = vmatpush2.msra.mxu0 0.0
  %8063 = vmatprep.subr.mxu0 0.0
  %8064 = vmatpush2.msra.mxu0 0.0
  %8065 = vmatprep.subr.mxu0 0.0
  %8066 = vmatpush2.msra.mxu0 0.0
  %8067 = vmatprep.mubr.f32.mxu0 0.0
  %8068 = vmatmul.mubr.f32.gmra.mxu0 %v7980
  %v8069 = vpop.f32.mrf.mxu0
  %v8070 = vadd.f32 %v7942, %v8069
  %v8071 = vpop.f32.mrf.mxu0
  %8072 = vmatprep.mubr.f32.mxu0 0.0
  %8073 = vmatmul.mubr.f32.gmra.mxu0 %v7983
  %v8074 = vpop.f32.mrf.mxu0
  %v8075 = vadd.f32 %v7947, %v8074
  %v8076 = vpop.f32.mrf.mxu0
  %8077 = vmatprep.mubr.f32.mxu0 0.0
  %8078 = vmatmul.mubr.f32.gmra.mxu0 %v7986
  %v8079 = vpop.f32.mrf.mxu0
  %v8080 = vadd.f32 %v7952, %v8079
  %v8081 = vpop.f32.mrf.mxu0
  %8082 = vmatprep.mubr.f32.mxu0 0.0
  %8083 = vmatmul.mubr.f32.gmra.mxu0 %v7989
  %v8084 = vpop.f32.mrf.mxu0
  %v8085 = vadd.f32 %v7957, %v8084
  %v8086 = vpop.f32.mrf.mxu0
  %8087 = vmatprep.mubr.f32.mxu0 0.0
  %8088 = vmatmul.mubr.f32.gmra.mxu0 %v7992
  %v8089 = vpop.f32.mrf.mxu0
  %v8090 = vadd.f32 %v7962, %v8089
  %v8091 = vpop.f32.mrf.mxu0
  %8092 = vmatprep.mubr.f32.mxu0 0.0
  %8093 = vmatmul.mubr.f32.gmra.mxu0 %v7995
  %v8094 = vpop.f32.mrf.mxu0
  %v8095 = vadd.f32 %v7967, %v8094
  %v8096 = vpop.f32.mrf.mxu0
  %8097 = vmatprep.mubr.f32.mxu0 0.0
  %8098 = vmatmul.mubr.f32.gmra.mxu0 %v7998
  %v8099 = vpop.f32.mrf.mxu0
  %v8100 = vadd.f32 %v7972, %v8099
  %v8101 = vpop.f32.mrf.mxu0
  %8102 = vmatprep.mubr.f32.mxu0 0.0
  %8103 = vmatmul.mubr.f32.gmra.mxu0 %v8001
  %v8104 = vpop.f32.mrf.mxu0
  %v8105 = vadd.f32 %v7977, %v8104
  %v8106 = vpop.f32.mrf.mxu0
  %8107 = vdwg.mxu0
  %v8108 = vmax.f32 %v8070, 0.0
  %v8109 = vmax.f32 %v8075, 0.0
  %v8110 = vmax.f32 %v8080, 0.0
  %v8111 = vmax.f32 %v8085, 0.0
  %v8112 = vmax.f32 %v8090, 0.0
  %v8113 = vmax.f32 %v8095, 0.0
  %v8114 = vmax.f32 %v8100, 0.0
  %v8115 = vmax.f32 %v8105, 0.0
  %8124 = vrot.lane.b32.xlu0 %v8108, 127
  %v8125 = vpop.permute.xlu0 %8124
  %8126 = vrot.lane.b32.xlu0 %v8109, 127
  %v8127 = vpop.permute.xlu0 %8126
  %8128 = vrot.lane.b32.xlu0 %v8110, 127
  %v8129 = vpop.permute.xlu0 %8128
  %8130 = vrot.lane.b32.xlu0 %v8111, 127
  %v8131 = vpop.permute.xlu0 %8130
  %8132 = vrot.lane.b32.xlu0 %v8112, 127
  %v8133 = vpop.permute.xlu0 %8132
  %8134 = vrot.lane.b32.xlu0 %v8113, 127
  %v8135 = vpop.permute.xlu0 %8134
  %8136 = vrot.lane.b32.xlu0 %v8114, 127
  %v8137 = vpop.permute.xlu0 %8136
  %8138 = vrot.lane.b32.xlu0 %v8115, 127
  %v8139 = vpop.permute.xlu0 %8138
  %v8148 = vmax.f32 %v8108, %v8125
  %v8149 = vmax.f32 %v8109, %v8127
  %v8150 = vmax.f32 %v8110, %v8129
  %v8151 = vmax.f32 %v8111, %v8131
  %v8152 = vmax.f32 %v8112, %v8133
  %v8153 = vmax.f32 %v8113, %v8135
  %v8154 = vmax.f32 %v8114, %v8137
  %v8155 = vmax.f32 %v8115, %v8139
  %8156 = vrot.lane.b32.xlu0 %v8108, 126
  %v8157 = vpop.permute.xlu0 %8156
  %8158 = vrot.lane.b32.xlu0 %v8109, 126
  %v8159 = vpop.permute.xlu0 %8158
  %8160 = vrot.lane.b32.xlu0 %v8110, 126
  %v8161 = vpop.permute.xlu0 %8160
  %8162 = vrot.lane.b32.xlu0 %v8111, 126
  %v8163 = vpop.permute.xlu0 %8162
  %8164 = vrot.lane.b32.xlu0 %v8112, 126
  %v8165 = vpop.permute.xlu0 %8164
  %8166 = vrot.lane.b32.xlu0 %v8113, 126
  %v8167 = vpop.permute.xlu0 %8166
  %8168 = vrot.lane.b32.xlu0 %v8114, 126
  %v8169 = vpop.permute.xlu0 %8168
  %8170 = vrot.lane.b32.xlu0 %v8115, 126
  %v8171 = vpop.permute.xlu0 %8170
  %v8180 = vmax.f32 %v8148, %v8157
  %v8181 = vmax.f32 %v8149, %v8159
  %v8182 = vmax.f32 %v8150, %v8161
  %v8183 = vmax.f32 %v8151, %v8163
  %v8184 = vmax.f32 %v8152, %v8165
  %v8185 = vmax.f32 %v8153, %v8167
  %v8186 = vmax.f32 %v8154, %v8169
  %v8187 = vmax.f32 %v8155, %v8171
  %v8188 = vld [vmem:[%s9] sm:$0xff]
  %v8189 = vld [vmem:[%s9 + $0x8] sm:$0xff]
  %v8190 = vld [vmem:[%s9 + $0x10] sm:$0xff]
  %v8191 = vld [vmem:[%s9 + $0x18] sm:$0xff]
  %v8192 = vld [vmem:[%s9 + $0x20] sm:$0xff]
  %v8193 = vld [vmem:[%s9 + $0x28] sm:$0xff]
  %v8194 = vld [vmem:[%s9 + $0x30] sm:$0x3]
  %v8196 = vsel %vm1284, %v8180, 0
  %v8199 = vsel %vm1284, %v8181, 0
  %v8202 = vsel %vm1284, %v8182, 0
  %v8205 = vsel %vm1284, %v8183, 0
  %v8208 = vsel %vm1284, %v8184, 0
  %v8211 = vsel %vm1284, %v8185, 0
  %v8214 = vsel %vm1284, %v8186, 0
  %v8217 = vsel %vm1284, %v8187, 0
  %v8220 = vsel %vm894, %v8194, 0
  %8222 = vmatprep.subr.mxu0 0.0
  %8223 = vmatpush1.msra.mxu0 0.0
  %8224 = vmatprep.subr.mxu0 0.0
  %8225 = vmatpush1.msra.mxu0 0.0
  %8226 = vmatprep.subr.mxu0 0.0
  %8227 = vmatpush1.msra.mxu0 0.0
  %8228 = vmatprep.subr.mxu0 0.0
  %8229 = vmatpush1.msra.mxu0 0.0
  %8230 = vmatprep.subr.mxu0 0.0
  %8231 = vmatpush1.msra.mxu0 0.0
  %8232 = vmatprep.subr.mxu0 0.0
  %8233 = vmatpush1.msra.mxu0 0.0
  %8234 = vmatprep.subr.mxu0 0.0
  %8235 = vmatpush1.msra.mxu0 0.0
  %8236 = vmatprep.subr.mxu0 0.0
  %8237 = vmatpush1.msra.mxu0 0.0
  %8238 = vmatprep.subr.mxu0 0.0
  %8239 = vmatpush1.msra.mxu0 0.0
  %8240 = vmatprep.subr.mxu0 0.0
  %8241 = vmatpush1.msra.mxu0 %v8220
  %8242 = vmatprep.subr.mxu0 0.0
  %8243 = vmatpush1.msra.mxu0 %v8193
  %8244 = vmatprep.subr.mxu0 0.0
  %8245 = vmatpush1.msra.mxu0 %v8192
  %8246 = vmatprep.subr.mxu0 0.0
  %8247 = vmatpush1.msra.mxu0 %v8191
  %8248 = vmatprep.subr.mxu0 0.0
  %8249 = vmatpush1.msra.mxu0 %v8190
  %8250 = vmatprep.subr.mxu0 0.0
  %8251 = vmatpush1.msra.mxu0 %v8189
  %8252 = vmatprep.subr.mxu0 0.0
  %8253 = vmatpush1.msra.mxu0 %v8188
  %8254 = vmatprep.subr.mxu0 0.0
  %8255 = vmatpush2.msra.mxu0 0.0
  %8256 = vmatprep.subr.mxu0 0.0
  %8257 = vmatpush2.msra.mxu0 0.0
  %8258 = vmatprep.subr.mxu0 0.0
  %8259 = vmatpush2.msra.mxu0 0.0
  %8260 = vmatprep.subr.mxu0 0.0
  %8261 = vmatpush2.msra.mxu0 0.0
  %8262 = vmatprep.subr.mxu0 0.0
  %8263 = vmatpush2.msra.mxu0 0.0
  %8264 = vmatprep.subr.mxu0 0.0
  %8265 = vmatpush2.msra.mxu0 0.0
  %8266 = vmatprep.subr.mxu0 0.0
  %8267 = vmatpush2.msra.mxu0 0.0
  %8268 = vmatprep.subr.mxu0 0.0
  %8269 = vmatpush2.msra.mxu0 0.0
  %8270 = vmatprep.subr.mxu0 0.0
  %8271 = vmatpush2.msra.mxu0 0.0
  %8272 = vmatprep.subr.mxu0 0.0
  %8273 = vmatpush2.msra.mxu0 0.0
  %8274 = vmatprep.subr.mxu0 0.0
  %8275 = vmatpush2.msra.mxu0 0.0
  %8276 = vmatprep.subr.mxu0 0.0
  %8277 = vmatpush2.msra.mxu0 0.0
  %8278 = vmatprep.subr.mxu0 0.0
  %8279 = vmatpush2.msra.mxu0 0.0
  %8280 = vmatprep.subr.mxu0 0.0
  %8281 = vmatpush2.msra.mxu0 0.0
  %8282 = vmatprep.subr.mxu0 0.0
  %8283 = vmatpush2.msra.mxu0 0.0
  %8284 = vmatprep.subr.mxu0 0.0
  %8285 = vmatpush2.msra.mxu0 0.0
  %8286 = vmatprep.mubr.f32.mxu0 0.0
  %8287 = vmatmul.mubr.f32.gmra.mxu0 %v8196
  %v8288 = vpop.f32.mrf.mxu0
  %v8289 = vadd.f32 0.0, %v8288
  %v8290 = vpop.f32.mrf.mxu0
  %8291 = vmatprep.mubr.f32.mxu0 0.0
  %8292 = vmatmul.mubr.f32.gmra.mxu0 %v8199
  %v8293 = vpop.f32.mrf.mxu0
  %v8294 = vadd.f32 0.0, %v8293
  %v8295 = vpop.f32.mrf.mxu0
  %8296 = vmatprep.mubr.f32.mxu0 0.0
  %8297 = vmatmul.mubr.f32.gmra.mxu0 %v8202
  %v8298 = vpop.f32.mrf.mxu0
  %v8299 = vadd.f32 0.0, %v8298
  %v8300 = vpop.f32.mrf.mxu0
  %8301 = vmatprep.mubr.f32.mxu0 0.0
  %8302 = vmatmul.mubr.f32.gmra.mxu0 %v8205
  %v8303 = vpop.f32.mrf.mxu0
  %v8304 = vadd.f32 0.0, %v8303
  %v8305 = vpop.f32.mrf.mxu0
  %8306 = vmatprep.mubr.f32.mxu0 0.0
  %8307 = vmatmul.mubr.f32.gmra.mxu0 %v8208
  %v8308 = vpop.f32.mrf.mxu0
  %v8309 = vadd.f32 0.0, %v8308
  %v8310 = vpop.f32.mrf.mxu0
  %8311 = vmatprep.mubr.f32.mxu0 0.0
  %8312 = vmatmul.mubr.f32.gmra.mxu0 %v8211
  %v8313 = vpop.f32.mrf.mxu0
  %v8314 = vadd.f32 0.0, %v8313
  %v8315 = vpop.f32.mrf.mxu0
  %8316 = vmatprep.mubr.f32.mxu0 0.0
  %8317 = vmatmul.mubr.f32.gmra.mxu0 %v8214
  %v8318 = vpop.f32.mrf.mxu0
  %v8319 = vadd.f32 0.0, %v8318
  %v8320 = vpop.f32.mrf.mxu0
  %8321 = vmatprep.mubr.f32.mxu0 0.0
  %8322 = vmatmul.mubr.f32.gmra.mxu0 %v8217
  %v8323 = vpop.f32.mrf.mxu0
  %v8324 = vadd.f32 0.0, %v8323
  %v8325 = vpop.f32.mrf.mxu0
  %8326 = vdwg.mxu0
  %s8327 = scalar_lea.vmem %s10, 320
  %8328 = vst.msk [vmem:[%s8327] sm:$0xff] %vm1417, %v8289
  %8329 = vst.msk [vmem:[%s8327 + $0x8] sm:$0xff] %vm1417, %v8294
  %8330 = vst.msk [vmem:[%s8327 + $0x10] sm:$0xff] %vm1417, %v8299
  %8331 = vst.msk [vmem:[%s8327 + $0x18] sm:$0xff] %vm1417, %v8304
  %8332 = vst.msk [vmem:[%s8327 + $0x20] sm:$0xff] %vm1417, %v8309
  %8333 = vst.msk [vmem:[%s8327 + $0x28] sm:$0xff] %vm1417, %v8314
  %8334 = vst.msk [vmem:[%s8327 + $0x30] sm:$0xff] %vm1417, %v8319
  %8335 = vst.msk [vmem:[%s8327 + $0x38] sm:$0xff] %vm1417, %v8324
  %s8336 = scalar_lea.vmem %s0, 6
  %v8337 = vld [vmem:[%s8336] ss:$8 sm:$0xf]
  %v8338 = vld [vmem:[%s1] sm:$0xff]
  %v8339 = vld [vmem:[%s1 + $0x8] sm:$0xff]
  %8341 = vset.pattern.permute.xlu0 0
  %8342 = vperm.xlu0 %8341, %v8338
  %v8343 = vpop.permute.xlu0 %8342
  %8346 = vset.pattern.permute.xlu0 0
  %8347 = vperm.xlu0 %8346, %v8339
  %v8348 = vpop.permute.xlu0 %8347
  %v8351 = vlaneseq
  %v8352 = vshrl.u32 %v8351, 7
  %v8353 = vsub.s32 0, %v8352
  %v8354 = vrot.slane %v8337, %v8353
  %v8355 = vlaneseq
  %v8356 = vshrl.u32 %v8355, 7
  %v8357 = vsub.s32 1, %v8356
  %v8358 = vrot.slane %v8337, %v8357
  %v8359 = vlaneseq
  %v8360 = vshrl.u32 %v8359, 7
  %v8361 = vsub.s32 2, %v8360
  %v8362 = vrot.slane %v8337, %v8361
  %v8363 = vlaneseq
  %v8364 = vshrl.u32 %v8363, 7
  %v8365 = vsub.s32 3, %v8364
  %v8366 = vrot.slane %v8337, %v8365
  %v8371 = vmul.f32 %v8343, %v8354
  %v8372 = vmul.f32 %v8343, %v8358
  %v8373 = vmul.f32 %v8343, %v8362
  %v8374 = vmul.f32 %v8343, %v8366
  %v8375 = vmul.f32 %v8348, %v8354
  %v8376 = vmul.f32 %v8348, %v8358
  %v8377 = vmul.f32 %v8348, %v8362
  %v8378 = vmul.f32 %v8348, %v8366
  %v8379 = vld [vmem:[%s77] sm:$0xff]
  %v8380 = vld [vmem:[%s77 + $0x8] sm:$0xff]
  %8382 = vset.pattern.permute.xlu0 0
  %8383 = vperm.xlu0 %8382, %v8379
  %v8384 = vpop.permute.xlu0 %8383
  %8387 = vset.pattern.permute.xlu0 0
  %8388 = vperm.xlu0 %8387, %v8380
  %v8389 = vpop.permute.xlu0 %8388
  %v8391 = vmul.f32 %v8384, %v8354
  %v8392 = vmul.f32 %v8384, %v8358
  %v8393 = vmul.f32 %v8384, %v8362
  %v8394 = vmul.f32 %v8384, %v8366
  %v8395 = vmul.f32 %v8389, %v8354
  %v8396 = vmul.f32 %v8389, %v8358
  %v8397 = vmul.f32 %v8389, %v8362
  %v8398 = vmul.f32 %v8389, %v8366
  %8407 = vrot.lane.b32.xlu0 %v8391, 127
  %v8408 = vpop.permute.xlu0 %8407
  %8409 = vrot.lane.b32.xlu0 %v8392, 127
  %v8410 = vpop.permute.xlu0 %8409
  %8411 = vrot.lane.b32.xlu0 %v8393, 127
  %v8412 = vpop.permute.xlu0 %8411
  %8413 = vrot.lane.b32.xlu0 %v8394, 127
  %v8414 = vpop.permute.xlu0 %8413
  %8415 = vrot.lane.b32.xlu0 %v8395, 127
  %v8416 = vpop.permute.xlu0 %8415
  %8417 = vrot.lane.b32.xlu0 %v8396, 127
  %v8418 = vpop.permute.xlu0 %8417
  %8419 = vrot.lane.b32.xlu0 %v8397, 127
  %v8420 = vpop.permute.xlu0 %8419
  %8421 = vrot.lane.b32.xlu0 %v8398, 127
  %v8422 = vpop.permute.xlu0 %8421
  %v8423 = vsel %vm122, %v8408, %v8410
  %v8424 = vsel %vm122, %v8410, %v8412
  %v8425 = vsel %vm122, %v8412, %v8414
  %v8426 = vsel %vm122, %v8416, %v8418
  %v8427 = vsel %vm122, %v8418, %v8420
  %v8428 = vsel %vm122, %v8420, %v8422
  %v8437 = vadd.f32 %v8371, %v8423
  %v8438 = vadd.f32 %v8372, %v8424
  %v8439 = vadd.f32 %v8373, %v8425
  %v8440 = vadd.f32 %v8374, %v8414
  %v8441 = vadd.f32 %v8375, %v8426
  %v8442 = vadd.f32 %v8376, %v8427
  %v8443 = vadd.f32 %v8377, %v8428
  %v8444 = vadd.f32 %v8378, %v8422
  %v8445 = vld [vmem:[%s145] sm:$0xff]
  %v8446 = vld [vmem:[%s145 + $0x8] sm:$0xff]
  %8448 = vset.pattern.permute.xlu0 0
  %8449 = vperm.xlu0 %8448, %v8445
  %v8450 = vpop.permute.xlu0 %8449
  %8453 = vset.pattern.permute.xlu0 0
  %8454 = vperm.xlu0 %8453, %v8446
  %v8455 = vpop.permute.xlu0 %8454
  %v8457 = vmul.f32 %v8450, %v8354
  %v8458 = vmul.f32 %v8450, %v8358
  %v8459 = vmul.f32 %v8450, %v8362
  %v8460 = vmul.f32 %v8450, %v8366
  %v8461 = vmul.f32 %v8455, %v8354
  %v8462 = vmul.f32 %v8455, %v8358
  %v8463 = vmul.f32 %v8455, %v8362
  %v8464 = vmul.f32 %v8455, %v8366
  %8473 = vrot.lane.b32.xlu0 %v8457, 126
  %v8474 = vpop.permute.xlu0 %8473
  %8475 = vrot.lane.b32.xlu0 %v8458, 126
  %v8476 = vpop.permute.xlu0 %8475
  %8477 = vrot.lane.b32.xlu0 %v8459, 126
  %v8478 = vpop.permute.xlu0 %8477
  %8479 = vrot.lane.b32.xlu0 %v8460, 126
  %v8480 = vpop.permute.xlu0 %8479
  %8481 = vrot.lane.b32.xlu0 %v8461, 126
  %v8482 = vpop.permute.xlu0 %8481
  %8483 = vrot.lane.b32.xlu0 %v8462, 126
  %v8484 = vpop.permute.xlu0 %8483
  %8485 = vrot.lane.b32.xlu0 %v8463, 126
  %v8486 = vpop.permute.xlu0 %8485
  %8487 = vrot.lane.b32.xlu0 %v8464, 126
  %v8488 = vpop.permute.xlu0 %8487
  %v8489 = vsel %vm190, %v8474, %v8476
  %v8490 = vsel %vm190, %v8476, %v8478
  %v8491 = vsel %vm190, %v8478, %v8480
  %v8492 = vsel %vm190, %v8482, %v8484
  %v8493 = vsel %vm190, %v8484, %v8486
  %v8494 = vsel %vm190, %v8486, %v8488
  %v8503 = vadd.f32 %v8437, %v8489
  %v8504 = vadd.f32 %v8438, %v8490
  %v8505 = vadd.f32 %v8439, %v8491
  %v8506 = vadd.f32 %v8440, %v8480
  %v8507 = vadd.f32 %v8441, %v8492
  %v8508 = vadd.f32 %v8442, %v8493
  %v8509 = vadd.f32 %v8443, %v8494
  %v8510 = vadd.f32 %v8444, %v8488
  %v8511 = vld [vmem:[%s2] sm:$0xff]
  %v8512 = vld [vmem:[%s2 + $0x8] sm:$0xff]
  %8514 = vset.pattern.permute.xlu0 0
  %8515 = vperm.xlu0 %8514, %v8511
  %v8516 = vpop.permute.xlu0 %8515
  %8519 = vset.pattern.permute.xlu0 0
  %8520 = vperm.xlu0 %8519, %v8512
  %v8521 = vpop.permute.xlu0 %8520
  %v8523 = vadd.f32 %v8503, %v8516
  %v8524 = vadd.f32 %v8504, %v8516
  %v8525 = vadd.f32 %v8505, %v8516
  %v8526 = vadd.f32 %v8506, %v8516
  %v8527 = vadd.f32 %v8507, %v8521
  %v8528 = vadd.f32 %v8508, %v8521
  %v8529 = vadd.f32 %v8509, %v8521
  %v8530 = vadd.f32 %v8510, %v8521
  %v8531 = vmax.f32 %v8523, 0.0
  %v8532 = vmax.f32 %v8524, 0.0
  %v8533 = vmax.f32 %v8525, 0.0
  %v8534 = vmax.f32 %v8526, 0.0
  %v8535 = vmax.f32 %v8527, 0.0
  %v8536 = vmax.f32 %v8528, 0.0
  %v8537 = vmax.f32 %v8529, 0.0
  %v8538 = vmax.f32 %v8530, 0.0
  %8547 = vrot.lane.b32.xlu0 %v8531, 127
  %v8548 = vpop.permute.xlu0 %8547
  %8549 = vrot.lane.b32.xlu0 %v8532, 127
  %v8550 = vpop.permute.xlu0 %8549
  %8551 = vrot.lane.b32.xlu0 %v8533, 127
  %v8552 = vpop.permute.xlu0 %8551
  %8553 = vrot.lane.b32.xlu0 %v8534, 127
  %v8554 = vpop.permute.xlu0 %8553
  %8555 = vrot.lane.b32.xlu0 %v8535, 127
  %v8556 = vpop.permute.xlu0 %8555
  %8557 = vrot.lane.b32.xlu0 %v8536, 127
  %v8558 = vpop.permute.xlu0 %8557
  %8559 = vrot.lane.b32.xlu0 %v8537, 127
  %v8560 = vpop.permute.xlu0 %8559
  %8561 = vrot.lane.b32.xlu0 %v8538, 127
  %v8562 = vpop.permute.xlu0 %8561
  %v8563 = vsel %vm122, %v8548, %v8550
  %v8564 = vsel %vm122, %v8550, %v8552
  %v8565 = vsel %vm122, %v8552, %v8554
  %v8566 = vsel %vm122, %v8556, %v8558
  %v8567 = vsel %vm122, %v8558, %v8560
  %v8568 = vsel %vm122, %v8560, %v8562
  %v8577 = vmax.f32 %v8531, %v8563
  %v8578 = vmax.f32 %v8532, %v8564
  %v8579 = vmax.f32 %v8533, %v8565
  %v8580 = vmax.f32 %v8534, %v8554
  %v8581 = vmax.f32 %v8535, %v8566
  %v8582 = vmax.f32 %v8536, %v8567
  %v8583 = vmax.f32 %v8537, %v8568
  %v8584 = vmax.f32 %v8538, %v8562
  %8585 = vrot.lane.b32.xlu0 %v8531, 126
  %v8586 = vpop.permute.xlu0 %8585
  %8587 = vrot.lane.b32.xlu0 %v8532, 126
  %v8588 = vpop.permute.xlu0 %8587
  %8589 = vrot.lane.b32.xlu0 %v8533, 126
  %v8590 = vpop.permute.xlu0 %8589
  %8591 = vrot.lane.b32.xlu0 %v8534, 126
  %v8592 = vpop.permute.xlu0 %8591
  %8593 = vrot.lane.b32.xlu0 %v8535, 126
  %v8594 = vpop.permute.xlu0 %8593
  %8595 = vrot.lane.b32.xlu0 %v8536, 126
  %v8596 = vpop.permute.xlu0 %8595
  %8597 = vrot.lane.b32.xlu0 %v8537, 126
  %v8598 = vpop.permute.xlu0 %8597
  %8599 = vrot.lane.b32.xlu0 %v8538, 126
  %v8600 = vpop.permute.xlu0 %8599
  %v8601 = vsel %vm190, %v8586, %v8588
  %v8602 = vsel %vm190, %v8588, %v8590
  %v8603 = vsel %vm190, %v8590, %v8592
  %v8604 = vsel %vm190, %v8594, %v8596
  %v8605 = vsel %vm190, %v8596, %v8598
  %v8606 = vsel %vm190, %v8598, %v8600
  %v8615 = vmax.f32 %v8577, %v8601
  %v8616 = vmax.f32 %v8578, %v8602
  %v8617 = vmax.f32 %v8579, %v8603
  %v8618 = vmax.f32 %v8580, %v8592
  %v8619 = vmax.f32 %v8581, %v8604
  %v8620 = vmax.f32 %v8582, %v8605
  %v8621 = vmax.f32 %v8583, %v8606
  %v8622 = vmax.f32 %v8584, %v8600
  %v8623 = vld [vmem:[%s3] sm:$0xff]
  %v8624 = vld [vmem:[%s3 + $0x8] sm:$0xff]
  %v8625 = vld [vmem:[%s3 + $0x10] sm:$0xff]
  %v8626 = vld [vmem:[%s3 + $0x18] sm:$0xff]
  %v8627 = vld [vmem:[%s3 + $0x20] sm:$0xff]
  %v8628 = vld [vmem:[%s3 + $0x28] sm:$0xff]
  %v8629 = vld [vmem:[%s3 + $0x30] sm:$0xff]
  %v8630 = vld [vmem:[%s3 + $0x38] sm:$0xff]
  %v8631 = vld [vmem:[%s3 + $0x40] sm:$0xff]
  %v8632 = vld [vmem:[%s3 + $0x48] sm:$0xff]
  %v8633 = vld [vmem:[%s3 + $0x50] sm:$0xff]
  %v8634 = vld [vmem:[%s3 + $0x58] sm:$0xff]
  %v8635 = vld [vmem:[%s3 + $0x60] sm:$0xff]
  %v8636 = vld [vmem:[%s3 + $0x68] sm:$0xff]
  %v8637 = vld [vmem:[%s3 + $0x70] sm:$0xff]
  %v8638 = vld [vmem:[%s3 + $0x78] sm:$0xff]
  %v8639 = vld [vmem:[%s3 + $0x80] sm:$0xff]
  %v8640 = vld [vmem:[%s3 + $0x88] sm:$0xff]
  %v8641 = vld [vmem:[%s3 + $0x90] sm:$0xff]
  %v8642 = vld [vmem:[%s3 + $0x98] sm:$0xff]
  %v8643 = vld [vmem:[%s3 + $0xa0] sm:$0xff]
  %v8644 = vld [vmem:[%s3 + $0xa8] sm:$0xff]
  %v8645 = vld [vmem:[%s3 + $0xb0] sm:$0xff]
  %v8646 = vld [vmem:[%s3 + $0xb8] sm:$0xff]
  %v8647 = vld [vmem:[%s3 + $0xc0] sm:$0xff]
  %v8648 = vld [vmem:[%s3 + $0xc8] sm:$0xff]
  %v8649 = vld [vmem:[%s3 + $0xd0] sm:$0xff]
  %v8650 = vld [vmem:[%s3 + $0xd8] sm:$0xff]
  %v8651 = vld [vmem:[%s3 + $0xe0] sm:$0xff]
  %v8652 = vld [vmem:[%s3 + $0xe8] sm:$0xff]
  %v8653 = vld [vmem:[%s3 + $0xf0] sm:$0xff]
  %v8654 = vld [vmem:[%s3 + $0xf8] sm:$0xff]
  %v8655 = vld [vmem:[%s3 + $0x100] sm:$0xff]
  %v8656 = vld [vmem:[%s3 + $0x108] sm:$0xff]
  %v8657 = vld [vmem:[%s3 + $0x110] sm:$0xff]
  %v8658 = vld [vmem:[%s3 + $0x118] sm:$0xff]
  %v8659 = vld [vmem:[%s3 + $0x120] sm:$0xff]
  %v8660 = vld [vmem:[%s3 + $0x128] sm:$0xff]
  %v8661 = vld [vmem:[%s3 + $0x130] sm:$0xff]
  %v8662 = vld [vmem:[%s3 + $0x138] sm:$0xff]
  %v8663 = vld [vmem:[%s3 + $0x140] sm:$0xff]
  %v8664 = vld [vmem:[%s3 + $0x148] sm:$0xff]
  %v8665 = vld [vmem:[%s3 + $0x150] sm:$0xff]
  %v8666 = vld [vmem:[%s3 + $0x158] sm:$0xff]
  %v8667 = vld [vmem:[%s3 + $0x160] sm:$0xff]
  %v8668 = vld [vmem:[%s3 + $0x168] sm:$0xff]
  %v8669 = vld [vmem:[%s3 + $0x170] sm:$0xff]
  %v8670 = vld [vmem:[%s3 + $0x178] sm:$0xff]
  %v8671 = vld [vmem:[%s3 + $0x180] sm:$0xff]
  %v8672 = vld [vmem:[%s3 + $0x188] sm:$0xff]
  %v8673 = vld [vmem:[%s3 + $0x190] sm:$0xff]
  %v8674 = vld [vmem:[%s3 + $0x198] sm:$0xff]
  %v8675 = vld [vmem:[%s3 + $0x1a0] sm:$0xff]
  %v8676 = vld [vmem:[%s3 + $0x1a8] sm:$0xff]
  %v8677 = vld [vmem:[%s3 + $0x1b0] sm:$0xff]
  %v8678 = vld [vmem:[%s3 + $0x1b8] sm:$0xff]
  %v8679 = vld [vmem:[%s3 + $0x1c0] sm:$0xff]
  %v8680 = vld [vmem:[%s3 + $0x1c8] sm:$0xff]
  %v8681 = vld [vmem:[%s3 + $0x1d0] sm:$0xff]
  %v8682 = vld [vmem:[%s3 + $0x1d8] sm:$0xff]
  %v8683 = vld [vmem:[%s3 + $0x1e0] sm:$0xff]
  %v8684 = vld [vmem:[%s3 + $0x1e8] sm:$0xff]
  %v8685 = vld [vmem:[%s3 + $0x1f0] sm:$0xff]
  %v8686 = vld [vmem:[%s3 + $0x1f8] sm:$0xff]
  %v8687 = vld [vmem:[%s3 + $0x200] sm:$0xff]
  %v8688 = vld [vmem:[%s3 + $0x208] sm:$0xff]
  %v8689 = vld [vmem:[%s3 + $0x210] sm:$0xff]
  %v8690 = vld [vmem:[%s3 + $0x218] sm:$0xff]
  %v8691 = vld [vmem:[%s3 + $0x220] sm:$0xff]
  %v8692 = vld [vmem:[%s3 + $0x228] sm:$0xff]
  %v8693 = vld [vmem:[%s3 + $0x230] sm:$0xff]
  %v8694 = vld [vmem:[%s3 + $0x238] sm:$0xff]
  %v8695 = vld [vmem:[%s3 + $0x240] sm:$0xff]
  %v8696 = vld [vmem:[%s3 + $0x248] sm:$0xff]
  %v8697 = vld [vmem:[%s3 + $0x250] sm:$0xff]
  %v8698 = vld [vmem:[%s3 + $0x258] sm:$0xff]
  %v8699 = vld [vmem:[%s3 + $0x260] sm:$0xff]
  %v8700 = vld [vmem:[%s3 + $0x268] sm:$0xff]
  %v8701 = vld [vmem:[%s3 + $0x270] sm:$0xff]
  %v8702 = vld [vmem:[%s3 + $0x278] sm:$0xff]
  %v8703 = vld [vmem:[%s3 + $0x280] sm:$0xff]
  %v8704 = vld [vmem:[%s3 + $0x288] sm:$0xff]
  %v8705 = vld [vmem:[%s3 + $0x290] sm:$0xff]
  %v8706 = vld [vmem:[%s3 + $0x298] sm:$0xff]
  %v8707 = vld [vmem:[%s3 + $0x2a0] sm:$0xff]
  %v8708 = vld [vmem:[%s3 + $0x2a8] sm:$0xff]
  %v8709 = vld [vmem:[%s3 + $0x2b0] sm:$0xff]
  %v8710 = vld [vmem:[%s3 + $0x2b8] sm:$0xff]
  %v8711 = vld [vmem:[%s3 + $0x2c0] sm:$0xff]
  %v8712 = vld [vmem:[%s3 + $0x2c8] sm:$0xff]
  %v8713 = vld [vmem:[%s3 + $0x2d0] sm:$0xff]
  %v8714 = vld [vmem:[%s3 + $0x2d8] sm:$0xff]
  %v8715 = vld [vmem:[%s3 + $0x2e0] sm:$0xff]
  %v8716 = vld [vmem:[%s3 + $0x2e8] sm:$0xff]
  %v8717 = vld [vmem:[%s3 + $0x2f0] sm:$0xff]
  %v8718 = vld [vmem:[%s3 + $0x2f8] sm:$0xff]
  %v8719 = vld [vmem:[%s3 + $0x300] sm:$0xff]
  %v8720 = vld [vmem:[%s3 + $0x308] sm:$0xff]
  %v8721 = vld [vmem:[%s3 + $0x310] sm:$0xff]
  %v8722 = vld [vmem:[%s3 + $0x318] sm:$0xff]
  %v8723 = vld [vmem:[%s3 + $0x320] sm:$0xff]
  %v8724 = vld [vmem:[%s3 + $0x328] sm:$0xff]
  %v8725 = vld [vmem:[%s3 + $0x330] sm:$0xff]
  %v8726 = vld [vmem:[%s3 + $0x338] sm:$0xff]
  %v8727 = vld [vmem:[%s3 + $0x340] sm:$0xff]
  %v8728 = vld [vmem:[%s3 + $0x348] sm:$0xff]
  %v8729 = vld [vmem:[%s3 + $0x350] sm:$0xff]
  %v8730 = vld [vmem:[%s3 + $0x358] sm:$0xff]
  %v8731 = vld [vmem:[%s3 + $0x360] sm:$0xff]
  %v8732 = vld [vmem:[%s3 + $0x368] sm:$0xff]
  %v8733 = vld [vmem:[%s3 + $0x370] sm:$0xff]
  %v8734 = vld [vmem:[%s3 + $0x378] sm:$0xff]
  %v8735 = vld [vmem:[%s3 + $0x380] sm:$0xff]
  %v8736 = vld [vmem:[%s3 + $0x388] sm:$0xff]
  %v8737 = vld [vmem:[%s3 + $0x390] sm:$0xff]
  %v8738 = vld [vmem:[%s3 + $0x398] sm:$0xff]
  %v8739 = vld [vmem:[%s3 + $0x3a0] sm:$0xff]
  %v8740 = vld [vmem:[%s3 + $0x3a8] sm:$0xff]
  %v8741 = vld [vmem:[%s3 + $0x3b0] sm:$0xff]
  %v8742 = vld [vmem:[%s3 + $0x3b8] sm:$0xff]
  %v8743 = vld [vmem:[%s3 + $0x3c0] sm:$0xff]
  %v8744 = vld [vmem:[%s3 + $0x3c8] sm:$0xff]
  %v8745 = vld [vmem:[%s3 + $0x3d0] sm:$0xff]
  %v8746 = vld [vmem:[%s3 + $0x3d8] sm:$0xff]
  %v8748 = vsel %vm449, %v8618, 0
  %v8751 = vsel %vm449, %v8622, 0
  %8753 = vmatprep.subr.mxu0 %v8654
  %8754 = vmatpush1.msra.mxu0 %v8653
  %8755 = vmatprep.subr.mxu0 %v8652
  %8756 = vmatpush1.msra.mxu0 %v8651
  %8757 = vmatprep.subr.mxu0 %v8650
  %8758 = vmatpush1.msra.mxu0 %v8649
  %8759 = vmatprep.subr.mxu0 %v8648
  %8760 = vmatpush1.msra.mxu0 %v8647
  %8761 = vmatprep.subr.mxu0 %v8646
  %8762 = vmatpush1.msra.mxu0 %v8645
  %8763 = vmatprep.subr.mxu0 %v8644
  %8764 = vmatpush1.msra.mxu0 %v8643
  %8765 = vmatprep.subr.mxu0 %v8642
  %8766 = vmatpush1.msra.mxu0 %v8641
  %8767 = vmatprep.subr.mxu0 %v8640
  %8768 = vmatpush1.msra.mxu0 %v8639
  %8769 = vmatprep.subr.mxu0 %v8638
  %8770 = vmatpush1.msra.mxu0 %v8637
  %8771 = vmatprep.subr.mxu0 %v8636
  %8772 = vmatpush1.msra.mxu0 %v8635
  %8773 = vmatprep.subr.mxu0 %v8634
  %8774 = vmatpush1.msra.mxu0 %v8633
  %8775 = vmatprep.subr.mxu0 %v8632
  %8776 = vmatpush1.msra.mxu0 %v8631
  %8777 = vmatprep.subr.mxu0 %v8630
  %8778 = vmatpush1.msra.mxu0 %v8629
  %8779 = vmatprep.subr.mxu0 %v8628
  %8780 = vmatpush1.msra.mxu0 %v8627
  %8781 = vmatprep.subr.mxu0 %v8626
  %8782 = vmatpush1.msra.mxu0 %v8625
  %8783 = vmatprep.subr.mxu0 %v8624
  %8784 = vmatpush1.msra.mxu0 %v8623
  %8785 = vmatprep.subr.mxu0 %v8686
  %8786 = vmatpush2.msra.mxu0 %v8685
  %8787 = vmatprep.subr.mxu0 %v8684
  %8788 = vmatpush2.msra.mxu0 %v8683
  %8789 = vmatprep.subr.mxu0 %v8682
  %8790 = vmatpush2.msra.mxu0 %v8681
  %8791 = vmatprep.subr.mxu0 %v8680
  %8792 = vmatpush2.msra.mxu0 %v8679
  %8793 = vmatprep.subr.mxu0 %v8678
  %8794 = vmatpush2.msra.mxu0 %v8677
  %8795 = vmatprep.subr.mxu0 %v8676
  %8796 = vmatpush2.msra.mxu0 %v8675
  %8797 = vmatprep.subr.mxu0 %v8674
  %8798 = vmatpush2.msra.mxu0 %v8673
  %8799 = vmatprep.subr.mxu0 %v8672
  %8800 = vmatpush2.msra.mxu0 %v8671
  %8801 = vmatprep.subr.mxu0 %v8670
  %8802 = vmatpush2.msra.mxu0 %v8669
  %8803 = vmatprep.subr.mxu0 %v8668
  %8804 = vmatpush2.msra.mxu0 %v8667
  %8805 = vmatprep.subr.mxu0 %v8666
  %8806 = vmatpush2.msra.mxu0 %v8665
  %8807 = vmatprep.subr.mxu0 %v8664
  %8808 = vmatpush2.msra.mxu0 %v8663
  %8809 = vmatprep.subr.mxu0 %v8662
  %8810 = vmatpush2.msra.mxu0 %v8661
  %8811 = vmatprep.subr.mxu0 %v8660
  %8812 = vmatpush2.msra.mxu0 %v8659
  %8813 = vmatprep.subr.mxu0 %v8658
  %8814 = vmatpush2.msra.mxu0 %v8657
  %8815 = vmatprep.subr.mxu0 %v8656
  %8816 = vmatpush2.msra.mxu0 %v8655
  %8817 = vmatprep.mubr.f32.mxu0 %v8616
  %8818 = vmatmul.mubr.f32.gmra.mxu0 %v8615
  %v8819 = vpop.f32.mrf.mxu0
  %v8820 = vadd.f32 0.0, %v8819
  %v8821 = vpop.f32.mrf.mxu0
  %v8822 = vadd.f32 0.0, %v8821
  %8823 = vmatprep.mubr.f32.mxu0 %v8620
  %8824 = vmatmul.mubr.f32.gmra.mxu0 %v8619
  %v8825 = vpop.f32.mrf.mxu0
  %v8826 = vadd.f32 0.0, %v8825
  %v8827 = vpop.f32.mrf.mxu0
  %v8828 = vadd.f32 0.0, %v8827
  %8829 = vdwg.mxu0
  %8830 = vmatprep.subr.mxu0 %v8718
  %8831 = vmatpush1.msra.mxu0 %v8717
  %8832 = vmatprep.subr.mxu0 %v8716
  %8833 = vmatpush1.msra.mxu0 %v8715
  %8834 = vmatprep.subr.mxu0 %v8714
  %8835 = vmatpush1.msra.mxu0 %v8713
  %8836 = vmatprep.subr.mxu0 %v8712
  %8837 = vmatpush1.msra.mxu0 %v8711
  %8838 = vmatprep.subr.mxu0 %v8710
  %8839 = vmatpush1.msra.mxu0 %v8709
  %8840 = vmatprep.subr.mxu0 %v8708
  %8841 = vmatpush1.msra.mxu0 %v8707
  %8842 = vmatprep.subr.mxu0 %v8706
  %8843 = vmatpush1.msra.mxu0 %v8705
  %8844 = vmatprep.subr.mxu0 %v8704
  %8845 = vmatpush1.msra.mxu0 %v8703
  %8846 = vmatprep.subr.mxu0 %v8702
  %8847 = vmatpush1.msra.mxu0 %v8701
  %8848 = vmatprep.subr.mxu0 %v8700
  %8849 = vmatpush1.msra.mxu0 %v8699
  %8850 = vmatprep.subr.mxu0 %v8698
  %8851 = vmatpush1.msra.mxu0 %v8697
  %8852 = vmatprep.subr.mxu0 %v8696
  %8853 = vmatpush1.msra.mxu0 %v8695
  %8854 = vmatprep.subr.mxu0 %v8694
  %8855 = vmatpush1.msra.mxu0 %v8693
  %8856 = vmatprep.subr.mxu0 %v8692
  %8857 = vmatpush1.msra.mxu0 %v8691
  %8858 = vmatprep.subr.mxu0 %v8690
  %8859 = vmatpush1.msra.mxu0 %v8689
  %8860 = vmatprep.subr.mxu0 %v8688
  %8861 = vmatpush1.msra.mxu0 %v8687
  %8862 = vmatprep.subr.mxu0 0.0
  %8863 = vmatpush2.msra.mxu0 0.0
  %8864 = vmatprep.subr.mxu0 0.0
  %8865 = vmatpush2.msra.mxu0 0.0
  %8866 = vmatprep.subr.mxu0 %v8746
  %8867 = vmatpush2.msra.mxu0 %v8745
  %8868 = vmatprep.subr.mxu0 %v8744
  %8869 = vmatpush2.msra.mxu0 %v8743
  %8870 = vmatprep.subr.mxu0 %v8742
  %8871 = vmatpush2.msra.mxu0 %v8741
  %8872 = vmatprep.subr.mxu0 %v8740
  %8873 = vmatpush2.msra.mxu0 %v8739
  %8874 = vmatprep.subr.mxu0 %v8738
  %8875 = vmatpush2.msra.mxu0 %v8737
  %8876 = vmatprep.subr.mxu0 %v8736
  %8877 = vmatpush2.msra.mxu0 %v8735
  %8878 = vmatprep.subr.mxu0 %v8734
  %8879 = vmatpush2.msra.mxu0 %v8733
  %8880 = vmatprep.subr.mxu0 %v8732
  %8881 = vmatpush2.msra.mxu0 %v8731
  %8882 = vmatprep.subr.mxu0 %v8730
  %8883 = vmatpush2.msra.mxu0 %v8729
  %8884 = vmatprep.subr.mxu0 %v8728
  %8885 = vmatpush2.msra.mxu0 %v8727
  %8886 = vmatprep.subr.mxu0 %v8726
  %8887 = vmatpush2.msra.mxu0 %v8725
  %8888 = vmatprep.subr.mxu0 %v8724
  %8889 = vmatpush2.msra.mxu0 %v8723
  %8890 = vmatprep.subr.mxu0 %v8722
  %8891 = vmatpush2.msra.mxu0 %v8721
  %8892 = vmatprep.subr.mxu0 %v8720
  %8893 = vmatpush2.msra.mxu0 %v8719
  %8894 = vmatprep.mubr.f32.mxu0 %v8748
  %8895 = vmatmul.mubr.f32.gmra.mxu0 %v8617
  %v8896 = vpop.f32.mrf.mxu0
  %v8897 = vadd.f32 %v8820, %v8896
  %v8898 = vpop.f32.mrf.mxu0
  %v8899 = vadd.f32 %v8822, %v8898
  %8900 = vmatprep.mubr.f32.mxu0 %v8751
  %8901 = vmatmul.mubr.f32.gmra.mxu0 %v8621
  %v8902 = vpop.f32.mrf.mxu0
  %v8903 = vadd.f32 %v8826, %v8902
  %v8904 = vpop.f32.mrf.mxu0
  %v8905 = vadd.f32 %v8828, %v8904
  %8906 = vdwg.mxu0
  %8911 = vrot.lane.b32.xlu0 %v8897, 127
  %v8912 = vpop.permute.xlu0 %8911
  %8913 = vrot.lane.b32.xlu0 %v8899, 127
  %v8914 = vpop.permute.xlu0 %8913
  %8915 = vrot.lane.b32.xlu0 %v8903, 127
  %v8916 = vpop.permute.xlu0 %8915
  %8917 = vrot.lane.b32.xlu0 %v8905, 127
  %v8918 = vpop.permute.xlu0 %8917
  %v8919 = vsel %vm122, %v8912, %v8914
  %v8920 = vsel %vm122, %v8916, %v8918
  %8925 = vrot.lane.b32.xlu0 %v8897, 126
  %v8926 = vpop.permute.xlu0 %8925
  %8927 = vrot.lane.b32.xlu0 %v8899, 126
  %v8928 = vpop.permute.xlu0 %8927
  %8929 = vrot.lane.b32.xlu0 %v8903, 126
  %v8930 = vpop.permute.xlu0 %8929
  %8931 = vrot.lane.b32.xlu0 %v8905, 126
  %v8932 = vpop.permute.xlu0 %8931
  %v8933 = vsel %vm190, %v8926, %v8928
  %v8934 = vsel %vm190, %v8930, %v8932
  %v8939 = vld [vmem:[%s4] sm:$0xff]
  %v8940 = vld [vmem:[%s4 + $0x8] sm:$0xff]
  %v8941 = vld [vmem:[%s4 + $0x10] sm:$0xff]
  %v8942 = vld [vmem:[%s4 + $0x18] sm:$0xff]
  %v8943 = vld [vmem:[%s5] sm:$0xff]
  %v8944 = vld [vmem:[%s5 + $0x8] sm:$0xff]
  %v8945 = vld [vmem:[%s5 + $0x10] sm:$0xff]
  %v8946 = vld [vmem:[%s5 + $0x18] sm:$0xff]
  %8948 = vset.pattern.permute.xlu0 0
  %8949 = vperm.xlu0 %8948, %v8943
  %v8950 = vpop.permute.xlu0 %8949
  %8953 = vset.pattern.permute.xlu0 0
  %8954 = vperm.xlu0 %8953, %v8944
  %v8955 = vpop.permute.xlu0 %8954
  %8958 = vset.pattern.permute.xlu0 0
  %8959 = vperm.xlu0 %8958, %v8945
  %v8960 = vpop.permute.xlu0 %8959
  %8963 = vset.pattern.permute.xlu0 0
  %8964 = vperm.xlu0 %8963, %v8946
  %v8965 = vpop.permute.xlu0 %8964
  %v8968 = vsel %vm670, %v8939, 0
  %v8971 = vsel %vm670, %v8940, 0
  %v8974 = vsel %vm670, %v8941, 0
  %v8977 = vsel %vm670, %v8942, 0
  %8979 = vmatprep.subr.mxu0 0.0
  %8980 = vmatpush1.msra.mxu0 0.0
  %8981 = vmatprep.subr.mxu0 0.0
  %8982 = vmatpush1.msra.mxu0 0.0
  %8983 = vmatprep.subr.mxu0 0.0
  %8984 = vmatpush1.msra.mxu0 0.0
  %8985 = vmatprep.subr.mxu0 0.0
  %8986 = vmatpush1.msra.mxu0 0.0
  %8987 = vmatprep.subr.mxu0 0.0
  %8988 = vmatpush1.msra.mxu0 0.0
  %8989 = vmatprep.subr.mxu0 0.0
  %8990 = vmatpush1.msra.mxu0 0.0
  %8991 = vmatprep.subr.mxu0 0.0
  %8992 = vmatpush1.msra.mxu0 0.0
  %8993 = vmatprep.subr.mxu0 0.0
  %8994 = vmatpush1.msra.mxu0 0.0
  %8995 = vmatprep.subr.mxu0 0.0
  %8996 = vmatpush1.msra.mxu0 0.0
  %8997 = vmatprep.subr.mxu0 0.0
  %8998 = vmatpush1.msra.mxu0 0.0
  %8999 = vmatprep.subr.mxu0 %v8932
  %9000 = vmatpush1.msra.mxu0 %v8934
  %9001 = vmatprep.subr.mxu0 %v8928
  %9002 = vmatpush1.msra.mxu0 %v8933
  %9003 = vmatprep.subr.mxu0 %v8918
  %9004 = vmatpush1.msra.mxu0 %v8920
  %9005 = vmatprep.subr.mxu0 %v8914
  %9006 = vmatpush1.msra.mxu0 %v8919
  %9007 = vmatprep.subr.mxu0 %v8905
  %9008 = vmatpush1.msra.mxu0 %v8903
  %9009 = vmatprep.subr.mxu0 %v8899
  %9010 = vmatpush1.msra.mxu0 %v8897
  %9011 = vmatprep.subr.mxu0 0.0
  %9012 = vmatpush2.msra.mxu0 0.0
  %9013 = vmatprep.subr.mxu0 0.0
  %9014 = vmatpush2.msra.mxu0 0.0
  %9015 = vmatprep.subr.mxu0 0.0
  %9016 = vmatpush2.msra.mxu0 0.0
  %9017 = vmatprep.subr.mxu0 0.0
  %9018 = vmatpush2.msra.mxu0 0.0
  %9019 = vmatprep.subr.mxu0 0.0
  %9020 = vmatpush2.msra.mxu0 0.0
  %9021 = vmatprep.subr.mxu0 0.0
  %9022 = vmatpush2.msra.mxu0 0.0
  %9023 = vmatprep.subr.mxu0 0.0
  %9024 = vmatpush2.msra.mxu0 0.0
  %9025 = vmatprep.subr.mxu0 0.0
  %9026 = vmatpush2.msra.mxu0 0.0
  %9027 = vmatprep.subr.mxu0 0.0
  %9028 = vmatpush2.msra.mxu0 0.0
  %9029 = vmatprep.subr.mxu0 0.0
  %9030 = vmatpush2.msra.mxu0 0.0
  %9031 = vmatprep.subr.mxu0 0.0
  %9032 = vmatpush2.msra.mxu0 0.0
  %9033 = vmatprep.subr.mxu0 0.0
  %9034 = vmatpush2.msra.mxu0 0.0
  %9035 = vmatprep.subr.mxu0 0.0
  %9036 = vmatpush2.msra.mxu0 0.0
  %9037 = vmatprep.subr.mxu0 0.0
  %9038 = vmatpush2.msra.mxu0 0.0
  %9039 = vmatprep.subr.mxu0 0.0
  %9040 = vmatpush2.msra.mxu0 0.0
  %9041 = vmatprep.subr.mxu0 0.0
  %9042 = vmatpush2.msra.mxu0 0.0
  %9043 = vmatprep.mubr.f32.mxu0 0.0
  %9044 = vmatmul.mubr.f32.gmra.mxu0 %v8968
  %v9045 = vpop.f32.mrf.mxu0
  %v9046 = vadd.f32 %v8950, %v9045
  %v9047 = vpop.f32.mrf.mxu0
  %v9048 = vadd.f32 %v8950, %v9047
  %9049 = vmatprep.mubr.f32.mxu0 0.0
  %9050 = vmatmul.mubr.f32.gmra.mxu0 %v8971
  %v9051 = vpop.f32.mrf.mxu0
  %v9052 = vadd.f32 %v8955, %v9051
  %v9053 = vpop.f32.mrf.mxu0
  %v9054 = vadd.f32 %v8955, %v9053
  %9055 = vmatprep.mubr.f32.mxu0 0.0
  %9056 = vmatmul.mubr.f32.gmra.mxu0 %v8974
  %v9057 = vpop.f32.mrf.mxu0
  %v9058 = vadd.f32 %v8960, %v9057
  %v9059 = vpop.f32.mrf.mxu0
  %v9060 = vadd.f32 %v8960, %v9059
  %9061 = vmatprep.mubr.f32.mxu0 0.0
  %9062 = vmatmul.mubr.f32.gmra.mxu0 %v8977
  %v9063 = vpop.f32.mrf.mxu0
  %v9064 = vadd.f32 %v8965, %v9063
  %v9065 = vpop.f32.mrf.mxu0
  %v9066 = vadd.f32 %v8965, %v9065
  %9067 = vdwg.mxu0
  %v9068 = vmax.f32 %v9046, 0.0
  %v9069 = vmax.f32 %v9048, 0.0
  %v9070 = vmax.f32 %v9052, 0.0
  %v9071 = vmax.f32 %v9054, 0.0
  %v9072 = vmax.f32 %v9058, 0.0
  %v9073 = vmax.f32 %v9060, 0.0
  %v9074 = vmax.f32 %v9064, 0.0
  %v9075 = vmax.f32 %v9066, 0.0
  %9084 = vrot.lane.b32.xlu0 %v9068, 127
  %v9085 = vpop.permute.xlu0 %9084
  %9086 = vrot.lane.b32.xlu0 %v9069, 127
  %v9087 = vpop.permute.xlu0 %9086
  %9088 = vrot.lane.b32.xlu0 %v9070, 127
  %v9089 = vpop.permute.xlu0 %9088
  %9090 = vrot.lane.b32.xlu0 %v9071, 127
  %v9091 = vpop.permute.xlu0 %9090
  %9092 = vrot.lane.b32.xlu0 %v9072, 127
  %v9093 = vpop.permute.xlu0 %9092
  %9094 = vrot.lane.b32.xlu0 %v9073, 127
  %v9095 = vpop.permute.xlu0 %9094
  %9096 = vrot.lane.b32.xlu0 %v9074, 127
  %v9097 = vpop.permute.xlu0 %9096
  %9098 = vrot.lane.b32.xlu0 %v9075, 127
  %v9099 = vpop.permute.xlu0 %9098
  %v9100 = vsel %vm122, %v9085, %v9087
  %v9101 = vsel %vm122, %v9089, %v9091
  %v9102 = vsel %vm122, %v9093, %v9095
  %v9103 = vsel %vm122, %v9097, %v9099
  %v9112 = vmax.f32 %v9068, %v9100
  %v9113 = vmax.f32 %v9069, %v9087
  %v9114 = vmax.f32 %v9070, %v9101
  %v9115 = vmax.f32 %v9071, %v9091
  %v9116 = vmax.f32 %v9072, %v9102
  %v9117 = vmax.f32 %v9073, %v9095
  %v9118 = vmax.f32 %v9074, %v9103
  %v9119 = vmax.f32 %v9075, %v9099
  %9120 = vrot.lane.b32.xlu0 %v9068, 126
  %v9121 = vpop.permute.xlu0 %9120
  %9122 = vrot.lane.b32.xlu0 %v9069, 126
  %v9123 = vpop.permute.xlu0 %9122
  %9124 = vrot.lane.b32.xlu0 %v9070, 126
  %v9125 = vpop.permute.xlu0 %9124
  %9126 = vrot.lane.b32.xlu0 %v9071, 126
  %v9127 = vpop.permute.xlu0 %9126
  %9128 = vrot.lane.b32.xlu0 %v9072, 126
  %v9129 = vpop.permute.xlu0 %9128
  %9130 = vrot.lane.b32.xlu0 %v9073, 126
  %v9131 = vpop.permute.xlu0 %9130
  %9132 = vrot.lane.b32.xlu0 %v9074, 126
  %v9133 = vpop.permute.xlu0 %9132
  %9134 = vrot.lane.b32.xlu0 %v9075, 126
  %v9135 = vpop.permute.xlu0 %9134
  %v9136 = vsel %vm190, %v9121, %v9123
  %v9137 = vsel %vm190, %v9125, %v9127
  %v9138 = vsel %vm190, %v9129, %v9131
  %v9139 = vsel %vm190, %v9133, %v9135
  %v9148 = vmax.f32 %v9112, %v9136
  %v9149 = vmax.f32 %v9113, %v9123
  %v9150 = vmax.f32 %v9114, %v9137
  %v9151 = vmax.f32 %v9115, %v9127
  %v9152 = vmax.f32 %v9116, %v9138
  %v9153 = vmax.f32 %v9117, %v9131
  %v9154 = vmax.f32 %v9118, %v9139
  %v9155 = vmax.f32 %v9119, %v9135
  %v9156 = vld [vmem:[%s6] sm:$0xff]
  %v9157 = vld [vmem:[%s6 + $0x8] sm:$0xff]
  %v9158 = vld [vmem:[%s6 + $0x10] sm:$0xff]
  %v9159 = vld [vmem:[%s6 + $0x18] sm:$0xff]
  %v9160 = vld [vmem:[%s6 + $0x20] sm:$0xff]
  %v9161 = vld [vmem:[%s6 + $0x28] sm:$0xff]
  %v9162 = vld [vmem:[%s6 + $0x30] sm:$0xff]
  %v9163 = vld [vmem:[%s6 + $0x38] sm:$0xff]
  %v9164 = vld [vmem:[%s6 + $0x40] sm:$0xff]
  %v9165 = vld [vmem:[%s6 + $0x48] sm:$0xff]
  %v9166 = vld [vmem:[%s6 + $0x50] sm:$0xff]
  %v9167 = vld [vmem:[%s6 + $0x58] sm:$0xff]
  %v9168 = vld [vmem:[%s6 + $0x60] sm:$0xff]
  %v9169 = vld [vmem:[%s6 + $0x68] sm:$0xff]
  %v9170 = vld [vmem:[%s6 + $0x70] sm:$0xff]
  %v9171 = vld [vmem:[%s6 + $0x78] sm:$0xff]
  %v9172 = vld [vmem:[%s6 + $0x80] sm:$0xff]
  %v9173 = vld [vmem:[%s6 + $0x88] sm:$0xff]
  %v9174 = vld [vmem:[%s6 + $0x90] sm:$0xff]
  %v9175 = vld [vmem:[%s6 + $0x98] sm:$0xff]
  %v9176 = vld [vmem:[%s6 + $0xa0] sm:$0x3]
  %v9178 = vsel %vm881, %v9149, 0
  %v9181 = vsel %vm881, %v9151, 0
  %v9184 = vsel %vm881, %v9153, 0
  %v9187 = vsel %vm881, %v9155, 0
  %v9190 = vsel %vm894, %v9176, 0
  %9192 = vmatprep.subr.mxu0 0.0
  %9193 = vmatpush1.msra.mxu0 %v9171
  %9194 = vmatprep.subr.mxu0 0.0
  %9195 = vmatpush1.msra.mxu0 %v9170
  %9196 = vmatprep.subr.mxu0 0.0
  %9197 = vmatpush1.msra.mxu0 %v9169
  %9198 = vmatprep.subr.mxu0 0.0
  %9199 = vmatpush1.msra.mxu0 %v9168
  %9200 = vmatprep.subr.mxu0 0.0
  %9201 = vmatpush1.msra.mxu0 %v9167
  %9202 = vmatprep.subr.mxu0 0.0
  %9203 = vmatpush1.msra.mxu0 %v9166
  %9204 = vmatprep.subr.mxu0 0.0
  %9205 = vmatpush1.msra.mxu0 %v9165
  %9206 = vmatprep.subr.mxu0 0.0
  %9207 = vmatpush1.msra.mxu0 %v9164
  %9208 = vmatprep.subr.mxu0 0.0
  %9209 = vmatpush1.msra.mxu0 %v9163
  %9210 = vmatprep.subr.mxu0 0.0
  %9211 = vmatpush1.msra.mxu0 %v9162
  %9212 = vmatprep.subr.mxu0 0.0
  %9213 = vmatpush1.msra.mxu0 %v9161
  %9214 = vmatprep.subr.mxu0 0.0
  %9215 = vmatpush1.msra.mxu0 %v9160
  %9216 = vmatprep.subr.mxu0 0.0
  %9217 = vmatpush1.msra.mxu0 %v9159
  %9218 = vmatprep.subr.mxu0 0.0
  %9219 = vmatpush1.msra.mxu0 %v9158
  %9220 = vmatprep.subr.mxu0 0.0
  %9221 = vmatpush1.msra.mxu0 %v9157
  %9222 = vmatprep.subr.mxu0 0.0
  %9223 = vmatpush1.msra.mxu0 %v9156
  %9224 = vmatprep.subr.mxu0 0.0
  %9225 = vmatpush2.msra.mxu0 0.0
  %9226 = vmatprep.subr.mxu0 0.0
  %9227 = vmatpush2.msra.mxu0 0.0
  %9228 = vmatprep.subr.mxu0 0.0
  %9229 = vmatpush2.msra.mxu0 0.0
  %9230 = vmatprep.subr.mxu0 0.0
  %9231 = vmatpush2.msra.mxu0 0.0
  %9232 = vmatprep.subr.mxu0 0.0
  %9233 = vmatpush2.msra.mxu0 0.0
  %9234 = vmatprep.subr.mxu0 0.0
  %9235 = vmatpush2.msra.mxu0 0.0
  %9236 = vmatprep.subr.mxu0 0.0
  %9237 = vmatpush2.msra.mxu0 0.0
  %9238 = vmatprep.subr.mxu0 0.0
  %9239 = vmatpush2.msra.mxu0 0.0
  %9240 = vmatprep.subr.mxu0 0.0
  %9241 = vmatpush2.msra.mxu0 0.0
  %9242 = vmatprep.subr.mxu0 0.0
  %9243 = vmatpush2.msra.mxu0 0.0
  %9244 = vmatprep.subr.mxu0 0.0
  %9245 = vmatpush2.msra.mxu0 0.0
  %9246 = vmatprep.subr.mxu0 0.0
  %9247 = vmatpush2.msra.mxu0 %v9190
  %9248 = vmatprep.subr.mxu0 0.0
  %9249 = vmatpush2.msra.mxu0 %v9175
  %9250 = vmatprep.subr.mxu0 0.0
  %9251 = vmatpush2.msra.mxu0 %v9174
  %9252 = vmatprep.subr.mxu0 0.0
  %9253 = vmatpush2.msra.mxu0 %v9173
  %9254 = vmatprep.subr.mxu0 0.0
  %9255 = vmatpush2.msra.mxu0 %v9172
  %9256 = vmatprep.mubr.f32.mxu0 %v9178
  %9257 = vmatmul.mubr.f32.gmra.mxu0 %v9148
  %v9258 = vpop.f32.mrf.mxu0
  %v9259 = vadd.f32 0.0, %v9258
  %v9260 = vpop.f32.mrf.mxu0
  %9261 = vmatprep.mubr.f32.mxu0 %v9181
  %9262 = vmatmul.mubr.f32.gmra.mxu0 %v9150
  %v9263 = vpop.f32.mrf.mxu0
  %v9264 = vadd.f32 0.0, %v9263
  %v9265 = vpop.f32.mrf.mxu0
  %9266 = vmatprep.mubr.f32.mxu0 %v9184
  %9267 = vmatmul.mubr.f32.gmra.mxu0 %v9152
  %v9268 = vpop.f32.mrf.mxu0
  %v9269 = vadd.f32 0.0, %v9268
  %v9270 = vpop.f32.mrf.mxu0
  %9271 = vmatprep.mubr.f32.mxu0 %v9187
  %9272 = vmatmul.mubr.f32.gmra.mxu0 %v9154
  %v9273 = vpop.f32.mrf.mxu0
  %v9274 = vadd.f32 0.0, %v9273
  %v9275 = vpop.f32.mrf.mxu0
  %9276 = vdwg.mxu0
  %9281 = vrot.lane.b32.xlu0 %v9259, 127
  %v9282 = vpop.permute.xlu0 %9281
  %9283 = vrot.lane.b32.xlu0 %v9264, 127
  %v9284 = vpop.permute.xlu0 %9283
  %9285 = vrot.lane.b32.xlu0 %v9269, 127
  %v9286 = vpop.permute.xlu0 %9285
  %9287 = vrot.lane.b32.xlu0 %v9274, 127
  %v9288 = vpop.permute.xlu0 %9287
  %9293 = vrot.lane.b32.xlu0 %v9259, 126
  %v9294 = vpop.permute.xlu0 %9293
  %9295 = vrot.lane.b32.xlu0 %v9264, 126
  %v9296 = vpop.permute.xlu0 %9295
  %9297 = vrot.lane.b32.xlu0 %v9269, 126
  %v9298 = vpop.permute.xlu0 %9297
  %9299 = vrot.lane.b32.xlu0 %v9274, 126
  %v9300 = vpop.permute.xlu0 %9299
  %v9305 = vld [vmem:[%s7] sm:$0xff]
  %v9306 = vld [vmem:[%s7 + $0x8] sm:$0xff]
  %v9307 = vld [vmem:[%s7 + $0x10] sm:$0xff]
  %v9308 = vld [vmem:[%s7 + $0x18] sm:$0xff]
  %v9309 = vld [vmem:[%s7 + $0x20] sm:$0xff]
  %v9310 = vld [vmem:[%s7 + $0x28] sm:$0xff]
  %v9311 = vld [vmem:[%s7 + $0x30] sm:$0xff]
  %v9312 = vld [vmem:[%s7 + $0x38] sm:$0xff]
  %v9313 = vld [vmem:[%s8] sm:$0xff]
  %v9314 = vld [vmem:[%s8 + $0x8] sm:$0xff]
  %v9315 = vld [vmem:[%s8 + $0x10] sm:$0xff]
  %v9316 = vld [vmem:[%s8 + $0x18] sm:$0xff]
  %v9317 = vld [vmem:[%s8 + $0x20] sm:$0xff]
  %v9318 = vld [vmem:[%s8 + $0x28] sm:$0xff]
  %v9319 = vld [vmem:[%s8 + $0x30] sm:$0xff]
  %v9320 = vld [vmem:[%s8 + $0x38] sm:$0xff]
  %9322 = vset.pattern.permute.xlu0 0
  %9323 = vperm.xlu0 %9322, %v9313
  %v9324 = vpop.permute.xlu0 %9323
  %9327 = vset.pattern.permute.xlu0 0
  %9328 = vperm.xlu0 %9327, %v9314
  %v9329 = vpop.permute.xlu0 %9328
  %9332 = vset.pattern.permute.xlu0 0
  %9333 = vperm.xlu0 %9332, %v9315
  %v9334 = vpop.permute.xlu0 %9333
  %9337 = vset.pattern.permute.xlu0 0
  %9338 = vperm.xlu0 %9337, %v9316
  %v9339 = vpop.permute.xlu0 %9338
  %9342 = vset.pattern.permute.xlu0 0
  %9343 = vperm.xlu0 %9342, %v9317
  %v9344 = vpop.permute.xlu0 %9343
  %9347 = vset.pattern.permute.xlu0 0
  %9348 = vperm.xlu0 %9347, %v9318
  %v9349 = vpop.permute.xlu0 %9348
  %9352 = vset.pattern.permute.xlu0 0
  %9353 = vperm.xlu0 %9352, %v9319
  %v9354 = vpop.permute.xlu0 %9353
  %9357 = vset.pattern.permute.xlu0 0
  %9358 = vperm.xlu0 %9357, %v9320
  %v9359 = vpop.permute.xlu0 %9358
  %v9362 = vsel %vm1067, %v9305, 0
  %v9365 = vsel %vm1067, %v9306, 0
  %v9368 = vsel %vm1067, %v9307, 0
  %v9371 = vsel %vm1067, %v9308, 0
  %v9374 = vsel %vm1067, %v9309, 0
  %v9377 = vsel %vm1067, %v9310, 0
  %v9380 = vsel %vm1067, %v9311, 0
  %v9383 = vsel %vm1067, %v9312, 0
  %9385 = vmatprep.subr.mxu0 0.0
  %9386 = vmatpush1.msra.mxu0 0.0
  %9387 = vmatprep.subr.mxu0 0.0
  %9388 = vmatpush1.msra.mxu0 0.0
  %9389 = vmatprep.subr.mxu0 0.0
  %9390 = vmatpush1.msra.mxu0 0.0
  %9391 = vmatprep.subr.mxu0 0.0
  %9392 = vmatpush1.msra.mxu0 0.0
  %9393 = vmatprep.subr.mxu0 0.0
  %9394 = vmatpush1.msra.mxu0 %v9300
  %9395 = vmatprep.subr.mxu0 0.0
  %9396 = vmatpush1.msra.mxu0 %v9298
  %9397 = vmatprep.subr.mxu0 0.0
  %9398 = vmatpush1.msra.mxu0 %v9296
  %9399 = vmatprep.subr.mxu0 0.0
  %9400 = vmatpush1.msra.mxu0 %v9294
  %9401 = vmatprep.subr.mxu0 0.0
  %9402 = vmatpush1.msra.mxu0 %v9288
  %9403 = vmatprep.subr.mxu0 0.0
  %9404 = vmatpush1.msra.mxu0 %v9286
  %9405 = vmatprep.subr.mxu0 0.0
  %9406 = vmatpush1.msra.mxu0 %v9284
  %9407 = vmatprep.subr.mxu0 0.0
  %9408 = vmatpush1.msra.mxu0 %v9282
  %9409 = vmatprep.subr.mxu0 0.0
  %9410 = vmatpush1.msra.mxu0 %v9274
  %9411 = vmatprep.subr.mxu0 0.0
  %9412 = vmatpush1.msra.mxu0 %v9269
  %9413 = vmatprep.subr.mxu0 0.0
  %9414 = vmatpush1.msra.mxu0 %v9264
  %9415 = vmatprep.subr.mxu0 0.0
  %9416 = vmatpush1.msra.mxu0 %v9259
  %9417 = vmatprep.subr.mxu0 0.0
  %9418 = vmatpush2.msra.mxu0 0.0
  %9419 = vmatprep.subr.mxu0 0.0
  %9420 = vmatpush2.msra.mxu0 0.0
  %9421 = vmatprep.subr.mxu0 0.0
  %9422 = vmatpush2.msra.mxu0 0.0
  %9423 = vmatprep.subr.mxu0 0.0
  %9424 = vmatpush2.msra.mxu0 0.0
  %9425 = vmatprep.subr.mxu0 0.0
  %9426 = vmatpush2.msra.mxu0 0.0
  %9427 = vmatprep.subr.mxu0 0.0
  %9428 = vmatpush2.msra.mxu0 0.0
  %9429 = vmatprep.subr.mxu0 0.0
  %9430 = vmatpush2.msra.mxu0 0.0
  %9431 = vmatprep.subr.mxu0 0.0
  %9432 = vmatpush2.msra.mxu0 0.0
  %9433 = vmatprep.subr.mxu0 0.0
  %9434 = vmatpush2.msra.mxu0 0.0
  %9435 = vmatprep.subr.mxu0 0.0
  %9436 = vmatpush2.msra.mxu0 0.0
  %9437 = vmatprep.subr.mxu0 0.0
  %9438 = vmatpush2.msra.mxu0 0.0
  %9439 = vmatprep.subr.mxu0 0.0
  %9440 = vmatpush2.msra.mxu0 0.0
  %9441 = vmatprep.subr.mxu0 0.0
  %9442 = vmatpush2.msra.mxu0 0.0
  %9443 = vmatprep.subr.mxu0 0.0
  %9444 = vmatpush2.msra.mxu0 0.0
  %9445 = vmatprep.subr.mxu0 0.0
  %9446 = vmatpush2.msra.mxu0 0.0
  %9447 = vmatprep.subr.mxu0 0.0
  %9448 = vmatpush2.msra.mxu0 0.0
  %9449 = vmatprep.mubr.f32.mxu0 0.0
  %9450 = vmatmul.mubr.f32.gmra.mxu0 %v9362
  %v9451 = vpop.f32.mrf.mxu0
  %v9452 = vadd.f32 %v9324, %v9451
  %v9453 = vpop.f32.mrf.mxu0
  %9454 = vmatprep.mubr.f32.mxu0 0.0
  %9455 = vmatmul.mubr.f32.gmra.mxu0 %v9365
  %v9456 = vpop.f32.mrf.mxu0
  %v9457 = vadd.f32 %v9329, %v9456
  %v9458 = vpop.f32.mrf.mxu0
  %9459 = vmatprep.mubr.f32.mxu0 0.0
  %9460 = vmatmul.mubr.f32.gmra.mxu0 %v9368
  %v9461 = vpop.f32.mrf.mxu0
  %v9462 = vadd.f32 %v9334, %v9461
  %v9463 = vpop.f32.mrf.mxu0
  %9464 = vmatprep.mubr.f32.mxu0 0.0
  %9465 = vmatmul.mubr.f32.gmra.mxu0 %v9371
  %v9466 = vpop.f32.mrf.mxu0
  %v9467 = vadd.f32 %v9339, %v9466
  %v9468 = vpop.f32.mrf.mxu0
  %9469 = vmatprep.mubr.f32.mxu0 0.0
  %9470 = vmatmul.mubr.f32.gmra.mxu0 %v9374
  %v9471 = vpop.f32.mrf.mxu0
  %v9472 = vadd.f32 %v9344, %v9471
  %v9473 = vpop.f32.mrf.mxu0
  %9474 = vmatprep.mubr.f32.mxu0 0.0
  %9475 = vmatmul.mubr.f32.gmra.mxu0 %v9377
  %v9476 = vpop.f32.mrf.mxu0
  %v9477 = vadd.f32 %v9349, %v9476
  %v9478 = vpop.f32.mrf.mxu0
  %9479 = vmatprep.mubr.f32.mxu0 0.0
  %9480 = vmatmul.mubr.f32.gmra.mxu0 %v9380
  %v9481 = vpop.f32.mrf.mxu0
  %v9482 = vadd.f32 %v9354, %v9481
  %v9483 = vpop.f32.mrf.mxu0
  %9484 = vmatprep.mubr.f32.mxu0 0.0
  %9485 = vmatmul.mubr.f32.gmra.mxu0 %v9383
  %v9486 = vpop.f32.mrf.mxu0
  %v9487 = vadd.f32 %v9359, %v9486
  %v9488 = vpop.f32.mrf.mxu0
  %9489 = vdwg.mxu0
  %v9490 = vmax.f32 %v9452, 0.0
  %v9491 = vmax.f32 %v9457, 0.0
  %v9492 = vmax.f32 %v9462, 0.0
  %v9493 = vmax.f32 %v9467, 0.0
  %v9494 = vmax.f32 %v9472, 0.0
  %v9495 = vmax.f32 %v9477, 0.0
  %v9496 = vmax.f32 %v9482, 0.0
  %v9497 = vmax.f32 %v9487, 0.0
  %9506 = vrot.lane.b32.xlu0 %v9490, 127
  %v9507 = vpop.permute.xlu0 %9506
  %9508 = vrot.lane.b32.xlu0 %v9491, 127
  %v9509 = vpop.permute.xlu0 %9508
  %9510 = vrot.lane.b32.xlu0 %v9492, 127
  %v9511 = vpop.permute.xlu0 %9510
  %9512 = vrot.lane.b32.xlu0 %v9493, 127
  %v9513 = vpop.permute.xlu0 %9512
  %9514 = vrot.lane.b32.xlu0 %v9494, 127
  %v9515 = vpop.permute.xlu0 %9514
  %9516 = vrot.lane.b32.xlu0 %v9495, 127
  %v9517 = vpop.permute.xlu0 %9516
  %9518 = vrot.lane.b32.xlu0 %v9496, 127
  %v9519 = vpop.permute.xlu0 %9518
  %9520 = vrot.lane.b32.xlu0 %v9497, 127
  %v9521 = vpop.permute.xlu0 %9520
  %v9530 = vmax.f32 %v9490, %v9507
  %v9531 = vmax.f32 %v9491, %v9509
  %v9532 = vmax.f32 %v9492, %v9511
  %v9533 = vmax.f32 %v9493, %v9513
  %v9534 = vmax.f32 %v9494, %v9515
  %v9535 = vmax.f32 %v9495, %v9517
  %v9536 = vmax.f32 %v9496, %v9519
  %v9537 = vmax.f32 %v9497, %v9521
  %9538 = vrot.lane.b32.xlu0 %v9490, 126
  %v9539 = vpop.permute.xlu0 %9538
  %9540 = vrot.lane.b32.xlu0 %v9491, 126
  %v9541 = vpop.permute.xlu0 %9540
  %9542 = vrot.lane.b32.xlu0 %v9492, 126
  %v9543 = vpop.permute.xlu0 %9542
  %9544 = vrot.lane.b32.xlu0 %v9493, 126
  %v9545 = vpop.permute.xlu0 %9544
  %9546 = vrot.lane.b32.xlu0 %v9494, 126
  %v9547 = vpop.permute.xlu0 %9546
  %9548 = vrot.lane.b32.xlu0 %v9495, 126
  %v9549 = vpop.permute.xlu0 %9548
  %9550 = vrot.lane.b32.xlu0 %v9496, 126
  %v9551 = vpop.permute.xlu0 %9550
  %9552 = vrot.lane.b32.xlu0 %v9497, 126
  %v9553 = vpop.permute.xlu0 %9552
  %v9562 = vmax.f32 %v9530, %v9539
  %v9563 = vmax.f32 %v9531, %v9541
  %v9564 = vmax.f32 %v9532, %v9543
  %v9565 = vmax.f32 %v9533, %v9545
  %v9566 = vmax.f32 %v9534, %v9547
  %v9567 = vmax.f32 %v9535, %v9549
  %v9568 = vmax.f32 %v9536, %v9551
  %v9569 = vmax.f32 %v9537, %v9553
  %v9570 = vld [vmem:[%s9] sm:$0xff]
  %v9571 = vld [vmem:[%s9 + $0x8] sm:$0xff]
  %v9572 = vld [vmem:[%s9 + $0x10] sm:$0xff]
  %v9573 = vld [vmem:[%s9 + $0x18] sm:$0xff]
  %v9574 = vld [vmem:[%s9 + $0x20] sm:$0xff]
  %v9575 = vld [vmem:[%s9 + $0x28] sm:$0xff]
  %v9576 = vld [vmem:[%s9 + $0x30] sm:$0x3]
  %v9578 = vsel %vm1284, %v9562, 0
  %v9581 = vsel %vm1284, %v9563, 0
  %v9584 = vsel %vm1284, %v9564, 0
  %v9587 = vsel %vm1284, %v9565, 0
  %v9590 = vsel %vm1284, %v9566, 0
  %v9593 = vsel %vm1284, %v9567, 0
  %v9596 = vsel %vm1284, %v9568, 0
  %v9599 = vsel %vm1284, %v9569, 0
  %v9602 = vsel %vm894, %v9576, 0
  %9604 = vmatprep.subr.mxu0 0.0
  %9605 = vmatpush1.msra.mxu0 0.0
  %9606 = vmatprep.subr.mxu0 0.0
  %9607 = vmatpush1.msra.mxu0 0.0
  %9608 = vmatprep.subr.mxu0 0.0
  %9609 = vmatpush1.msra.mxu0 0.0
  %9610 = vmatprep.subr.mxu0 0.0
  %9611 = vmatpush1.msra.mxu0 0.0
  %9612 = vmatprep.subr.mxu0 0.0
  %9613 = vmatpush1.msra.mxu0 0.0
  %9614 = vmatprep.subr.mxu0 0.0
  %9615 = vmatpush1.msra.mxu0 0.0
  %9616 = vmatprep.subr.mxu0 0.0
  %9617 = vmatpush1.msra.mxu0 0.0
  %9618 = vmatprep.subr.mxu0 0.0
  %9619 = vmatpush1.msra.mxu0 0.0
  %9620 = vmatprep.subr.mxu0 0.0
  %9621 = vmatpush1.msra.mxu0 0.0
  %9622 = vmatprep.subr.mxu0 0.0
  %9623 = vmatpush1.msra.mxu0 %v9602
  %9624 = vmatprep.subr.mxu0 0.0
  %9625 = vmatpush1.msra.mxu0 %v9575
  %9626 = vmatprep.subr.mxu0 0.0
  %9627 = vmatpush1.msra.mxu0 %v9574
  %9628 = vmatprep.subr.mxu0 0.0
  %9629 = vmatpush1.msra.mxu0 %v9573
  %9630 = vmatprep.subr.mxu0 0.0
  %9631 = vmatpush1.msra.mxu0 %v9572
  %9632 = vmatprep.subr.mxu0 0.0
  %9633 = vmatpush1.msra.mxu0 %v9571
  %9634 = vmatprep.subr.mxu0 0.0
  %9635 = vmatpush1.msra.mxu0 %v9570
  %9636 = vmatprep.subr.mxu0 0.0
  %9637 = vmatpush2.msra.mxu0 0.0
  %9638 = vmatprep.subr.mxu0 0.0
  %9639 = vmatpush2.msra.mxu0 0.0
  %9640 = vmatprep.subr.mxu0 0.0
  %9641 = vmatpush2.msra.mxu0 0.0
  %9642 = vmatprep.subr.mxu0 0.0
  %9643 = vmatpush2.msra.mxu0 0.0
  %9644 = vmatprep.subr.mxu0 0.0
  %9645 = vmatpush2.msra.mxu0 0.0
  %9646 = vmatprep.subr.mxu0 0.0
  %9647 = vmatpush2.msra.mxu0 0.0
  %9648 = vmatprep.subr.mxu0 0.0
  %9649 = vmatpush2.msra.mxu0 0.0
  %9650 = vmatprep.subr.mxu0 0.0
  %9651 = vmatpush2.msra.mxu0 0.0
  %9652 = vmatprep.subr.mxu0 0.0
  %9653 = vmatpush2.msra.mxu0 0.0
  %9654 = vmatprep.subr.mxu0 0.0
  %9655 = vmatpush2.msra.mxu0 0.0
  %9656 = vmatprep.subr.mxu0 0.0
  %9657 = vmatpush2.msra.mxu0 0.0
  %9658 = vmatprep.subr.mxu0 0.0
  %9659 = vmatpush2.msra.mxu0 0.0
  %9660 = vmatprep.subr.mxu0 0.0
  %9661 = vmatpush2.msra.mxu0 0.0
  %9662 = vmatprep.subr.mxu0 0.0
  %9663 = vmatpush2.msra.mxu0 0.0
  %9664 = vmatprep.subr.mxu0 0.0
  %9665 = vmatpush2.msra.mxu0 0.0
  %9666 = vmatprep.subr.mxu0 0.0
  %9667 = vmatpush2.msra.mxu0 0.0
  %9668 = vmatprep.mubr.f32.mxu0 0.0
  %9669 = vmatmul.mubr.f32.gmra.mxu0 %v9578
  %v9670 = vpop.f32.mrf.mxu0
  %v9671 = vadd.f32 0.0, %v9670
  %v9672 = vpop.f32.mrf.mxu0
  %9673 = vmatprep.mubr.f32.mxu0 0.0
  %9674 = vmatmul.mubr.f32.gmra.mxu0 %v9581
  %v9675 = vpop.f32.mrf.mxu0
  %v9676 = vadd.f32 0.0, %v9675
  %v9677 = vpop.f32.mrf.mxu0
  %9678 = vmatprep.mubr.f32.mxu0 0.0
  %9679 = vmatmul.mubr.f32.gmra.mxu0 %v9584
  %v9680 = vpop.f32.mrf.mxu0
  %v9681 = vadd.f32 0.0, %v9680
  %v9682 = vpop.f32.mrf.mxu0
  %9683 = vmatprep.mubr.f32.mxu0 0.0
  %9684 = vmatmul.mubr.f32.gmra.mxu0 %v9587
  %v9685 = vpop.f32.mrf.mxu0
  %v9686 = vadd.f32 0.0, %v9685
  %v9687 = vpop.f32.mrf.mxu0
  %9688 = vmatprep.mubr.f32.mxu0 0.0
  %9689 = vmatmul.mubr.f32.gmra.mxu0 %v9590
  %v9690 = vpop.f32.mrf.mxu0
  %v9691 = vadd.f32 0.0, %v9690
  %v9692 = vpop.f32.mrf.mxu0
  %9693 = vmatprep.mubr.f32.mxu0 0.0
  %9694 = vmatmul.mubr.f32.gmra.mxu0 %v9593
  %v9695 = vpop.f32.mrf.mxu0
  %v9696 = vadd.f32 0.0, %v9695
  %v9697 = vpop.f32.mrf.mxu0
  %9698 = vmatprep.mubr.f32.mxu0 0.0
  %9699 = vmatmul.mubr.f32.gmra.mxu0 %v9596
  %v9700 = vpop.f32.mrf.mxu0
  %v9701 = vadd.f32 0.0, %v9700
  %v9702 = vpop.f32.mrf.mxu0
  %9703 = vmatprep.mubr.f32.mxu0 0.0
  %9704 = vmatmul.mubr.f32.gmra.mxu0 %v9599
  %v9705 = vpop.f32.mrf.mxu0
  %v9706 = vadd.f32 0.0, %v9705
  %v9707 = vpop.f32.mrf.mxu0
  %9708 = vdwg.mxu0
  %s9709 = scalar_lea.vmem %s10, 384
  %9710 = vst.msk [vmem:[%s9709] sm:$0xff] %vm1417, %v9671
  %9711 = vst.msk [vmem:[%s9709 + $0x8] sm:$0xff] %vm1417, %v9676
  %9712 = vst.msk [vmem:[%s9709 + $0x10] sm:$0xff] %vm1417, %v9681
  %9713 = vst.msk [vmem:[%s9709 + $0x18] sm:$0xff] %vm1417, %v9686
  %9714 = vst.msk [vmem:[%s9709 + $0x20] sm:$0xff] %vm1417, %v9691
  %9715 = vst.msk [vmem:[%s9709 + $0x28] sm:$0xff] %vm1417, %v9696
  %9716 = vst.msk [vmem:[%s9709 + $0x30] sm:$0xff] %vm1417, %v9701
  %9717 = vst.msk [vmem:[%s9709 + $0x38] sm:$0xff] %vm1417, %v9706
  %s9718 = scalar_lea.vmem %s0, 7
  %v9719 = vld [vmem:[%s9718] ss:$8 sm:$0xf]
  %v9720 = vld [vmem:[%s1] sm:$0xff]
  %v9721 = vld [vmem:[%s1 + $0x8] sm:$0xff]
  %9723 = vset.pattern.permute.xlu0 0
  %9724 = vperm.xlu0 %9723, %v9720
  %v9725 = vpop.permute.xlu0 %9724
  %9728 = vset.pattern.permute.xlu0 0
  %9729 = vperm.xlu0 %9728, %v9721
  %v9730 = vpop.permute.xlu0 %9729
  %v9733 = vlaneseq
  %v9734 = vshrl.u32 %v9733, 7
  %v9735 = vsub.s32 0, %v9734
  %v9736 = vrot.slane %v9719, %v9735
  %v9737 = vlaneseq
  %v9738 = vshrl.u32 %v9737, 7
  %v9739 = vsub.s32 1, %v9738
  %v9740 = vrot.slane %v9719, %v9739
  %v9741 = vlaneseq
  %v9742 = vshrl.u32 %v9741, 7
  %v9743 = vsub.s32 2, %v9742
  %v9744 = vrot.slane %v9719, %v9743
  %v9745 = vlaneseq
  %v9746 = vshrl.u32 %v9745, 7
  %v9747 = vsub.s32 3, %v9746
  %v9748 = vrot.slane %v9719, %v9747
  %v9753 = vmul.f32 %v9725, %v9736
  %v9754 = vmul.f32 %v9725, %v9740
  %v9755 = vmul.f32 %v9725, %v9744
  %v9756 = vmul.f32 %v9725, %v9748
  %v9757 = vmul.f32 %v9730, %v9736
  %v9758 = vmul.f32 %v9730, %v9740
  %v9759 = vmul.f32 %v9730, %v9744
  %v9760 = vmul.f32 %v9730, %v9748
  %v9761 = vld [vmem:[%s77] sm:$0xff]
  %v9762 = vld [vmem:[%s77 + $0x8] sm:$0xff]
  %9764 = vset.pattern.permute.xlu0 0
  %9765 = vperm.xlu0 %9764, %v9761
  %v9766 = vpop.permute.xlu0 %9765
  %9769 = vset.pattern.permute.xlu0 0
  %9770 = vperm.xlu0 %9769, %v9762
  %v9771 = vpop.permute.xlu0 %9770
  %v9773 = vmul.f32 %v9766, %v9736
  %v9774 = vmul.f32 %v9766, %v9740
  %v9775 = vmul.f32 %v9766, %v9744
  %v9776 = vmul.f32 %v9766, %v9748
  %v9777 = vmul.f32 %v9771, %v9736
  %v9778 = vmul.f32 %v9771, %v9740
  %v9779 = vmul.f32 %v9771, %v9744
  %v9780 = vmul.f32 %v9771, %v9748
  %9789 = vrot.lane.b32.xlu0 %v9773, 127
  %v9790 = vpop.permute.xlu0 %9789
  %9791 = vrot.lane.b32.xlu0 %v9774, 127
  %v9792 = vpop.permute.xlu0 %9791
  %9793 = vrot.lane.b32.xlu0 %v9775, 127
  %v9794 = vpop.permute.xlu0 %9793
  %9795 = vrot.lane.b32.xlu0 %v9776, 127
  %v9796 = vpop.permute.xlu0 %9795
  %9797 = vrot.lane.b32.xlu0 %v9777, 127
  %v9798 = vpop.permute.xlu0 %9797
  %9799 = vrot.lane.b32.xlu0 %v9778, 127
  %v9800 = vpop.permute.xlu0 %9799
  %9801 = vrot.lane.b32.xlu0 %v9779, 127
  %v9802 = vpop.permute.xlu0 %9801
  %9803 = vrot.lane.b32.xlu0 %v9780, 127
  %v9804 = vpop.permute.xlu0 %9803
  %v9805 = vsel %vm122, %v9790, %v9792
  %v9806 = vsel %vm122, %v9792, %v9794
  %v9807 = vsel %vm122, %v9794, %v9796
  %v9808 = vsel %vm122, %v9798, %v9800
  %v9809 = vsel %vm122, %v9800, %v9802
  %v9810 = vsel %vm122, %v9802, %v9804
  %v9819 = vadd.f32 %v9753, %v9805
  %v9820 = vadd.f32 %v9754, %v9806
  %v9821 = vadd.f32 %v9755, %v9807
  %v9822 = vadd.f32 %v9756, %v9796
  %v9823 = vadd.f32 %v9757, %v9808
  %v9824 = vadd.f32 %v9758, %v9809
  %v9825 = vadd.f32 %v9759, %v9810
  %v9826 = vadd.f32 %v9760, %v9804
  %v9827 = vld [vmem:[%s145] sm:$0xff]
  %v9828 = vld [vmem:[%s145 + $0x8] sm:$0xff]
  %9830 = vset.pattern.permute.xlu0 0
  %9831 = vperm.xlu0 %9830, %v9827
  %v9832 = vpop.permute.xlu0 %9831
  %9835 = vset.pattern.permute.xlu0 0
  %9836 = vperm.xlu0 %9835, %v9828
  %v9837 = vpop.permute.xlu0 %9836
  %v9839 = vmul.f32 %v9832, %v9736
  %v9840 = vmul.f32 %v9832, %v9740
  %v9841 = vmul.f32 %v9832, %v9744
  %v9842 = vmul.f32 %v9832, %v9748
  %v9843 = vmul.f32 %v9837, %v9736
  %v9844 = vmul.f32 %v9837, %v9740
  %v9845 = vmul.f32 %v9837, %v9744
  %v9846 = vmul.f32 %v9837, %v9748
  %9855 = vrot.lane.b32.xlu0 %v9839, 126
  %v9856 = vpop.permute.xlu0 %9855
  %9857 = vrot.lane.b32.xlu0 %v9840, 126
  %v9858 = vpop.permute.xlu0 %9857
  %9859 = vrot.lane.b32.xlu0 %v9841, 126
  %v9860 = vpop.permute.xlu0 %9859
  %9861 = vrot.lane.b32.xlu0 %v9842, 126
  %v9862 = vpop.permute.xlu0 %9861
  %9863 = vrot.lane.b32.xlu0 %v9843, 126
  %v9864 = vpop.permute.xlu0 %9863
  %9865 = vrot.lane.b32.xlu0 %v9844, 126
  %v9866 = vpop.permute.xlu0 %9865
  %9867 = vrot.lane.b32.xlu0 %v9845, 126
  %v9868 = vpop.permute.xlu0 %9867
  %9869 = vrot.lane.b32.xlu0 %v9846, 126
  %v9870 = vpop.permute.xlu0 %9869
  %v9871 = vsel %vm190, %v9856, %v9858
  %v9872 = vsel %vm190, %v9858, %v9860
  %v9873 = vsel %vm190, %v9860, %v9862
  %v9874 = vsel %vm190, %v9864, %v9866
  %v9875 = vsel %vm190, %v9866, %v9868
  %v9876 = vsel %vm190, %v9868, %v9870
  %v9885 = vadd.f32 %v9819, %v9871
  %v9886 = vadd.f32 %v9820, %v9872
  %v9887 = vadd.f32 %v9821, %v9873
  %v9888 = vadd.f32 %v9822, %v9862
  %v9889 = vadd.f32 %v9823, %v9874
  %v9890 = vadd.f32 %v9824, %v9875
  %v9891 = vadd.f32 %v9825, %v9876
  %v9892 = vadd.f32 %v9826, %v9870
  %v9893 = vld [vmem:[%s2] sm:$0xff]
  %v9894 = vld [vmem:[%s2 + $0x8] sm:$0xff]
  %9896 = vset.pattern.permute.xlu0 0
  %9897 = vperm.xlu0 %9896, %v9893
  %v9898 = vpop.permute.xlu0 %9897
  %9901 = vset.pattern.permute.xlu0 0
  %9902 = vperm.xlu0 %9901, %v9894
  %v9903 = vpop.permute.xlu0 %9902
  %v9905 = vadd.f32 %v9885, %v9898
  %v9906 = vadd.f32 %v9886, %v9898
  %v9907 = vadd.f32 %v9887, %v9898
  %v9908 = vadd.f32 %v9888, %v9898
  %v9909 = vadd.f32 %v9889, %v9903
  %v9910 = vadd.f32 %v9890, %v9903
  %v9911 = vadd.f32 %v9891, %v9903
  %v9912 = vadd.f32 %v9892, %v9903
  %v9913 = vmax.f32 %v9905, 0.0
  %v9914 = vmax.f32 %v9906, 0.0
  %v9915 = vmax.f32 %v9907, 0.0
  %v9916 = vmax.f32 %v9908, 0.0
  %v9917 = vmax.f32 %v9909, 0.0
  %v9918 = vmax.f32 %v9910, 0.0
  %v9919 = vmax.f32 %v9911, 0.0
  %v9920 = vmax.f32 %v9912, 0.0
  %9929 = vrot.lane.b32.xlu0 %v9913, 127
  %v9930 = vpop.permute.xlu0 %9929
  %9931 = vrot.lane.b32.xlu0 %v9914, 127
  %v9932 = vpop.permute.xlu0 %9931
  %9933 = vrot.lane.b32.xlu0 %v9915, 127
  %v9934 = vpop.permute.xlu0 %9933
  %9935 = vrot.lane.b32.xlu0 %v9916, 127
  %v9936 = vpop.permute.xlu0 %9935
  %9937 = vrot.lane.b32.xlu0 %v9917, 127
  %v9938 = vpop.permute.xlu0 %9937
  %9939 = vrot.lane.b32.xlu0 %v9918, 127
  %v9940 = vpop.permute.xlu0 %9939
  %9941 = vrot.lane.b32.xlu0 %v9919, 127
  %v9942 = vpop.permute.xlu0 %9941
  %9943 = vrot.lane.b32.xlu0 %v9920, 127
  %v9944 = vpop.permute.xlu0 %9943
  %v9945 = vsel %vm122, %v9930, %v9932
  %v9946 = vsel %vm122, %v9932, %v9934
  %v9947 = vsel %vm122, %v9934, %v9936
  %v9948 = vsel %vm122, %v9938, %v9940
  %v9949 = vsel %vm122, %v9940, %v9942
  %v9950 = vsel %vm122, %v9942, %v9944
  %v9959 = vmax.f32 %v9913, %v9945
  %v9960 = vmax.f32 %v9914, %v9946
  %v9961 = vmax.f32 %v9915, %v9947
  %v9962 = vmax.f32 %v9916, %v9936
  %v9963 = vmax.f32 %v9917, %v9948
  %v9964 = vmax.f32 %v9918, %v9949
  %v9965 = vmax.f32 %v9919, %v9950
  %v9966 = vmax.f32 %v9920, %v9944
  %9967 = vrot.lane.b32.xlu0 %v9913, 126
  %v9968 = vpop.permute.xlu0 %9967
  %9969 = vrot.lane.b32.xlu0 %v9914, 126
  %v9970 = vpop.permute.xlu0 %9969
  %9971 = vrot.lane.b32.xlu0 %v9915, 126
  %v9972 = vpop.permute.xlu0 %9971
  %9973 = vrot.lane.b32.xlu0 %v9916, 126
  %v9974 = vpop.permute.xlu0 %9973
  %9975 = vrot.lane.b32.xlu0 %v9917, 126
  %v9976 = vpop.permute.xlu0 %9975
  %9977 = vrot.lane.b32.xlu0 %v9918, 126
  %v9978 = vpop.permute.xlu0 %9977
  %9979 = vrot.lane.b32.xlu0 %v9919, 126
  %v9980 = vpop.permute.xlu0 %9979
  %9981 = vrot.lane.b32.xlu0 %v9920, 126
  %v9982 = vpop.permute.xlu0 %9981
  %v9983 = vsel %vm190, %v9968, %v9970
  %v9984 = vsel %vm190, %v9970, %v9972
  %v9985 = vsel %vm190, %v9972, %v9974
  %v9986 = vsel %vm190, %v9976, %v9978
  %v9987 = vsel %vm190, %v9978, %v9980
  %v9988 = vsel %vm190, %v9980, %v9982
  %v9997 = vmax.f32 %v9959, %v9983
  %v9998 = vmax.f32 %v9960, %v9984
  %v9999 = vmax.f32 %v9961, %v9985
  %v10000 = vmax.f32 %v9962, %v9974
  %v10001 = vmax.f32 %v9963, %v9986
  %v10002 = vmax.f32 %v9964, %v9987
  %v10003 = vmax.f32 %v9965, %v9988
  %v10004 = vmax.f32 %v9966, %v9982
  %v10005 = vld [vmem:[%s3] sm:$0xff]
  %v10006 = vld [vmem:[%s3 + $0x8] sm:$0xff]
  %v10007 = vld [vmem:[%s3 + $0x10] sm:$0xff]
  %v10008 = vld [vmem:[%s3 + $0x18] sm:$0xff]
  %v10009 = vld [vmem:[%s3 + $0x20] sm:$0xff]
  %v10010 = vld [vmem:[%s3 + $0x28] sm:$0xff]
  %v10011 = vld [vmem:[%s3 + $0x30] sm:$0xff]
  %v10012 = vld [vmem:[%s3 + $0x38] sm:$0xff]
  %v10013 = vld [vmem:[%s3 + $0x40] sm:$0xff]
  %v10014 = vld [vmem:[%s3 + $0x48] sm:$0xff]
  %v10015 = vld [vmem:[%s3 + $0x50] sm:$0xff]
  %v10016 = vld [vmem:[%s3 + $0x58] sm:$0xff]
  %v10017 = vld [vmem:[%s3 + $0x60] sm:$0xff]
  %v10018 = vld [vmem:[%s3 + $0x68] sm:$0xff]
  %v10019 = vld [vmem:[%s3 + $0x70] sm:$0xff]
  %v10020 = vld [vmem:[%s3 + $0x78] sm:$0xff]
  %v10021 = vld [vmem:[%s3 + $0x80] sm:$0xff]
  %v10022 = vld [vmem:[%s3 + $0x88] sm:$0xff]
  %v10023 = vld [vmem:[%s3 + $0x90] sm:$0xff]
  %v10024 = vld [vmem:[%s3 + $0x98] sm:$0xff]
  %v10025 = vld [vmem:[%s3 + $0xa0] sm:$0xff]
  %v10026 = vld [vmem:[%s3 + $0xa8] sm:$0xff]
  %v10027 = vld [vmem:[%s3 + $0xb0] sm:$0xff]
  %v10028 = vld [vmem:[%s3 + $0xb8] sm:$0xff]
  %v10029 = vld [vmem:[%s3 + $0xc0] sm:$0xff]
  %v10030 = vld [vmem:[%s3 + $0xc8] sm:$0xff]
  %v10031 = vld [vmem:[%s3 + $0xd0] sm:$0xff]
  %v10032 = vld [vmem:[%s3 + $0xd8] sm:$0xff]
  %v10033 = vld [vmem:[%s3 + $0xe0] sm:$0xff]
  %v10034 = vld [vmem:[%s3 + $0xe8] sm:$0xff]
  %v10035 = vld [vmem:[%s3 + $0xf0] sm:$0xff]
  %v10036 = vld [vmem:[%s3 + $0xf8] sm:$0xff]
  %v10037 = vld [vmem:[%s3 + $0x100] sm:$0xff]
  %v10038 = vld [vmem:[%s3 + $0x108] sm:$0xff]
  %v10039 = vld [vmem:[%s3 + $0x110] sm:$0xff]
  %v10040 = vld [vmem:[%s3 + $0x118] sm:$0xff]
  %v10041 = vld [vmem:[%s3 + $0x120] sm:$0xff]
  %v10042 = vld [vmem:[%s3 + $0x128] sm:$0xff]
  %v10043 = vld [vmem:[%s3 + $0x130] sm:$0xff]
  %v10044 = vld [vmem:[%s3 + $0x138] sm:$0xff]
  %v10045 = vld [vmem:[%s3 + $0x140] sm:$0xff]
  %v10046 = vld [vmem:[%s3 + $0x148] sm:$0xff]
  %v10047 = vld [vmem:[%s3 + $0x150] sm:$0xff]
  %v10048 = vld [vmem:[%s3 + $0x158] sm:$0xff]
  %v10049 = vld [vmem:[%s3 + $0x160] sm:$0xff]
  %v10050 = vld [vmem:[%s3 + $0x168] sm:$0xff]
  %v10051 = vld [vmem:[%s3 + $0x170] sm:$0xff]
  %v10052 = vld [vmem:[%s3 + $0x178] sm:$0xff]
  %v10053 = vld [vmem:[%s3 + $0x180] sm:$0xff]
  %v10054 = vld [vmem:[%s3 + $0x188] sm:$0xff]
  %v10055 = vld [vmem:[%s3 + $0x190] sm:$0xff]
  %v10056 = vld [vmem:[%s3 + $0x198] sm:$0xff]
  %v10057 = vld [vmem:[%s3 + $0x1a0] sm:$0xff]
  %v10058 = vld [vmem:[%s3 + $0x1a8] sm:$0xff]
  %v10059 = vld [vmem:[%s3 + $0x1b0] sm:$0xff]
  %v10060 = vld [vmem:[%s3 + $0x1b8] sm:$0xff]
  %v10061 = vld [vmem:[%s3 + $0x1c0] sm:$0xff]
  %v10062 = vld [vmem:[%s3 + $0x1c8] sm:$0xff]
  %v10063 = vld [vmem:[%s3 + $0x1d0] sm:$0xff]
  %v10064 = vld [vmem:[%s3 + $0x1d8] sm:$0xff]
  %v10065 = vld [vmem:[%s3 + $0x1e0] sm:$0xff]
  %v10066 = vld [vmem:[%s3 + $0x1e8] sm:$0xff]
  %v10067 = vld [vmem:[%s3 + $0x1f0] sm:$0xff]
  %v10068 = vld [vmem:[%s3 + $0x1f8] sm:$0xff]
  %v10069 = vld [vmem:[%s3 + $0x200] sm:$0xff]
  %v10070 = vld [vmem:[%s3 + $0x208] sm:$0xff]
  %v10071 = vld [vmem:[%s3 + $0x210] sm:$0xff]
  %v10072 = vld [vmem:[%s3 + $0x218] sm:$0xff]
  %v10073 = vld [vmem:[%s3 + $0x220] sm:$0xff]
  %v10074 = vld [vmem:[%s3 + $0x228] sm:$0xff]
  %v10075 = vld [vmem:[%s3 + $0x230] sm:$0xff]
  %v10076 = vld [vmem:[%s3 + $0x238] sm:$0xff]
  %v10077 = vld [vmem:[%s3 + $0x240] sm:$0xff]
  %v10078 = vld [vmem:[%s3 + $0x248] sm:$0xff]
  %v10079 = vld [vmem:[%s3 + $0x250] sm:$0xff]
  %v10080 = vld [vmem:[%s3 + $0x258] sm:$0xff]
  %v10081 = vld [vmem:[%s3 + $0x260] sm:$0xff]
  %v10082 = vld [vmem:[%s3 + $0x268] sm:$0xff]
  %v10083 = vld [vmem:[%s3 + $0x270] sm:$0xff]
  %v10084 = vld [vmem:[%s3 + $0x278] sm:$0xff]
  %v10085 = vld [vmem:[%s3 + $0x280] sm:$0xff]
  %v10086 = vld [vmem:[%s3 + $0x288] sm:$0xff]
  %v10087 = vld [vmem:[%s3 + $0x290] sm:$0xff]
  %v10088 = vld [vmem:[%s3 + $0x298] sm:$0xff]
  %v10089 = vld [vmem:[%s3 + $0x2a0] sm:$0xff]
  %v10090 = vld [vmem:[%s3 + $0x2a8] sm:$0xff]
  %v10091 = vld [vmem:[%s3 + $0x2b0] sm:$0xff]
  %v10092 = vld [vmem:[%s3 + $0x2b8] sm:$0xff]
  %v10093 = vld [vmem:[%s3 + $0x2c0] sm:$0xff]
  %v10094 = vld [vmem:[%s3 + $0x2c8] sm:$0xff]
  %v10095 = vld [vmem:[%s3 + $0x2d0] sm:$0xff]
  %v10096 = vld [vmem:[%s3 + $0x2d8] sm:$0xff]
  %v10097 = vld [vmem:[%s3 + $0x2e0] sm:$0xff]
  %v10098 = vld [vmem:[%s3 + $0x2e8] sm:$0xff]
  %v10099 = vld [vmem:[%s3 + $0x2f0] sm:$0xff]
  %v10100 = vld [vmem:[%s3 + $0x2f8] sm:$0xff]
  %v10101 = vld [vmem:[%s3 + $0x300] sm:$0xff]
  %v10102 = vld [vmem:[%s3 + $0x308] sm:$0xff]
  %v10103 = vld [vmem:[%s3 + $0x310] sm:$0xff]
  %v10104 = vld [vmem:[%s3 + $0x318] sm:$0xff]
  %v10105 = vld [vmem:[%s3 + $0x320] sm:$0xff]
  %v10106 = vld [vmem:[%s3 + $0x328] sm:$0xff]
  %v10107 = vld [vmem:[%s3 + $0x330] sm:$0xff]
  %v10108 = vld [vmem:[%s3 + $0x338] sm:$0xff]
  %v10109 = vld [vmem:[%s3 + $0x340] sm:$0xff]
  %v10110 = vld [vmem:[%s3 + $0x348] sm:$0xff]
  %v10111 = vld [vmem:[%s3 + $0x350] sm:$0xff]
  %v10112 = vld [vmem:[%s3 + $0x358] sm:$0xff]
  %v10113 = vld [vmem:[%s3 + $0x360] sm:$0xff]
  %v10114 = vld [vmem:[%s3 + $0x368] sm:$0xff]
  %v10115 = vld [vmem:[%s3 + $0x370] sm:$0xff]
  %v10116 = vld [vmem:[%s3 + $0x378] sm:$0xff]
  %v10117 = vld [vmem:[%s3 + $0x380] sm:$0xff]
  %v10118 = vld [vmem:[%s3 + $0x388] sm:$0xff]
  %v10119 = vld [vmem:[%s3 + $0x390] sm:$0xff]
  %v10120 = vld [vmem:[%s3 + $0x398] sm:$0xff]
  %v10121 = vld [vmem:[%s3 + $0x3a0] sm:$0xff]
  %v10122 = vld [vmem:[%s3 + $0x3a8] sm:$0xff]
  %v10123 = vld [vmem:[%s3 + $0x3b0] sm:$0xff]
  %v10124 = vld [vmem:[%s3 + $0x3b8] sm:$0xff]
  %v10125 = vld [vmem:[%s3 + $0x3c0] sm:$0xff]
  %v10126 = vld [vmem:[%s3 + $0x3c8] sm:$0xff]
  %v10127 = vld [vmem:[%s3 + $0x3d0] sm:$0xff]
  %v10128 = vld [vmem:[%s3 + $0x3d8] sm:$0xff]
  %v10130 = vsel %vm449, %v10000, 0
  %v10133 = vsel %vm449, %v10004, 0
  %10135 = vmatprep.subr.mxu0 %v10036
  %10136 = vmatpush1.msra.mxu0 %v10035
  %10137 = vmatprep.subr.mxu0 %v10034
  %10138 = vmatpush1.msra.mxu0 %v10033
  %10139 = vmatprep.subr.mxu0 %v10032
  %10140 = vmatpush1.msra.mxu0 %v10031
  %10141 = vmatprep.subr.mxu0 %v10030
  %10142 = vmatpush1.msra.mxu0 %v10029
  %10143 = vmatprep.subr.mxu0 %v10028
  %10144 = vmatpush1.msra.mxu0 %v10027
  %10145 = vmatprep.subr.mxu0 %v10026
  %10146 = vmatpush1.msra.mxu0 %v10025
  %10147 = vmatprep.subr.mxu0 %v10024
  %10148 = vmatpush1.msra.mxu0 %v10023
  %10149 = vmatprep.subr.mxu0 %v10022
  %10150 = vmatpush1.msra.mxu0 %v10021
  %10151 = vmatprep.subr.mxu0 %v10020
  %10152 = vmatpush1.msra.mxu0 %v10019
  %10153 = vmatprep.subr.mxu0 %v10018
  %10154 = vmatpush1.msra.mxu0 %v10017
  %10155 = vmatprep.subr.mxu0 %v10016
  %10156 = vmatpush1.msra.mxu0 %v10015
  %10157 = vmatprep.subr.mxu0 %v10014
  %10158 = vmatpush1.msra.mxu0 %v10013
  %10159 = vmatprep.subr.mxu0 %v10012
  %10160 = vmatpush1.msra.mxu0 %v10011
  %10161 = vmatprep.subr.mxu0 %v10010
  %10162 = vmatpush1.msra.mxu0 %v10009
  %10163 = vmatprep.subr.mxu0 %v10008
  %10164 = vmatpush1.msra.mxu0 %v10007
  %10165 = vmatprep.subr.mxu0 %v10006
  %10166 = vmatpush1.msra.mxu0 %v10005
  %10167 = vmatprep.subr.mxu0 %v10068
  %10168 = vmatpush2.msra.mxu0 %v10067
  %10169 = vmatprep.subr.mxu0 %v10066
  %10170 = vmatpush2.msra.mxu0 %v10065
  %10171 = vmatprep.subr.mxu0 %v10064
  %10172 = vmatpush2.msra.mxu0 %v10063
  %10173 = vmatprep.subr.mxu0 %v10062
  %10174 = vmatpush2.msra.mxu0 %v10061
  %10175 = vmatprep.subr.mxu0 %v10060
  %10176 = vmatpush2.msra.mxu0 %v10059
  %10177 = vmatprep.subr.mxu0 %v10058
  %10178 = vmatpush2.msra.mxu0 %v10057
  %10179 = vmatprep.subr.mxu0 %v10056
  %10180 = vmatpush2.msra.mxu0 %v10055
  %10181 = vmatprep.subr.mxu0 %v10054
  %10182 = vmatpush2.msra.mxu0 %v10053
  %10183 = vmatprep.subr.mxu0 %v10052
  %10184 = vmatpush2.msra.mxu0 %v10051
  %10185 = vmatprep.subr.mxu0 %v10050
  %10186 = vmatpush2.msra.mxu0 %v10049
  %10187 = vmatprep.subr.mxu0 %v10048
  %10188 = vmatpush2.msra.mxu0 %v10047
  %10189 = vmatprep.subr.mxu0 %v10046
  %10190 = vmatpush2.msra.mxu0 %v10045
  %10191 = vmatprep.subr.mxu0 %v10044
  %10192 = vmatpush2.msra.mxu0 %v10043
  %10193 = vmatprep.subr.mxu0 %v10042
  %10194 = vmatpush2.msra.mxu0 %v10041
  %10195 = vmatprep.subr.mxu0 %v10040
  %10196 = vmatpush2.msra.mxu0 %v10039
  %10197 = vmatprep.subr.mxu0 %v10038
  %10198 = vmatpush2.msra.mxu0 %v10037
  %10199 = vmatprep.mubr.f32.mxu0 %v9998
  %10200 = vmatmul.mubr.f32.gmra.mxu0 %v9997
  %v10201 = vpop.f32.mrf.mxu0
  %v10202 = vadd.f32 0.0, %v10201
  %v10203 = vpop.f32.mrf.mxu0
  %v10204 = vadd.f32 0.0, %v10203
  %10205 = vmatprep.mubr.f32.mxu0 %v10002
  %10206 = vmatmul.mubr.f32.gmra.mxu0 %v10001
  %v10207 = vpop.f32.mrf.mxu0
  %v10208 = vadd.f32 0.0, %v10207
  %v10209 = vpop.f32.mrf.mxu0
  %v10210 = vadd.f32 0.0, %v10209
  %10211 = vdwg.mxu0
  %10212 = vmatprep.subr.mxu0 %v10100
  %10213 = vmatpush1.msra.mxu0 %v10099
  %10214 = vmatprep.subr.mxu0 %v10098
  %10215 = vmatpush1.msra.mxu0 %v10097
  %10216 = vmatprep.subr.mxu0 %v10096
  %10217 = vmatpush1.msra.mxu0 %v10095
  %10218 = vmatprep.subr.mxu0 %v10094
  %10219 = vmatpush1.msra.mxu0 %v10093
  %10220 = vmatprep.subr.mxu0 %v10092
  %10221 = vmatpush1.msra.mxu0 %v10091
  %10222 = vmatprep.subr.mxu0 %v10090
  %10223 = vmatpush1.msra.mxu0 %v10089
  %10224 = vmatprep.subr.mxu0 %v10088
  %10225 = vmatpush1.msra.mxu0 %v10087
  %10226 = vmatprep.subr.mxu0 %v10086
  %10227 = vmatpush1.msra.mxu0 %v10085
  %10228 = vmatprep.subr.mxu0 %v10084
  %10229 = vmatpush1.msra.mxu0 %v10083
  %10230 = vmatprep.subr.mxu0 %v10082
  %10231 = vmatpush1.msra.mxu0 %v10081
  %10232 = vmatprep.subr.mxu0 %v10080
  %10233 = vmatpush1.msra.mxu0 %v10079
  %10234 = vmatprep.subr.mxu0 %v10078
  %10235 = vmatpush1.msra.mxu0 %v10077
  %10236 = vmatprep.subr.mxu0 %v10076
  %10237 = vmatpush1.msra.mxu0 %v10075
  %10238 = vmatprep.subr.mxu0 %v10074
  %10239 = vmatpush1.msra.mxu0 %v10073
  %10240 = vmatprep.subr.mxu0 %v10072
  %10241 = vmatpush1.msra.mxu0 %v10071
  %10242 = vmatprep.subr.mxu0 %v10070
  %10243 = vmatpush1.msra.mxu0 %v10069
  %10244 = vmatprep.subr.mxu0 0.0
  %10245 = vmatpush2.msra.mxu0 0.0
  %10246 = vmatprep.subr.mxu0 0.0
  %10247 = vmatpush2.msra.mxu0 0.0
  %10248 = vmatprep.subr.mxu0 %v10128
  %10249 = vmatpush2.msra.mxu0 %v10127
  %10250 = vmatprep.subr.mxu0 %v10126
  %10251 = vmatpush2.msra.mxu0 %v10125
  %10252 = vmatprep.subr.mxu0 %v10124
  %10253 = vmatpush2.msra.mxu0 %v10123
  %10254 = vmatprep.subr.mxu0 %v10122
  %10255 = vmatpush2.msra.mxu0 %v10121
  %10256 = vmatprep.subr.mxu0 %v10120
  %10257 = vmatpush2.msra.mxu0 %v10119
  %10258 = vmatprep.subr.mxu0 %v10118
  %10259 = vmatpush2.msra.mxu0 %v10117
  %10260 = vmatprep.subr.mxu0 %v10116
  %10261 = vmatpush2.msra.mxu0 %v10115
  %10262 = vmatprep.subr.mxu0 %v10114
  %10263 = vmatpush2.msra.mxu0 %v10113
  %10264 = vmatprep.subr.mxu0 %v10112
  %10265 = vmatpush2.msra.mxu0 %v10111
  %10266 = vmatprep.subr.mxu0 %v10110
  %10267 = vmatpush2.msra.mxu0 %v10109
  %10268 = vmatprep.subr.mxu0 %v10108
  %10269 = vmatpush2.msra.mxu0 %v10107
  %10270 = vmatprep.subr.mxu0 %v10106
  %10271 = vmatpush2.msra.mxu0 %v10105
  %10272 = vmatprep.subr.mxu0 %v10104
  %10273 = vmatpush2.msra.mxu0 %v10103
  %10274 = vmatprep.subr.mxu0 %v10102
  %10275 = vmatpush2.msra.mxu0 %v10101
  %10276 = vmatprep.mubr.f32.mxu0 %v10130
  %10277 = vmatmul.mubr.f32.gmra.mxu0 %v9999
  %v10278 = vpop.f32.mrf.mxu0
  %v10279 = vadd.f32 %v10202, %v10278
  %v10280 = vpop.f32.mrf.mxu0
  %v10281 = vadd.f32 %v10204, %v10280
  %10282 = vmatprep.mubr.f32.mxu0 %v10133
  %10283 = vmatmul.mubr.f32.gmra.mxu0 %v10003
  %v10284 = vpop.f32.mrf.mxu0
  %v10285 = vadd.f32 %v10208, %v10284
  %v10286 = vpop.f32.mrf.mxu0
  %v10287 = vadd.f32 %v10210, %v10286
  %10288 = vdwg.mxu0
  %10293 = vrot.lane.b32.xlu0 %v10279, 127
  %v10294 = vpop.permute.xlu0 %10293
  %10295 = vrot.lane.b32.xlu0 %v10281, 127
  %v10296 = vpop.permute.xlu0 %10295
  %10297 = vrot.lane.b32.xlu0 %v10285, 127
  %v10298 = vpop.permute.xlu0 %10297
  %10299 = vrot.lane.b32.xlu0 %v10287, 127
  %v10300 = vpop.permute.xlu0 %10299
  %v10301 = vsel %vm122, %v10294, %v10296
  %v10302 = vsel %vm122, %v10298, %v10300
  %10307 = vrot.lane.b32.xlu0 %v10279, 126
  %v10308 = vpop.permute.xlu0 %10307
  %10309 = vrot.lane.b32.xlu0 %v10281, 126
  %v10310 = vpop.permute.xlu0 %10309
  %10311 = vrot.lane.b32.xlu0 %v10285, 126
  %v10312 = vpop.permute.xlu0 %10311
  %10313 = vrot.lane.b32.xlu0 %v10287, 126
  %v10314 = vpop.permute.xlu0 %10313
  %v10315 = vsel %vm190, %v10308, %v10310
  %v10316 = vsel %vm190, %v10312, %v10314
  %v10321 = vld [vmem:[%s4] sm:$0xff]
  %v10322 = vld [vmem:[%s4 + $0x8] sm:$0xff]
  %v10323 = vld [vmem:[%s4 + $0x10] sm:$0xff]
  %v10324 = vld [vmem:[%s4 + $0x18] sm:$0xff]
  %v10325 = vld [vmem:[%s5] sm:$0xff]
  %v10326 = vld [vmem:[%s5 + $0x8] sm:$0xff]
  %v10327 = vld [vmem:[%s5 + $0x10] sm:$0xff]
  %v10328 = vld [vmem:[%s5 + $0x18] sm:$0xff]
  %10330 = vset.pattern.permute.xlu0 0
  %10331 = vperm.xlu0 %10330, %v10325
  %v10332 = vpop.permute.xlu0 %10331
  %10335 = vset.pattern.permute.xlu0 0
  %10336 = vperm.xlu0 %10335, %v10326
  %v10337 = vpop.permute.xlu0 %10336
  %10340 = vset.pattern.permute.xlu0 0
  %10341 = vperm.xlu0 %10340, %v10327
  %v10342 = vpop.permute.xlu0 %10341
  %10345 = vset.pattern.permute.xlu0 0
  %10346 = vperm.xlu0 %10345, %v10328
  %v10347 = vpop.permute.xlu0 %10346
  %v10350 = vsel %vm670, %v10321, 0
  %v10353 = vsel %vm670, %v10322, 0
  %v10356 = vsel %vm670, %v10323, 0
  %v10359 = vsel %vm670, %v10324, 0
  %10361 = vmatprep.subr.mxu0 0.0
  %10362 = vmatpush1.msra.mxu0 0.0
  %10363 = vmatprep.subr.mxu0 0.0
  %10364 = vmatpush1.msra.mxu0 0.0
  %10365 = vmatprep.subr.mxu0 0.0
  %10366 = vmatpush1.msra.mxu0 0.0
  %10367 = vmatprep.subr.mxu0 0.0
  %10368 = vmatpush1.msra.mxu0 0.0
  %10369 = vmatprep.subr.mxu0 0.0
  %10370 = vmatpush1.msra.mxu0 0.0
  %10371 = vmatprep.subr.mxu0 0.0
  %10372 = vmatpush1.msra.mxu0 0.0
  %10373 = vmatprep.subr.mxu0 0.0
  %10374 = vmatpush1.msra.mxu0 0.0
  %10375 = vmatprep.subr.mxu0 0.0
  %10376 = vmatpush1.msra.mxu0 0.0
  %10377 = vmatprep.subr.mxu0 0.0
  %10378 = vmatpush1.msra.mxu0 0.0
  %10379 = vmatprep.subr.mxu0 0.0
  %10380 = vmatpush1.msra.mxu0 0.0
  %10381 = vmatprep.subr.mxu0 %v10314
  %10382 = vmatpush1.msra.mxu0 %v10316
  %10383 = vmatprep.subr.mxu0 %v10310
  %10384 = vmatpush1.msra.mxu0 %v10315
  %10385 = vmatprep.subr.mxu0 %v10300
  %10386 = vmatpush1.msra.mxu0 %v10302
  %10387 = vmatprep.subr.mxu0 %v10296
  %10388 = vmatpush1.msra.mxu0 %v10301
  %10389 = vmatprep.subr.mxu0 %v10287
  %10390 = vmatpush1.msra.mxu0 %v10285
  %10391 = vmatprep.subr.mxu0 %v10281
  %10392 = vmatpush1.msra.mxu0 %v10279
  %10393 = vmatprep.subr.mxu0 0.0
  %10394 = vmatpush2.msra.mxu0 0.0
  %10395 = vmatprep.subr.mxu0 0.0
  %10396 = vmatpush2.msra.mxu0 0.0
  %10397 = vmatprep.subr.mxu0 0.0
  %10398 = vmatpush2.msra.mxu0 0.0
  %10399 = vmatprep.subr.mxu0 0.0
  %10400 = vmatpush2.msra.mxu0 0.0
  %10401 = vmatprep.subr.mxu0 0.0
  %10402 = vmatpush2.msra.mxu0 0.0
  %10403 = vmatprep.subr.mxu0 0.0
  %10404 = vmatpush2.msra.mxu0 0.0
  %10405 = vmatprep.subr.mxu0 0.0
  %10406 = vmatpush2.msra.mxu0 0.0
  %10407 = vmatprep.subr.mxu0 0.0
  %10408 = vmatpush2.msra.mxu0 0.0
  %10409 = vmatprep.subr.mxu0 0.0
  %10410 = vmatpush2.msra.mxu0 0.0
  %10411 = vmatprep.subr.mxu0 0.0
  %10412 = vmatpush2.msra.mxu0 0.0
  %10413 = vmatprep.subr.mxu0 0.0
  %10414 = vmatpush2.msra.mxu0 0.0
  %10415 = vmatprep.subr.mxu0 0.0
  %10416 = vmatpush2.msra.mxu0 0.0
  %10417 = vmatprep.subr.mxu0 0.0
  %10418 = vmatpush2.msra.mxu0 0.0
  %10419 = vmatprep.subr.mxu0 0.0
  %10420 = vmatpush2.msra.mxu0 0.0
  %10421 = vmatprep.subr.mxu0 0.0
  %10422 = vmatpush2.msra.mxu0 0.0
  %10423 = vmatprep.subr.mxu0 0.0
  %10424 = vmatpush2.msra.mxu0 0.0
  %10425 = vmatprep.mubr.f32.mxu0 0.0
  %10426 = vmatmul.mubr.f32.gmra.mxu0 %v10350
  %v10427 = vpop.f32.mrf.mxu0
  %v10428 = vadd.f32 %v10332, %v10427
  %v10429 = vpop.f32.mrf.mxu0
  %v10430 = vadd.f32 %v10332, %v10429
  %10431 = vmatprep.mubr.f32.mxu0 0.0
  %10432 = vmatmul.mubr.f32.gmra.mxu0 %v10353
  %v10433 = vpop.f32.mrf.mxu0
  %v10434 = vadd.f32 %v10337, %v10433
  %v10435 = vpop.f32.mrf.mxu0
  %v10436 = vadd.f32 %v10337, %v10435
  %10437 = vmatprep.mubr.f32.mxu0 0.0
  %10438 = vmatmul.mubr.f32.gmra.mxu0 %v10356
  %v10439 = vpop.f32.mrf.mxu0
  %v10440 = vadd.f32 %v10342, %v10439
  %v10441 = vpop.f32.mrf.mxu0
  %v10442 = vadd.f32 %v10342, %v10441
  %10443 = vmatprep.mubr.f32.mxu0 0.0
  %10444 = vmatmul.mubr.f32.gmra.mxu0 %v10359
  %v10445 = vpop.f32.mrf.mxu0
  %v10446 = vadd.f32 %v10347, %v10445
  %v10447 = vpop.f32.mrf.mxu0
  %v10448 = vadd.f32 %v10347, %v10447
  %10449 = vdwg.mxu0
  %v10450 = vmax.f32 %v10428, 0.0
  %v10451 = vmax.f32 %v10430, 0.0
  %v10452 = vmax.f32 %v10434, 0.0
  %v10453 = vmax.f32 %v10436, 0.0
  %v10454 = vmax.f32 %v10440, 0.0
  %v10455 = vmax.f32 %v10442, 0.0
  %v10456 = vmax.f32 %v10446, 0.0
  %v10457 = vmax.f32 %v10448, 0.0
  %10466 = vrot.lane.b32.xlu0 %v10450, 127
  %v10467 = vpop.permute.xlu0 %10466
  %10468 = vrot.lane.b32.xlu0 %v10451, 127
  %v10469 = vpop.permute.xlu0 %10468
  %10470 = vrot.lane.b32.xlu0 %v10452, 127
  %v10471 = vpop.permute.xlu0 %10470
  %10472 = vrot.lane.b32.xlu0 %v10453, 127
  %v10473 = vpop.permute.xlu0 %10472
  %10474 = vrot.lane.b32.xlu0 %v10454, 127
  %v10475 = vpop.permute.xlu0 %10474
  %10476 = vrot.lane.b32.xlu0 %v10455, 127
  %v10477 = vpop.permute.xlu0 %10476
  %10478 = vrot.lane.b32.xlu0 %v10456, 127
  %v10479 = vpop.permute.xlu0 %10478
  %10480 = vrot.lane.b32.xlu0 %v10457, 127
  %v10481 = vpop.permute.xlu0 %10480
  %v10482 = vsel %vm122, %v10467, %v10469
  %v10483 = vsel %vm122, %v10471, %v10473
  %v10484 = vsel %vm122, %v10475, %v10477
  %v10485 = vsel %vm122, %v10479, %v10481
  %v10494 = vmax.f32 %v10450, %v10482
  %v10495 = vmax.f32 %v10451, %v10469
  %v10496 = vmax.f32 %v10452, %v10483
  %v10497 = vmax.f32 %v10453, %v10473
  %v10498 = vmax.f32 %v10454, %v10484
  %v10499 = vmax.f32 %v10455, %v10477
  %v10500 = vmax.f32 %v10456, %v10485
  %v10501 = vmax.f32 %v10457, %v10481
  %10502 = vrot.lane.b32.xlu0 %v10450, 126
  %v10503 = vpop.permute.xlu0 %10502
  %10504 = vrot.lane.b32.xlu0 %v10451, 126
  %v10505 = vpop.permute.xlu0 %10504
  %10506 = vrot.lane.b32.xlu0 %v10452, 126
  %v10507 = vpop.permute.xlu0 %10506
  %10508 = vrot.lane.b32.xlu0 %v10453, 126
  %v10509 = vpop.permute.xlu0 %10508
  %10510 = vrot.lane.b32.xlu0 %v10454, 126
  %v10511 = vpop.permute.xlu0 %10510
  %10512 = vrot.lane.b32.xlu0 %v10455, 126
  %v10513 = vpop.permute.xlu0 %10512
  %10514 = vrot.lane.b32.xlu0 %v10456, 126
  %v10515 = vpop.permute.xlu0 %10514
  %10516 = vrot.lane.b32.xlu0 %v10457, 126
  %v10517 = vpop.permute.xlu0 %10516
  %v10518 = vsel %vm190, %v10503, %v10505
  %v10519 = vsel %vm190, %v10507, %v10509
  %v10520 = vsel %vm190, %v10511, %v10513
  %v10521 = vsel %vm190, %v10515, %v10517
  %v10530 = vmax.f32 %v10494, %v10518
  %v10531 = vmax.f32 %v10495, %v10505
  %v10532 = vmax.f32 %v10496, %v10519
  %v10533 = vmax.f32 %v10497, %v10509
  %v10534 = vmax.f32 %v10498, %v10520
  %v10535 = vmax.f32 %v10499, %v10513
  %v10536 = vmax.f32 %v10500, %v10521
  %v10537 = vmax.f32 %v10501, %v10517
  %v10538 = vld [vmem:[%s6] sm:$0xff]
  %v10539 = vld [vmem:[%s6 + $0x8] sm:$0xff]
  %v10540 = vld [vmem:[%s6 + $0x10] sm:$0xff]
  %v10541 = vld [vmem:[%s6 + $0x18] sm:$0xff]
  %v10542 = vld [vmem:[%s6 + $0x20] sm:$0xff]
  %v10543 = vld [vmem:[%s6 + $0x28] sm:$0xff]
  %v10544 = vld [vmem:[%s6 + $0x30] sm:$0xff]
  %v10545 = vld [vmem:[%s6 + $0x38] sm:$0xff]
  %v10546 = vld [vmem:[%s6 + $0x40] sm:$0xff]
  %v10547 = vld [vmem:[%s6 + $0x48] sm:$0xff]
  %v10548 = vld [vmem:[%s6 + $0x50] sm:$0xff]
  %v10549 = vld [vmem:[%s6 + $0x58] sm:$0xff]
  %v10550 = vld [vmem:[%s6 + $0x60] sm:$0xff]
  %v10551 = vld [vmem:[%s6 + $0x68] sm:$0xff]
  %v10552 = vld [vmem:[%s6 + $0x70] sm:$0xff]
  %v10553 = vld [vmem:[%s6 + $0x78] sm:$0xff]
  %v10554 = vld [vmem:[%s6 + $0x80] sm:$0xff]
  %v10555 = vld [vmem:[%s6 + $0x88] sm:$0xff]
  %v10556 = vld [vmem:[%s6 + $0x90] sm:$0xff]
  %v10557 = vld [vmem:[%s6 + $0x98] sm:$0xff]
  %v10558 = vld [vmem:[%s6 + $0xa0] sm:$0x3]
  %v10560 = vsel %vm881, %v10531, 0
  %v10563 = vsel %vm881, %v10533, 0
  %v10566 = vsel %vm881, %v10535, 0
  %v10569 = vsel %vm881, %v10537, 0
  %v10572 = vsel %vm894, %v10558, 0
  %10574 = vmatprep.subr.mxu0 0.0
  %10575 = vmatpush1.msra.mxu0 %v10553
  %10576 = vmatprep.subr.mxu0 0.0
  %10577 = vmatpush1.msra.mxu0 %v10552
  %10578 = vmatprep.subr.mxu0 0.0
  %10579 = vmatpush1.msra.mxu0 %v10551
  %10580 = vmatprep.subr.mxu0 0.0
  %10581 = vmatpush1.msra.mxu0 %v10550
  %10582 = vmatprep.subr.mxu0 0.0
  %10583 = vmatpush1.msra.mxu0 %v10549
  %10584 = vmatprep.subr.mxu0 0.0
  %10585 = vmatpush1.msra.mxu0 %v10548
  %10586 = vmatprep.subr.mxu0 0.0
  %10587 = vmatpush1.msra.mxu0 %v10547
  %10588 = vmatprep.subr.mxu0 0.0
  %10589 = vmatpush1.msra.mxu0 %v10546
  %10590 = vmatprep.subr.mxu0 0.0
  %10591 = vmatpush1.msra.mxu0 %v10545
  %10592 = vmatprep.subr.mxu0 0.0
  %10593 = vmatpush1.msra.mxu0 %v10544
  %10594 = vmatprep.subr.mxu0 0.0
  %10595 = vmatpush1.msra.mxu0 %v10543
  %10596 = vmatprep.subr.mxu0 0.0
  %10597 = vmatpush1.msra.mxu0 %v10542
  %10598 = vmatprep.subr.mxu0 0.0
  %10599 = vmatpush1.msra.mxu0 %v10541
  %10600 = vmatprep.subr.mxu0 0.0
  %10601 = vmatpush1.msra.mxu0 %v10540
  %10602 = vmatprep.subr.mxu0 0.0
  %10603 = vmatpush1.msra.mxu0 %v10539
  %10604 = vmatprep.subr.mxu0 0.0
  %10605 = vmatpush1.msra.mxu0 %v10538
  %10606 = vmatprep.subr.mxu0 0.0
  %10607 = vmatpush2.msra.mxu0 0.0
  %10608 = vmatprep.subr.mxu0 0.0
  %10609 = vmatpush2.msra.mxu0 0.0
  %10610 = vmatprep.subr.mxu0 0.0
  %10611 = vmatpush2.msra.mxu0 0.0
  %10612 = vmatprep.subr.mxu0 0.0
  %10613 = vmatpush2.msra.mxu0 0.0
  %10614 = vmatprep.subr.mxu0 0.0
  %10615 = vmatpush2.msra.mxu0 0.0
  %10616 = vmatprep.subr.mxu0 0.0
  %10617 = vmatpush2.msra.mxu0 0.0
  %10618 = vmatprep.subr.mxu0 0.0
  %10619 = vmatpush2.msra.mxu0 0.0
  %10620 = vmatprep.subr.mxu0 0.0
  %10621 = vmatpush2.msra.mxu0 0.0
  %10622 = vmatprep.subr.mxu0 0.0
  %10623 = vmatpush2.msra.mxu0 0.0
  %10624 = vmatprep.subr.mxu0 0.0
  %10625 = vmatpush2.msra.mxu0 0.0
  %10626 = vmatprep.subr.mxu0 0.0
  %10627 = vmatpush2.msra.mxu0 0.0
  %10628 = vmatprep.subr.mxu0 0.0
  %10629 = vmatpush2.msra.mxu0 %v10572
  %10630 = vmatprep.subr.mxu0 0.0
  %10631 = vmatpush2.msra.mxu0 %v10557
  %10632 = vmatprep.subr.mxu0 0.0
  %10633 = vmatpush2.msra.mxu0 %v10556
  %10634 = vmatprep.subr.mxu0 0.0
  %10635 = vmatpush2.msra.mxu0 %v10555
  %10636 = vmatprep.subr.mxu0 0.0
  %10637 = vmatpush2.msra.mxu0 %v10554
  %10638 = vmatprep.mubr.f32.mxu0 %v10560
  %10639 = vmatmul.mubr.f32.gmra.mxu0 %v10530
  %v10640 = vpop.f32.mrf.mxu0
  %v10641 = vadd.f32 0.0, %v10640
  %v10642 = vpop.f32.mrf.mxu0
  %10643 = vmatprep.mubr.f32.mxu0 %v10563
  %10644 = vmatmul.mubr.f32.gmra.mxu0 %v10532
  %v10645 = vpop.f32.mrf.mxu0
  %v10646 = vadd.f32 0.0, %v10645
  %v10647 = vpop.f32.mrf.mxu0
  %10648 = vmatprep.mubr.f32.mxu0 %v10566
  %10649 = vmatmul.mubr.f32.gmra.mxu0 %v10534
  %v10650 = vpop.f32.mrf.mxu0
  %v10651 = vadd.f32 0.0, %v10650
  %v10652 = vpop.f32.mrf.mxu0
  %10653 = vmatprep.mubr.f32.mxu0 %v10569
  %10654 = vmatmul.mubr.f32.gmra.mxu0 %v10536
  %v10655 = vpop.f32.mrf.mxu0
  %v10656 = vadd.f32 0.0, %v10655
  %v10657 = vpop.f32.mrf.mxu0
  %10658 = vdwg.mxu0
  %10663 = vrot.lane.b32.xlu0 %v10641, 127
  %v10664 = vpop.permute.xlu0 %10663
  %10665 = vrot.lane.b32.xlu0 %v10646, 127
  %v10666 = vpop.permute.xlu0 %10665
  %10667 = vrot.lane.b32.xlu0 %v10651, 127
  %v10668 = vpop.permute.xlu0 %10667
  %10669 = vrot.lane.b32.xlu0 %v10656, 127
  %v10670 = vpop.permute.xlu0 %10669
  %10675 = vrot.lane.b32.xlu0 %v10641, 126
  %v10676 = vpop.permute.xlu0 %10675
  %10677 = vrot.lane.b32.xlu0 %v10646, 126
  %v10678 = vpop.permute.xlu0 %10677
  %10679 = vrot.lane.b32.xlu0 %v10651, 126
  %v10680 = vpop.permute.xlu0 %10679
  %10681 = vrot.lane.b32.xlu0 %v10656, 126
  %v10682 = vpop.permute.xlu0 %10681
  %v10687 = vld [vmem:[%s7] sm:$0xff]
  %v10688 = vld [vmem:[%s7 + $0x8] sm:$0xff]
  %v10689 = vld [vmem:[%s7 + $0x10] sm:$0xff]
  %v10690 = vld [vmem:[%s7 + $0x18] sm:$0xff]
  %v10691 = vld [vmem:[%s7 + $0x20] sm:$0xff]
  %v10692 = vld [vmem:[%s7 + $0x28] sm:$0xff]
  %v10693 = vld [vmem:[%s7 + $0x30] sm:$0xff]
  %v10694 = vld [vmem:[%s7 + $0x38] sm:$0xff]
  %v10695 = vld [vmem:[%s8] sm:$0xff]
  %v10696 = vld [vmem:[%s8 + $0x8] sm:$0xff]
  %v10697 = vld [vmem:[%s8 + $0x10] sm:$0xff]
  %v10698 = vld [vmem:[%s8 + $0x18] sm:$0xff]
  %v10699 = vld [vmem:[%s8 + $0x20] sm:$0xff]
  %v10700 = vld [vmem:[%s8 + $0x28] sm:$0xff]
  %v10701 = vld [vmem:[%s8 + $0x30] sm:$0xff]
  %v10702 = vld [vmem:[%s8 + $0x38] sm:$0xff]
  %10704 = vset.pattern.permute.xlu0 0
  %10705 = vperm.xlu0 %10704, %v10695
  %v10706 = vpop.permute.xlu0 %10705
  %10709 = vset.pattern.permute.xlu0 0
  %10710 = vperm.xlu0 %10709, %v10696
  %v10711 = vpop.permute.xlu0 %10710
  %10714 = vset.pattern.permute.xlu0 0
  %10715 = vperm.xlu0 %10714, %v10697
  %v10716 = vpop.permute.xlu0 %10715
  %10719 = vset.pattern.permute.xlu0 0
  %10720 = vperm.xlu0 %10719, %v10698
  %v10721 = vpop.permute.xlu0 %10720
  %10724 = vset.pattern.permute.xlu0 0
  %10725 = vperm.xlu0 %10724, %v10699
  %v10726 = vpop.permute.xlu0 %10725
  %10729 = vset.pattern.permute.xlu0 0
  %10730 = vperm.xlu0 %10729, %v10700
  %v10731 = vpop.permute.xlu0 %10730
  %10734 = vset.pattern.permute.xlu0 0
  %10735 = vperm.xlu0 %10734, %v10701
  %v10736 = vpop.permute.xlu0 %10735
  %10739 = vset.pattern.permute.xlu0 0
  %10740 = vperm.xlu0 %10739, %v10702
  %v10741 = vpop.permute.xlu0 %10740
  %v10744 = vsel %vm1067, %v10687, 0
  %v10747 = vsel %vm1067, %v10688, 0
  %v10750 = vsel %vm1067, %v10689, 0
  %v10753 = vsel %vm1067, %v10690, 0
  %v10756 = vsel %vm1067, %v10691, 0
  %v10759 = vsel %vm1067, %v10692, 0
  %v10762 = vsel %vm1067, %v10693, 0
  %v10765 = vsel %vm1067, %v10694, 0
  %10767 = vmatprep.subr.mxu0 0.0
  %10768 = vmatpush1.msra.mxu0 0.0
  %10769 = vmatprep.subr.mxu0 0.0
  %10770 = vmatpush1.msra.mxu0 0.0
  %10771 = vmatprep.subr.mxu0 0.0
  %10772 = vmatpush1.msra.mxu0 0.0
  %10773 = vmatprep.subr.mxu0 0.0
  %10774 = vmatpush1.msra.mxu0 0.0
  %10775 = vmatprep.subr.mxu0 0.0
  %10776 = vmatpush1.msra.mxu0 %v10682
  %10777 = vmatprep.subr.mxu0 0.0
  %10778 = vmatpush1.msra.mxu0 %v10680
  %10779 = vmatprep.subr.mxu0 0.0
  %10780 = vmatpush1.msra.mxu0 %v10678
  %10781 = vmatprep.subr.mxu0 0.0
  %10782 = vmatpush1.msra.mxu0 %v10676
  %10783 = vmatprep.subr.mxu0 0.0
  %10784 = vmatpush1.msra.mxu0 %v10670
  %10785 = vmatprep.subr.mxu0 0.0
  %10786 = vmatpush1.msra.mxu0 %v10668
  %10787 = vmatprep.subr.mxu0 0.0
  %10788 = vmatpush1.msra.mxu0 %v10666
  %10789 = vmatprep.subr.mxu0 0.0
  %10790 = vmatpush1.msra.mxu0 %v10664
  %10791 = vmatprep.subr.mxu0 0.0
  %10792 = vmatpush1.msra.mxu0 %v10656
  %10793 = vmatprep.subr.mxu0 0.0
  %10794 = vmatpush1.msra.mxu0 %v10651
  %10795 = vmatprep.subr.mxu0 0.0
  %10796 = vmatpush1.msra.mxu0 %v10646
  %10797 = vmatprep.subr.mxu0 0.0
  %10798 = vmatpush1.msra.mxu0 %v10641
  %10799 = vmatprep.subr.mxu0 0.0
  %10800 = vmatpush2.msra.mxu0 0.0
  %10801 = vmatprep.subr.mxu0 0.0
  %10802 = vmatpush2.msra.mxu0 0.0
  %10803 = vmatprep.subr.mxu0 0.0
  %10804 = vmatpush2.msra.mxu0 0.0
  %10805 = vmatprep.subr.mxu0 0.0
  %10806 = vmatpush2.msra.mxu0 0.0
  %10807 = vmatprep.subr.mxu0 0.0
  %10808 = vmatpush2.msra.mxu0 0.0
  %10809 = vmatprep.subr.mxu0 0.0
  %10810 = vmatpush2.msra.mxu0 0.0
  %10811 = vmatprep.subr.mxu0 0.0
  %10812 = vmatpush2.msra.mxu0 0.0
  %10813 = vmatprep.subr.mxu0 0.0
  %10814 = vmatpush2.msra.mxu0 0.0
  %10815 = vmatprep.subr.mxu0 0.0
  %10816 = vmatpush2.msra.mxu0 0.0
  %10817 = vmatprep.subr.mxu0 0.0
  %10818 = vmatpush2.msra.mxu0 0.0
  %10819 = vmatprep.subr.mxu0 0.0
  %10820 = vmatpush2.msra.mxu0 0.0
  %10821 = vmatprep.subr.mxu0 0.0
  %10822 = vmatpush2.msra.mxu0 0.0
  %10823 = vmatprep.subr.mxu0 0.0
  %10824 = vmatpush2.msra.mxu0 0.0
  %10825 = vmatprep.subr.mxu0 0.0
  %10826 = vmatpush2.msra.mxu0 0.0
  %10827 = vmatprep.subr.mxu0 0.0
  %10828 = vmatpush2.msra.mxu0 0.0
  %10829 = vmatprep.subr.mxu0 0.0
  %10830 = vmatpush2.msra.mxu0 0.0
  %10831 = vmatprep.mubr.f32.mxu0 0.0
  %10832 = vmatmul.mubr.f32.gmra.mxu0 %v10744
  %v10833 = vpop.f32.mrf.mxu0
  %v10834 = vadd.f32 %v10706, %v10833
  %v10835 = vpop.f32.mrf.mxu0
  %10836 = vmatprep.mubr.f32.mxu0 0.0
  %10837 = vmatmul.mubr.f32.gmra.mxu0 %v10747
  %v10838 = vpop.f32.mrf.mxu0
  %v10839 = vadd.f32 %v10711, %v10838
  %v10840 = vpop.f32.mrf.mxu0
  %10841 = vmatprep.mubr.f32.mxu0 0.0
  %10842 = vmatmul.mubr.f32.gmra.mxu0 %v10750
  %v10843 = vpop.f32.mrf.mxu0
  %v10844 = vadd.f32 %v10716, %v10843
  %v10845 = vpop.f32.mrf.mxu0
  %10846 = vmatprep.mubr.f32.mxu0 0.0
  %10847 = vmatmul.mubr.f32.gmra.mxu0 %v10753
  %v10848 = vpop.f32.mrf.mxu0
  %v10849 = vadd.f32 %v10721, %v10848
  %v10850 = vpop.f32.mrf.mxu0
  %10851 = vmatprep.mubr.f32.mxu0 0.0
  %10852 = vmatmul.mubr.f32.gmra.mxu0 %v10756
  %v10853 = vpop.f32.mrf.mxu0
  %v10854 = vadd.f32 %v10726, %v10853
  %v10855 = vpop.f32.mrf.mxu0
  %10856 = vmatprep.mubr.f32.mxu0 0.0
  %10857 = vmatmul.mubr.f32.gmra.mxu0 %v10759
  %v10858 = vpop.f32.mrf.mxu0
  %v10859 = vadd.f32 %v10731, %v10858
  %v10860 = vpop.f32.mrf.mxu0
  %10861 = vmatprep.mubr.f32.mxu0 0.0
  %10862 = vmatmul.mubr.f32.gmra.mxu0 %v10762
  %v10863 = vpop.f32.mrf.mxu0
  %v10864 = vadd.f32 %v10736, %v10863
  %v10865 = vpop.f32.mrf.mxu0
  %10866 = vmatprep.mubr.f32.mxu0 0.0
  %10867 = vmatmul.mubr.f32.gmra.mxu0 %v10765
  %v10868 = vpop.f32.mrf.mxu0
  %v10869 = vadd.f32 %v10741, %v10868
  %v10870 = vpop.f32.mrf.mxu0
  %10871 = vdwg.mxu0
  %v10872 = vmax.f32 %v10834, 0.0
  %v10873 = vmax.f32 %v10839, 0.0
  %v10874 = vmax.f32 %v10844, 0.0
  %v10875 = vmax.f32 %v10849, 0.0
  %v10876 = vmax.f32 %v10854, 0.0
  %v10877 = vmax.f32 %v10859, 0.0
  %v10878 = vmax.f32 %v10864, 0.0
  %v10879 = vmax.f32 %v10869, 0.0
  %10888 = vrot.lane.b32.xlu0 %v10872, 127
  %v10889 = vpop.permute.xlu0 %10888
  %10890 = vrot.lane.b32.xlu0 %v10873, 127
  %v10891 = vpop.permute.xlu0 %10890
  %10892 = vrot.lane.b32.xlu0 %v10874, 127
  %v10893 = vpop.permute.xlu0 %10892
  %10894 = vrot.lane.b32.xlu0 %v10875, 127
  %v10895 = vpop.permute.xlu0 %10894
  %10896 = vrot.lane.b32.xlu0 %v10876, 127
  %v10897 = vpop.permute.xlu0 %10896
  %10898 = vrot.lane.b32.xlu0 %v10877, 127
  %v10899 = vpop.permute.xlu0 %10898
  %10900 = vrot.lane.b32.xlu0 %v10878, 127
  %v10901 = vpop.permute.xlu0 %10900
  %10902 = vrot.lane.b32.xlu0 %v10879, 127
  %v10903 = vpop.permute.xlu0 %10902
  %v10912 = vmax.f32 %v10872, %v10889
  %v10913 = vmax.f32 %v10873, %v10891
  %v10914 = vmax.f32 %v10874, %v10893
  %v10915 = vmax.f32 %v10875, %v10895
  %v10916 = vmax.f32 %v10876, %v10897
  %v10917 = vmax.f32 %v10877, %v10899
  %v10918 = vmax.f32 %v10878, %v10901
  %v10919 = vmax.f32 %v10879, %v10903
  %10920 = vrot.lane.b32.xlu0 %v10872, 126
  %v10921 = vpop.permute.xlu0 %10920
  %10922 = vrot.lane.b32.xlu0 %v10873, 126
  %v10923 = vpop.permute.xlu0 %10922
  %10924 = vrot.lane.b32.xlu0 %v10874, 126
  %v10925 = vpop.permute.xlu0 %10924
  %10926 = vrot.lane.b32.xlu0 %v10875, 126
  %v10927 = vpop.permute.xlu0 %10926
  %10928 = vrot.lane.b32.xlu0 %v10876, 126
  %v10929 = vpop.permute.xlu0 %10928
  %10930 = vrot.lane.b32.xlu0 %v10877, 126
  %v10931 = vpop.permute.xlu0 %10930
  %10932 = vrot.lane.b32.xlu0 %v10878, 126
  %v10933 = vpop.permute.xlu0 %10932
  %10934 = vrot.lane.b32.xlu0 %v10879, 126
  %v10935 = vpop.permute.xlu0 %10934
  %v10944 = vmax.f32 %v10912, %v10921
  %v10945 = vmax.f32 %v10913, %v10923
  %v10946 = vmax.f32 %v10914, %v10925
  %v10947 = vmax.f32 %v10915, %v10927
  %v10948 = vmax.f32 %v10916, %v10929
  %v10949 = vmax.f32 %v10917, %v10931
  %v10950 = vmax.f32 %v10918, %v10933
  %v10951 = vmax.f32 %v10919, %v10935
  %v10952 = vld [vmem:[%s9] sm:$0xff]
  %v10953 = vld [vmem:[%s9 + $0x8] sm:$0xff]
  %v10954 = vld [vmem:[%s9 + $0x10] sm:$0xff]
  %v10955 = vld [vmem:[%s9 + $0x18] sm:$0xff]
  %v10956 = vld [vmem:[%s9 + $0x20] sm:$0xff]
  %v10957 = vld [vmem:[%s9 + $0x28] sm:$0xff]
  %v10958 = vld [vmem:[%s9 + $0x30] sm:$0x3]
  %v10960 = vsel %vm1284, %v10944, 0
  %v10963 = vsel %vm1284, %v10945, 0
  %v10966 = vsel %vm1284, %v10946, 0
  %v10969 = vsel %vm1284, %v10947, 0
  %v10972 = vsel %vm1284, %v10948, 0
  %v10975 = vsel %vm1284, %v10949, 0
  %v10978 = vsel %vm1284, %v10950, 0
  %v10981 = vsel %vm1284, %v10951, 0
  %v10984 = vsel %vm894, %v10958, 0
  %10986 = vmatprep.subr.mxu0 0.0
  %10987 = vmatpush1.msra.mxu0 0.0
  %10988 = vmatprep.subr.mxu0 0.0
  %10989 = vmatpush1.msra.mxu0 0.0
  %10990 = vmatprep.subr.mxu0 0.0
  %10991 = vmatpush1.msra.mxu0 0.0
  %10992 = vmatprep.subr.mxu0 0.0
  %10993 = vmatpush1.msra.mxu0 0.0
  %10994 = vmatprep.subr.mxu0 0.0
  %10995 = vmatpush1.msra.mxu0 0.0
  %10996 = vmatprep.subr.mxu0 0.0
  %10997 = vmatpush1.msra.mxu0 0.0
  %10998 = vmatprep.subr.mxu0 0.0
  %10999 = vmatpush1.msra.mxu0 0.0
  %11000 = vmatprep.subr.mxu0 0.0
  %11001 = vmatpush1.msra.mxu0 0.0
  %11002 = vmatprep.subr.mxu0 0.0
  %11003 = vmatpush1.msra.mxu0 0.0
  %11004 = vmatprep.subr.mxu0 0.0
  %11005 = vmatpush1.msra.mxu0 %v10984
  %11006 = vmatprep.subr.mxu0 0.0
  %11007 = vmatpush1.msra.mxu0 %v10957
  %11008 = vmatprep.subr.mxu0 0.0
  %11009 = vmatpush1.msra.mxu0 %v10956
  %11010 = vmatprep.subr.mxu0 0.0
  %11011 = vmatpush1.msra.mxu0 %v10955
  %11012 = vmatprep.subr.mxu0 0.0
  %11013 = vmatpush1.msra.mxu0 %v10954
  %11014 = vmatprep.subr.mxu0 0.0
  %11015 = vmatpush1.msra.mxu0 %v10953
  %11016 = vmatprep.subr.mxu0 0.0
  %11017 = vmatpush1.msra.mxu0 %v10952
  %11018 = vmatprep.subr.mxu0 0.0
  %11019 = vmatpush2.msra.mxu0 0.0
  %11020 = vmatprep.subr.mxu0 0.0
  %11021 = vmatpush2.msra.mxu0 0.0
  %11022 = vmatprep.subr.mxu0 0.0
  %11023 = vmatpush2.msra.mxu0 0.0
  %11024 = vmatprep.subr.mxu0 0.0
  %11025 = vmatpush2.msra.mxu0 0.0
  %11026 = vmatprep.subr.mxu0 0.0
  %11027 = vmatpush2.msra.mxu0 0.0
  %11028 = vmatprep.subr.mxu0 0.0
  %11029 = vmatpush2.msra.mxu0 0.0
  %11030 = vmatprep.subr.mxu0 0.0
  %11031 = vmatpush2.msra.mxu0 0.0
  %11032 = vmatprep.subr.mxu0 0.0
  %11033 = vmatpush2.msra.mxu0 0.0
  %11034 = vmatprep.subr.mxu0 0.0
  %11035 = vmatpush2.msra.mxu0 0.0
  %11036 = vmatprep.subr.mxu0 0.0
  %11037 = vmatpush2.msra.mxu0 0.0
  %11038 = vmatprep.subr.mxu0 0.0
  %11039 = vmatpush2.msra.mxu0 0.0
  %11040 = vmatprep.subr.mxu0 0.0
  %11041 = vmatpush2.msra.mxu0 0.0
  %11042 = vmatprep.subr.mxu0 0.0
  %11043 = vmatpush2.msra.mxu0 0.0
  %11044 = vmatprep.subr.mxu0 0.0
  %11045 = vmatpush2.msra.mxu0 0.0
  %11046 = vmatprep.subr.mxu0 0.0
  %11047 = vmatpush2.msra.mxu0 0.0
  %11048 = vmatprep.subr.mxu0 0.0
  %11049 = vmatpush2.msra.mxu0 0.0
  %11050 = vmatprep.mubr.f32.mxu0 0.0
  %11051 = vmatmul.mubr.f32.gmra.mxu0 %v10960
  %v11052 = vpop.f32.mrf.mxu0
  %v11053 = vadd.f32 0.0, %v11052
  %v11054 = vpop.f32.mrf.mxu0
  %11055 = vmatprep.mubr.f32.mxu0 0.0
  %11056 = vmatmul.mubr.f32.gmra.mxu0 %v10963
  %v11057 = vpop.f32.mrf.mxu0
  %v11058 = vadd.f32 0.0, %v11057
  %v11059 = vpop.f32.mrf.mxu0
  %11060 = vmatprep.mubr.f32.mxu0 0.0
  %11061 = vmatmul.mubr.f32.gmra.mxu0 %v10966
  %v11062 = vpop.f32.mrf.mxu0
  %v11063 = vadd.f32 0.0, %v11062
  %v11064 = vpop.f32.mrf.mxu0
  %11065 = vmatprep.mubr.f32.mxu0 0.0
  %11066 = vmatmul.mubr.f32.gmra.mxu0 %v10969
  %v11067 = vpop.f32.mrf.mxu0
  %v11068 = vadd.f32 0.0, %v11067
  %v11069 = vpop.f32.mrf.mxu0
  %11070 = vmatprep.mubr.f32.mxu0 0.0
  %11071 = vmatmul.mubr.f32.gmra.mxu0 %v10972
  %v11072 = vpop.f32.mrf.mxu0
  %v11073 = vadd.f32 0.0, %v11072
  %v11074 = vpop.f32.mrf.mxu0
  %11075 = vmatprep.mubr.f32.mxu0 0.0
  %11076 = vmatmul.mubr.f32.gmra.mxu0 %v10975
  %v11077 = vpop.f32.mrf.mxu0
  %v11078 = vadd.f32 0.0, %v11077
  %v11079 = vpop.f32.mrf.mxu0
  %11080 = vmatprep.mubr.f32.mxu0 0.0
  %11081 = vmatmul.mubr.f32.gmra.mxu0 %v10978
  %v11082 = vpop.f32.mrf.mxu0
  %v11083 = vadd.f32 0.0, %v11082
  %v11084 = vpop.f32.mrf.mxu0
  %11085 = vmatprep.mubr.f32.mxu0 0.0
  %11086 = vmatmul.mubr.f32.gmra.mxu0 %v10981
  %v11087 = vpop.f32.mrf.mxu0
  %v11088 = vadd.f32 0.0, %v11087
  %v11089 = vpop.f32.mrf.mxu0
  %11090 = vdwg.mxu0
  %s11091 = scalar_lea.vmem %s10, 448
  %11092 = vst.msk [vmem:[%s11091] sm:$0xff] %vm1417, %v11053
  %11093 = vst.msk [vmem:[%s11091 + $0x8] sm:$0xff] %vm1417, %v11058
  %11094 = vst.msk [vmem:[%s11091 + $0x10] sm:$0xff] %vm1417, %v11063
  %11095 = vst.msk [vmem:[%s11091 + $0x18] sm:$0xff] %vm1417, %v11068
  %11096 = vst.msk [vmem:[%s11091 + $0x20] sm:$0xff] %vm1417, %v11073
  %11097 = vst.msk [vmem:[%s11091 + $0x28] sm:$0xff] %vm1417, %v11078
  %11098 = vst.msk [vmem:[%s11091 + $0x30] sm:$0xff] %vm1417, %v11083
  %11099 = vst.msk [vmem:[%s11091 + $0x38] sm:$0xff] %vm1417, %v11088
  // Predicated region
  $region42: #{onedcnn_forward.2} parent=0 // pred_check
    _
  $region43: #{onedcnn_forward.2} parent=0 // pred_check_branch
    %11101 = sbr.rel (0) target = $region45
  $region44: #{onedcnn_forward.2} parent=0 // pred_region
    _
  $region45: #{onedcnn_forward.2} parent=0 // pred_fallthru
    _
  // Predicated region
  $region46: #{onedcnn_forward.2} parent=0 // pred_check
    _
  $region47: #{onedcnn_forward.2} parent=0 // pred_check_branch
    %11103 = sbr.rel (0) target = $region49
  $region48: #{onedcnn_forward.2} parent=0 // pred_region
    _
  $region49: #{onedcnn_forward.2} parent=0 // pred_fallthru
    _

</llo_original>
